<compile_context>
chip_gen: v5e
topology: v5e:2x2
jax: 0.10.0
libtpu: 0.0.40
codegen_flags: <defaults>
</compile_context>

<pallas_src>
import functools
import math

import jax
import jax.numpy as jnp
from jax.experimental import pallas as pl
from jax.experimental.pallas import tpu as pltpu

# ----------------------------- config ---------------------------------------
IMG, PATCH, IN_CH = 32, 8, 3
V_EMBED, V_DEPTH, V_HEADS, V_MLP = 64, 2, 4, 4
VOCAB, MAX_POS, T_HID, T_LAYERS, T_HEADS, T_INTER = 100, 16, 64, 2, 4, 256
SEQ_LEN, BATCH = 8, 2

_SQRT_HALF = 1.0 / math.sqrt(2.0)


# ----------------------------- in-kernel math helpers ------------------------
def _gelu_exact(x):
    # exact (erf) GELU, matching torch.nn.GELU / HF BertIntermediate
    return 0.5 * x * (1.0 + jax.lax.erf(x * _SQRT_HALF))


def _ln(x, g, b, eps):
    # LayerNorm over last dim, biased variance (torch convention), f32 math
    mu = jnp.mean(x, axis=-1, keepdims=True)
    var = jnp.mean((x - mu) ** 2, axis=-1, keepdims=True)
    return (x - mu) * jax.lax.rsqrt(var + eps) * g + b


def _qkT(q, k):
    # (Sq, Dh) x (Sk, Dh) -> (Sq, Sk) without materializing k^T
    return jax.lax.dot_general(q, k, (((1,), (1,)), ((), ())),
                               preferred_element_type=jnp.float32)


def _softmax(s):
    s = s - jnp.max(s, axis=-1, keepdims=True)
    p = jnp.exp(s)
    return p / jnp.sum(p, axis=-1, keepdims=True)


# ----------------------------- fused ViT block kernel ------------------------
def _vit_block_kernel(x_ref, ln1_g, ln1_b, qkv_w, qkv_b, proj_w, proj_b,
                      ln2_g, ln2_b, fc1_w, fc1_b, fc2_w, fc2_b, o_ref,
                      *, nh, eps):
    x = x_ref[...].astype(jnp.float32)                    # (S, E)
    S, E = x.shape
    dh = E // nh
    scale = dh ** -0.5

    # LN1 -> fused QKV projection
    h = _ln(x, ln1_g[...], ln1_b[...], eps)
    qkv = jnp.dot(h, qkv_w[...], preferred_element_type=jnp.float32) + qkv_b[...]

    # multi-head attention, heads unrolled; output proj folded per-head
    pw = proj_w[...]
    ctx = jnp.zeros((S, E), jnp.float32)
    for hh in range(nh):
        q = qkv[:, hh * dh:(hh + 1) * dh]
        k = qkv[:, E + hh * dh:E + (hh + 1) * dh]
        v = qkv[:, 2 * E + hh * dh:2 * E + (hh + 1) * dh]
        p = _softmax(_qkT(q, k) * scale)                  # no mask: ViT is unmasked
        o_h = jnp.dot(p, v, preferred_element_type=jnp.float32)
        ctx = ctx + jnp.dot(o_h, pw[hh * dh:(hh + 1) * dh, :],
                            preferred_element_type=jnp.float32)
    x = x + ctx + proj_b[...]                             # residual

    # LN2 -> MLP (GELU) -> residual
    h = _ln(x, ln2_g[...], ln2_b[...], eps)
    h = jnp.dot(h, fc1_w[...], preferred_element_type=jnp.float32) + fc1_b[...]
    h = _gelu_exact(h)
    h = jnp.dot(h, fc2_w[...], preferred_element_type=jnp.float32) + fc2_b[...]
    o_ref[...] = (x + h).astype(o_ref.dtype)


def _bcast_spec(shape):
    nd = len(shape)
    return pl.BlockSpec(shape, lambda b, _nd=nd: (0,) * _nd)


def vit_block(x, blk):
    B, S, E = x.shape
    w_args = (
        blk["ln1_g"].reshape(1, E), blk["ln1_b"].reshape(1, E),
        blk["qkv_w"], blk["qkv_b"].reshape(1, 3 * E),
        blk["proj_w"], blk["proj_b"].reshape(1, E),
        blk["ln2_g"].reshape(1, E), blk["ln2_b"].reshape(1, E),
        blk["fc1_w"], blk["fc1_b"].reshape(1, V_MLP * E),
        blk["fc2_w"], blk["fc2_b"].reshape(1, E),
    )
    kern = functools.partial(_vit_block_kernel, nh=V_HEADS, eps=1e-6)
    return pl.pallas_call(
        kern,
        out_shape=jax.ShapeDtypeStruct((B, S, E), x.dtype),
        grid=(B,),
        in_specs=[pl.BlockSpec((None, S, E), lambda b: (b, 0, 0))]
                 + [_bcast_spec(a.shape) for a in w_args],
        out_specs=pl.BlockSpec((None, S, E), lambda b: (b, 0, 0)),
        compiler_params=pltpu.CompilerParams(dimension_semantics=("parallel",)),
    )(x, *w_args)


# ----------------------------- fused BERT layer kernel -----------------------
def _bert_layer_kernel(x_ref, enc_ref, mask_ref,
                       sq_w, sq_b, sk_w, sk_b, sv_w, sv_b, so_w, so_b, sln_g, sln_b,
                       cq_w, cq_b, ck_w, ck_b, cv_w, cv_b, co_w, co_b, cln_g, cln_b,
                       f1_w, f1_b, f2_w, f2_b, fln_g, fln_b,
                       o_ref, *, nh, eps):
    x = x_ref[...].astype(jnp.float32)                    # (S, H)
    enc = enc_ref[...].astype(jnp.float32)                # (Se, H)
    H = x.shape[1]
    dh = H // nh
    scale = dh ** -0.5
    # additive self-attention mask from the raw (1, S) text mask
    add_mask = (1.0 - mask_ref[...].astype(jnp.float32)) * -1e4   # (1, S)

    def mha(xq, xkv, mask_add, qw, qb, kw, kb, vw, vb, ow, ob):
        q = jnp.dot(xq, qw[...], preferred_element_type=jnp.float32) + qb[...]
        k = jnp.dot(xkv, kw[...], preferred_element_type=jnp.float32) + kb[...]
        v = jnp.dot(xkv, vw[...], preferred_element_type=jnp.float32) + vb[...]
        ow_v = ow[...]
        ctx = jnp.zeros((xq.shape[0], H), jnp.float32)
        for hh in range(nh):
            qh = q[:, hh * dh:(hh + 1) * dh]
            kh = k[:, hh * dh:(hh + 1) * dh]
            vh = v[:, hh * dh:(hh + 1) * dh]
            s = _qkT(qh, kh) * scale
            if mask_add is not None:
                s = s + mask_add                           # (1,Sk) broadcast over rows
            p = _softmax(s)
            o_h = jnp.dot(p, vh, preferred_element_type=jnp.float32)
            ctx = ctx + jnp.dot(o_h, ow_v[hh * dh:(hh + 1) * dh, :],
                                preferred_element_type=jnp.float32)
        return ctx + ob[...]

    # self-attention + add & norm
    ctx = mha(x, x, add_mask, sq_w, sq_b, sk_w, sk_b, sv_w, sv_b, so_w, so_b)
    x = _ln(x + ctx, sln_g[...], sln_b[...], eps)
    # cross-attention to image embeds; image_atts is all-ones -> additive mask == 0,
    # folded statically (no mask load, no wasted VPU add)
    ctx = mha(x, enc, None, cq_w, cq_b, ck_w, ck_b, cv_w, cv_b, co_w, co_b)
    x = _ln(x + ctx, cln_g[...], cln_b[...], eps)
    # FFN + add & norm
    h = jnp.dot(x, f1_w[...], preferred_element_type=jnp.float32) + f1_b[...]
    h = _gelu_exact(h)
    h = jnp.dot(h, f2_w[...], preferred_element_type=jnp.float32) + f2_b[...]
    x = _ln(x + h, fln_g[...], fln_b[...], eps)
    o_ref[...] = x.astype(o_ref.dtype)


def bert_layer(x, enc_hidden, mask, lyr):
    B, S, H = x.shape
    Se = enc_hidden.shape[1]
    s, c = lyr["self"], lyr["cross"]
    w_args = (
        s["q_w"], s["q_b"].reshape(1, H), s["k_w"], s["k_b"].reshape(1, H),
        s["v_w"], s["v_b"].reshape(1, H), s["o_w"], s["o_b"].reshape(1, H),
        s["ln_g"].reshape(1, H), s["ln_b"].reshape(1, H),
        c["q_w"], c["q_b"].reshape(1, H), c["k_w"], c["k_b"].reshape(1, H),
        c["v_w"], c["v_b"].reshape(1, H), c["o_w"], c["o_b"].reshape(1, H),
        c["ln_g"].reshape(1, H), c["ln_b"].reshape(1, H),
        lyr["ffn_w1"], lyr["ffn_b1"].reshape(1, T_INTER),
        lyr["ffn_w2"], lyr["ffn_b2"].reshape(1, H),
        lyr["ffn_ln_g"].reshape(1, H), lyr["ffn_ln_b"].reshape(1, H),
    )
    kern = functools.partial(_bert_layer_kernel, nh=T_HEADS, eps=1e-12)
    return pl.pallas_call(
        kern,
        out_shape=jax.ShapeDtypeStruct((B, S, H), x.dtype),
        grid=(B,),
        in_specs=[pl.BlockSpec((None, S, H), lambda b: (b, 0, 0)),
                  pl.BlockSpec((None, Se, H), lambda b: (b, 0, 0)),
                  pl.BlockSpec((None, 1, S), lambda b: (b, 0, 0))]
                 + [_bcast_spec(a.shape) for a in w_args],
        out_specs=pl.BlockSpec((None, S, H), lambda b: (b, 0, 0)),
        compiler_params=pltpu.CompilerParams(dimension_semantics=("parallel",)),
    )(x, enc_hidden, mask, *w_args)


# ----------------------------- small standalone kernels ----------------------
def _linear_kernel(x_ref, w_ref, b_ref, o_ref):
    acc = jnp.dot(x_ref[...], w_ref[...], preferred_element_type=jnp.float32)
    o_ref[...] = (acc + b_ref[...]).astype(o_ref.dtype)


def pallas_linear(x, w, b):
    """y = x @ w + b  (x: (M,K), w: (K,N), b: (N,)). Used for patch embed / itm head."""
    M, K = x.shape
    N = w.shape[1]
    return pl.pallas_call(
        _linear_kernel,
        out_shape=jax.ShapeDtypeStruct((M, N), x.dtype),
        grid=(1,),
        in_specs=[
            pl.BlockSpec((M, K), lambda i: (0, 0)),
            pl.BlockSpec((K, N), lambda i: (0, 0)),
            pl.BlockSpec((1, N), lambda i: (0, 0)),
        ],
        out_specs=pl.BlockSpec((M, N), lambda i: (0, 0)),
    )(x, w, b.reshape(1, N))


def _ln_kernel(x_ref, g_ref, b_ref, o_ref, *, eps):
    x = x_ref[...].astype(jnp.float32)
    o_ref[...] = _ln(x, g_ref[...], b_ref[...], eps).astype(o_ref.dtype)


def pallas_layernorm(x, gamma, beta, eps):
    """LayerNorm over last dim. x: (M, H). Used for final ViT LN / BERT embedding LN."""
    M, H = x.shape
    kern = functools.partial(_ln_kernel, eps=eps)
    return pl.pallas_call(
        kern,
        out_shape=jax.ShapeDtypeStruct((M, H), x.dtype),
        grid=(1,),
        in_specs=[
            pl.BlockSpec((M, H), lambda i: (0, 0)),
            pl.BlockSpec((1, H), lambda i: (0, 0)),
            pl.BlockSpec((1, H), lambda i: (0, 0)),
        ],
        out_specs=pl.BlockSpec((M, H), lambda i: (0, 0)),
    )(x, gamma.reshape(1, H), beta.reshape(1, H))


# ----------------------------- parameter init -------------------------------
def init_params(key):
    keys = iter(jax.random.split(key, 512))

    def nrm(shape):
        return jax.random.normal(next(keys), shape, jnp.float32) * 0.02

    p = {}
    # Vision encoder (timm-style ViT)
    p["patch_w"] = nrm((IN_CH * PATCH * PATCH, V_EMBED))
    p["patch_b"] = jnp.zeros((V_EMBED,), jnp.float32)
    p["cls_token"] = nrm((1, 1, V_EMBED))
    n_tok = (IMG // PATCH) ** 2 + 1
    p["pos_embed"] = nrm((1, n_tok, V_EMBED))
    p["v_blocks"] = []
    for _ in range(V_DEPTH):
        p["v_blocks"].append({
            "ln1_g": jnp.ones((V_EMBED,)), "ln1_b": jnp.zeros((V_EMBED,)),
            "qkv_w": nrm((V_EMBED, 3 * V_EMBED)), "qkv_b": jnp.zeros((3 * V_EMBED,)),
            "proj_w": nrm((V_EMBED, V_EMBED)), "proj_b": jnp.zeros((V_EMBED,)),
            "ln2_g": jnp.ones((V_EMBED,)), "ln2_b": jnp.zeros((V_EMBED,)),
            "fc1_w": nrm((V_EMBED, V_MLP * V_EMBED)), "fc1_b": jnp.zeros((V_MLP * V_EMBED,)),
            "fc2_w": nrm((V_MLP * V_EMBED, V_EMBED)), "fc2_b": jnp.zeros((V_EMBED,)),
        })
    p["v_ln_g"] = jnp.ones((V_EMBED,))
    p["v_ln_b"] = jnp.zeros((V_EMBED,))

    # Text encoder (BERT with cross-attention to image embeds)
    p["word_emb"] = nrm((VOCAB, T_HID))
    p["pos_emb"] = nrm((MAX_POS, T_HID))
    p["type_emb"] = nrm((2, T_HID))
    p["emb_ln_g"] = jnp.ones((T_HID,))
    p["emb_ln_b"] = jnp.zeros((T_HID,))

    def attn_prm():
        return {
            "q_w": nrm((T_HID, T_HID)), "q_b": jnp.zeros((T_HID,)),
            "k_w": nrm((T_HID, T_HID)), "k_b": jnp.zeros((T_HID,)),
            "v_w": nrm((T_HID, T_HID)), "v_b": jnp.zeros((T_HID,)),
            "o_w": nrm((T_HID, T_HID)), "o_b": jnp.zeros((T_HID,)),
            "ln_g": jnp.ones((T_HID,)), "ln_b": jnp.zeros((T_HID,)),
        }

    p["t_layers"] = []
    for _ in range(T_LAYERS):
        p["t_layers"].append({
            "self": attn_prm(),
            "cross": attn_prm(),
            "ffn_w1": nrm((T_HID, T_INTER)), "ffn_b1": jnp.zeros((T_INTER,)),
            "ffn_w2": nrm((T_INTER, T_HID)), "ffn_b2": jnp.zeros((T_HID,)),
            "ffn_ln_g": jnp.ones((T_HID,)), "ffn_ln_b": jnp.zeros((T_HID,)),
        })

    p["itm_w"] = nrm((T_HID, 2))
    p["itm_b"] = jnp.zeros((2,), jnp.float32)
    return p


# ----------------------------- model forward --------------------------------
def vit_forward(image, p):
    """image: (B, C, H, W) NCHW -> (B, N+1, V_EMBED)."""
    B = image.shape[0]
    n = IMG // PATCH
    # Conv2d(kernel=stride=PATCH) == per-patch matmul with (C,P,P)-ordered flatten.
    patches = image.reshape(B, IN_CH, n, PATCH, n, PATCH)
    patches = patches.transpose(0, 2, 4, 1, 3, 5).reshape(B * n * n, IN_CH * PATCH * PATCH)
    x = pallas_linear(patches, p["patch_w"], p["patch_b"]).reshape(B, n * n, V_EMBED)
    cls = jnp.broadcast_to(p["cls_token"], (B, 1, V_EMBED))
    x = jnp.concatenate([cls, x], axis=1) + p["pos_embed"]
    for blk in p["v_blocks"]:
        x = vit_block(x, blk)                             # one fused kernel per block
    B_, S, E = x.shape
    x = pallas_layernorm(x.reshape(B_ * S, E), p["v_ln_g"], p["v_ln_b"], 1e-6)
    return x.reshape(B_, S, E)


def bert_forward(input_ids, attention_mask, enc_hidden, p):
    B, S = input_ids.shape
    # embedding-table gather + position/type add stays in plain JAX (glue)
    emb = (p["word_emb"][input_ids]
           + p["pos_emb"][:S][None, :, :]
           + p["type_emb"][0][None, None, :])
    x = pallas_layernorm(emb.reshape(B * S, T_HID), p["emb_ln_g"], p["emb_ln_b"],
                         1e-12).reshape(B, S, T_HID)
    mask = attention_mask.astype(jnp.float32).reshape(B, 1, S)   # raw mask, no broadcast
    for lyr in p["t_layers"]:
        x = bert_layer(x, enc_hidden, mask, lyr)          # one fused kernel per layer
    return x


def vl_transformer_itm(image, input_ids, attention_mask, params):
    image_embeds = vit_forward(image, params)                     # (B, N+1, 64)
    # image_atts = ones(...) in the reference module => cross-attn additive mask is 0;
    # it is folded statically into the fused BERT layer kernel (no mask tensor built).
    last_hidden = bert_forward(input_ids, attention_mask, image_embeds, params)
    vl_embeddings = last_hidden[:, 0, :]                          # CLS token
    return pallas_linear(vl_embeddings, params["itm_w"], params["itm_b"])  # (B, 2)


# TODO(synk): dropout layers are eval-mode identities; pretrained-checkpoint
# loading (BertModel.from_pretrained / deit weights) replaced by deterministic init.

# ----------------------------- main ------------------------------------------
if __name__ == "__main__":
    key = jax.random.PRNGKey(0)
    kp, ki, kt = jax.random.split(key, 3)
    params = init_params(kp)

    image = jax.random.normal(ki, (BATCH, IN_CH, IMG, IMG), jnp.float32)   # NCHW
    input_ids = jax.random.randint(kt, (BATCH, SEQ_LEN), 0, VOCAB, dtype=jnp.int32)
    attention_mask = jnp.ones((BATCH, SEQ_LEN), jnp.int32)

    fwd = jax.jit(vl_transformer_itm)
    out = fwd(image, input_ids, attention_mask, params)
    out = jax.block_until_ready(out)
    assert out.shape == (BATCH, 2) and out.dtype == jnp.float32
    print("KERNEL_OK")
</pallas_src>

<mosaic_0001>
module attributes {stable_mosaic.version = 11 : i64} {
  func.func @_ln_kernel(%arg0: i32, %arg1: memref<34x64xf32, #tpu.memory_space<vmem>>, %arg2: memref<1x64xf32, #tpu.memory_space<vmem>>, %arg3: memref<1x64xf32, #tpu.memory_space<vmem>>, %arg4: memref<34x64xf32, #tpu.memory_space<vmem>>) attributes {dimension_semantics = [#tpu.dimension_semantics<arbitrary>], iteration_bounds = array<i64: 1>, scalar_prefetch = 0 : i64, scratch_operands = 0 : i64, tpu.core_type = #tpu.core_type<tc>, window_params = [{pipeline_mode = #tpu.pipeline_mode<synchronous>, transform_indices = @transform_0, window_bounds = array<i64: 34, 64>}, {pipeline_mode = #tpu.pipeline_mode<synchronous>, transform_indices = @transform_1, window_bounds = array<i64: 1, 64>}, {pipeline_mode = #tpu.pipeline_mode<synchronous>, transform_indices = @transform_2, window_bounds = array<i64: 1, 64>}, {pipeline_mode = #tpu.pipeline_mode<synchronous>, transform_indices = @transform_3, window_bounds = array<i64: 34, 64>}]} {
    %c0 = arith.constant 0 : index
    %c0_0 = arith.constant 0 : index
    %0 = vector.load %arg1[%c0, %c0_0] : memref<34x64xf32, #tpu.memory_space<vmem>>, vector<34x64xf32>
    %c0_1 = arith.constant 0 : index
    %c0_2 = arith.constant 0 : index
    %1 = vector.load %arg2[%c0_1, %c0_2] : memref<1x64xf32, #tpu.memory_space<vmem>>, vector<1x64xf32>
    %c0_3 = arith.constant 0 : index
    %c0_4 = arith.constant 0 : index
    %2 = vector.load %arg3[%c0_3, %c0_4] : memref<1x64xf32, #tpu.memory_space<vmem>>, vector<1x64xf32>
    %cst = arith.constant dense<0.000000e+00> : vector<34xf32>
    %3 = vector.multi_reduction <add>, %0, %cst [1] : vector<34x64xf32> to vector<34xf32>
    %4 = vector.shape_cast %3 : vector<34xf32> to vector<34x1xf32>
    %cst_5 = arith.constant 6.400000e+01 : f32
    %5 = vector.broadcast %cst_5 : f32 to vector<34x1xf32>
    %6 = arith.divf %4, %5 : vector<34x1xf32>
    %7 = vector.broadcast %6 : vector<34x1xf32> to vector<34x64xf32>
    %8 = arith.subf %0, %7 : vector<34x64xf32>
    %9 = arith.mulf %8, %8 : vector<34x64xf32>
    %cst_6 = arith.constant dense<0.000000e+00> : vector<34xf32>
    %10 = vector.multi_reduction <add>, %9, %cst_6 [1] : vector<34x64xf32> to vector<34xf32>
    %11 = vector.shape_cast %10 : vector<34xf32> to vector<34x1xf32>
    %cst_7 = arith.constant 6.400000e+01 : f32
    %12 = vector.broadcast %cst_7 : f32 to vector<34x1xf32>
    %13 = arith.divf %11, %12 : vector<34x1xf32>
    %14 = vector.broadcast %6 : vector<34x1xf32> to vector<34x64xf32>
    %15 = arith.subf %0, %14 : vector<34x64xf32>
    %cst_8 = arith.constant 9.99999997E-7 : f32
    %16 = vector.broadcast %cst_8 : f32 to vector<34x1xf32>
    %17 = arith.addf %13, %16 : vector<34x1xf32>
    %18 = math.rsqrt %17 : vector<34x1xf32>
    %19 = vector.broadcast %18 : vector<34x1xf32> to vector<34x64xf32>
    %20 = arith.mulf %15, %19 : vector<34x64xf32>
    %21 = vector.broadcast %1 : vector<1x64xf32> to vector<34x64xf32>
    %22 = arith.mulf %20, %21 : vector<34x64xf32>
    %23 = vector.broadcast %2 : vector<1x64xf32> to vector<34x64xf32>
    %24 = arith.addf %22, %23 : vector<34x64xf32>
    %c0_9 = arith.constant 0 : index
    %c0_10 = arith.constant 0 : index
    %25 = vector.load %arg4[%c0_9, %c0_10] : memref<34x64xf32, #tpu.memory_space<vmem>>, vector<34x64xf32>
    tpu.vector_store %arg4[%c0_9, %c0_10], %24 {strides = array<i32>} : memref<34x64xf32, #tpu.memory_space<vmem>>, vector<34x64xf32>,
    return
  }
  func.func @transform_0(%arg0: i32) -> (i32, i32) {
    %c0_i32 = arith.constant 0 : i32
    %c0_i32_0 = arith.constant 0 : i32
    %c0_i32_1 = arith.constant 0 : i32
    return %c0_i32, %c0_i32_0 : i32, i32
  }
  func.func @transform_1(%arg0: i32) -> (i32, i32) {
    %c0_i32 = arith.constant 0 : i32
    %c0_i32_0 = arith.constant 0 : i32
    %c0_i32_1 = arith.constant 0 : i32
    return %c0_i32, %c0_i32_0 : i32, i32
  }
  func.func @transform_2(%arg0: i32) -> (i32, i32) {
    %c0_i32 = arith.constant 0 : i32
    %c0_i32_0 = arith.constant 0 : i32
    %c0_i32_1 = arith.constant 0 : i32
    return %c0_i32, %c0_i32_0 : i32, i32
  }
  func.func @transform_3(%arg0: i32) -> (i32, i32) {
    %c0_i32 = arith.constant 0 : i32
    %c0_i32_0 = arith.constant 0 : i32
    %c0_i32_1 = arith.constant 0 : i32
    return %c0_i32, %c0_i32_0 : i32, i32
  }
}

module attributes {stable_mosaic.version = 11 : i64} {
  func.func @_linear_kernel(%arg0: i32, %arg1: memref<32x192xf32, #tpu.memory_space<vmem>>, %arg2: memref<192x64xf32, #tpu.memory_space<vmem>>, %arg3: memref<1x64xf32, #tpu.memory_space<vmem>>, %arg4: memref<32x64xf32, #tpu.memory_space<vmem>>) attributes {dimension_semantics = [#tpu.dimension_semantics<arbitrary>], iteration_bounds = array<i64: 1>, scalar_prefetch = 0 : i64, scratch_operands = 0 : i64, tpu.core_type = #tpu.core_type<tc>, window_params = [{pipeline_mode = #tpu.pipeline_mode<synchronous>, transform_indices = @transform_0, window_bounds = array<i64: 32, 192>}, {pipeline_mode = #tpu.pipeline_mode<synchronous>, transform_indices = @transform_1, window_bounds = array<i64: 192, 64>}, {pipeline_mode = #tpu.pipeline_mode<synchronous>, transform_indices = @transform_2, window_bounds = array<i64: 1, 64>}, {pipeline_mode = #tpu.pipeline_mode<synchronous>, transform_indices = @transform_3, window_bounds = array<i64: 32, 64>}]} {
    %c0 = arith.constant 0 : index
    %c0_0 = arith.constant 0 : index
    %0 = vector.load %arg1[%c0, %c0_0] : memref<32x192xf32, #tpu.memory_space<vmem>>, vector<32x192xf32>
    %c0_1 = arith.constant 0 : index
    %c0_2 = arith.constant 0 : index
    %1 = vector.load %arg2[%c0_1, %c0_2] : memref<192x64xf32, #tpu.memory_space<vmem>>, vector<192x64xf32>
    %cst = arith.constant dense<0.000000e+00> : vector<32x64xf32>
    %2 = tpu.matmul %0, %1, %cst {dimension_numbers = #tpu.dot_dimension_numbers<[1], [0], [0], [1], [0, 0, 1, 1], [], []>} : vector<32x192xf32>, vector<192x64xf32>, vector<32x64xf32> -> vector<32x64xf32>
    %c0_3 = arith.constant 0 : index
    %c0_4 = arith.constant 0 : index
    %3 = vector.load %arg3[%c0_3, %c0_4] : memref<1x64xf32, #tpu.memory_space<vmem>>, vector<1x64xf32>
    %4 = vector.broadcast %3 : vector<1x64xf32> to vector<32x64xf32>
    %5 = arith.addf %2, %4 : vector<32x64xf32>
    %c0_5 = arith.constant 0 : index
    %c0_6 = arith.constant 0 : index
    %6 = vector.load %arg4[%c0_5, %c0_6] : memref<32x64xf32, #tpu.memory_space<vmem>>, vector<32x64xf32>
    tpu.vector_store %arg4[%c0_5, %c0_6], %5 {strides = array<i32>} : memref<32x64xf32, #tpu.memory_space<vmem>>, vector<32x64xf32>,
    return
  }
  func.func @transform_0(%arg0: i32) -> (i32, i32) {
    %c0_i32 = arith.constant 0 : i32
    %c0_i32_0 = arith.constant 0 : i32
    %c0_i32_1 = arith.constant 0 : i32
    return %c0_i32, %c0_i32_0 : i32, i32
  }
  func.func @transform_1(%arg0: i32) -> (i32, i32) {
    %c0_i32 = arith.constant 0 : i32
    %c0_i32_0 = arith.constant 0 : i32
    %c0_i32_1 = arith.constant 0 : i32
    return %c0_i32, %c0_i32_0 : i32, i32
  }
  func.func @transform_2(%arg0: i32) -> (i32, i32) {
    %c0_i32 = arith.constant 0 : i32
    %c0_i32_0 = arith.constant 0 : i32
    %c0_i32_1 = arith.constant 0 : i32
    return %c0_i32, %c0_i32_0 : i32, i32
  }
  func.func @transform_3(%arg0: i32) -> (i32, i32) {
    %c0_i32 = arith.constant 0 : i32
    %c0_i32_0 = arith.constant 0 : i32
    %c0_i32_1 = arith.constant 0 : i32
    return %c0_i32, %c0_i32_0 : i32, i32
  }
}

module attributes {stable_mosaic.version = 11 : i64} {
  func.func @_vit_block_kernel(%arg0: i32, %arg1: memref<1x17x64xf32, #tpu.memory_space<vmem>>, %arg2: memref<1x64xf32, #tpu.memory_space<vmem>>, %arg3: memref<1x64xf32, #tpu.memory_space<vmem>>, %arg4: memref<64x192xf32, #tpu.memory_space<vmem>>, %arg5: memref<1x192xf32, #tpu.memory_space<vmem>>, %arg6: memref<64x64xf32, #tpu.memory_space<vmem>>, %arg7: memref<1x64xf32, #tpu.memory_space<vmem>>, %arg8: memref<1x64xf32, #tpu.memory_space<vmem>>, %arg9: memref<1x64xf32, #tpu.memory_space<vmem>>, %arg10: memref<64x256xf32, #tpu.memory_space<vmem>>, %arg11: memref<1x256xf32, #tpu.memory_space<vmem>>, %arg12: memref<256x64xf32, #tpu.memory_space<vmem>>, %arg13: memref<1x64xf32, #tpu.memory_space<vmem>>, %arg14: memref<1x17x64xf32, #tpu.memory_space<vmem>>) attributes {dimension_semantics = [#tpu.dimension_semantics<parallel>], iteration_bounds = array<i64: 2>, scalar_prefetch = 0 : i64, scratch_operands = 0 : i64, tpu.core_type = #tpu.core_type<tc>, window_params = [{transform_indices = @transform_0, window_bounds = array<i64: 1, 17, 64>}, {pipeline_mode = #tpu.pipeline_mode<synchronous>, transform_indices = @transform_1, window_bounds = array<i64: 1, 64>}, {pipeline_mode = #tpu.pipeline_mode<synchronous>, transform_indices = @transform_2, window_bounds = array<i64: 1, 64>}, {pipeline_mode = #tpu.pipeline_mode<synchronous>, transform_indices = @transform_3, window_bounds = array<i64: 64, 192>}, {pipeline_mode = #tpu.pipeline_mode<synchronous>, transform_indices = @transform_4, window_bounds = array<i64: 1, 192>}, {pipeline_mode = #tpu.pipeline_mode<synchronous>, transform_indices = @transform_5, window_bounds = array<i64: 64, 64>}, {pipeline_mode = #tpu.pipeline_mode<synchronous>, transform_indices = @transform_6, window_bounds = array<i64: 1, 64>}, {pipeline_mode = #tpu.pipeline_mode<synchronous>, transform_indices = @transform_7, window_bounds = array<i64: 1, 64>}, {pipeline_mode = #tpu.pipeline_mode<synchronous>, transform_indices = @transform_8, window_bounds = array<i64: 1, 64>}, {pipeline_mode = #tpu.pipeline_mode<synchronous>, transform_indices = @transform_9, window_bounds = array<i64: 64, 256>}, {pipeline_mode = #tpu.pipeline_mode<synchronous>, transform_indices = @transform_10, window_bounds = array<i64: 1, 256>}, {pipeline_mode = #tpu.pipeline_mode<synchronous>, transform_indices = @transform_11, window_bounds = array<i64: 256, 64>}, {pipeline_mode = #tpu.pipeline_mode<synchronous>, transform_indices = @transform_12, window_bounds = array<i64: 1, 64>}, {transform_indices = @transform_13, window_bounds = array<i64: 1, 17, 64>}]} {
    %c0 = arith.constant 0 : index
    %c0_0 = arith.constant 0 : index
    %c0_1 = arith.constant 0 : index
    %0 = vector.load %arg1[%c0, %c0_0, %c0_1] : memref<1x17x64xf32, #tpu.memory_space<vmem>>, vector<1x17x64xf32>
    %1 = vector.shape_cast %0 : vector<1x17x64xf32> to vector<17x64xf32>
    %c0_2 = arith.constant 0 : index
    %c0_3 = arith.constant 0 : index
    %2 = vector.load %arg2[%c0_2, %c0_3] : memref<1x64xf32, #tpu.memory_space<vmem>>, vector<1x64xf32>
    %c0_4 = arith.constant 0 : index
    %c0_5 = arith.constant 0 : index
    %3 = vector.load %arg3[%c0_4, %c0_5] : memref<1x64xf32, #tpu.memory_space<vmem>>, vector<1x64xf32>
    %cst = arith.constant dense<0.000000e+00> : vector<17xf32>
    %4 = vector.multi_reduction <add>, %1, %cst [1] : vector<17x64xf32> to vector<17xf32>
    %5 = vector.shape_cast %4 : vector<17xf32> to vector<17x1xf32>
    %cst_6 = arith.constant 6.400000e+01 : f32
    %6 = vector.broadcast %cst_6 : f32 to vector<17x1xf32>
    %7 = arith.divf %5, %6 : vector<17x1xf32>
    %8 = vector.broadcast %7 : vector<17x1xf32> to vector<17x64xf32>
    %9 = arith.subf %1, %8 : vector<17x64xf32>
    %10 = arith.mulf %9, %9 : vector<17x64xf32>
    %cst_7 = arith.constant dense<0.000000e+00> : vector<17xf32>
    %11 = vector.multi_reduction <add>, %10, %cst_7 [1] : vector<17x64xf32> to vector<17xf32>
    %12 = vector.shape_cast %11 : vector<17xf32> to vector<17x1xf32>
    %cst_8 = arith.constant 6.400000e+01 : f32
    %13 = vector.broadcast %cst_8 : f32 to vector<17x1xf32>
    %14 = arith.divf %12, %13 : vector<17x1xf32>
    %15 = vector.broadcast %7 : vector<17x1xf32> to vector<17x64xf32>
    %16 = arith.subf %1, %15 : vector<17x64xf32>
    %cst_9 = arith.constant 9.99999997E-7 : f32
    %17 = vector.broadcast %cst_9 : f32 to vector<17x1xf32>
    %18 = arith.addf %14, %17 : vector<17x1xf32>
    %19 = math.rsqrt %18 : vector<17x1xf32>
    %20 = vector.broadcast %19 : vector<17x1xf32> to vector<17x64xf32>
    %21 = arith.mulf %16, %20 : vector<17x64xf32>
    %22 = vector.broadcast %2 : vector<1x64xf32> to vector<17x64xf32>
    %23 = arith.mulf %21, %22 : vector<17x64xf32>
    %24 = vector.broadcast %3 : vector<1x64xf32> to vector<17x64xf32>
    %25 = arith.addf %23, %24 : vector<17x64xf32>
    %c0_10 = arith.constant 0 : index
    %c0_11 = arith.constant 0 : index
    %26 = vector.load %arg4[%c0_10, %c0_11] : memref<64x192xf32, #tpu.memory_space<vmem>>, vector<64x192xf32>
    %cst_12 = arith.constant dense<0.000000e+00> : vector<17x192xf32>
    %27 = tpu.matmul %25, %26, %cst_12 {dimension_numbers = #tpu.dot_dimension_numbers<[1], [0], [0], [1], [0, 0, 1, 1], [], []>} : vector<17x64xf32>, vector<64x192xf32>, vector<17x192xf32> -> vector<17x192xf32>
    %c0_13 = arith.constant 0 : index
    %c0_14 = arith.constant 0 : index
    %28 = vector.load %arg5[%c0_13, %c0_14] : memref<1x192xf32, #tpu.memory_space<vmem>>, vector<1x192xf32>
    %29 = vector.broadcast %28 : vector<1x192xf32> to vector<17x192xf32>
    %30 = arith.addf %27, %29 : vector<17x192xf32>
    %c0_15 = arith.constant 0 : index
    %c0_16 = arith.constant 0 : index
    %31 = vector.load %arg6[%c0_15, %c0_16] : memref<64x64xf32, #tpu.memory_space<vmem>>, vector<64x64xf32>
    %cst_17 = arith.constant 0.000000e+00 : f32
    %32 = vector.broadcast %cst_17 : f32 to vector<17x64xf32>
    %33 = vector.extract_strided_slice %30 {offsets = [0, 0], sizes = [17, 16], strides = [1, 1]} : vector<17x192xf32> to vector<17x16xf32>
    %34 = vector.extract_strided_slice %30 {offsets = [0, 64], sizes = [17, 16], strides = [1, 1]} : vector<17x192xf32> to vector<17x16xf32>
    %35 = vector.extract_strided_slice %30 {offsets = [0, 128], sizes = [17, 16], strides = [1, 1]} : vector<17x192xf32> to vector<17x16xf32>
    %cst_18 = arith.constant dense<0.000000e+00> : vector<17x17xf32>
    %36 = tpu.matmul %33, %34, %cst_18 {dimension_numbers = #tpu.dot_dimension_numbers<[1], [1], [0], [0], [0, 0, 1, 0], [], []>} : vector<17x16xf32>, vector<17x16xf32>, vector<17x17xf32> -> vector<17x17xf32>
    %cst_19 = arith.constant 2.500000e-01 : f32
    %37 = vector.broadcast %cst_19 : f32 to vector<17x17xf32>
    %38 = arith.mulf %36, %37 : vector<17x17xf32>
    %cst_20 = arith.constant dense<0xFF800000> : vector<17xf32>
    %39 = vector.multi_reduction <maximumf>, %38, %cst_20 [1] : vector<17x17xf32> to vector<17xf32>
    %40 = vector.shape_cast %39 : vector<17xf32> to vector<17x1xf32>
    %41 = vector.broadcast %40 : vector<17x1xf32> to vector<17x17xf32>
    %42 = arith.subf %38, %41 : vector<17x17xf32>
    %43 = math.exp %42 : vector<17x17xf32>
    %cst_21 = arith.constant dense<0.000000e+00> : vector<17xf32>
    %44 = vector.multi_reduction <add>, %43, %cst_21 [1] : vector<17x17xf32> to vector<17xf32>
    %45 = vector.shape_cast %44 : vector<17xf32> to vector<17x1xf32>
    %46 = vector.broadcast %45 : vector<17x1xf32> to vector<17x17xf32>
    %47 = arith.divf %43, %46 : vector<17x17xf32>
    %cst_22 = arith.constant dense<0.000000e+00> : vector<17x16xf32>
    %48 = tpu.matmul %47, %35, %cst_22 {dimension_numbers = #tpu.dot_dimension_numbers<[1], [0], [0], [1], [0, 0, 1, 1], [], []>} : vector<17x17xf32>, vector<17x16xf32>, vector<17x16xf32> -> vector<17x16xf32>
    %49 = vector.extract_strided_slice %31 {offsets = [0, 0], sizes = [16, 64], strides = [1, 1]} : vector<64x64xf32> to vector<16x64xf32>
    %cst_23 = arith.constant dense<0.000000e+00> : vector<17x64xf32>
    %50 = tpu.matmul %48, %49, %cst_23 {dimension_numbers = #tpu.dot_dimension_numbers<[1], [0], [0], [1], [0, 0, 1, 1], [], []>} : vector<17x16xf32>, vector<16x64xf32>, vector<17x64xf32> -> vector<17x64xf32>
    %51 = arith.addf %32, %50 : vector<17x64xf32>
    %52 = vector.extract_strided_slice %30 {offsets = [0, 16], sizes = [17, 16], strides = [1, 1]} : vector<17x192xf32> to vector<17x16xf32>
    %53 = vector.extract_strided_slice %30 {offsets = [0, 80], sizes = [17, 16], strides = [1, 1]} : vector<17x192xf32> to vector<17x16xf32>
    %54 = vector.extract_strided_slice %30 {offsets = [0, 144], sizes = [17, 16], strides = [1, 1]} : vector<17x192xf32> to vector<17x16xf32>
    %cst_24 = arith.constant dense<0.000000e+00> : vector<17x17xf32>
    %55 = tpu.matmul %52, %53, %cst_24 {dimension_numbers = #tpu.dot_dimension_numbers<[1], [1], [0], [0], [0, 0, 1, 0], [], []>} : vector<17x16xf32>, vector<17x16xf32>, vector<17x17xf32> -> vector<17x17xf32>
    %cst_25 = arith.constant 2.500000e-01 : f32
    %56 = vector.broadcast %cst_25 : f32 to vector<17x17xf32>
    %57 = arith.mulf %55, %56 : vector<17x17xf32>
    %cst_26 = arith.constant dense<0xFF800000> : vector<17xf32>
    %58 = vector.multi_reduction <maximumf>, %57, %cst_26 [1] : vector<17x17xf32> to vector<17xf32>
    %59 = vector.shape_cast %58 : vector<17xf32> to vector<17x1xf32>
    %60 = vector.broadcast %59 : vector<17x1xf32> to vector<17x17xf32>
    %61 = arith.subf %57, %60 : vector<17x17xf32>
    %62 = math.exp %61 : vector<17x17xf32>
    %cst_27 = arith.constant dense<0.000000e+00> : vector<17xf32>
    %63 = vector.multi_reduction <add>, %62, %cst_27 [1] : vector<17x17xf32> to vector<17xf32>
    %64 = vector.shape_cast %63 : vector<17xf32> to vector<17x1xf32>
    %65 = vector.broadcast %64 : vector<17x1xf32> to vector<17x17xf32>
    %66 = arith.divf %62, %65 : vector<17x17xf32>
    %cst_28 = arith.constant dense<0.000000e+00> : vector<17x16xf32>
    %67 = tpu.matmul %66, %54, %cst_28 {dimension_numbers = #tpu.dot_dimension_numbers<[1], [0], [0], [1], [0, 0, 1, 1], [], []>} : vector<17x17xf32>, vector<17x16xf32>, vector<17x16xf32> -> vector<17x16xf32>
    %68 = vector.extract_strided_slice %31 {offsets = [16, 0], sizes = [16, 64], strides = [1, 1]} : vector<64x64xf32> to vector<16x64xf32>
    %cst_29 = arith.constant dense<0.000000e+00> : vector<17x64xf32>
    %69 = tpu.matmul %67, %68, %cst_29 {dimension_numbers = #tpu.dot_dimension_numbers<[1], [0], [0], [1], [0, 0, 1, 1], [], []>} : vector<17x16xf32>, vector<16x64xf32>, vector<17x64xf32> -> vector<17x64xf32>
    %70 = arith.addf %51, %69 : vector<17x64xf32>
    %71 = vector.extract_strided_slice %30 {offsets = [0, 32], sizes = [17, 16], strides = [1, 1]} : vector<17x192xf32> to vector<17x16xf32>
    %72 = vector.extract_strided_slice %30 {offsets = [0, 96], sizes = [17, 16], strides = [1, 1]} : vector<17x192xf32> to vector<17x16xf32>
    %73 = vector.extract_strided_slice %30 {offsets = [0, 160], sizes = [17, 16], strides = [1, 1]} : vector<17x192xf32> to vector<17x16xf32>
    %cst_30 = arith.constant dense<0.000000e+00> : vector<17x17xf32>
    %74 = tpu.matmul %71, %72, %cst_30 {dimension_numbers = #tpu.dot_dimension_numbers<[1], [1], [0], [0], [0, 0, 1, 0], [], []>} : vector<17x16xf32>, vector<17x16xf32>, vector<17x17xf32> -> vector<17x17xf32>
    %cst_31 = arith.constant 2.500000e-01 : f32
    %75 = vector.broadcast %cst_31 : f32 to vector<17x17xf32>
    %76 = arith.mulf %74, %75 : vector<17x17xf32>
    %cst_32 = arith.constant dense<0xFF800000> : vector<17xf32>
    %77 = vector.multi_reduction <maximumf>, %76, %cst_32 [1] : vector<17x17xf32> to vector<17xf32>
    %78 = vector.shape_cast %77 : vector<17xf32> to vector<17x1xf32>
    %79 = vector.broadcast %78 : vector<17x1xf32> to vector<17x17xf32>
    %80 = arith.subf %76, %79 : vector<17x17xf32>
    %81 = math.exp %80 : vector<17x17xf32>
    %cst_33 = arith.constant dense<0.000000e+00> : vector<17xf32>
    %82 = vector.multi_reduction <add>, %81, %cst_33 [1] : vector<17x17xf32> to vector<17xf32>
    %83 = vector.shape_cast %82 : vector<17xf32> to vector<17x1xf32>
    %84 = vector.broadcast %83 : vector<17x1xf32> to vector<17x17xf32>
    %85 = arith.divf %81, %84 : vector<17x17xf32>
    %cst_34 = arith.constant dense<0.000000e+00> : vector<17x16xf32>
    %86 = tpu.matmul %85, %73, %cst_34 {dimension_numbers = #tpu.dot_dimension_numbers<[1], [0], [0], [1], [0, 0, 1, 1], [], []>} : vector<17x17xf32>, vector<17x16xf32>, vector<17x16xf32> -> vector<17x16xf32>
    %87 = vector.extract_strided_slice %31 {offsets = [32, 0], sizes = [16, 64], strides = [1, 1]} : vector<64x64xf32> to vector<16x64xf32>
    %cst_35 = arith.constant dense<0.000000e+00> : vector<17x64xf32>
    %88 = tpu.matmul %86, %87, %cst_35 {dimension_numbers = #tpu.dot_dimension_numbers<[1], [0], [0], [1], [0, 0, 1, 1], [], []>} : vector<17x16xf32>, vector<16x64xf32>, vector<17x64xf32> -> vector<17x64xf32>
    %89 = arith.addf %70, %88 : vector<17x64xf32>
    %90 = vector.extract_strided_slice %30 {offsets = [0, 48], sizes = [17, 16], strides = [1, 1]} : vector<17x192xf32> to vector<17x16xf32>
    %91 = vector.extract_strided_slice %30 {offsets = [0, 112], sizes = [17, 16], strides = [1, 1]} : vector<17x192xf32> to vector<17x16xf32>
    %92 = vector.extract_strided_slice %30 {offsets = [0, 176], sizes = [17, 16], strides = [1, 1]} : vector<17x192xf32> to vector<17x16xf32>
    %cst_36 = arith.constant dense<0.000000e+00> : vector<17x17xf32>
    %93 = tpu.matmul %90, %91, %cst_36 {dimension_numbers = #tpu.dot_dimension_numbers<[1], [1], [0], [0], [0, 0, 1, 0], [], []>} : vector<17x16xf32>, vector<17x16xf32>, vector<17x17xf32> -> vector<17x17xf32>
    %cst_37 = arith.constant 2.500000e-01 : f32
    %94 = vector.broadcast %cst_37 : f32 to vector<17x17xf32>
    %95 = arith.mulf %93, %94 : vector<17x17xf32>
    %cst_38 = arith.constant dense<0xFF800000> : vector<17xf32>
    %96 = vector.multi_reduction <maximumf>, %95, %cst_38 [1] : vector<17x17xf32> to vector<17xf32>
    %97 = vector.shape_cast %96 : vector<17xf32> to vector<17x1xf32>
    %98 = vector.broadcast %97 : vector<17x1xf32> to vector<17x17xf32>
    %99 = arith.subf %95, %98 : vector<17x17xf32>
    %100 = math.exp %99 : vector<17x17xf32>
    %cst_39 = arith.constant dense<0.000000e+00> : vector<17xf32>
    %101 = vector.multi_reduction <add>, %100, %cst_39 [1] : vector<17x17xf32> to vector<17xf32>
    %102 = vector.shape_cast %101 : vector<17xf32> to vector<17x1xf32>
    %103 = vector.broadcast %102 : vector<17x1xf32> to vector<17x17xf32>
    %104 = arith.divf %100, %103 : vector<17x17xf32>
    %cst_40 = arith.constant dense<0.000000e+00> : vector<17x16xf32>
    %105 = tpu.matmul %104, %92, %cst_40 {dimension_numbers = #tpu.dot_dimension_numbers<[1], [0], [0], [1], [0, 0, 1, 1], [], []>} : vector<17x17xf32>, vector<17x16xf32>, vector<17x16xf32> -> vector<17x16xf32>
    %106 = vector.extract_strided_slice %31 {offsets = [48, 0], sizes = [16, 64], strides = [1, 1]} : vector<64x64xf32> to vector<16x64xf32>
    %cst_41 = arith.constant dense<0.000000e+00> : vector<17x64xf32>
    %107 = tpu.matmul %105, %106, %cst_41 {dimension_numbers = #tpu.dot_dimension_numbers<[1], [0], [0], [1], [0, 0, 1, 1], [], []>} : vector<17x16xf32>, vector<16x64xf32>, vector<17x64xf32> -> vector<17x64xf32>
    %108 = arith.addf %89, %107 : vector<17x64xf32>
    %109 = arith.addf %1, %108 : vector<17x64xf32>
    %c0_42 = arith.constant 0 : index
    %c0_43 = arith.constant 0 : index
    %110 = vector.load %arg7[%c0_42, %c0_43] : memref<1x64xf32, #tpu.memory_space<vmem>>, vector<1x64xf32>
    %111 = vector.broadcast %110 : vector<1x64xf32> to vector<17x64xf32>
    %112 = arith.addf %109, %111 : vector<17x64xf32>
    %c0_44 = arith.constant 0 : index
    %c0_45 = arith.constant 0 : index
    %113 = vector.load %arg8[%c0_44, %c0_45] : memref<1x64xf32, #tpu.memory_space<vmem>>, vector<1x64xf32>
    %c0_46 = arith.constant 0 : index
    %c0_47 = arith.constant 0 : index
    %114 = vector.load %arg9[%c0_46, %c0_47] : memref<1x64xf32, #tpu.memory_space<vmem>>, vector<1x64xf32>
    %cst_48 = arith.constant dense<0.000000e+00> : vector<17xf32>
    %115 = vector.multi_reduction <add>, %112, %cst_48 [1] : vector<17x64xf32> to vector<17xf32>
    %116 = vector.shape_cast %115 : vector<17xf32> to vector<17x1xf32>
    %cst_49 = arith.constant 6.400000e+01 : f32
    %117 = vector.broadcast %cst_49 : f32 to vector<17x1xf32>
    %118 = arith.divf %116, %117 : vector<17x1xf32>
    %119 = vector.broadcast %118 : vector<17x1xf32> to vector<17x64xf32>
    %120 = arith.subf %112, %119 : vector<17x64xf32>
    %121 = arith.mulf %120, %120 : vector<17x64xf32>
    %cst_50 = arith.constant dense<0.000000e+00> : vector<17xf32>
    %122 = vector.multi_reduction <add>, %121, %cst_50 [1] : vector<17x64xf32> to vector<17xf32>
    %123 = vector.shape_cast %122 : vector<17xf32> to vector<17x1xf32>
    %cst_51 = arith.constant 6.400000e+01 : f32
    %124 = vector.broadcast %cst_51 : f32 to vector<17x1xf32>
    %125 = arith.divf %123, %124 : vector<17x1xf32>
    %126 = vector.broadcast %118 : vector<17x1xf32> to vector<17x64xf32>
    %127 = arith.subf %112, %126 : vector<17x64xf32>
    %cst_52 = arith.constant 9.99999997E-7 : f32
    %128 = vector.broadcast %cst_52 : f32 to vector<17x1xf32>
    %129 = arith.addf %125, %128 : vector<17x1xf32>
    %130 = math.rsqrt %129 : vector<17x1xf32>
    %131 = vector.broadcast %130 : vector<17x1xf32> to vector<17x64xf32>
    %132 = arith.mulf %127, %131 : vector<17x64xf32>
    %133 = vector.broadcast %113 : vector<1x64xf32> to vector<17x64xf32>
    %134 = arith.mulf %132, %133 : vector<17x64xf32>
    %135 = vector.broadcast %114 : vector<1x64xf32> to vector<17x64xf32>
    %136 = arith.addf %134, %135 : vector<17x64xf32>
    %c0_53 = arith.constant 0 : index
    %c0_54 = arith.constant 0 : index
    %137 = vector.load %arg10[%c0_53, %c0_54] : memref<64x256xf32, #tpu.memory_space<vmem>>, vector<64x256xf32>
    %cst_55 = arith.constant dense<0.000000e+00> : vector<17x256xf32>
    %138 = tpu.matmul %136, %137, %cst_55 {dimension_numbers = #tpu.dot_dimension_numbers<[1], [0], [0], [1], [0, 0, 1, 1], [], []>} : vector<17x64xf32>, vector<64x256xf32>, vector<17x256xf32> -> vector<17x256xf32>
    %c0_56 = arith.constant 0 : index
    %c0_57 = arith.constant 0 : index
    %139 = vector.load %arg11[%c0_56, %c0_57] : memref<1x256xf32, #tpu.memory_space<vmem>>, vector<1x256xf32>
    %140 = vector.broadcast %139 : vector<1x256xf32> to vector<17x256xf32>
    %141 = arith.addf %138, %140 : vector<17x256xf32>
    %cst_58 = arith.constant 5.000000e-01 : f32
    %142 = vector.broadcast %cst_58 : f32 to vector<17x256xf32>
    %143 = arith.mulf %142, %141 : vector<17x256xf32>
    %cst_59 = arith.constant 0.707106769 : f32
    %144 = vector.broadcast %cst_59 : f32 to vector<17x256xf32>
    %145 = arith.mulf %141, %144 : vector<17x256xf32>
    %146 = math.erf %145 : vector<17x256xf32>
    %cst_60 = arith.constant 1.000000e+00 : f32
    %147 = vector.broadcast %cst_60 : f32 to vector<17x256xf32>
    %148 = arith.addf %147, %146 : vector<17x256xf32>
    %149 = arith.mulf %143, %148 : vector<17x256xf32>
    %c0_61 = arith.constant 0 : index
    %c0_62 = arith.constant 0 : index
    %150 = vector.load %arg12[%c0_61, %c0_62] : memref<256x64xf32, #tpu.memory_space<vmem>>, vector<256x64xf32>
    %cst_63 = arith.constant dense<0.000000e+00> : vector<17x64xf32>
    %151 = tpu.matmul %149, %150, %cst_63 {dimension_numbers = #tpu.dot_dimension_numbers<[1], [0], [0], [1], [0, 0, 1, 1], [], []>} : vector<17x256xf32>, vector<256x64xf32>, vector<17x64xf32> -> vector<17x64xf32>
    %c0_64 = arith.constant 0 : index
    %c0_65 = arith.constant 0 : index
    %152 = vector.load %arg13[%c0_64, %c0_65] : memref<1x64xf32, #tpu.memory_space<vmem>>, vector<1x64xf32>
    %153 = vector.broadcast %152 : vector<1x64xf32> to vector<17x64xf32>
    %154 = arith.addf %151, %153 : vector<17x64xf32>
    %155 = arith.addf %112, %154 : vector<17x64xf32>
    %c0_66 = arith.constant 0 : index
    %c0_67 = arith.constant 0 : index
    %c0_68 = arith.constant 0 : index
    %156 = vector.load %arg14[%c0_66, %c0_67, %c0_68] : memref<1x17x64xf32, #tpu.memory_space<vmem>>, vector<1x17x64xf32>
    %157 = vector.shape_cast %156 : vector<1x17x64xf32> to vector<17x64xf32>
    %158 = vector.shape_cast %155 : vector<17x64xf32> to vector<1x17x64xf32>
    tpu.vector_store %arg14[%c0_66, %c0_67, %c0_68], %158 {strides = array<i32>} : memref<1x17x64xf32, #tpu.memory_space<vmem>>, vector<1x17x64xf32>,
    return
  }
  func.func @transform_0(%arg0: i32) -> (i32, i32, i32) {
    %c0_i32 = arith.constant 0 : i32
    %c0_i32_0 = arith.constant 0 : i32
    %c0_i32_1 = arith.constant 0 : i32
    return %arg0, %c0_i32, %c0_i32_0 : i32, i32, i32
  }
  func.func @transform_1(%arg0: i32) -> (i32, i32) {
    %c0_i32 = arith.constant 0 : i32
    %c0_i32_0 = arith.constant 0 : i32
    %c0_i32_1 = arith.constant 0 : i32
    return %c0_i32, %c0_i32_0 : i32, i32
  }
  func.func @transform_2(%arg0: i32) -> (i32, i32) {
    %c0_i32 = arith.constant 0 : i32
    %c0_i32_0 = arith.constant 0 : i32
    %c0_i32_1 = arith.constant 0 : i32
    return %c0_i32, %c0_i32_0 : i32, i32
  }
  func.func @transform_3(%arg0: i32) -> (i32, i32) {
    %c0_i32 = arith.constant 0 : i32
    %c0_i32_0 = arith.constant 0 : i32
    %c0_i32_1 = arith.constant 0 : i32
    return %c0_i32, %c0_i32_0 : i32, i32
  }
  func.func @transform_4(%arg0: i32) -> (i32, i32) {
    %c0_i32 = arith.constant 0 : i32
    %c0_i32_0 = arith.constant 0 : i32
    %c0_i32_1 = arith.constant 0 : i32
    return %c0_i32, %c0_i32_0 : i32, i32
  }
  func.func @transform_5(%arg0: i32) -> (i32, i32) {
    %c0_i32 = arith.constant 0 : i32
    %c0_i32_0 = arith.constant 0 : i32
    %c0_i32_1 = arith.constant 0 : i32
    return %c0_i32, %c0_i32_0 : i32, i32
  }
  func.func @transform_6(%arg0: i32) -> (i32, i32) {
    %c0_i32 = arith.constant 0 : i32
    %c0_i32_0 = arith.constant 0 : i32
    %c0_i32_1 = arith.constant 0 : i32
    return %c0_i32, %c0_i32_0 : i32, i32
  }
  func.func @transform_7(%arg0: i32) -> (i32, i32) {
    %c0_i32 = arith.constant 0 : i32
    %c0_i32_0 = arith.constant 0 : i32
    %c0_i32_1 = arith.constant 0 : i32
    return %c0_i32, %c0_i32_0 : i32, i32
  }
  func.func @transform_8(%arg0: i32) -> (i32, i32) {
    %c0_i32 = arith.constant 0 : i32
    %c0_i32_0 = arith.constant 0 : i32
    %c0_i32_1 = arith.constant 0 : i32
    return %c0_i32, %c0_i32_0 : i32, i32
  }
  func.func @transform_9(%arg0: i32) -> (i32, i32) {
    %c0_i32 = arith.constant 0 : i32
    %c0_i32_0 = arith.constant 0 : i32
    %c0_i32_1 = arith.constant 0 : i32
    return %c0_i32, %c0_i32_0 : i32, i32
  }
  func.func @transform_10(%arg0: i32) -> (i32, i32) {
    %c0_i32 = arith.constant 0 : i32
    %c0_i32_0 = arith.constant 0 : i32
    %c0_i32_1 = arith.constant 0 : i32
    return %c0_i32, %c0_i32_0 : i32, i32
  }
  func.func @transform_11(%arg0: i32) -> (i32, i32) {
    %c0_i32 = arith.constant 0 : i32
    %c0_i32_0 = arith.constant 0 : i32
    %c0_i32_1 = arith.constant 0 : i32
    return %c0_i32, %c0_i32_0 : i32, i32
  }
  func.func @transform_12(%arg0: i32) -> (i32, i32) {
    %c0_i32 = arith.constant 0 : i32
    %c0_i32_0 = arith.constant 0 : i32
    %c0_i32_1 = arith.constant 0 : i32
    return %c0_i32, %c0_i32_0 : i32, i32
  }
  func.func @transform_13(%arg0: i32) -> (i32, i32, i32) {
    %c0_i32 = arith.constant 0 : i32
    %c0_i32_0 = arith.constant 0 : i32
    %c0_i32_1 = arith.constant 0 : i32
    return %arg0, %c0_i32, %c0_i32_0 : i32, i32, i32
  }
}

module attributes {stable_mosaic.version = 11 : i64} {
  func.func @_ln_kernel(%arg0: i32, %arg1: memref<16x64xf32, #tpu.memory_space<vmem>>, %arg2: memref<1x64xf32, #tpu.memory_space<vmem>>, %arg3: memref<1x64xf32, #tpu.memory_space<vmem>>, %arg4: memref<16x64xf32, #tpu.memory_space<vmem>>) attributes {dimension_semantics = [#tpu.dimension_semantics<arbitrary>], iteration_bounds = array<i64: 1>, scalar_prefetch = 0 : i64, scratch_operands = 0 : i64, tpu.core_type = #tpu.core_type<tc>, window_params = [{pipeline_mode = #tpu.pipeline_mode<synchronous>, transform_indices = @transform_0, window_bounds = array<i64: 16, 64>}, {pipeline_mode = #tpu.pipeline_mode<synchronous>, transform_indices = @transform_1, window_bounds = array<i64: 1, 64>}, {pipeline_mode = #tpu.pipeline_mode<synchronous>, transform_indices = @transform_2, window_bounds = array<i64: 1, 64>}, {pipeline_mode = #tpu.pipeline_mode<synchronous>, transform_indices = @transform_3, window_bounds = array<i64: 16, 64>}]} {
    %c0 = arith.constant 0 : index
    %c0_0 = arith.constant 0 : index
    %0 = vector.load %arg1[%c0, %c0_0] : memref<16x64xf32, #tpu.memory_space<vmem>>, vector<16x64xf32>
    %c0_1 = arith.constant 0 : index
    %c0_2 = arith.constant 0 : index
    %1 = vector.load %arg2[%c0_1, %c0_2] : memref<1x64xf32, #tpu.memory_space<vmem>>, vector<1x64xf32>
    %c0_3 = arith.constant 0 : index
    %c0_4 = arith.constant 0 : index
    %2 = vector.load %arg3[%c0_3, %c0_4] : memref<1x64xf32, #tpu.memory_space<vmem>>, vector<1x64xf32>
    %cst = arith.constant dense<0.000000e+00> : vector<16xf32>
    %3 = vector.multi_reduction <add>, %0, %cst [1] : vector<16x64xf32> to vector<16xf32>
    %4 = vector.shape_cast %3 : vector<16xf32> to vector<16x1xf32>
    %cst_5 = arith.constant 6.400000e+01 : f32
    %5 = vector.broadcast %cst_5 : f32 to vector<16x1xf32>
    %6 = arith.divf %4, %5 : vector<16x1xf32>
    %7 = vector.broadcast %6 : vector<16x1xf32> to vector<16x64xf32>
    %8 = arith.subf %0, %7 : vector<16x64xf32>
    %9 = arith.mulf %8, %8 : vector<16x64xf32>
    %cst_6 = arith.constant dense<0.000000e+00> : vector<16xf32>
    %10 = vector.multi_reduction <add>, %9, %cst_6 [1] : vector<16x64xf32> to vector<16xf32>
    %11 = vector.shape_cast %10 : vector<16xf32> to vector<16x1xf32>
    %cst_7 = arith.constant 6.400000e+01 : f32
    %12 = vector.broadcast %cst_7 : f32 to vector<16x1xf32>
    %13 = arith.divf %11, %12 : vector<16x1xf32>
    %14 = vector.broadcast %6 : vector<16x1xf32> to vector<16x64xf32>
    %15 = arith.subf %0, %14 : vector<16x64xf32>
    %cst_8 = arith.constant 9.99999996E-13 : f32
    %16 = vector.broadcast %cst_8 : f32 to vector<16x1xf32>
    %17 = arith.addf %13, %16 : vector<16x1xf32>
    %18 = math.rsqrt %17 : vector<16x1xf32>
    %19 = vector.broadcast %18 : vector<16x1xf32> to vector<16x64xf32>
    %20 = arith.mulf %15, %19 : vector<16x64xf32>
    %21 = vector.broadcast %1 : vector<1x64xf32> to vector<16x64xf32>
    %22 = arith.mulf %20, %21 : vector<16x64xf32>
    %23 = vector.broadcast %2 : vector<1x64xf32> to vector<16x64xf32>
    %24 = arith.addf %22, %23 : vector<16x64xf32>
    %c0_9 = arith.constant 0 : index
    %c0_10 = arith.constant 0 : index
    %25 = vector.load %arg4[%c0_9, %c0_10] : memref<16x64xf32, #tpu.memory_space<vmem>>, vector<16x64xf32>
    tpu.vector_store %arg4[%c0_9, %c0_10], %24 {strides = array<i32>} : memref<16x64xf32, #tpu.memory_space<vmem>>, vector<16x64xf32>,
    return
  }
  func.func @transform_0(%arg0: i32) -> (i32, i32) {
    %c0_i32 = arith.constant 0 : i32
    %c0_i32_0 = arith.constant 0 : i32
    %c0_i32_1 = arith.constant 0 : i32
    return %c0_i32, %c0_i32_0 : i32, i32
  }
  func.func @transform_1(%arg0: i32) -> (i32, i32) {
    %c0_i32 = arith.constant 0 : i32
    %c0_i32_0 = arith.constant 0 : i32
    %c0_i32_1 = arith.constant 0 : i32
    return %c0_i32, %c0_i32_0 : i32, i32
  }
  func.func @transform_2(%arg0: i32) -> (i32, i32) {
    %c0_i32 = arith.constant 0 : i32
    %c0_i32_0 = arith.constant 0 : i32
    %c0_i32_1 = arith.constant 0 : i32
    return %c0_i32, %c0_i32_0 : i32, i32
  }
  func.func @transform_3(%arg0: i32) -> (i32, i32) {
    %c0_i32 = arith.constant 0 : i32
    %c0_i32_0 = arith.constant 0 : i32
    %c0_i32_1 = arith.constant 0 : i32
    return %c0_i32, %c0_i32_0 : i32, i32
  }
}

module attributes {stable_mosaic.version = 11 : i64} {
  func.func @_bert_layer_kernel(%arg0: i32, %arg1: memref<1x8x64xf32, #tpu.memory_space<vmem>>, %arg2: memref<1x17x64xf32, #tpu.memory_space<vmem>>, %arg3: memref<1x1x8xf32, #tpu.memory_space<vmem>>, %arg4: memref<64x64xf32, #tpu.memory_space<vmem>>, %arg5: memref<1x64xf32, #tpu.memory_space<vmem>>, %arg6: memref<64x64xf32, #tpu.memory_space<vmem>>, %arg7: memref<1x64xf32, #tpu.memory_space<vmem>>, %arg8: memref<64x64xf32, #tpu.memory_space<vmem>>, %arg9: memref<1x64xf32, #tpu.memory_space<vmem>>, %arg10: memref<64x64xf32, #tpu.memory_space<vmem>>, %arg11: memref<1x64xf32, #tpu.memory_space<vmem>>, %arg12: memref<1x64xf32, #tpu.memory_space<vmem>>, %arg13: memref<1x64xf32, #tpu.memory_space<vmem>>, %arg14: memref<64x64xf32, #tpu.memory_space<vmem>>, %arg15: memref<1x64xf32, #tpu.memory_space<vmem>>, %arg16: memref<64x64xf32, #tpu.memory_space<vmem>>, %arg17: memref<1x64xf32, #tpu.memory_space<vmem>>, %arg18: memref<64x64xf32, #tpu.memory_space<vmem>>, %arg19: memref<1x64xf32, #tpu.memory_space<vmem>>, %arg20: memref<64x64xf32, #tpu.memory_space<vmem>>, %arg21: memref<1x64xf32, #tpu.memory_space<vmem>>, %arg22: memref<1x64xf32, #tpu.memory_space<vmem>>, %arg23: memref<1x64xf32, #tpu.memory_space<vmem>>, %arg24: memref<64x256xf32, #tpu.memory_space<vmem>>, %arg25: memref<1x256xf32, #tpu.memory_space<vmem>>, %arg26: memref<256x64xf32, #tpu.memory_space<vmem>>, %arg27: memref<1x64xf32, #tpu.memory_space<vmem>>, %arg28: memref<1x64xf32, #tpu.memory_space<vmem>>, %arg29: memref<1x64xf32, #tpu.memory_space<vmem>>, %arg30: memref<1x8x64xf32, #tpu.memory_space<vmem>>) attributes {dimension_semantics = [#tpu.dimension_semantics<parallel>], iteration_bounds = array<i64: 2>, scalar_prefetch = 0 : i64, scratch_operands = 0 : i64, tpu.core_type = #tpu.core_type<tc>, window_params = [{transform_indices = @transform_0, window_bounds = array<i64: 1, 8, 64>}, {transform_indices = @transform_1, window_bounds = array<i64: 1, 17, 64>}, {transform_indices = @transform_2, window_bounds = array<i64: 1, 1, 8>}, {pipeline_mode = #tpu.pipeline_mode<synchronous>, transform_indices = @transform_3, window_bounds = array<i64: 64, 64>}, {pipeline_mode = #tpu.pipeline_mode<synchronous>, transform_indices = @transform_4, window_bounds = array<i64: 1, 64>}, {pipeline_mode = #tpu.pipeline_mode<synchronous>, transform_indices = @transform_5, window_bounds = array<i64: 64, 64>}, {pipeline_mode = #tpu.pipeline_mode<synchronous>, transform_indices = @transform_6, window_bounds = array<i64: 1, 64>}, {pipeline_mode = #tpu.pipeline_mode<synchronous>, transform_indices = @transform_7, window_bounds = array<i64: 64, 64>}, {pipeline_mode = #tpu.pipeline_mode<synchronous>, transform_indices = @transform_8, window_bounds = array<i64: 1, 64>}, {pipeline_mode = #tpu.pipeline_mode<synchronous>, transform_indices = @transform_9, window_bounds = array<i64: 64, 64>}, {pipeline_mode = #tpu.pipeline_mode<synchronous>, transform_indices = @transform_10, window_bounds = array<i64: 1, 64>}, {pipeline_mode = #tpu.pipeline_mode<synchronous>, transform_indices = @transform_11, window_bounds = array<i64: 1, 64>}, {pipeline_mode = #tpu.pipeline_mode<synchronous>, transform_indices = @transform_12, window_bounds = array<i64: 1, 64>}, {pipeline_mode = #tpu.pipeline_mode<synchronous>, transform_indices = @transform_13, window_bounds = array<i64: 64, 64>}, {pipeline_mode = #tpu.pipeline_mode<synchronous>, transform_indices = @transform_14, window_bounds = array<i64: 1, 64>}, {pipeline_mode = #tpu.pipeline_mode<synchronous>, transform_indices = @transform_15, window_bounds = array<i64: 64, 64>}, {pipeline_mode = #tpu.pipeline_mode<synchronous>, transform_indices = @transform_16, window_bounds = array<i64: 1, 64>}, {pipeline_mode = #tpu.pipeline_mode<synchronous>, transform_indices = @transform_17, window_bounds = array<i64: 64, 64>}, {pipeline_mode = #tpu.pipeline_mode<synchronous>, transform_indices = @transform_18, window_bounds = array<i64: 1, 64>}, {pipeline_mode = #tpu.pipeline_mode<synchronous>, transform_indices = @transform_19, window_bounds = array<i64: 64, 64>}, {pipeline_mode = #tpu.pipeline_mode<synchronous>, transform_indices = @transform_20, window_bounds = array<i64: 1, 64>}, {pipeline_mode = #tpu.pipeline_mode<synchronous>, transform_indices = @transform_21, window_bounds = array<i64: 1, 64>}, {pipeline_mode = #tpu.pipeline_mode<synchronous>, transform_indices = @transform_22, window_bounds = array<i64: 1, 64>}, {pipeline_mode = #tpu.pipeline_mode<synchronous>, transform_indices = @transform_23, window_bounds = array<i64: 64, 256>}, {pipeline_mode = #tpu.pipeline_mode<synchronous>, transform_indices = @transform_24, window_bounds = array<i64: 1, 256>}, {pipeline_mode = #tpu.pipeline_mode<synchronous>, transform_indices = @transform_25, window_bounds = array<i64: 256, 64>}, {pipeline_mode = #tpu.pipeline_mode<synchronous>, transform_indices = @transform_26, window_bounds = array<i64: 1, 64>}, {pipeline_mode = #tpu.pipeline_mode<synchronous>, transform_indices = @transform_27, window_bounds = array<i64: 1, 64>}, {pipeline_mode = #tpu.pipeline_mode<synchronous>, transform_indices = @transform_28, window_bounds = array<i64: 1, 64>}, {transform_indices = @transform_29, window_bounds = array<i64: 1, 8, 64>}]} {
    %c0 = arith.constant 0 : index
    %c0_0 = arith.constant 0 : index
    %c0_1 = arith.constant 0 : index
    %0 = vector.load %arg1[%c0, %c0_0, %c0_1] : memref<1x8x64xf32, #tpu.memory_space<vmem>>, vector<1x8x64xf32>
    %1 = vector.shape_cast %0 : vector<1x8x64xf32> to vector<8x64xf32>
    %c0_2 = arith.constant 0 : index
    %c0_3 = arith.constant 0 : index
    %c0_4 = arith.constant 0 : index
    %2 = vector.load %arg2[%c0_2, %c0_3, %c0_4] : memref<1x17x64xf32, #tpu.memory_space<vmem>>, vector<1x17x64xf32>
    %3 = vector.shape_cast %2 : vector<1x17x64xf32> to vector<17x64xf32>
    %c0_5 = arith.constant 0 : index
    %c0_6 = arith.constant 0 : index
    %c0_7 = arith.constant 0 : index
    %4 = vector.load %arg3[%c0_5, %c0_6, %c0_7] : memref<1x1x8xf32, #tpu.memory_space<vmem>>, vector<1x1x8xf32>
    %5 = vector.shape_cast %4 : vector<1x1x8xf32> to vector<1x8xf32>
    %cst = arith.constant 1.000000e+00 : f32
    %6 = vector.broadcast %cst : f32 to vector<1x8xf32>
    %7 = arith.subf %6, %5 : vector<1x8xf32>
    %cst_8 = arith.constant -1.000000e+04 : f32
    %8 = vector.broadcast %cst_8 : f32 to vector<1x8xf32>
    %9 = arith.mulf %7, %8 : vector<1x8xf32>
    %c0_9 = arith.constant 0 : index
    %c0_10 = arith.constant 0 : index
    %10 = vector.load %arg4[%c0_9, %c0_10] : memref<64x64xf32, #tpu.memory_space<vmem>>, vector<64x64xf32>
    %cst_11 = arith.constant dense<0.000000e+00> : vector<8x64xf32>
    %11 = tpu.matmul %1, %10, %cst_11 {dimension_numbers = #tpu.dot_dimension_numbers<[1], [0], [0], [1], [0, 0, 1, 1], [], []>} : vector<8x64xf32>, vector<64x64xf32>, vector<8x64xf32> -> vector<8x64xf32>
    %c0_12 = arith.constant 0 : index
    %c0_13 = arith.constant 0 : index
    %12 = vector.load %arg5[%c0_12, %c0_13] : memref<1x64xf32, #tpu.memory_space<vmem>>, vector<1x64xf32>
    %13 = vector.broadcast %12 : vector<1x64xf32> to vector<8x64xf32>
    %14 = arith.addf %11, %13 : vector<8x64xf32>
    %c0_14 = arith.constant 0 : index
    %c0_15 = arith.constant 0 : index
    %15 = vector.load %arg6[%c0_14, %c0_15] : memref<64x64xf32, #tpu.memory_space<vmem>>, vector<64x64xf32>
    %cst_16 = arith.constant dense<0.000000e+00> : vector<8x64xf32>
    %16 = tpu.matmul %1, %15, %cst_16 {dimension_numbers = #tpu.dot_dimension_numbers<[1], [0], [0], [1], [0, 0, 1, 1], [], []>} : vector<8x64xf32>, vector<64x64xf32>, vector<8x64xf32> -> vector<8x64xf32>
    %c0_17 = arith.constant 0 : index
    %c0_18 = arith.constant 0 : index
    %17 = vector.load %arg7[%c0_17, %c0_18] : memref<1x64xf32, #tpu.memory_space<vmem>>, vector<1x64xf32>
    %18 = vector.broadcast %17 : vector<1x64xf32> to vector<8x64xf32>
    %19 = arith.addf %16, %18 : vector<8x64xf32>
    %c0_19 = arith.constant 0 : index
    %c0_20 = arith.constant 0 : index
    %20 = vector.load %arg8[%c0_19, %c0_20] : memref<64x64xf32, #tpu.memory_space<vmem>>, vector<64x64xf32>
    %cst_21 = arith.constant dense<0.000000e+00> : vector<8x64xf32>
    %21 = tpu.matmul %1, %20, %cst_21 {dimension_numbers = #tpu.dot_dimension_numbers<[1], [0], [0], [1], [0, 0, 1, 1], [], []>} : vector<8x64xf32>, vector<64x64xf32>, vector<8x64xf32> -> vector<8x64xf32>
    %c0_22 = arith.constant 0 : index
    %c0_23 = arith.constant 0 : index
    %22 = vector.load %arg9[%c0_22, %c0_23] : memref<1x64xf32, #tpu.memory_space<vmem>>, vector<1x64xf32>
    %23 = vector.broadcast %22 : vector<1x64xf32> to vector<8x64xf32>
    %24 = arith.addf %21, %23 : vector<8x64xf32>
    %c0_24 = arith.constant 0 : index
    %c0_25 = arith.constant 0 : index
    %25 = vector.load %arg10[%c0_24, %c0_25] : memref<64x64xf32, #tpu.memory_space<vmem>>, vector<64x64xf32>
    %cst_26 = arith.constant 0.000000e+00 : f32
    %26 = vector.broadcast %cst_26 : f32 to vector<8x64xf32>
    %27 = vector.extract_strided_slice %14 {offsets = [0, 0], sizes = [8, 16], strides = [1, 1]} : vector<8x64xf32> to vector<8x16xf32>
    %28 = vector.extract_strided_slice %19 {offsets = [0, 0], sizes = [8, 16], strides = [1, 1]} : vector<8x64xf32> to vector<8x16xf32>
    %29 = vector.extract_strided_slice %24 {offsets = [0, 0], sizes = [8, 16], strides = [1, 1]} : vector<8x64xf32> to vector<8x16xf32>
    %cst_27 = arith.constant dense<0.000000e+00> : vector<8x8xf32>
    %30 = tpu.matmul %27, %28, %cst_27 {dimension_numbers = #tpu.dot_dimension_numbers<[1], [1], [0], [0], [0, 0, 1, 0], [], []>} : vector<8x16xf32>, vector<8x16xf32>, vector<8x8xf32> -> vector<8x8xf32>
    %cst_28 = arith.constant 2.500000e-01 : f32
    %31 = vector.broadcast %cst_28 : f32 to vector<8x8xf32>
    %32 = arith.mulf %30, %31 : vector<8x8xf32>
    %33 = vector.broadcast %9 : vector<1x8xf32> to vector<8x8xf32>
    %34 = arith.addf %32, %33 : vector<8x8xf32>
    %cst_29 = arith.constant dense<0xFF800000> : vector<8xf32>
    %35 = vector.multi_reduction <maximumf>, %34, %cst_29 [1] : vector<8x8xf32> to vector<8xf32>
    %36 = vector.shape_cast %35 : vector<8xf32> to vector<8x1xf32>
    %37 = vector.broadcast %36 : vector<8x1xf32> to vector<8x8xf32>
    %38 = arith.subf %34, %37 : vector<8x8xf32>
    %39 = math.exp %38 : vector<8x8xf32>
    %cst_30 = arith.constant dense<0.000000e+00> : vector<8xf32>
    %40 = vector.multi_reduction <add>, %39, %cst_30 [1] : vector<8x8xf32> to vector<8xf32>
    %41 = vector.shape_cast %40 : vector<8xf32> to vector<8x1xf32>
    %42 = vector.broadcast %41 : vector<8x1xf32> to vector<8x8xf32>
    %43 = arith.divf %39, %42 : vector<8x8xf32>
    %cst_31 = arith.constant dense<0.000000e+00> : vector<8x16xf32>
    %44 = tpu.matmul %43, %29, %cst_31 {dimension_numbers = #tpu.dot_dimension_numbers<[1], [0], [0], [1], [0, 0, 1, 1], [], []>} : vector<8x8xf32>, vector<8x16xf32>, vector<8x16xf32> -> vector<8x16xf32>
    %45 = vector.extract_strided_slice %25 {offsets = [0, 0], sizes = [16, 64], strides = [1, 1]} : vector<64x64xf32> to vector<16x64xf32>
    %cst_32 = arith.constant dense<0.000000e+00> : vector<8x64xf32>
    %46 = tpu.matmul %44, %45, %cst_32 {dimension_numbers = #tpu.dot_dimension_numbers<[1], [0], [0], [1], [0, 0, 1, 1], [], []>} : vector<8x16xf32>, vector<16x64xf32>, vector<8x64xf32> -> vector<8x64xf32>
    %47 = arith.addf %26, %46 : vector<8x64xf32>
    %48 = vector.extract_strided_slice %14 {offsets = [0, 16], sizes = [8, 16], strides = [1, 1]} : vector<8x64xf32> to vector<8x16xf32>
    %49 = vector.extract_strided_slice %19 {offsets = [0, 16], sizes = [8, 16], strides = [1, 1]} : vector<8x64xf32> to vector<8x16xf32>
    %50 = vector.extract_strided_slice %24 {offsets = [0, 16], sizes = [8, 16], strides = [1, 1]} : vector<8x64xf32> to vector<8x16xf32>
    %cst_33 = arith.constant dense<0.000000e+00> : vector<8x8xf32>
    %51 = tpu.matmul %48, %49, %cst_33 {dimension_numbers = #tpu.dot_dimension_numbers<[1], [1], [0], [0], [0, 0, 1, 0], [], []>} : vector<8x16xf32>, vector<8x16xf32>, vector<8x8xf32> -> vector<8x8xf32>
    %cst_34 = arith.constant 2.500000e-01 : f32
    %52 = vector.broadcast %cst_34 : f32 to vector<8x8xf32>
    %53 = arith.mulf %51, %52 : vector<8x8xf32>
    %54 = vector.broadcast %9 : vector<1x8xf32> to vector<8x8xf32>
    %55 = arith.addf %53, %54 : vector<8x8xf32>
    %cst_35 = arith.constant dense<0xFF800000> : vector<8xf32>
    %56 = vector.multi_reduction <maximumf>, %55, %cst_35 [1] : vector<8x8xf32> to vector<8xf32>
    %57 = vector.shape_cast %56 : vector<8xf32> to vector<8x1xf32>
    %58 = vector.broadcast %57 : vector<8x1xf32> to vector<8x8xf32>
    %59 = arith.subf %55, %58 : vector<8x8xf32>
    %60 = math.exp %59 : vector<8x8xf32>
    %cst_36 = arith.constant dense<0.000000e+00> : vector<8xf32>
    %61 = vector.multi_reduction <add>, %60, %cst_36 [1] : vector<8x8xf32> to vector<8xf32>
    %62 = vector.shape_cast %61 : vector<8xf32> to vector<8x1xf32>
    %63 = vector.broadcast %62 : vector<8x1xf32> to vector<8x8xf32>
    %64 = arith.divf %60, %63 : vector<8x8xf32>
    %cst_37 = arith.constant dense<0.000000e+00> : vector<8x16xf32>
    %65 = tpu.matmul %64, %50, %cst_37 {dimension_numbers = #tpu.dot_dimension_numbers<[1], [0], [0], [1], [0, 0, 1, 1], [], []>} : vector<8x8xf32>, vector<8x16xf32>, vector<8x16xf32> -> vector<8x16xf32>
    %66 = vector.extract_strided_slice %25 {offsets = [16, 0], sizes = [16, 64], strides = [1, 1]} : vector<64x64xf32> to vector<16x64xf32>
    %cst_38 = arith.constant dense<0.000000e+00> : vector<8x64xf32>
    %67 = tpu.matmul %65, %66, %cst_38 {dimension_numbers = #tpu.dot_dimension_numbers<[1], [0], [0], [1], [0, 0, 1, 1], [], []>} : vector<8x16xf32>, vector<16x64xf32>, vector<8x64xf32> -> vector<8x64xf32>
    %68 = arith.addf %47, %67 : vector<8x64xf32>
    %69 = vector.extract_strided_slice %14 {offsets = [0, 32], sizes = [8, 16], strides = [1, 1]} : vector<8x64xf32> to vector<8x16xf32>
    %70 = vector.extract_strided_slice %19 {offsets = [0, 32], sizes = [8, 16], strides = [1, 1]} : vector<8x64xf32> to vector<8x16xf32>
    %71 = vector.extract_strided_slice %24 {offsets = [0, 32], sizes = [8, 16], strides = [1, 1]} : vector<8x64xf32> to vector<8x16xf32>
    %cst_39 = arith.constant dense<0.000000e+00> : vector<8x8xf32>
    %72 = tpu.matmul %69, %70, %cst_39 {dimension_numbers = #tpu.dot_dimension_numbers<[1], [1], [0], [0], [0, 0, 1, 0], [], []>} : vector<8x16xf32>, vector<8x16xf32>, vector<8x8xf32> -> vector<8x8xf32>
    %cst_40 = arith.constant 2.500000e-01 : f32
    %73 = vector.broadcast %cst_40 : f32 to vector<8x8xf32>
    %74 = arith.mulf %72, %73 : vector<8x8xf32>
    %75 = vector.broadcast %9 : vector<1x8xf32> to vector<8x8xf32>
    %76 = arith.addf %74, %75 : vector<8x8xf32>
    %cst_41 = arith.constant dense<0xFF800000> : vector<8xf32>
    %77 = vector.multi_reduction <maximumf>, %76, %cst_41 [1] : vector<8x8xf32> to vector<8xf32>
    %78 = vector.shape_cast %77 : vector<8xf32> to vector<8x1xf32>
    %79 = vector.broadcast %78 : vector<8x1xf32> to vector<8x8xf32>
    %80 = arith.subf %76, %79 : vector<8x8xf32>
    %81 = math.exp %80 : vector<8x8xf32>
    %cst_42 = arith.constant dense<0.000000e+00> : vector<8xf32>
    %82 = vector.multi_reduction <add>, %81, %cst_42 [1] : vector<8x8xf32> to vector<8xf32>
    %83 = vector.shape_cast %82 : vector<8xf32> to vector<8x1xf32>
    %84 = vector.broadcast %83 : vector<8x1xf32> to vector<8x8xf32>
    %85 = arith.divf %81, %84 : vector<8x8xf32>
    %cst_43 = arith.constant dense<0.000000e+00> : vector<8x16xf32>
    %86 = tpu.matmul %85, %71, %cst_43 {dimension_numbers = #tpu.dot_dimension_numbers<[1], [0], [0], [1], [0, 0, 1, 1], [], []>} : vector<8x8xf32>, vector<8x16xf32>, vector<8x16xf32> -> vector<8x16xf32>
    %87 = vector.extract_strided_slice %25 {offsets = [32, 0], sizes = [16, 64], strides = [1, 1]} : vector<64x64xf32> to vector<16x64xf32>
    %cst_44 = arith.constant dense<0.000000e+00> : vector<8x64xf32>
    %88 = tpu.matmul %86, %87, %cst_44 {dimension_numbers = #tpu.dot_dimension_numbers<[1], [0], [0], [1], [0, 0, 1, 1], [], []>} : vector<8x16xf32>, vector<16x64xf32>, vector<8x64xf32> -> vector<8x64xf32>
    %89 = arith.addf %68, %88 : vector<8x64xf32>
    %90 = vector.extract_strided_slice %14 {offsets = [0, 48], sizes = [8, 16], strides = [1, 1]} : vector<8x64xf32> to vector<8x16xf32>
    %91 = vector.extract_strided_slice %19 {offsets = [0, 48], sizes = [8, 16], strides = [1, 1]} : vector<8x64xf32> to vector<8x16xf32>
    %92 = vector.extract_strided_slice %24 {offsets = [0, 48], sizes = [8, 16], strides = [1, 1]} : vector<8x64xf32> to vector<8x16xf32>
    %cst_45 = arith.constant dense<0.000000e+00> : vector<8x8xf32>
    %93 = tpu.matmul %90, %91, %cst_45 {dimension_numbers = #tpu.dot_dimension_numbers<[1], [1], [0], [0], [0, 0, 1, 0], [], []>} : vector<8x16xf32>, vector<8x16xf32>, vector<8x8xf32> -> vector<8x8xf32>
    %cst_46 = arith.constant 2.500000e-01 : f32
    %94 = vector.broadcast %cst_46 : f32 to vector<8x8xf32>
    %95 = arith.mulf %93, %94 : vector<8x8xf32>
    %96 = vector.broadcast %9 : vector<1x8xf32> to vector<8x8xf32>
    %97 = arith.addf %95, %96 : vector<8x8xf32>
    %cst_47 = arith.constant dense<0xFF800000> : vector<8xf32>
    %98 = vector.multi_reduction <maximumf>, %97, %cst_47 [1] : vector<8x8xf32> to vector<8xf32>
    %99 = vector.shape_cast %98 : vector<8xf32> to vector<8x1xf32>
    %100 = vector.broadcast %99 : vector<8x1xf32> to vector<8x8xf32>
    %101 = arith.subf %97, %100 : vector<8x8xf32>
    %102 = math.exp %101 : vector<8x8xf32>
    %cst_48 = arith.constant dense<0.000000e+00> : vector<8xf32>
    %103 = vector.multi_reduction <add>, %102, %cst_48 [1] : vector<8x8xf32> to vector<8xf32>
    %104 = vector.shape_cast %103 : vector<8xf32> to vector<8x1xf32>
    %105 = vector.broadcast %104 : vector<8x1xf32> to vector<8x8xf32>
    %106 = arith.divf %102, %105 : vector<8x8xf32>
    %cst_49 = arith.constant dense<0.000000e+00> : vector<8x16xf32>
    %107 = tpu.matmul %106, %92, %cst_49 {dimension_numbers = #tpu.dot_dimension_numbers<[1], [0], [0], [1], [0, 0, 1, 1], [], []>} : vector<8x8xf32>, vector<8x16xf32>, vector<8x16xf32> -> vector<8x16xf32>
    %108 = vector.extract_strided_slice %25 {offsets = [48, 0], sizes = [16, 64], strides = [1, 1]} : vector<64x64xf32> to vector<16x64xf32>
    %cst_50 = arith.constant dense<0.000000e+00> : vector<8x64xf32>
    %109 = tpu.matmul %107, %108, %cst_50 {dimension_numbers = #tpu.dot_dimension_numbers<[1], [0], [0], [1], [0, 0, 1, 1], [], []>} : vector<8x16xf32>, vector<16x64xf32>, vector<8x64xf32> -> vector<8x64xf32>
    %110 = arith.addf %89, %109 : vector<8x64xf32>
    %c0_51 = arith.constant 0 : index
    %c0_52 = arith.constant 0 : index
    %111 = vector.load %arg11[%c0_51, %c0_52] : memref<1x64xf32, #tpu.memory_space<vmem>>, vector<1x64xf32>
    %112 = vector.broadcast %111 : vector<1x64xf32> to vector<8x64xf32>
    %113 = arith.addf %110, %112 : vector<8x64xf32>
    %114 = arith.addf %1, %113 : vector<8x64xf32>
    %c0_53 = arith.constant 0 : index
    %c0_54 = arith.constant 0 : index
    %115 = vector.load %arg12[%c0_53, %c0_54] : memref<1x64xf32, #tpu.memory_space<vmem>>, vector<1x64xf32>
    %c0_55 = arith.constant 0 : index
    %c0_56 = arith.constant 0 : index
    %116 = vector.load %arg13[%c0_55, %c0_56] : memref<1x64xf32, #tpu.memory_space<vmem>>, vector<1x64xf32>
    %cst_57 = arith.constant dense<0.000000e+00> : vector<8xf32>
    %117 = vector.multi_reduction <add>, %114, %cst_57 [1] : vector<8x64xf32> to vector<8xf32>
    %118 = vector.shape_cast %117 : vector<8xf32> to vector<8x1xf32>
    %cst_58 = arith.constant 6.400000e+01 : f32
    %119 = vector.broadcast %cst_58 : f32 to vector<8x1xf32>
    %120 = arith.divf %118, %119 : vector<8x1xf32>
    %121 = vector.broadcast %120 : vector<8x1xf32> to vector<8x64xf32>
    %122 = arith.subf %114, %121 : vector<8x64xf32>
    %123 = arith.mulf %122, %122 : vector<8x64xf32>
    %cst_59 = arith.constant dense<0.000000e+00> : vector<8xf32>
    %124 = vector.multi_reduction <add>, %123, %cst_59 [1] : vector<8x64xf32> to vector<8xf32>
    %125 = vector.shape_cast %124 : vector<8xf32> to vector<8x1xf32>
    %cst_60 = arith.constant 6.400000e+01 : f32
    %126 = vector.broadcast %cst_60 : f32 to vector<8x1xf32>
    %127 = arith.divf %125, %126 : vector<8x1xf32>
    %128 = vector.broadcast %120 : vector<8x1xf32> to vector<8x64xf32>
    %129 = arith.subf %114, %128 : vector<8x64xf32>
    %cst_61 = arith.constant 9.99999996E-13 : f32
    %130 = vector.broadcast %cst_61 : f32 to vector<8x1xf32>
    %131 = arith.addf %127, %130 : vector<8x1xf32>
    %132 = math.rsqrt %131 : vector<8x1xf32>
    %133 = vector.broadcast %132 : vector<8x1xf32> to vector<8x64xf32>
    %134 = arith.mulf %129, %133 : vector<8x64xf32>
    %135 = vector.broadcast %115 : vector<1x64xf32> to vector<8x64xf32>
    %136 = arith.mulf %134, %135 : vector<8x64xf32>
    %137 = vector.broadcast %116 : vector<1x64xf32> to vector<8x64xf32>
    %138 = arith.addf %136, %137 : vector<8x64xf32>
    %c0_62 = arith.constant 0 : index
    %c0_63 = arith.constant 0 : index
    %139 = vector.load %arg14[%c0_62, %c0_63] : memref<64x64xf32, #tpu.memory_space<vmem>>, vector<64x64xf32>
    %cst_64 = arith.constant dense<0.000000e+00> : vector<8x64xf32>
    %140 = tpu.matmul %138, %139, %cst_64 {dimension_numbers = #tpu.dot_dimension_numbers<[1], [0], [0], [1], [0, 0, 1, 1], [], []>} : vector<8x64xf32>, vector<64x64xf32>, vector<8x64xf32> -> vector<8x64xf32>
    %c0_65 = arith.constant 0 : index
    %c0_66 = arith.constant 0 : index
    %141 = vector.load %arg15[%c0_65, %c0_66] : memref<1x64xf32, #tpu.memory_space<vmem>>, vector<1x64xf32>
    %142 = vector.broadcast %141 : vector<1x64xf32> to vector<8x64xf32>
    %143 = arith.addf %140, %142 : vector<8x64xf32>
    %c0_67 = arith.constant 0 : index
    %c0_68 = arith.constant 0 : index
    %144 = vector.load %arg16[%c0_67, %c0_68] : memref<64x64xf32, #tpu.memory_space<vmem>>, vector<64x64xf32>
    %cst_69 = arith.constant dense<0.000000e+00> : vector<17x64xf32>
    %145 = tpu.matmul %3, %144, %cst_69 {dimension_numbers = #tpu.dot_dimension_numbers<[1], [0], [0], [1], [0, 0, 1, 1], [], []>} : vector<17x64xf32>, vector<64x64xf32>, vector<17x64xf32> -> vector<17x64xf32>
    %c0_70 = arith.constant 0 : index
    %c0_71 = arith.constant 0 : index
    %146 = vector.load %arg17[%c0_70, %c0_71] : memref<1x64xf32, #tpu.memory_space<vmem>>, vector<1x64xf32>
    %147 = vector.broadcast %146 : vector<1x64xf32> to vector<17x64xf32>
    %148 = arith.addf %145, %147 : vector<17x64xf32>
    %c0_72 = arith.constant 0 : index
    %c0_73 = arith.constant 0 : index
    %149 = vector.load %arg18[%c0_72, %c0_73] : memref<64x64xf32, #tpu.memory_space<vmem>>, vector<64x64xf32>
    %cst_74 = arith.constant dense<0.000000e+00> : vector<17x64xf32>
    %150 = tpu.matmul %3, %149, %cst_74 {dimension_numbers = #tpu.dot_dimension_numbers<[1], [0], [0], [1], [0, 0, 1, 1], [], []>} : vector<17x64xf32>, vector<64x64xf32>, vector<17x64xf32> -> vector<17x64xf32>
    %c0_75 = arith.constant 0 : index
    %c0_76 = arith.constant 0 : index
    %151 = vector.load %arg19[%c0_75, %c0_76] : memref<1x64xf32, #tpu.memory_space<vmem>>, vector<1x64xf32>
    %152 = vector.broadcast %151 : vector<1x64xf32> to vector<17x64xf32>
    %153 = arith.addf %150, %152 : vector<17x64xf32>
    %c0_77 = arith.constant 0 : index
    %c0_78 = arith.constant 0 : index
    %154 = vector.load %arg20[%c0_77, %c0_78] : memref<64x64xf32, #tpu.memory_space<vmem>>, vector<64x64xf32>
    %cst_79 = arith.constant 0.000000e+00 : f32
    %155 = vector.broadcast %cst_79 : f32 to vector<8x64xf32>
    %156 = vector.extract_strided_slice %143 {offsets = [0, 0], sizes = [8, 16], strides = [1, 1]} : vector<8x64xf32> to vector<8x16xf32>
    %157 = vector.extract_strided_slice %148 {offsets = [0, 0], sizes = [17, 16], strides = [1, 1]} : vector<17x64xf32> to vector<17x16xf32>
    %158 = vector.extract_strided_slice %153 {offsets = [0, 0], sizes = [17, 16], strides = [1, 1]} : vector<17x64xf32> to vector<17x16xf32>
    %cst_80 = arith.constant dense<0.000000e+00> : vector<8x17xf32>
    %159 = tpu.matmul %156, %157, %cst_80 {dimension_numbers = #tpu.dot_dimension_numbers<[1], [1], [0], [0], [0, 0, 1, 0], [], []>} : vector<8x16xf32>, vector<17x16xf32>, vector<8x17xf32> -> vector<8x17xf32>
    %cst_81 = arith.constant 2.500000e-01 : f32
    %160 = vector.broadcast %cst_81 : f32 to vector<8x17xf32>
    %161 = arith.mulf %159, %160 : vector<8x17xf32>
    %cst_82 = arith.constant dense<0xFF800000> : vector<8xf32>
    %162 = vector.multi_reduction <maximumf>, %161, %cst_82 [1] : vector<8x17xf32> to vector<8xf32>
    %163 = vector.shape_cast %162 : vector<8xf32> to vector<8x1xf32>
    %164 = vector.broadcast %163 : vector<8x1xf32> to vector<8x17xf32>
    %165 = arith.subf %161, %164 : vector<8x17xf32>
    %166 = math.exp %165 : vector<8x17xf32>
    %cst_83 = arith.constant dense<0.000000e+00> : vector<8xf32>
    %167 = vector.multi_reduction <add>, %166, %cst_83 [1] : vector<8x17xf32> to vector<8xf32>
    %168 = vector.shape_cast %167 : vector<8xf32> to vector<8x1xf32>
    %169 = vector.broadcast %168 : vector<8x1xf32> to vector<8x17xf32>
    %170 = arith.divf %166, %169 : vector<8x17xf32>
    %cst_84 = arith.constant dense<0.000000e+00> : vector<8x16xf32>
    %171 = tpu.matmul %170, %158, %cst_84 {dimension_numbers = #tpu.dot_dimension_numbers<[1], [0], [0], [1], [0, 0, 1, 1], [], []>} : vector<8x17xf32>, vector<17x16xf32>, vector<8x16xf32> -> vector<8x16xf32>
    %172 = vector.extract_strided_slice %154 {offsets = [0, 0], sizes = [16, 64], strides = [1, 1]} : vector<64x64xf32> to vector<16x64xf32>
    %cst_85 = arith.constant dense<0.000000e+00> : vector<8x64xf32>
    %173 = tpu.matmul %171, %172, %cst_85 {dimension_numbers = #tpu.dot_dimension_numbers<[1], [0], [0], [1], [0, 0, 1, 1], [], []>} : vector<8x16xf32>, vector<16x64xf32>, vector<8x64xf32> -> vector<8x64xf32>
    %174 = arith.addf %155, %173 : vector<8x64xf32>
    %175 = vector.extract_strided_slice %143 {offsets = [0, 16], sizes = [8, 16], strides = [1, 1]} : vector<8x64xf32> to vector<8x16xf32>
    %176 = vector.extract_strided_slice %148 {offsets = [0, 16], sizes = [17, 16], strides = [1, 1]} : vector<17x64xf32> to vector<17x16xf32>
    %177 = vector.extract_strided_slice %153 {offsets = [0, 16], sizes = [17, 16], strides = [1, 1]} : vector<17x64xf32> to vector<17x16xf32>
    %cst_86 = arith.constant dense<0.000000e+00> : vector<8x17xf32>
    %178 = tpu.matmul %175, %176, %cst_86 {dimension_numbers = #tpu.dot_dimension_numbers<[1], [1], [0], [0], [0, 0, 1, 0], [], []>} : vector<8x16xf32>, vector<17x16xf32>, vector<8x17xf32> -> vector<8x17xf32>
    %cst_87 = arith.constant 2.500000e-01 : f32
    %179 = vector.broadcast %cst_87 : f32 to vector<8x17xf32>
    %180 = arith.mulf %178, %179 : vector<8x17xf32>
    %cst_88 = arith.constant dense<0xFF800000> : vector<8xf32>
    %181 = vector.multi_reduction <maximumf>, %180, %cst_88 [1] : vector<8x17xf32> to vector<8xf32>
    %182 = vector.shape_cast %181 : vector<8xf32> to vector<8x1xf32>
    %183 = vector.broadcast %182 : vector<8x1xf32> to vector<8x17xf32>
    %184 = arith.subf %180, %183 : vector<8x17xf32>
    %185 = math.exp %184 : vector<8x17xf32>
    %cst_89 = arith.constant dense<0.000000e+00> : vector<8xf32>
    %186 = vector.multi_reduction <add>, %185, %cst_89 [1] : vector<8x17xf32> to vector<8xf32>
    %187 = vector.shape_cast %186 : vector<8xf32> to vector<8x1xf32>
    %188 = vector.broadcast %187 : vector<8x1xf32> to vector<8x17xf32>
    %189 = arith.divf %185, %188 : vector<8x17xf32>
    %cst_90 = arith.constant dense<0.000000e+00> : vector<8x16xf32>
    %190 = tpu.matmul %189, %177, %cst_90 {dimension_numbers = #tpu.dot_dimension_numbers<[1], [0], [0], [1], [0, 0, 1, 1], [], []>} : vector<8x17xf32>, vector<17x16xf32>, vector<8x16xf32> -> vector<8x16xf32>
    %191 = vector.extract_strided_slice %154 {offsets = [16, 0], sizes = [16, 64], strides = [1, 1]} : vector<64x64xf32> to vector<16x64xf32>
    %cst_91 = arith.constant dense<0.000000e+00> : vector<8x64xf32>
    %192 = tpu.matmul %190, %191, %cst_91 {dimension_numbers = #tpu.dot_dimension_numbers<[1], [0], [0], [1], [0, 0, 1, 1], [], []>} : vector<8x16xf32>, vector<16x64xf32>, vector<8x64xf32> -> vector<8x64xf32>
    %193 = arith.addf %174, %192 : vector<8x64xf32>
    %194 = vector.extract_strided_slice %143 {offsets = [0, 32], sizes = [8, 16], strides = [1, 1]} : vector<8x64xf32> to vector<8x16xf32>
    %195 = vector.extract_strided_slice %148 {offsets = [0, 32], sizes = [17, 16], strides = [1, 1]} : vector<17x64xf32> to vector<17x16xf32>
    %196 = vector.extract_strided_slice %153 {offsets = [0, 32], sizes = [17, 16], strides = [1, 1]} : vector<17x64xf32> to vector<17x16xf32>
    %cst_92 = arith.constant dense<0.000000e+00> : vector<8x17xf32>
    %197 = tpu.matmul %194, %195, %cst_92 {dimension_numbers = #tpu.dot_dimension_numbers<[1], [1], [0], [0], [0, 0, 1, 0], [], []>} : vector<8x16xf32>, vector<17x16xf32>, vector<8x17xf32> -> vector<8x17xf32>
    %cst_93 = arith.constant 2.500000e-01 : f32
    %198 = vector.broadcast %cst_93 : f32 to vector<8x17xf32>
    %199 = arith.mulf %197, %198 : vector<8x17xf32>
    %cst_94 = arith.constant dense<0xFF800000> : vector<8xf32>
    %200 = vector.multi_reduction <maximumf>, %199, %cst_94 [1] : vector<8x17xf32> to vector<8xf32>
    %201 = vector.shape_cast %200 : vector<8xf32> to vector<8x1xf32>
    %202 = vector.broadcast %201 : vector<8x1xf32> to vector<8x17xf32>
    %203 = arith.subf %199, %202 : vector<8x17xf32>
    %204 = math.exp %203 : vector<8x17xf32>
    %cst_95 = arith.constant dense<0.000000e+00> : vector<8xf32>
    %205 = vector.multi_reduction <add>, %204, %cst_95 [1] : vector<8x17xf32> to vector<8xf32>
    %206 = vector.shape_cast %205 : vector<8xf32> to vector<8x1xf32>
    %207 = vector.broadcast %206 : vector<8x1xf32> to vector<8x17xf32>
    %208 = arith.divf %204, %207 : vector<8x17xf32>
    %cst_96 = arith.constant dense<0.000000e+00> : vector<8x16xf32>
    %209 = tpu.matmul %208, %196, %cst_96 {dimension_numbers = #tpu.dot_dimension_numbers<[1], [0], [0], [1], [0, 0, 1, 1], [], []>} : vector<8x17xf32>, vector<17x16xf32>, vector<8x16xf32> -> vector<8x16xf32>
    %210 = vector.extract_strided_slice %154 {offsets = [32, 0], sizes = [16, 64], strides = [1, 1]} : vector<64x64xf32> to vector<16x64xf32>
    %cst_97 = arith.constant dense<0.000000e+00> : vector<8x64xf32>
    %211 = tpu.matmul %209, %210, %cst_97 {dimension_numbers = #tpu.dot_dimension_numbers<[1], [0], [0], [1], [0, 0, 1, 1], [], []>} : vector<8x16xf32>, vector<16x64xf32>, vector<8x64xf32> -> vector<8x64xf32>
    %212 = arith.addf %193, %211 : vector<8x64xf32>
    %213 = vector.extract_strided_slice %143 {offsets = [0, 48], sizes = [8, 16], strides = [1, 1]} : vector<8x64xf32> to vector<8x16xf32>
    %214 = vector.extract_strided_slice %148 {offsets = [0, 48], sizes = [17, 16], strides = [1, 1]} : vector<17x64xf32> to vector<17x16xf32>
    %215 = vector.extract_strided_slice %153 {offsets = [0, 48], sizes = [17, 16], strides = [1, 1]} : vector<17x64xf32> to vector<17x16xf32>
    %cst_98 = arith.constant dense<0.000000e+00> : vector<8x17xf32>
    %216 = tpu.matmul %213, %214, %cst_98 {dimension_numbers = #tpu.dot_dimension_numbers<[1], [1], [0], [0], [0, 0, 1, 0], [], []>} : vector<8x16xf32>, vector<17x16xf32>, vector<8x17xf32> -> vector<8x17xf32>
    %cst_99 = arith.constant 2.500000e-01 : f32
    %217 = vector.broadcast %cst_99 : f32 to vector<8x17xf32>
    %218 = arith.mulf %216, %217 : vector<8x17xf32>
    %cst_100 = arith.constant dense<0xFF800000> : vector<8xf32>
    %219 = vector.multi_reduction <maximumf>, %218, %cst_100 [1] : vector<8x17xf32> to vector<8xf32>
    %220 = vector.shape_cast %219 : vector<8xf32> to vector<8x1xf32>
    %221 = vector.broadcast %220 : vector<8x1xf32> to vector<8x17xf32>
    %222 = arith.subf %218, %221 : vector<8x17xf32>
    %223 = math.exp %222 : vector<8x17xf32>
    %cst_101 = arith.constant dense<0.000000e+00> : vector<8xf32>
    %224 = vector.multi_reduction <add>, %223, %cst_101 [1] : vector<8x17xf32> to vector<8xf32>
    %225 = vector.shape_cast %224 : vector<8xf32> to vector<8x1xf32>
    %226 = vector.broadcast %225 : vector<8x1xf32> to vector<8x17xf32>
    %227 = arith.divf %223, %226 : vector<8x17xf32>
    %cst_102 = arith.constant dense<0.000000e+00> : vector<8x16xf32>
    %228 = tpu.matmul %227, %215, %cst_102 {dimension_numbers = #tpu.dot_dimension_numbers<[1], [0], [0], [1], [0, 0, 1, 1], [], []>} : vector<8x17xf32>, vector<17x16xf32>, vector<8x16xf32> -> vector<8x16xf32>
    %229 = vector.extract_strided_slice %154 {offsets = [48, 0], sizes = [16, 64], strides = [1, 1]} : vector<64x64xf32> to vector<16x64xf32>
    %cst_103 = arith.constant dense<0.000000e+00> : vector<8x64xf32>
    %230 = tpu.matmul %228, %229, %cst_103 {dimension_numbers = #tpu.dot_dimension_numbers<[1], [0], [0], [1], [0, 0, 1, 1], [], []>} : vector<8x16xf32>, vector<16x64xf32>, vector<8x64xf32> -> vector<8x64xf32>
    %231 = arith.addf %212, %230 : vector<8x64xf32>
    %c0_104 = arith.constant 0 : index
    %c0_105 = arith.constant 0 : index
    %232 = vector.load %arg21[%c0_104, %c0_105] : memref<1x64xf32, #tpu.memory_space<vmem>>, vector<1x64xf32>
    %233 = vector.broadcast %232 : vector<1x64xf32> to vector<8x64xf32>
    %234 = arith.addf %231, %233 : vector<8x64xf32>
    %235 = arith.addf %138, %234 : vector<8x64xf32>
    %c0_106 = arith.constant 0 : index
    %c0_107 = arith.constant 0 : index
    %236 = vector.load %arg22[%c0_106, %c0_107] : memref<1x64xf32, #tpu.memory_space<vmem>>, vector<1x64xf32>
    %c0_108 = arith.constant 0 : index
    %c0_109 = arith.constant 0 : index
    %237 = vector.load %arg23[%c0_108, %c0_109] : memref<1x64xf32, #tpu.memory_space<vmem>>, vector<1x64xf32>
    %cst_110 = arith.constant dense<0.000000e+00> : vector<8xf32>
    %238 = vector.multi_reduction <add>, %235, %cst_110 [1] : vector<8x64xf32> to vector<8xf32>
    %239 = vector.shape_cast %238 : vector<8xf32> to vector<8x1xf32>
    %cst_111 = arith.constant 6.400000e+01 : f32
    %240 = vector.broadcast %cst_111 : f32 to vector<8x1xf32>
    %241 = arith.divf %239, %240 : vector<8x1xf32>
    %242 = vector.broadcast %241 : vector<8x1xf32> to vector<8x64xf32>
    %243 = arith.subf %235, %242 : vector<8x64xf32>
    %244 = arith.mulf %243, %243 : vector<8x64xf32>
    %cst_112 = arith.constant dense<0.000000e+00> : vector<8xf32>
    %245 = vector.multi_reduction <add>, %244, %cst_112 [1] : vector<8x64xf32> to vector<8xf32>
    %246 = vector.shape_cast %245 : vector<8xf32> to vector<8x1xf32>
    %cst_113 = arith.constant 6.400000e+01 : f32
    %247 = vector.broadcast %cst_113 : f32 to vector<8x1xf32>
    %248 = arith.divf %246, %247 : vector<8x1xf32>
    %249 = vector.broadcast %241 : vector<8x1xf32> to vector<8x64xf32>
    %250 = arith.subf %235, %249 : vector<8x64xf32>
    %cst_114 = arith.constant 9.99999996E-13 : f32
    %251 = vector.broadcast %cst_114 : f32 to vector<8x1xf32>
    %252 = arith.addf %248, %251 : vector<8x1xf32>
    %253 = math.rsqrt %252 : vector<8x1xf32>
    %254 = vector.broadcast %253 : vector<8x1xf32> to vector<8x64xf32>
    %255 = arith.mulf %250, %254 : vector<8x64xf32>
    %256 = vector.broadcast %236 : vector<1x64xf32> to vector<8x64xf32>
    %257 = arith.mulf %255, %256 : vector<8x64xf32>
    %258 = vector.broadcast %237 : vector<1x64xf32> to vector<8x64xf32>
    %259 = arith.addf %257, %258 : vector<8x64xf32>
    %c0_115 = arith.constant 0 : index
    %c0_116 = arith.constant 0 : index
    %260 = vector.load %arg24[%c0_115, %c0_116] : memref<64x256xf32, #tpu.memory_space<vmem>>, vector<64x256xf32>
    %cst_117 = arith.constant dense<0.000000e+00> : vector<8x256xf32>
    %261 = tpu.matmul %259, %260, %cst_117 {dimension_numbers = #tpu.dot_dimension_numbers<[1], [0], [0], [1], [0, 0, 1, 1], [], []>} : vector<8x64xf32>, vector<64x256xf32>, vector<8x256xf32> -> vector<8x256xf32>
    %c0_118 = arith.constant 0 : index
    %c0_119 = arith.constant 0 : index
    %262 = vector.load %arg25[%c0_118, %c0_119] : memref<1x256xf32, #tpu.memory_space<vmem>>, vector<1x256xf32>
    %263 = vector.broadcast %262 : vector<1x256xf32> to vector<8x256xf32>
    %264 = arith.addf %261, %263 : vector<8x256xf32>
    %cst_120 = arith.constant 5.000000e-01 : f32
    %265 = vector.broadcast %cst_120 : f32 to vector<8x256xf32>
    %266 = arith.mulf %265, %264 : vector<8x256xf32>
    %cst_121 = arith.constant 0.707106769 : f32
    %267 = vector.broadcast %cst_121 : f32 to vector<8x256xf32>
    %268 = arith.mulf %264, %267 : vector<8x256xf32>
    %269 = math.erf %268 : vector<8x256xf32>
    %cst_122 = arith.constant 1.000000e+00 : f32
    %270 = vector.broadcast %cst_122 : f32 to vector<8x256xf32>
    %271 = arith.addf %270, %269 : vector<8x256xf32>
    %272 = arith.mulf %266, %271 : vector<8x256xf32>
    %c0_123 = arith.constant 0 : index
    %c0_124 = arith.constant 0 : index
    %273 = vector.load %arg26[%c0_123, %c0_124] : memref<256x64xf32, #tpu.memory_space<vmem>>, vector<256x64xf32>
    %cst_125 = arith.constant dense<0.000000e+00> : vector<8x64xf32>
    %274 = tpu.matmul %272, %273, %cst_125 {dimension_numbers = #tpu.dot_dimension_numbers<[1], [0], [0], [1], [0, 0, 1, 1], [], []>} : vector<8x256xf32>, vector<256x64xf32>, vector<8x64xf32> -> vector<8x64xf32>
    %c0_126 = arith.constant 0 : index
    %c0_127 = arith.constant 0 : index
    %275 = vector.load %arg27[%c0_126, %c0_127] : memref<1x64xf32, #tpu.memory_space<vmem>>, vector<1x64xf32>
    %276 = vector.broadcast %275 : vector<1x64xf32> to vector<8x64xf32>
    %277 = arith.addf %274, %276 : vector<8x64xf32>
    %278 = arith.addf %259, %277 : vector<8x64xf32>
    %c0_128 = arith.constant 0 : index
    %c0_129 = arith.constant 0 : index
    %279 = vector.load %arg28[%c0_128, %c0_129] : memref<1x64xf32, #tpu.memory_space<vmem>>, vector<1x64xf32>
    %c0_130 = arith.constant 0 : index
    %c0_131 = arith.constant 0 : index
    %280 = vector.load %arg29[%c0_130, %c0_131] : memref<1x64xf32, #tpu.memory_space<vmem>>, vector<1x64xf32>
    %cst_132 = arith.constant dense<0.000000e+00> : vector<8xf32>
    %281 = vector.multi_reduction <add>, %278, %cst_132 [1] : vector<8x64xf32> to vector<8xf32>
    %282 = vector.shape_cast %281 : vector<8xf32> to vector<8x1xf32>
    %cst_133 = arith.constant 6.400000e+01 : f32
    %283 = vector.broadcast %cst_133 : f32 to vector<8x1xf32>
    %284 = arith.divf %282, %283 : vector<8x1xf32>
    %285 = vector.broadcast %284 : vector<8x1xf32> to vector<8x64xf32>
    %286 = arith.subf %278, %285 : vector<8x64xf32>
    %287 = arith.mulf %286, %286 : vector<8x64xf32>
    %cst_134 = arith.constant dense<0.000000e+00> : vector<8xf32>
    %288 = vector.multi_reduction <add>, %287, %cst_134 [1] : vector<8x64xf32> to vector<8xf32>
    %289 = vector.shape_cast %288 : vector<8xf32> to vector<8x1xf32>
    %cst_135 = arith.constant 6.400000e+01 : f32
    %290 = vector.broadcast %cst_135 : f32 to vector<8x1xf32>
    %291 = arith.divf %289, %290 : vector<8x1xf32>
    %292 = vector.broadcast %284 : vector<8x1xf32> to vector<8x64xf32>
    %293 = arith.subf %278, %292 : vector<8x64xf32>
    %cst_136 = arith.constant 9.99999996E-13 : f32
    %294 = vector.broadcast %cst_136 : f32 to vector<8x1xf32>
    %295 = arith.addf %291, %294 : vector<8x1xf32>
    %296 = math.rsqrt %295 : vector<8x1xf32>
    %297 = vector.broadcast %296 : vector<8x1xf32> to vector<8x64xf32>
    %298 = arith.mulf %293, %297 : vector<8x64xf32>
    %299 = vector.broadcast %279 : vector<1x64xf32> to vector<8x64xf32>
    %300 = arith.mulf %298, %299 : vector<8x64xf32>
    %301 = vector.broadcast %280 : vector<1x64xf32> to vector<8x64xf32>
    %302 = arith.addf %300, %301 : vector<8x64xf32>
    %c0_137 = arith.constant 0 : index
    %c0_138 = arith.constant 0 : index
    %c0_139 = arith.constant 0 : index
    %303 = vector.load %arg30[%c0_137, %c0_138, %c0_139] : memref<1x8x64xf32, #tpu.memory_space<vmem>>, vector<1x8x64xf32>
    %304 = vector.shape_cast %303 : vector<1x8x64xf32> to vector<8x64xf32>
    %305 = vector.shape_cast %302 : vector<8x64xf32> to vector<1x8x64xf32>
    tpu.vector_store %arg30[%c0_137, %c0_138, %c0_139], %305 {strides = array<i32>} : memref<1x8x64xf32, #tpu.memory_space<vmem>>, vector<1x8x64xf32>,
    return
  }
  func.func @transform_0(%arg0: i32) -> (i32, i32, i32) {
    %c0_i32 = arith.constant 0 : i32
    %c0_i32_0 = arith.constant 0 : i32
    %c0_i32_1 = arith.constant 0 : i32
    return %arg0, %c0_i32, %c0_i32_0 : i32, i32, i32
  }
  func.func @transform_1(%arg0: i32) -> (i32, i32, i32) {
    %c0_i32 = arith.constant 0 : i32
    %c0_i32_0 = arith.constant 0 : i32
    %c0_i32_1 = arith.constant 0 : i32
    return %arg0, %c0_i32, %c0_i32_0 : i32, i32, i32
  }
  func.func @transform_2(%arg0: i32) -> (i32, i32, i32) {
    %c0_i32 = arith.constant 0 : i32
    %c0_i32_0 = arith.constant 0 : i32
    %c0_i32_1 = arith.constant 0 : i32
    return %arg0, %c0_i32, %c0_i32_0 : i32, i32, i32
  }
  func.func @transform_3(%arg0: i32) -> (i32, i32) {
    %c0_i32 = arith.constant 0 : i32
    %c0_i32_0 = arith.constant 0 : i32
    %c0_i32_1 = arith.constant 0 : i32
    return %c0_i32, %c0_i32_0 : i32, i32
  }
  func.func @transform_4(%arg0: i32) -> (i32, i32) {
    %c0_i32 = arith.constant 0 : i32
    %c0_i32_0 = arith.constant 0 : i32
    %c0_i32_1 = arith.constant 0 : i32
    return %c0_i32, %c0_i32_0 : i32, i32
  }
  func.func @transform_5(%arg0: i32) -> (i32, i32) {
    %c0_i32 = arith.constant 0 : i32
    %c0_i32_0 = arith.constant 0 : i32
    %c0_i32_1 = arith.constant 0 : i32
    return %c0_i32, %c0_i32_0 : i32, i32
  }
  func.func @transform_6(%arg0: i32) -> (i32, i32) {
    %c0_i32 = arith.constant 0 : i32
    %c0_i32_0 = arith.constant 0 : i32
    %c0_i32_1 = arith.constant 0 : i32
    return %c0_i32, %c0_i32_0 : i32, i32
  }
  func.func @transform_7(%arg0: i32) -> (i32, i32) {
    %c0_i32 = arith.constant 0 : i32
    %c0_i32_0 = arith.constant 0 : i32
    %c0_i32_1 = arith.constant 0 : i32
    return %c0_i32, %c0_i32_0 : i32, i32
  }
  func.func @transform_8(%arg0: i32) -> (i32, i32) {
    %c0_i32 = arith.constant 0 : i32
    %c0_i32_0 = arith.constant 0 : i32
    %c0_i32_1 = arith.constant 0 : i32
    return %c0_i32, %c0_i32_0 : i32, i32
  }
  func.func @transform_9(%arg0: i32) -> (i32, i32) {
    %c0_i32 = arith.constant 0 : i32
    %c0_i32_0 = arith.constant 0 : i32
    %c0_i32_1 = arith.constant 0 : i32
    return %c0_i32, %c0_i32_0 : i32, i32
  }
  func.func @transform_10(%arg0: i32) -> (i32, i32) {
    %c0_i32 = arith.constant 0 : i32
    %c0_i32_0 = arith.constant 0 : i32
    %c0_i32_1 = arith.constant 0 : i32
    return %c0_i32, %c0_i32_0 : i32, i32
  }
  func.func @transform_11(%arg0: i32) -> (i32, i32) {
    %c0_i32 = arith.constant 0 : i32
    %c0_i32_0 = arith.constant 0 : i32
    %c0_i32_1 = arith.constant 0 : i32
    return %c0_i32, %c0_i32_0 : i32, i32
  }
  func.func @transform_12(%arg0: i32) -> (i32, i32) {
    %c0_i32 = arith.constant 0 : i32
    %c0_i32_0 = arith.constant 0 : i32
    %c0_i32_1 = arith.constant 0 : i32
    return %c0_i32, %c0_i32_0 : i32, i32
  }
  func.func @transform_13(%arg0: i32) -> (i32, i32) {
    %c0_i32 = arith.constant 0 : i32
    %c0_i32_0 = arith.constant 0 : i32
    %c0_i32_1 = arith.constant 0 : i32
    return %c0_i32, %c0_i32_0 : i32, i32
  }
  func.func @transform_14(%arg0: i32) -> (i32, i32) {
    %c0_i32 = arith.constant 0 : i32
    %c0_i32_0 = arith.constant 0 : i32
    %c0_i32_1 = arith.constant 0 : i32
    return %c0_i32, %c0_i32_0 : i32, i32
  }
  func.func @transform_15(%arg0: i32) -> (i32, i32) {
    %c0_i32 = arith.constant 0 : i32
    %c0_i32_0 = arith.constant 0 : i32
    %c0_i32_1 = arith.constant 0 : i32
    return %c0_i32, %c0_i32_0 : i32, i32
  }
  func.func @transform_16(%arg0: i32) -> (i32, i32) {
    %c0_i32 = arith.constant 0 : i32
    %c0_i32_0 = arith.constant 0 : i32
    %c0_i32_1 = arith.constant 0 : i32
    return %c0_i32, %c0_i32_0 : i32, i32
  }
  func.func @transform_17(%arg0: i32) -> (i32, i32) {
    %c0_i32 = arith.constant 0 : i32
    %c0_i32_0 = arith.constant 0 : i32
    %c0_i32_1 = arith.constant 0 : i32
    return %c0_i32, %c0_i32_0 : i32, i32
  }
  func.func @transform_18(%arg0: i32) -> (i32, i32) {
    %c0_i32 = arith.constant 0 : i32
    %c0_i32_0 = arith.constant 0 : i32
    %c0_i32_1 = arith.constant 0 : i32
    return %c0_i32, %c0_i32_0 : i32, i32
  }
  func.func @transform_19(%arg0: i32) -> (i32, i32) {
    %c0_i32 = arith.constant 0 : i32
    %c0_i32_0 = arith.constant 0 : i32
    %c0_i32_1 = arith.constant 0 : i32
    return %c0_i32, %c0_i32_0 : i32, i32
  }
  func.func @transform_20(%arg0: i32) -> (i32, i32) {
    %c0_i32 = arith.constant 0 : i32
    %c0_i32_0 = arith.constant 0 : i32
    %c0_i32_1 = arith.constant 0 : i32
    return %c0_i32, %c0_i32_0 : i32, i32
  }
  func.func @transform_21(%arg0: i32) -> (i32, i32) {
    %c0_i32 = arith.constant 0 : i32
    %c0_i32_0 = arith.constant 0 : i32
    %c0_i32_1 = arith.constant 0 : i32
    return %c0_i32, %c0_i32_0 : i32, i32
  }
  func.func @transform_22(%arg0: i32) -> (i32, i32) {
    %c0_i32 = arith.constant 0 : i32
    %c0_i32_0 = arith.constant 0 : i32
    %c0_i32_1 = arith.constant 0 : i32
    return %c0_i32, %c0_i32_0 : i32, i32
  }
  func.func @transform_23(%arg0: i32) -> (i32, i32) {
    %c0_i32 = arith.constant 0 : i32
    %c0_i32_0 = arith.constant 0 : i32
    %c0_i32_1 = arith.constant 0 : i32
    return %c0_i32, %c0_i32_0 : i32, i32
  }
  func.func @transform_24(%arg0: i32) -> (i32, i32) {
    %c0_i32 = arith.constant 0 : i32
    %c0_i32_0 = arith.constant 0 : i32
    %c0_i32_1 = arith.constant 0 : i32
    return %c0_i32, %c0_i32_0 : i32, i32
  }
  func.func @transform_25(%arg0: i32) -> (i32, i32) {
    %c0_i32 = arith.constant 0 : i32
    %c0_i32_0 = arith.constant 0 : i32
    %c0_i32_1 = arith.constant 0 : i32
    return %c0_i32, %c0_i32_0 : i32, i32
  }
  func.func @transform_26(%arg0: i32) -> (i32, i32) {
    %c0_i32 = arith.constant 0 : i32
    %c0_i32_0 = arith.constant 0 : i32
    %c0_i32_1 = arith.constant 0 : i32
    return %c0_i32, %c0_i32_0 : i32, i32
  }
  func.func @transform_27(%arg0: i32) -> (i32, i32) {
    %c0_i32 = arith.constant 0 : i32
    %c0_i32_0 = arith.constant 0 : i32
    %c0_i32_1 = arith.constant 0 : i32
    return %c0_i32, %c0_i32_0 : i32, i32
  }
  func.func @transform_28(%arg0: i32) -> (i32, i32) {
    %c0_i32 = arith.constant 0 : i32
    %c0_i32_0 = arith.constant 0 : i32
    %c0_i32_1 = arith.constant 0 : i32
    return %c0_i32, %c0_i32_0 : i32, i32
  }
  func.func @transform_29(%arg0: i32) -> (i32, i32, i32) {
    %c0_i32 = arith.constant 0 : i32
    %c0_i32_0 = arith.constant 0 : i32
    %c0_i32_1 = arith.constant 0 : i32
    return %arg0, %c0_i32, %c0_i32_0 : i32, i32, i32
  }
}

module attributes {stable_mosaic.version = 11 : i64} {
  func.func @_bert_layer_kernel(%arg0: i32, %arg1: memref<1x8x64xf32, #tpu.memory_space<vmem>>, %arg2: memref<1x17x64xf32, #tpu.memory_space<vmem>>, %arg3: memref<1x1x8xf32, #tpu.memory_space<vmem>>, %arg4: memref<64x64xf32, #tpu.memory_space<vmem>>, %arg5: memref<1x64xf32, #tpu.memory_space<vmem>>, %arg6: memref<64x64xf32, #tpu.memory_space<vmem>>, %arg7: memref<1x64xf32, #tpu.memory_space<vmem>>, %arg8: memref<64x64xf32, #tpu.memory_space<vmem>>, %arg9: memref<1x64xf32, #tpu.memory_space<vmem>>, %arg10: memref<64x64xf32, #tpu.memory_space<vmem>>, %arg11: memref<1x64xf32, #tpu.memory_space<vmem>>, %arg12: memref<1x64xf32, #tpu.memory_space<vmem>>, %arg13: memref<1x64xf32, #tpu.memory_space<vmem>>, %arg14: memref<64x64xf32, #tpu.memory_space<vmem>>, %arg15: memref<1x64xf32, #tpu.memory_space<vmem>>, %arg16: memref<64x64xf32, #tpu.memory_space<vmem>>, %arg17: memref<1x64xf32, #tpu.memory_space<vmem>>, %arg18: memref<64x64xf32, #tpu.memory_space<vmem>>, %arg19: memref<1x64xf32, #tpu.memory_space<vmem>>, %arg20: memref<64x64xf32, #tpu.memory_space<vmem>>, %arg21: memref<1x64xf32, #tpu.memory_space<vmem>>, %arg22: memref<1x64xf32, #tpu.memory_space<vmem>>, %arg23: memref<1x64xf32, #tpu.memory_space<vmem>>, %arg24: memref<64x256xf32, #tpu.memory_space<vmem>>, %arg25: memref<1x256xf32, #tpu.memory_space<vmem>>, %arg26: memref<256x64xf32, #tpu.memory_space<vmem>>, %arg27: memref<1x64xf32, #tpu.memory_space<vmem>>, %arg28: memref<1x64xf32, #tpu.memory_space<vmem>>, %arg29: memref<1x64xf32, #tpu.memory_space<vmem>>, %arg30: memref<1x8x64xf32, #tpu.memory_space<vmem>>) attributes {dimension_semantics = [#tpu.dimension_semantics<parallel>], iteration_bounds = array<i64: 2>, scalar_prefetch = 0 : i64, scratch_operands = 0 : i64, tpu.core_type = #tpu.core_type<tc>, window_params = [{transform_indices = @transform_0, window_bounds = array<i64: 1, 8, 64>}, {transform_indices = @transform_1, window_bounds = array<i64: 1, 17, 64>}, {transform_indices = @transform_2, window_bounds = array<i64: 1, 1, 8>}, {pipeline_mode = #tpu.pipeline_mode<synchronous>, transform_indices = @transform_3, window_bounds = array<i64: 64, 64>}, {pipeline_mode = #tpu.pipeline_mode<synchronous>, transform_indices = @transform_4, window_bounds = array<i64: 1, 64>}, {pipeline_mode = #tpu.pipeline_mode<synchronous>, transform_indices = @transform_5, window_bounds = array<i64: 64, 64>}, {pipeline_mode = #tpu.pipeline_mode<synchronous>, transform_indices = @transform_6, window_bounds = array<i64: 1, 64>}, {pipeline_mode = #tpu.pipeline_mode<synchronous>, transform_indices = @transform_7, window_bounds = array<i64: 64, 64>}, {pipeline_mode = #tpu.pipeline_mode<synchronous>, transform_indices = @transform_8, window_bounds = array<i64: 1, 64>}, {pipeline_mode = #tpu.pipeline_mode<synchronous>, transform_indices = @transform_9, window_bounds = array<i64: 64, 64>}, {pipeline_mode = #tpu.pipeline_mode<synchronous>, transform_indices = @transform_10, window_bounds = array<i64: 1, 64>}, {pipeline_mode = #tpu.pipeline_mode<synchronous>, transform_indices = @transform_11, window_bounds = array<i64: 1, 64>}, {pipeline_mode = #tpu.pipeline_mode<synchronous>, transform_indices = @transform_12, window_bounds = array<i64: 1, 64>}, {pipeline_mode = #tpu.pipeline_mode<synchronous>, transform_indices = @transform_13, window_bounds = array<i64: 64, 64>}, {pipeline_mode = #tpu.pipeline_mode<synchronous>, transform_indices = @transform_14, window_bounds = array<i64: 1, 64>}, {pipeline_mode = #tpu.pipeline_mode<synchronous>, transform_indices = @transform_15, window_bounds = array<i64: 64, 64>}, {pipeline_mode = #tpu.pipeline_mode<synchronous>, transform_indices = @transform_16, window_bounds = array<i64: 1, 64>}, {pipeline_mode = #tpu.pipeline_mode<synchronous>, transform_indices = @transform_17, window_bounds = array<i64: 64, 64>}, {pipeline_mode = #tpu.pipeline_mode<synchronous>, transform_indices = @transform_18, window_bounds = array<i64: 1, 64>}, {pipeline_mode = #tpu.pipeline_mode<synchronous>, transform_indices = @transform_19, window_bounds = array<i64: 64, 64>}, {pipeline_mode = #tpu.pipeline_mode<synchronous>, transform_indices = @transform_20, window_bounds = array<i64: 1, 64>}, {pipeline_mode = #tpu.pipeline_mode<synchronous>, transform_indices = @transform_21, window_bounds = array<i64: 1, 64>}, {pipeline_mode = #tpu.pipeline_mode<synchronous>, transform_indices = @transform_22, window_bounds = array<i64: 1, 64>}, {pipeline_mode = #tpu.pipeline_mode<synchronous>, transform_indices = @transform_23, window_bounds = array<i64: 64, 256>}, {pipeline_mode = #tpu.pipeline_mode<synchronous>, transform_indices = @transform_24, window_bounds = array<i64: 1, 256>}, {pipeline_mode = #tpu.pipeline_mode<synchronous>, transform_indices = @transform_25, window_bounds = array<i64: 256, 64>}, {pipeline_mode = #tpu.pipeline_mode<synchronous>, transform_indices = @transform_26, window_bounds = array<i64: 1, 64>}, {pipeline_mode = #tpu.pipeline_mode<synchronous>, transform_indices = @transform_27, window_bounds = array<i64: 1, 64>}, {pipeline_mode = #tpu.pipeline_mode<synchronous>, transform_indices = @transform_28, window_bounds = array<i64: 1, 64>}, {transform_indices = @transform_29, window_bounds = array<i64: 1, 8, 64>}]} {
    %c0 = arith.constant 0 : index
    %c0_0 = arith.constant 0 : index
    %c0_1 = arith.constant 0 : index
    %0 = vector.load %arg1[%c0, %c0_0, %c0_1] : memref<1x8x64xf32, #tpu.memory_space<vmem>>, vector<1x8x64xf32>
    %1 = vector.shape_cast %0 : vector<1x8x64xf32> to vector<8x64xf32>
    %c0_2 = arith.constant 0 : index
    %c0_3 = arith.constant 0 : index
    %c0_4 = arith.constant 0 : index
    %2 = vector.load %arg2[%c0_2, %c0_3, %c0_4] : memref<1x17x64xf32, #tpu.memory_space<vmem>>, vector<1x17x64xf32>
    %3 = vector.shape_cast %2 : vector<1x17x64xf32> to vector<17x64xf32>
    %c0_5 = arith.constant 0 : index
    %c0_6 = arith.constant 0 : index
    %c0_7 = arith.constant 0 : index
    %4 = vector.load %arg3[%c0_5, %c0_6, %c0_7] : memref<1x1x8xf32, #tpu.memory_space<vmem>>, vector<1x1x8xf32>
    %5 = vector.shape_cast %4 : vector<1x1x8xf32> to vector<1x8xf32>
    %cst = arith.constant 1.000000e+00 : f32
    %6 = vector.broadcast %cst : f32 to vector<1x8xf32>
    %7 = arith.subf %6, %5 : vector<1x8xf32>
    %cst_8 = arith.constant -1.000000e+04 : f32
    %8 = vector.broadcast %cst_8 : f32 to vector<1x8xf32>
    %9 = arith.mulf %7, %8 : vector<1x8xf32>
    %c0_9 = arith.constant 0 : index
    %c0_10 = arith.constant 0 : index
    %10 = vector.load %arg4[%c0_9, %c0_10] : memref<64x64xf32, #tpu.memory_space<vmem>>, vector<64x64xf32>
    %cst_11 = arith.constant dense<0.000000e+00> : vector<8x64xf32>
    %11 = tpu.matmul %1, %10, %cst_11 {dimension_numbers = #tpu.dot_dimension_numbers<[1], [0], [0], [1], [0, 0, 1, 1], [], []>} : vector<8x64xf32>, vector<64x64xf32>, vector<8x64xf32> -> vector<8x64xf32>
    %c0_12 = arith.constant 0 : index
    %c0_13 = arith.constant 0 : index
    %12 = vector.load %arg5[%c0_12, %c0_13] : memref<1x64xf32, #tpu.memory_space<vmem>>, vector<1x64xf32>
    %13 = vector.broadcast %12 : vector<1x64xf32> to vector<8x64xf32>
    %14 = arith.addf %11, %13 : vector<8x64xf32>
    %c0_14 = arith.constant 0 : index
    %c0_15 = arith.constant 0 : index
    %15 = vector.load %arg6[%c0_14, %c0_15] : memref<64x64xf32, #tpu.memory_space<vmem>>, vector<64x64xf32>
    %cst_16 = arith.constant dense<0.000000e+00> : vector<8x64xf32>
    %16 = tpu.matmul %1, %15, %cst_16 {dimension_numbers = #tpu.dot_dimension_numbers<[1], [0], [0], [1], [0, 0, 1, 1], [], []>} : vector<8x64xf32>, vector<64x64xf32>, vector<8x64xf32> -> vector<8x64xf32>
    %c0_17 = arith.constant 0 : index
    %c0_18 = arith.constant 0 : index
    %17 = vector.load %arg7[%c0_17, %c0_18] : memref<1x64xf32, #tpu.memory_space<vmem>>, vector<1x64xf32>
    %18 = vector.broadcast %17 : vector<1x64xf32> to vector<8x64xf32>
    %19 = arith.addf %16, %18 : vector<8x64xf32>
    %c0_19 = arith.constant 0 : index
    %c0_20 = arith.constant 0 : index
    %20 = vector.load %arg8[%c0_19, %c0_20] : memref<64x64xf32, #tpu.memory_space<vmem>>, vector<64x64xf32>
    %cst_21 = arith.constant dense<0.000000e+00> : vector<8x64xf32>
    %21 = tpu.matmul %1, %20, %cst_21 {dimension_numbers = #tpu.dot_dimension_numbers<[1], [0], [0], [1], [0, 0, 1, 1], [], []>} : vector<8x64xf32>, vector<64x64xf32>, vector<8x64xf32> -> vector<8x64xf32>
    %c0_22 = arith.constant 0 : index
    %c0_23 = arith.constant 0 : index
    %22 = vector.load %arg9[%c0_22, %c0_23] : memref<1x64xf32, #tpu.memory_space<vmem>>, vector<1x64xf32>
    %23 = vector.broadcast %22 : vector<1x64xf32> to vector<8x64xf32>
    %24 = arith.addf %21, %23 : vector<8x64xf32>
    %c0_24 = arith.constant 0 : index
    %c0_25 = arith.constant 0 : index
    %25 = vector.load %arg10[%c0_24, %c0_25] : memref<64x64xf32, #tpu.memory_space<vmem>>, vector<64x64xf32>
    %cst_26 = arith.constant 0.000000e+00 : f32
    %26 = vector.broadcast %cst_26 : f32 to vector<8x64xf32>
    %27 = vector.extract_strided_slice %14 {offsets = [0, 0], sizes = [8, 16], strides = [1, 1]} : vector<8x64xf32> to vector<8x16xf32>
    %28 = vector.extract_strided_slice %19 {offsets = [0, 0], sizes = [8, 16], strides = [1, 1]} : vector<8x64xf32> to vector<8x16xf32>
    %29 = vector.extract_strided_slice %24 {offsets = [0, 0], sizes = [8, 16], strides = [1, 1]} : vector<8x64xf32> to vector<8x16xf32>
    %cst_27 = arith.constant dense<0.000000e+00> : vector<8x8xf32>
    %30 = tpu.matmul %27, %28, %cst_27 {dimension_numbers = #tpu.dot_dimension_numbers<[1], [1], [0], [0], [0, 0, 1, 0], [], []>} : vector<8x16xf32>, vector<8x16xf32>, vector<8x8xf32> -> vector<8x8xf32>
    %cst_28 = arith.constant 2.500000e-01 : f32
    %31 = vector.broadcast %cst_28 : f32 to vector<8x8xf32>
    %32 = arith.mulf %30, %31 : vector<8x8xf32>
    %33 = vector.broadcast %9 : vector<1x8xf32> to vector<8x8xf32>
    %34 = arith.addf %32, %33 : vector<8x8xf32>
    %cst_29 = arith.constant dense<0xFF800000> : vector<8xf32>
    %35 = vector.multi_reduction <maximumf>, %34, %cst_29 [1] : vector<8x8xf32> to vector<8xf32>
    %36 = vector.shape_cast %35 : vector<8xf32> to vector<8x1xf32>
    %37 = vector.broadcast %36 : vector<8x1xf32> to vector<8x8xf32>
    %38 = arith.subf %34, %37 : vector<8x8xf32>
    %39 = math.exp %38 : vector<8x8xf32>
    %cst_30 = arith.constant dense<0.000000e+00> : vector<8xf32>
    %40 = vector.multi_reduction <add>, %39, %cst_30 [1] : vector<8x8xf32> to vector<8xf32>
    %41 = vector.shape_cast %40 : vector<8xf32> to vector<8x1xf32>
    %42 = vector.broadcast %41 : vector<8x1xf32> to vector<8x8xf32>
    %43 = arith.divf %39, %42 : vector<8x8xf32>
    %cst_31 = arith.constant dense<0.000000e+00> : vector<8x16xf32>
    %44 = tpu.matmul %43, %29, %cst_31 {dimension_numbers = #tpu.dot_dimension_numbers<[1], [0], [0], [1], [0, 0, 1, 1], [], []>} : vector<8x8xf32>, vector<8x16xf32>, vector<8x16xf32> -> vector<8x16xf32>
    %45 = vector.extract_strided_slice %25 {offsets = [0, 0], sizes = [16, 64], strides = [1, 1]} : vector<64x64xf32> to vector<16x64xf32>
    %cst_32 = arith.constant dense<0.000000e+00> : vector<8x64xf32>
    %46 = tpu.matmul %44, %45, %cst_32 {dimension_numbers = #tpu.dot_dimension_numbers<[1], [0], [0], [1], [0, 0, 1, 1], [], []>} : vector<8x16xf32>, vector<16x64xf32>, vector<8x64xf32> -> vector<8x64xf32>
    %47 = arith.addf %26, %46 : vector<8x64xf32>
    %48 = vector.extract_strided_slice %14 {offsets = [0, 16], sizes = [8, 16], strides = [1, 1]} : vector<8x64xf32> to vector<8x16xf32>
    %49 = vector.extract_strided_slice %19 {offsets = [0, 16], sizes = [8, 16], strides = [1, 1]} : vector<8x64xf32> to vector<8x16xf32>
    %50 = vector.extract_strided_slice %24 {offsets = [0, 16], sizes = [8, 16], strides = [1, 1]} : vector<8x64xf32> to vector<8x16xf32>
    %cst_33 = arith.constant dense<0.000000e+00> : vector<8x8xf32>
    %51 = tpu.matmul %48, %49, %cst_33 {dimension_numbers = #tpu.dot_dimension_numbers<[1], [1], [0], [0], [0, 0, 1, 0], [], []>} : vector<8x16xf32>, vector<8x16xf32>, vector<8x8xf32> -> vector<8x8xf32>
    %cst_34 = arith.constant 2.500000e-01 : f32
    %52 = vector.broadcast %cst_34 : f32 to vector<8x8xf32>
    %53 = arith.mulf %51, %52 : vector<8x8xf32>
    %54 = vector.broadcast %9 : vector<1x8xf32> to vector<8x8xf32>
    %55 = arith.addf %53, %54 : vector<8x8xf32>
    %cst_35 = arith.constant dense<0xFF800000> : vector<8xf32>
    %56 = vector.multi_reduction <maximumf>, %55, %cst_35 [1] : vector<8x8xf32> to vector<8xf32>
    %57 = vector.shape_cast %56 : vector<8xf32> to vector<8x1xf32>
    %58 = vector.broadcast %57 : vector<8x1xf32> to vector<8x8xf32>
    %59 = arith.subf %55, %58 : vector<8x8xf32>
    %60 = math.exp %59 : vector<8x8xf32>
    %cst_36 = arith.constant dense<0.000000e+00> : vector<8xf32>
    %61 = vector.multi_reduction <add>, %60, %cst_36 [1] : vector<8x8xf32> to vector<8xf32>
    %62 = vector.shape_cast %61 : vector<8xf32> to vector<8x1xf32>
    %63 = vector.broadcast %62 : vector<8x1xf32> to vector<8x8xf32>
    %64 = arith.divf %60, %63 : vector<8x8xf32>
    %cst_37 = arith.constant dense<0.000000e+00> : vector<8x16xf32>
    %65 = tpu.matmul %64, %50, %cst_37 {dimension_numbers = #tpu.dot_dimension_numbers<[1], [0], [0], [1], [0, 0, 1, 1], [], []>} : vector<8x8xf32>, vector<8x16xf32>, vector<8x16xf32> -> vector<8x16xf32>
    %66 = vector.extract_strided_slice %25 {offsets = [16, 0], sizes = [16, 64], strides = [1, 1]} : vector<64x64xf32> to vector<16x64xf32>
    %cst_38 = arith.constant dense<0.000000e+00> : vector<8x64xf32>
    %67 = tpu.matmul %65, %66, %cst_38 {dimension_numbers = #tpu.dot_dimension_numbers<[1], [0], [0], [1], [0, 0, 1, 1], [], []>} : vector<8x16xf32>, vector<16x64xf32>, vector<8x64xf32> -> vector<8x64xf32>
    %68 = arith.addf %47, %67 : vector<8x64xf32>
    %69 = vector.extract_strided_slice %14 {offsets = [0, 32], sizes = [8, 16], strides = [1, 1]} : vector<8x64xf32> to vector<8x16xf32>
    %70 = vector.extract_strided_slice %19 {offsets = [0, 32], sizes = [8, 16], strides = [1, 1]} : vector<8x64xf32> to vector<8x16xf32>
    %71 = vector.extract_strided_slice %24 {offsets = [0, 32], sizes = [8, 16], strides = [1, 1]} : vector<8x64xf32> to vector<8x16xf32>
    %cst_39 = arith.constant dense<0.000000e+00> : vector<8x8xf32>
    %72 = tpu.matmul %69, %70, %cst_39 {dimension_numbers = #tpu.dot_dimension_numbers<[1], [1], [0], [0], [0, 0, 1, 0], [], []>} : vector<8x16xf32>, vector<8x16xf32>, vector<8x8xf32> -> vector<8x8xf32>
    %cst_40 = arith.constant 2.500000e-01 : f32
    %73 = vector.broadcast %cst_40 : f32 to vector<8x8xf32>
    %74 = arith.mulf %72, %73 : vector<8x8xf32>
    %75 = vector.broadcast %9 : vector<1x8xf32> to vector<8x8xf32>
    %76 = arith.addf %74, %75 : vector<8x8xf32>
    %cst_41 = arith.constant dense<0xFF800000> : vector<8xf32>
    %77 = vector.multi_reduction <maximumf>, %76, %cst_41 [1] : vector<8x8xf32> to vector<8xf32>
    %78 = vector.shape_cast %77 : vector<8xf32> to vector<8x1xf32>
    %79 = vector.broadcast %78 : vector<8x1xf32> to vector<8x8xf32>
    %80 = arith.subf %76, %79 : vector<8x8xf32>
    %81 = math.exp %80 : vector<8x8xf32>
    %cst_42 = arith.constant dense<0.000000e+00> : vector<8xf32>
    %82 = vector.multi_reduction <add>, %81, %cst_42 [1] : vector<8x8xf32> to vector<8xf32>
    %83 = vector.shape_cast %82 : vector<8xf32> to vector<8x1xf32>
    %84 = vector.broadcast %83 : vector<8x1xf32> to vector<8x8xf32>
    %85 = arith.divf %81, %84 : vector<8x8xf32>
    %cst_43 = arith.constant dense<0.000000e+00> : vector<8x16xf32>
    %86 = tpu.matmul %85, %71, %cst_43 {dimension_numbers = #tpu.dot_dimension_numbers<[1], [0], [0], [1], [0, 0, 1, 1], [], []>} : vector<8x8xf32>, vector<8x16xf32>, vector<8x16xf32> -> vector<8x16xf32>
    %87 = vector.extract_strided_slice %25 {offsets = [32, 0], sizes = [16, 64], strides = [1, 1]} : vector<64x64xf32> to vector<16x64xf32>
    %cst_44 = arith.constant dense<0.000000e+00> : vector<8x64xf32>
    %88 = tpu.matmul %86, %87, %cst_44 {dimension_numbers = #tpu.dot_dimension_numbers<[1], [0], [0], [1], [0, 0, 1, 1], [], []>} : vector<8x16xf32>, vector<16x64xf32>, vector<8x64xf32> -> vector<8x64xf32>
    %89 = arith.addf %68, %88 : vector<8x64xf32>
    %90 = vector.extract_strided_slice %14 {offsets = [0, 48], sizes = [8, 16], strides = [1, 1]} : vector<8x64xf32> to vector<8x16xf32>
    %91 = vector.extract_strided_slice %19 {offsets = [0, 48], sizes = [8, 16], strides = [1, 1]} : vector<8x64xf32> to vector<8x16xf32>
    %92 = vector.extract_strided_slice %24 {offsets = [0, 48], sizes = [8, 16], strides = [1, 1]} : vector<8x64xf32> to vector<8x16xf32>
    %cst_45 = arith.constant dense<0.000000e+00> : vector<8x8xf32>
    %93 = tpu.matmul %90, %91, %cst_45 {dimension_numbers = #tpu.dot_dimension_numbers<[1], [1], [0], [0], [0, 0, 1, 0], [], []>} : vector<8x16xf32>, vector<8x16xf32>, vector<8x8xf32> -> vector<8x8xf32>
    %cst_46 = arith.constant 2.500000e-01 : f32
    %94 = vector.broadcast %cst_46 : f32 to vector<8x8xf32>
    %95 = arith.mulf %93, %94 : vector<8x8xf32>
    %96 = vector.broadcast %9 : vector<1x8xf32> to vector<8x8xf32>
    %97 = arith.addf %95, %96 : vector<8x8xf32>
    %cst_47 = arith.constant dense<0xFF800000> : vector<8xf32>
    %98 = vector.multi_reduction <maximumf>, %97, %cst_47 [1] : vector<8x8xf32> to vector<8xf32>
    %99 = vector.shape_cast %98 : vector<8xf32> to vector<8x1xf32>
    %100 = vector.broadcast %99 : vector<8x1xf32> to vector<8x8xf32>
    %101 = arith.subf %97, %100 : vector<8x8xf32>
    %102 = math.exp %101 : vector<8x8xf32>
    %cst_48 = arith.constant dense<0.000000e+00> : vector<8xf32>
    %103 = vector.multi_reduction <add>, %102, %cst_48 [1] : vector<8x8xf32> to vector<8xf32>
    %104 = vector.shape_cast %103 : vector<8xf32> to vector<8x1xf32>
    %105 = vector.broadcast %104 : vector<8x1xf32> to vector<8x8xf32>
    %106 = arith.divf %102, %105 : vector<8x8xf32>
    %cst_49 = arith.constant dense<0.000000e+00> : vector<8x16xf32>
    %107 = tpu.matmul %106, %92, %cst_49 {dimension_numbers = #tpu.dot_dimension_numbers<[1], [0], [0], [1], [0, 0, 1, 1], [], []>} : vector<8x8xf32>, vector<8x16xf32>, vector<8x16xf32> -> vector<8x16xf32>
    %108 = vector.extract_strided_slice %25 {offsets = [48, 0], sizes = [16, 64], strides = [1, 1]} : vector<64x64xf32> to vector<16x64xf32>
    %cst_50 = arith.constant dense<0.000000e+00> : vector<8x64xf32>
    %109 = tpu.matmul %107, %108, %cst_50 {dimension_numbers = #tpu.dot_dimension_numbers<[1], [0], [0], [1], [0, 0, 1, 1], [], []>} : vector<8x16xf32>, vector<16x64xf32>, vector<8x64xf32> -> vector<8x64xf32>
    %110 = arith.addf %89, %109 : vector<8x64xf32>
    %c0_51 = arith.constant 0 : index
    %c0_52 = arith.constant 0 : index
    %111 = vector.load %arg11[%c0_51, %c0_52] : memref<1x64xf32, #tpu.memory_space<vmem>>, vector<1x64xf32>
    %112 = vector.broadcast %111 : vector<1x64xf32> to vector<8x64xf32>
    %113 = arith.addf %110, %112 : vector<8x64xf32>
    %114 = arith.addf %1, %113 : vector<8x64xf32>
    %c0_53 = arith.constant 0 : index
    %c0_54 = arith.constant 0 : index
    %115 = vector.load %arg12[%c0_53, %c0_54] : memref<1x64xf32, #tpu.memory_space<vmem>>, vector<1x64xf32>
    %c0_55 = arith.constant 0 : index
    %c0_56 = arith.constant 0 : index
    %116 = vector.load %arg13[%c0_55, %c0_56] : memref<1x64xf32, #tpu.memory_space<vmem>>, vector<1x64xf32>
    %cst_57 = arith.constant dense<0.000000e+00> : vector<8xf32>
    %117 = vector.multi_reduction <add>, %114, %cst_57 [1] : vector<8x64xf32> to vector<8xf32>
    %118 = vector.shape_cast %117 : vector<8xf32> to vector<8x1xf32>
    %cst_58 = arith.constant 6.400000e+01 : f32
    %119 = vector.broadcast %cst_58 : f32 to vector<8x1xf32>
    %120 = arith.divf %118, %119 : vector<8x1xf32>
    %121 = vector.broadcast %120 : vector<8x1xf32> to vector<8x64xf32>
    %122 = arith.subf %114, %121 : vector<8x64xf32>
    %123 = arith.mulf %122, %122 : vector<8x64xf32>
    %cst_59 = arith.constant dense<0.000000e+00> : vector<8xf32>
    %124 = vector.multi_reduction <add>, %123, %cst_59 [1] : vector<8x64xf32> to vector<8xf32>
    %125 = vector.shape_cast %124 : vector<8xf32> to vector<8x1xf32>
    %cst_60 = arith.constant 6.400000e+01 : f32
    %126 = vector.broadcast %cst_60 : f32 to vector<8x1xf32>
    %127 = arith.divf %125, %126 : vector<8x1xf32>
    %128 = vector.broadcast %120 : vector<8x1xf32> to vector<8x64xf32>
    %129 = arith.subf %114, %128 : vector<8x64xf32>
    %cst_61 = arith.constant 9.99999996E-13 : f32
    %130 = vector.broadcast %cst_61 : f32 to vector<8x1xf32>
    %131 = arith.addf %127, %130 : vector<8x1xf32>
    %132 = math.rsqrt %131 : vector<8x1xf32>
    %133 = vector.broadcast %132 : vector<8x1xf32> to vector<8x64xf32>
    %134 = arith.mulf %129, %133 : vector<8x64xf32>
    %135 = vector.broadcast %115 : vector<1x64xf32> to vector<8x64xf32>
    %136 = arith.mulf %134, %135 : vector<8x64xf32>
    %137 = vector.broadcast %116 : vector<1x64xf32> to vector<8x64xf32>
    %138 = arith.addf %136, %137 : vector<8x64xf32>
    %c0_62 = arith.constant 0 : index
    %c0_63 = arith.constant 0 : index
    %139 = vector.load %arg14[%c0_62, %c0_63] : memref<64x64xf32, #tpu.memory_space<vmem>>, vector<64x64xf32>
    %cst_64 = arith.constant dense<0.000000e+00> : vector<8x64xf32>
    %140 = tpu.matmul %138, %139, %cst_64 {dimension_numbers = #tpu.dot_dimension_numbers<[1], [0], [0], [1], [0, 0, 1, 1], [], []>} : vector<8x64xf32>, vector<64x64xf32>, vector<8x64xf32> -> vector<8x64xf32>
    %c0_65 = arith.constant 0 : index
    %c0_66 = arith.constant 0 : index
    %141 = vector.load %arg15[%c0_65, %c0_66] : memref<1x64xf32, #tpu.memory_space<vmem>>, vector<1x64xf32>
    %142 = vector.broadcast %141 : vector<1x64xf32> to vector<8x64xf32>
    %143 = arith.addf %140, %142 : vector<8x64xf32>
    %c0_67 = arith.constant 0 : index
    %c0_68 = arith.constant 0 : index
    %144 = vector.load %arg16[%c0_67, %c0_68] : memref<64x64xf32, #tpu.memory_space<vmem>>, vector<64x64xf32>
    %cst_69 = arith.constant dense<0.000000e+00> : vector<17x64xf32>
    %145 = tpu.matmul %3, %144, %cst_69 {dimension_numbers = #tpu.dot_dimension_numbers<[1], [0], [0], [1], [0, 0, 1, 1], [], []>} : vector<17x64xf32>, vector<64x64xf32>, vector<17x64xf32> -> vector<17x64xf32>
    %c0_70 = arith.constant 0 : index
    %c0_71 = arith.constant 0 : index
    %146 = vector.load %arg17[%c0_70, %c0_71] : memref<1x64xf32, #tpu.memory_space<vmem>>, vector<1x64xf32>
    %147 = vector.broadcast %146 : vector<1x64xf32> to vector<17x64xf32>
    %148 = arith.addf %145, %147 : vector<17x64xf32>
    %c0_72 = arith.constant 0 : index
    %c0_73 = arith.constant 0 : index
    %149 = vector.load %arg18[%c0_72, %c0_73] : memref<64x64xf32, #tpu.memory_space<vmem>>, vector<64x64xf32>
    %cst_74 = arith.constant dense<0.000000e+00> : vector<17x64xf32>
    %150 = tpu.matmul %3, %149, %cst_74 {dimension_numbers = #tpu.dot_dimension_numbers<[1], [0], [0], [1], [0, 0, 1, 1], [], []>} : vector<17x64xf32>, vector<64x64xf32>, vector<17x64xf32> -> vector<17x64xf32>
    %c0_75 = arith.constant 0 : index
    %c0_76 = arith.constant 0 : index
    %151 = vector.load %arg19[%c0_75, %c0_76] : memref<1x64xf32, #tpu.memory_space<vmem>>, vector<1x64xf32>
    %152 = vector.broadcast %151 : vector<1x64xf32> to vector<17x64xf32>
    %153 = arith.addf %150, %152 : vector<17x64xf32>
    %c0_77 = arith.constant 0 : index
    %c0_78 = arith.constant 0 : index
    %154 = vector.load %arg20[%c0_77, %c0_78] : memref<64x64xf32, #tpu.memory_space<vmem>>, vector<64x64xf32>
    %cst_79 = arith.constant 0.000000e+00 : f32
    %155 = vector.broadcast %cst_79 : f32 to vector<8x64xf32>
    %156 = vector.extract_strided_slice %143 {offsets = [0, 0], sizes = [8, 16], strides = [1, 1]} : vector<8x64xf32> to vector<8x16xf32>
    %157 = vector.extract_strided_slice %148 {offsets = [0, 0], sizes = [17, 16], strides = [1, 1]} : vector<17x64xf32> to vector<17x16xf32>
    %158 = vector.extract_strided_slice %153 {offsets = [0, 0], sizes = [17, 16], strides = [1, 1]} : vector<17x64xf32> to vector<17x16xf32>
    %cst_80 = arith.constant dense<0.000000e+00> : vector<8x17xf32>
    %159 = tpu.matmul %156, %157, %cst_80 {dimension_numbers = #tpu.dot_dimension_numbers<[1], [1], [0], [0], [0, 0, 1, 0], [], []>} : vector<8x16xf32>, vector<17x16xf32>, vector<8x17xf32> -> vector<8x17xf32>
    %cst_81 = arith.constant 2.500000e-01 : f32
    %160 = vector.broadcast %cst_81 : f32 to vector<8x17xf32>
    %161 = arith.mulf %159, %160 : vector<8x17xf32>
    %cst_82 = arith.constant dense<0xFF800000> : vector<8xf32>
    %162 = vector.multi_reduction <maximumf>, %161, %cst_82 [1] : vector<8x17xf32> to vector<8xf32>
    %163 = vector.shape_cast %162 : vector<8xf32> to vector<8x1xf32>
    %164 = vector.broadcast %163 : vector<8x1xf32> to vector<8x17xf32>
    %165 = arith.subf %161, %164 : vector<8x17xf32>
    %166 = math.exp %165 : vector<8x17xf32>
    %cst_83 = arith.constant dense<0.000000e+00> : vector<8xf32>
    %167 = vector.multi_reduction <add>, %166, %cst_83 [1] : vector<8x17xf32> to vector<8xf32>
    %168 = vector.shape_cast %167 : vector<8xf32> to vector<8x1xf32>
    %169 = vector.broadcast %168 : vector<8x1xf32> to vector<8x17xf32>
    %170 = arith.divf %166, %169 : vector<8x17xf32>
    %cst_84 = arith.constant dense<0.000000e+00> : vector<8x16xf32>
    %171 = tpu.matmul %170, %158, %cst_84 {dimension_numbers = #tpu.dot_dimension_numbers<[1], [0], [0], [1], [0, 0, 1, 1], [], []>} : vector<8x17xf32>, vector<17x16xf32>, vector<8x16xf32> -> vector<8x16xf32>
    %172 = vector.extract_strided_slice %154 {offsets = [0, 0], sizes = [16, 64], strides = [1, 1]} : vector<64x64xf32> to vector<16x64xf32>
    %cst_85 = arith.constant dense<0.000000e+00> : vector<8x64xf32>
    %173 = tpu.matmul %171, %172, %cst_85 {dimension_numbers = #tpu.dot_dimension_numbers<[1], [0], [0], [1], [0, 0, 1, 1], [], []>} : vector<8x16xf32>, vector<16x64xf32>, vector<8x64xf32> -> vector<8x64xf32>
    %174 = arith.addf %155, %173 : vector<8x64xf32>
    %175 = vector.extract_strided_slice %143 {offsets = [0, 16], sizes = [8, 16], strides = [1, 1]} : vector<8x64xf32> to vector<8x16xf32>
    %176 = vector.extract_strided_slice %148 {offsets = [0, 16], sizes = [17, 16], strides = [1, 1]} : vector<17x64xf32> to vector<17x16xf32>
    %177 = vector.extract_strided_slice %153 {offsets = [0, 16], sizes = [17, 16], strides = [1, 1]} : vector<17x64xf32> to vector<17x16xf32>
    %cst_86 = arith.constant dense<0.000000e+00> : vector<8x17xf32>
    %178 = tpu.matmul %175, %176, %cst_86 {dimension_numbers = #tpu.dot_dimension_numbers<[1], [1], [0], [0], [0, 0, 1, 0], [], []>} : vector<8x16xf32>, vector<17x16xf32>, vector<8x17xf32> -> vector<8x17xf32>
    %cst_87 = arith.constant 2.500000e-01 : f32
    %179 = vector.broadcast %cst_87 : f32 to vector<8x17xf32>
    %180 = arith.mulf %178, %179 : vector<8x17xf32>
    %cst_88 = arith.constant dense<0xFF800000> : vector<8xf32>
    %181 = vector.multi_reduction <maximumf>, %180, %cst_88 [1] : vector<8x17xf32> to vector<8xf32>
    %182 = vector.shape_cast %181 : vector<8xf32> to vector<8x1xf32>
    %183 = vector.broadcast %182 : vector<8x1xf32> to vector<8x17xf32>
    %184 = arith.subf %180, %183 : vector<8x17xf32>
    %185 = math.exp %184 : vector<8x17xf32>
    %cst_89 = arith.constant dense<0.000000e+00> : vector<8xf32>
    %186 = vector.multi_reduction <add>, %185, %cst_89 [1] : vector<8x17xf32> to vector<8xf32>
    %187 = vector.shape_cast %186 : vector<8xf32> to vector<8x1xf32>
    %188 = vector.broadcast %187 : vector<8x1xf32> to vector<8x17xf32>
    %189 = arith.divf %185, %188 : vector<8x17xf32>
    %cst_90 = arith.constant dense<0.000000e+00> : vector<8x16xf32>
    %190 = tpu.matmul %189, %177, %cst_90 {dimension_numbers = #tpu.dot_dimension_numbers<[1], [0], [0], [1], [0, 0, 1, 1], [], []>} : vector<8x17xf32>, vector<17x16xf32>, vector<8x16xf32> -> vector<8x16xf32>
    %191 = vector.extract_strided_slice %154 {offsets = [16, 0], sizes = [16, 64], strides = [1, 1]} : vector<64x64xf32> to vector<16x64xf32>
    %cst_91 = arith.constant dense<0.000000e+00> : vector<8x64xf32>
    %192 = tpu.matmul %190, %191, %cst_91 {dimension_numbers = #tpu.dot_dimension_numbers<[1], [0], [0], [1], [0, 0, 1, 1], [], []>} : vector<8x16xf32>, vector<16x64xf32>, vector<8x64xf32> -> vector<8x64xf32>
    %193 = arith.addf %174, %192 : vector<8x64xf32>
    %194 = vector.extract_strided_slice %143 {offsets = [0, 32], sizes = [8, 16], strides = [1, 1]} : vector<8x64xf32> to vector<8x16xf32>
    %195 = vector.extract_strided_slice %148 {offsets = [0, 32], sizes = [17, 16], strides = [1, 1]} : vector<17x64xf32> to vector<17x16xf32>
    %196 = vector.extract_strided_slice %153 {offsets = [0, 32], sizes = [17, 16], strides = [1, 1]} : vector<17x64xf32> to vector<17x16xf32>
    %cst_92 = arith.constant dense<0.000000e+00> : vector<8x17xf32>
    %197 = tpu.matmul %194, %195, %cst_92 {dimension_numbers = #tpu.dot_dimension_numbers<[1], [1], [0], [0], [0, 0, 1, 0], [], []>} : vector<8x16xf32>, vector<17x16xf32>, vector<8x17xf32> -> vector<8x17xf32>
    %cst_93 = arith.constant 2.500000e-01 : f32
    %198 = vector.broadcast %cst_93 : f32 to vector<8x17xf32>
    %199 = arith.mulf %197, %198 : vector<8x17xf32>
    %cst_94 = arith.constant dense<0xFF800000> : vector<8xf32>
    %200 = vector.multi_reduction <maximumf>, %199, %cst_94 [1] : vector<8x17xf32> to vector<8xf32>
    %201 = vector.shape_cast %200 : vector<8xf32> to vector<8x1xf32>
    %202 = vector.broadcast %201 : vector<8x1xf32> to vector<8x17xf32>
    %203 = arith.subf %199, %202 : vector<8x17xf32>
    %204 = math.exp %203 : vector<8x17xf32>
    %cst_95 = arith.constant dense<0.000000e+00> : vector<8xf32>
    %205 = vector.multi_reduction <add>, %204, %cst_95 [1] : vector<8x17xf32> to vector<8xf32>
    %206 = vector.shape_cast %205 : vector<8xf32> to vector<8x1xf32>
    %207 = vector.broadcast %206 : vector<8x1xf32> to vector<8x17xf32>
    %208 = arith.divf %204, %207 : vector<8x17xf32>
    %cst_96 = arith.constant dense<0.000000e+00> : vector<8x16xf32>
    %209 = tpu.matmul %208, %196, %cst_96 {dimension_numbers = #tpu.dot_dimension_numbers<[1], [0], [0], [1], [0, 0, 1, 1], [], []>} : vector<8x17xf32>, vector<17x16xf32>, vector<8x16xf32> -> vector<8x16xf32>
    %210 = vector.extract_strided_slice %154 {offsets = [32, 0], sizes = [16, 64], strides = [1, 1]} : vector<64x64xf32> to vector<16x64xf32>
    %cst_97 = arith.constant dense<0.000000e+00> : vector<8x64xf32>
    %211 = tpu.matmul %209, %210, %cst_97 {dimension_numbers = #tpu.dot_dimension_numbers<[1], [0], [0], [1], [0, 0, 1, 1], [], []>} : vector<8x16xf32>, vector<16x64xf32>, vector<8x64xf32> -> vector<8x64xf32>
    %212 = arith.addf %193, %211 : vector<8x64xf32>
    %213 = vector.extract_strided_slice %143 {offsets = [0, 48], sizes = [8, 16], strides = [1, 1]} : vector<8x64xf32> to vector<8x16xf32>
    %214 = vector.extract_strided_slice %148 {offsets = [0, 48], sizes = [17, 16], strides = [1, 1]} : vector<17x64xf32> to vector<17x16xf32>
    %215 = vector.extract_strided_slice %153 {offsets = [0, 48], sizes = [17, 16], strides = [1, 1]} : vector<17x64xf32> to vector<17x16xf32>
    %cst_98 = arith.constant dense<0.000000e+00> : vector<8x17xf32>
    %216 = tpu.matmul %213, %214, %cst_98 {dimension_numbers = #tpu.dot_dimension_numbers<[1], [1], [0], [0], [0, 0, 1, 0], [], []>} : vector<8x16xf32>, vector<17x16xf32>, vector<8x17xf32> -> vector<8x17xf32>
    %cst_99 = arith.constant 2.500000e-01 : f32
    %217 = vector.broadcast %cst_99 : f32 to vector<8x17xf32>
    %218 = arith.mulf %216, %217 : vector<8x17xf32>
    %cst_100 = arith.constant dense<0xFF800000> : vector<8xf32>
    %219 = vector.multi_reduction <maximumf>, %218, %cst_100 [1] : vector<8x17xf32> to vector<8xf32>
    %220 = vector.shape_cast %219 : vector<8xf32> to vector<8x1xf32>
    %221 = vector.broadcast %220 : vector<8x1xf32> to vector<8x17xf32>
    %222 = arith.subf %218, %221 : vector<8x17xf32>
    %223 = math.exp %222 : vector<8x17xf32>
    %cst_101 = arith.constant dense<0.000000e+00> : vector<8xf32>
    %224 = vector.multi_reduction <add>, %223, %cst_101 [1] : vector<8x17xf32> to vector<8xf32>
    %225 = vector.shape_cast %224 : vector<8xf32> to vector<8x1xf32>
    %226 = vector.broadcast %225 : vector<8x1xf32> to vector<8x17xf32>
    %227 = arith.divf %223, %226 : vector<8x17xf32>
    %cst_102 = arith.constant dense<0.000000e+00> : vector<8x16xf32>
    %228 = tpu.matmul %227, %215, %cst_102 {dimension_numbers = #tpu.dot_dimension_numbers<[1], [0], [0], [1], [0, 0, 1, 1], [], []>} : vector<8x17xf32>, vector<17x16xf32>, vector<8x16xf32> -> vector<8x16xf32>
    %229 = vector.extract_strided_slice %154 {offsets = [48, 0], sizes = [16, 64], strides = [1, 1]} : vector<64x64xf32> to vector<16x64xf32>
    %cst_103 = arith.constant dense<0.000000e+00> : vector<8x64xf32>
    %230 = tpu.matmul %228, %229, %cst_103 {dimension_numbers = #tpu.dot_dimension_numbers<[1], [0], [0], [1], [0, 0, 1, 1], [], []>} : vector<8x16xf32>, vector<16x64xf32>, vector<8x64xf32> -> vector<8x64xf32>
    %231 = arith.addf %212, %230 : vector<8x64xf32>
    %c0_104 = arith.constant 0 : index
    %c0_105 = arith.constant 0 : index
    %232 = vector.load %arg21[%c0_104, %c0_105] : memref<1x64xf32, #tpu.memory_space<vmem>>, vector<1x64xf32>
    %233 = vector.broadcast %232 : vector<1x64xf32> to vector<8x64xf32>
    %234 = arith.addf %231, %233 : vector<8x64xf32>
    %235 = arith.addf %138, %234 : vector<8x64xf32>
    %c0_106 = arith.constant 0 : index
    %c0_107 = arith.constant 0 : index
    %236 = vector.load %arg22[%c0_106, %c0_107] : memref<1x64xf32, #tpu.memory_space<vmem>>, vector<1x64xf32>
    %c0_108 = arith.constant 0 : index
    %c0_109 = arith.constant 0 : index
    %237 = vector.load %arg23[%c0_108, %c0_109] : memref<1x64xf32, #tpu.memory_space<vmem>>, vector<1x64xf32>
    %cst_110 = arith.constant dense<0.000000e+00> : vector<8xf32>
    %238 = vector.multi_reduction <add>, %235, %cst_110 [1] : vector<8x64xf32> to vector<8xf32>
    %239 = vector.shape_cast %238 : vector<8xf32> to vector<8x1xf32>
    %cst_111 = arith.constant 6.400000e+01 : f32
    %240 = vector.broadcast %cst_111 : f32 to vector<8x1xf32>
    %241 = arith.divf %239, %240 : vector<8x1xf32>
    %242 = vector.broadcast %241 : vector<8x1xf32> to vector<8x64xf32>
    %243 = arith.subf %235, %242 : vector<8x64xf32>
    %244 = arith.mulf %243, %243 : vector<8x64xf32>
    %cst_112 = arith.constant dense<0.000000e+00> : vector<8xf32>
    %245 = vector.multi_reduction <add>, %244, %cst_112 [1] : vector<8x64xf32> to vector<8xf32>
    %246 = vector.shape_cast %245 : vector<8xf32> to vector<8x1xf32>
    %cst_113 = arith.constant 6.400000e+01 : f32
    %247 = vector.broadcast %cst_113 : f32 to vector<8x1xf32>
    %248 = arith.divf %246, %247 : vector<8x1xf32>
    %249 = vector.broadcast %241 : vector<8x1xf32> to vector<8x64xf32>
    %250 = arith.subf %235, %249 : vector<8x64xf32>
    %cst_114 = arith.constant 9.99999996E-13 : f32
    %251 = vector.broadcast %cst_114 : f32 to vector<8x1xf32>
    %252 = arith.addf %248, %251 : vector<8x1xf32>
    %253 = math.rsqrt %252 : vector<8x1xf32>
    %254 = vector.broadcast %253 : vector<8x1xf32> to vector<8x64xf32>
    %255 = arith.mulf %250, %254 : vector<8x64xf32>
    %256 = vector.broadcast %236 : vector<1x64xf32> to vector<8x64xf32>
    %257 = arith.mulf %255, %256 : vector<8x64xf32>
    %258 = vector.broadcast %237 : vector<1x64xf32> to vector<8x64xf32>
    %259 = arith.addf %257, %258 : vector<8x64xf32>
    %c0_115 = arith.constant 0 : index
    %c0_116 = arith.constant 0 : index
    %260 = vector.load %arg24[%c0_115, %c0_116] : memref<64x256xf32, #tpu.memory_space<vmem>>, vector<64x256xf32>
    %cst_117 = arith.constant dense<0.000000e+00> : vector<8x256xf32>
    %261 = tpu.matmul %259, %260, %cst_117 {dimension_numbers = #tpu.dot_dimension_numbers<[1], [0], [0], [1], [0, 0, 1, 1], [], []>} : vector<8x64xf32>, vector<64x256xf32>, vector<8x256xf32> -> vector<8x256xf32>
    %c0_118 = arith.constant 0 : index
    %c0_119 = arith.constant 0 : index
    %262 = vector.load %arg25[%c0_118, %c0_119] : memref<1x256xf32, #tpu.memory_space<vmem>>, vector<1x256xf32>
    %263 = vector.broadcast %262 : vector<1x256xf32> to vector<8x256xf32>
    %264 = arith.addf %261, %263 : vector<8x256xf32>
    %cst_120 = arith.constant 5.000000e-01 : f32
    %265 = vector.broadcast %cst_120 : f32 to vector<8x256xf32>
    %266 = arith.mulf %265, %264 : vector<8x256xf32>
    %cst_121 = arith.constant 0.707106769 : f32
    %267 = vector.broadcast %cst_121 : f32 to vector<8x256xf32>
    %268 = arith.mulf %264, %267 : vector<8x256xf32>
    %269 = math.erf %268 : vector<8x256xf32>
    %cst_122 = arith.constant 1.000000e+00 : f32
    %270 = vector.broadcast %cst_122 : f32 to vector<8x256xf32>
    %271 = arith.addf %270, %269 : vector<8x256xf32>
    %272 = arith.mulf %266, %271 : vector<8x256xf32>
    %c0_123 = arith.constant 0 : index
    %c0_124 = arith.constant 0 : index
    %273 = vector.load %arg26[%c0_123, %c0_124] : memref<256x64xf32, #tpu.memory_space<vmem>>, vector<256x64xf32>
    %cst_125 = arith.constant dense<0.000000e+00> : vector<8x64xf32>
    %274 = tpu.matmul %272, %273, %cst_125 {dimension_numbers = #tpu.dot_dimension_numbers<[1], [0], [0], [1], [0, 0, 1, 1], [], []>} : vector<8x256xf32>, vector<256x64xf32>, vector<8x64xf32> -> vector<8x64xf32>
    %c0_126 = arith.constant 0 : index
    %c0_127 = arith.constant 0 : index
    %275 = vector.load %arg27[%c0_126, %c0_127] : memref<1x64xf32, #tpu.memory_space<vmem>>, vector<1x64xf32>
    %276 = vector.broadcast %275 : vector<1x64xf32> to vector<8x64xf32>
    %277 = arith.addf %274, %276 : vector<8x64xf32>
    %278 = arith.addf %259, %277 : vector<8x64xf32>
    %c0_128 = arith.constant 0 : index
    %c0_129 = arith.constant 0 : index
    %279 = vector.load %arg28[%c0_128, %c0_129] : memref<1x64xf32, #tpu.memory_space<vmem>>, vector<1x64xf32>
    %c0_130 = arith.constant 0 : index
    %c0_131 = arith.constant 0 : index
    %280 = vector.load %arg29[%c0_130, %c0_131] : memref<1x64xf32, #tpu.memory_space<vmem>>, vector<1x64xf32>
    %cst_132 = arith.constant dense<0.000000e+00> : vector<8xf32>
    %281 = vector.multi_reduction <add>, %278, %cst_132 [1] : vector<8x64xf32> to vector<8xf32>
    %282 = vector.shape_cast %281 : vector<8xf32> to vector<8x1xf32>
    %cst_133 = arith.constant 6.400000e+01 : f32
    %283 = vector.broadcast %cst_133 : f32 to vector<8x1xf32>
    %284 = arith.divf %282, %283 : vector<8x1xf32>
    %285 = vector.broadcast %284 : vector<8x1xf32> to vector<8x64xf32>
    %286 = arith.subf %278, %285 : vector<8x64xf32>
    %287 = arith.mulf %286, %286 : vector<8x64xf32>
    %cst_134 = arith.constant dense<0.000000e+00> : vector<8xf32>
    %288 = vector.multi_reduction <add>, %287, %cst_134 [1] : vector<8x64xf32> to vector<8xf32>
    %289 = vector.shape_cast %288 : vector<8xf32> to vector<8x1xf32>
    %cst_135 = arith.constant 6.400000e+01 : f32
    %290 = vector.broadcast %cst_135 : f32 to vector<8x1xf32>
    %291 = arith.divf %289, %290 : vector<8x1xf32>
    %292 = vector.broadcast %284 : vector<8x1xf32> to vector<8x64xf32>
    %293 = arith.subf %278, %292 : vector<8x64xf32>
    %cst_136 = arith.constant 9.99999996E-13 : f32
    %294 = vector.broadcast %cst_136 : f32 to vector<8x1xf32>
    %295 = arith.addf %291, %294 : vector<8x1xf32>
    %296 = math.rsqrt %295 : vector<8x1xf32>
    %297 = vector.broadcast %296 : vector<8x1xf32> to vector<8x64xf32>
    %298 = arith.mulf %293, %297 : vector<8x64xf32>
    %299 = vector.broadcast %279 : vector<1x64xf32> to vector<8x64xf32>
    %300 = arith.mulf %298, %299 : vector<8x64xf32>
    %301 = vector.broadcast %280 : vector<1x64xf32> to vector<8x64xf32>
    %302 = arith.addf %300, %301 : vector<8x64xf32>
    %c0_137 = arith.constant 0 : index
    %c0_138 = arith.constant 0 : index
    %c0_139 = arith.constant 0 : index
    %303 = vector.load %arg30[%c0_137, %c0_138, %c0_139] : memref<1x8x64xf32, #tpu.memory_space<vmem>>, vector<1x8x64xf32>
    %304 = vector.shape_cast %303 : vector<1x8x64xf32> to vector<8x64xf32>
    %305 = vector.shape_cast %302 : vector<8x64xf32> to vector<1x8x64xf32>
    tpu.vector_store %arg30[%c0_137, %c0_138, %c0_139], %305 {strides = array<i32>} : memref<1x8x64xf32, #tpu.memory_space<vmem>>, vector<1x8x64xf32>,
    return
  }
  func.func @transform_0(%arg0: i32) -> (i32, i32, i32) {
    %c0_i32 = arith.constant 0 : i32
    %c0_i32_0 = arith.constant 0 : i32
    %c0_i32_1 = arith.constant 0 : i32
    return %arg0, %c0_i32, %c0_i32_0 : i32, i32, i32
  }
  func.func @transform_1(%arg0: i32) -> (i32, i32, i32) {
    %c0_i32 = arith.constant 0 : i32
    %c0_i32_0 = arith.constant 0 : i32
    %c0_i32_1 = arith.constant 0 : i32
    return %arg0, %c0_i32, %c0_i32_0 : i32, i32, i32
  }
  func.func @transform_2(%arg0: i32) -> (i32, i32, i32) {
    %c0_i32 = arith.constant 0 : i32
    %c0_i32_0 = arith.constant 0 : i32
    %c0_i32_1 = arith.constant 0 : i32
    return %arg0, %c0_i32, %c0_i32_0 : i32, i32, i32
  }
  func.func @transform_3(%arg0: i32) -> (i32, i32) {
    %c0_i32 = arith.constant 0 : i32
    %c0_i32_0 = arith.constant 0 : i32
    %c0_i32_1 = arith.constant 0 : i32
    return %c0_i32, %c0_i32_0 : i32, i32
  }
  func.func @transform_4(%arg0: i32) -> (i32, i32) {
    %c0_i32 = arith.constant 0 : i32
    %c0_i32_0 = arith.constant 0 : i32
    %c0_i32_1 = arith.constant 0 : i32
    return %c0_i32, %c0_i32_0 : i32, i32
  }
  func.func @transform_5(%arg0: i32) -> (i32, i32) {
    %c0_i32 = arith.constant 0 : i32
    %c0_i32_0 = arith.constant 0 : i32
    %c0_i32_1 = arith.constant 0 : i32
    return %c0_i32, %c0_i32_0 : i32, i32
  }
  func.func @transform_6(%arg0: i32) -> (i32, i32) {
    %c0_i32 = arith.constant 0 : i32
    %c0_i32_0 = arith.constant 0 : i32
    %c0_i32_1 = arith.constant 0 : i32
    return %c0_i32, %c0_i32_0 : i32, i32
  }
  func.func @transform_7(%arg0: i32) -> (i32, i32) {
    %c0_i32 = arith.constant 0 : i32
    %c0_i32_0 = arith.constant 0 : i32
    %c0_i32_1 = arith.constant 0 : i32
    return %c0_i32, %c0_i32_0 : i32, i32
  }
  func.func @transform_8(%arg0: i32) -> (i32, i32) {
    %c0_i32 = arith.constant 0 : i32
    %c0_i32_0 = arith.constant 0 : i32
    %c0_i32_1 = arith.constant 0 : i32
    return %c0_i32, %c0_i32_0 : i32, i32
  }
  func.func @transform_9(%arg0: i32) -> (i32, i32) {
    %c0_i32 = arith.constant 0 : i32
    %c0_i32_0 = arith.constant 0 : i32
    %c0_i32_1 = arith.constant 0 : i32
    return %c0_i32, %c0_i32_0 : i32, i32
  }
  func.func @transform_10(%arg0: i32) -> (i32, i32) {
    %c0_i32 = arith.constant 0 : i32
    %c0_i32_0 = arith.constant 0 : i32
    %c0_i32_1 = arith.constant 0 : i32
    return %c0_i32, %c0_i32_0 : i32, i32
  }
  func.func @transform_11(%arg0: i32) -> (i32, i32) {
    %c0_i32 = arith.constant 0 : i32
    %c0_i32_0 = arith.constant 0 : i32
    %c0_i32_1 = arith.constant 0 : i32
    return %c0_i32, %c0_i32_0 : i32, i32
  }
  func.func @transform_12(%arg0: i32) -> (i32, i32) {
    %c0_i32 = arith.constant 0 : i32
    %c0_i32_0 = arith.constant 0 : i32
    %c0_i32_1 = arith.constant 0 : i32
    return %c0_i32, %c0_i32_0 : i32, i32
  }
  func.func @transform_13(%arg0: i32) -> (i32, i32) {
    %c0_i32 = arith.constant 0 : i32
    %c0_i32_0 = arith.constant 0 : i32
    %c0_i32_1 = arith.constant 0 : i32
    return %c0_i32, %c0_i32_0 : i32, i32
  }
  func.func @transform_14(%arg0: i32) -> (i32, i32) {
    %c0_i32 = arith.constant 0 : i32
    %c0_i32_0 = arith.constant 0 : i32
    %c0_i32_1 = arith.constant 0 : i32
    return %c0_i32, %c0_i32_0 : i32, i32
  }
  func.func @transform_15(%arg0: i32) -> (i32, i32) {
    %c0_i32 = arith.constant 0 : i32
    %c0_i32_0 = arith.constant 0 : i32
    %c0_i32_1 = arith.constant 0 : i32
    return %c0_i32, %c0_i32_0 : i32, i32
  }
  func.func @transform_16(%arg0: i32) -> (i32, i32) {
    %c0_i32 = arith.constant 0 : i32
    %c0_i32_0 = arith.constant 0 : i32
    %c0_i32_1 = arith.constant 0 : i32
    return %c0_i32, %c0_i32_0 : i32, i32
  }
  func.func @transform_17(%arg0: i32) -> (i32, i32) {
    %c0_i32 = arith.constant 0 : i32
    %c0_i32_0 = arith.constant 0 : i32
    %c0_i32_1 = arith.constant 0 : i32
    return %c0_i32, %c0_i32_0 : i32, i32
  }
  func.func @transform_18(%arg0: i32) -> (i32, i32) {
    %c0_i32 = arith.constant 0 : i32
    %c0_i32_0 = arith.constant 0 : i32
    %c0_i32_1 = arith.constant 0 : i32
    return %c0_i32, %c0_i32_0 : i32, i32
  }
  func.func @transform_19(%arg0: i32) -> (i32, i32) {
    %c0_i32 = arith.constant 0 : i32
    %c0_i32_0 = arith.constant 0 : i32
    %c0_i32_1 = arith.constant 0 : i32
    return %c0_i32, %c0_i32_0 : i32, i32
  }
  func.func @transform_20(%arg0: i32) -> (i32, i32) {
    %c0_i32 = arith.constant 0 : i32
    %c0_i32_0 = arith.constant 0 : i32
    %c0_i32_1 = arith.constant 0 : i32
    return %c0_i32, %c0_i32_0 : i32, i32
  }
  func.func @transform_21(%arg0: i32) -> (i32, i32) {
    %c0_i32 = arith.constant 0 : i32
    %c0_i32_0 = arith.constant 0 : i32
    %c0_i32_1 = arith.constant 0 : i32
    return %c0_i32, %c0_i32_0 : i32, i32
  }
  func.func @transform_22(%arg0: i32) -> (i32, i32) {
    %c0_i32 = arith.constant 0 : i32
    %c0_i32_0 = arith.constant 0 : i32
    %c0_i32_1 = arith.constant 0 : i32
    return %c0_i32, %c0_i32_0 : i32, i32
  }
  func.func @transform_23(%arg0: i32) -> (i32, i32) {
    %c0_i32 = arith.constant 0 : i32
    %c0_i32_0 = arith.constant 0 : i32
    %c0_i32_1 = arith.constant 0 : i32
    return %c0_i32, %c0_i32_0 : i32, i32
  }
  func.func @transform_24(%arg0: i32) -> (i32, i32) {
    %c0_i32 = arith.constant 0 : i32
    %c0_i32_0 = arith.constant 0 : i32
    %c0_i32_1 = arith.constant 0 : i32
    return %c0_i32, %c0_i32_0 : i32, i32
  }
  func.func @transform_25(%arg0: i32) -> (i32, i32) {
    %c0_i32 = arith.constant 0 : i32
    %c0_i32_0 = arith.constant 0 : i32
    %c0_i32_1 = arith.constant 0 : i32
    return %c0_i32, %c0_i32_0 : i32, i32
  }
  func.func @transform_26(%arg0: i32) -> (i32, i32) {
    %c0_i32 = arith.constant 0 : i32
    %c0_i32_0 = arith.constant 0 : i32
    %c0_i32_1 = arith.constant 0 : i32
    return %c0_i32, %c0_i32_0 : i32, i32
  }
  func.func @transform_27(%arg0: i32) -> (i32, i32) {
    %c0_i32 = arith.constant 0 : i32
    %c0_i32_0 = arith.constant 0 : i32
    %c0_i32_1 = arith.constant 0 : i32
    return %c0_i32, %c0_i32_0 : i32, i32
  }
  func.func @transform_28(%arg0: i32) -> (i32, i32) {
    %c0_i32 = arith.constant 0 : i32
    %c0_i32_0 = arith.constant 0 : i32
    %c0_i32_1 = arith.constant 0 : i32
    return %c0_i32, %c0_i32_0 : i32, i32
  }
  func.func @transform_29(%arg0: i32) -> (i32, i32, i32) {
    %c0_i32 = arith.constant 0 : i32
    %c0_i32_0 = arith.constant 0 : i32
    %c0_i32_1 = arith.constant 0 : i32
    return %arg0, %c0_i32, %c0_i32_0 : i32, i32, i32
  }
}

module attributes {stable_mosaic.version = 11 : i64} {
  func.func @_linear_kernel(%arg0: i32, %arg1: memref<2x64xf32, #tpu.memory_space<vmem>>, %arg2: memref<64x2xf32, #tpu.memory_space<vmem>>, %arg3: memref<1x2xf32, #tpu.memory_space<vmem>>, %arg4: memref<2x2xf32, #tpu.memory_space<vmem>>) attributes {dimension_semantics = [#tpu.dimension_semantics<arbitrary>], iteration_bounds = array<i64: 1>, scalar_prefetch = 0 : i64, scratch_operands = 0 : i64, tpu.core_type = #tpu.core_type<tc>, window_params = [{pipeline_mode = #tpu.pipeline_mode<synchronous>, transform_indices = @transform_0, window_bounds = array<i64: 2, 64>}, {pipeline_mode = #tpu.pipeline_mode<synchronous>, transform_indices = @transform_1, window_bounds = array<i64: 64, 2>}, {pipeline_mode = #tpu.pipeline_mode<synchronous>, transform_indices = @transform_2, window_bounds = array<i64: 1, 2>}, {pipeline_mode = #tpu.pipeline_mode<synchronous>, transform_indices = @transform_3, window_bounds = array<i64: 2, 2>}]} {
    %c0 = arith.constant 0 : index
    %c0_0 = arith.constant 0 : index
    %0 = vector.load %arg1[%c0, %c0_0] : memref<2x64xf32, #tpu.memory_space<vmem>>, vector<2x64xf32>
    %c0_1 = arith.constant 0 : index
    %c0_2 = arith.constant 0 : index
    %1 = vector.load %arg2[%c0_1, %c0_2] : memref<64x2xf32, #tpu.memory_space<vmem>>, vector<64x2xf32>
    %cst = arith.constant dense<0.000000e+00> : vector<2x2xf32>
    %2 = tpu.matmul %0, %1, %cst {dimension_numbers = #tpu.dot_dimension_numbers<[1], [0], [0], [1], [0, 0, 1, 1], [], []>} : vector<2x64xf32>, vector<64x2xf32>, vector<2x2xf32> -> vector<2x2xf32>
    %c0_3 = arith.constant 0 : index
    %c0_4 = arith.constant 0 : index
    %3 = vector.load %arg3[%c0_3, %c0_4] : memref<1x2xf32, #tpu.memory_space<vmem>>, vector<1x2xf32>
    %4 = vector.broadcast %3 : vector<1x2xf32> to vector<2x2xf32>
    %5 = arith.addf %2, %4 : vector<2x2xf32>
    %c0_5 = arith.constant 0 : index
    %c0_6 = arith.constant 0 : index
    %6 = vector.load %arg4[%c0_5, %c0_6] : memref<2x2xf32, #tpu.memory_space<vmem>>, vector<2x2xf32>
    tpu.vector_store %arg4[%c0_5, %c0_6], %5 {strides = array<i32>} : memref<2x2xf32, #tpu.memory_space<vmem>>, vector<2x2xf32>,
    return
  }
  func.func @transform_0(%arg0: i32) -> (i32, i32) {
    %c0_i32 = arith.constant 0 : i32
    %c0_i32_0 = arith.constant 0 : i32
    %c0_i32_1 = arith.constant 0 : i32
    return %c0_i32, %c0_i32_0 : i32, i32
  }
  func.func @transform_1(%arg0: i32) -> (i32, i32) {
    %c0_i32 = arith.constant 0 : i32
    %c0_i32_0 = arith.constant 0 : i32
    %c0_i32_1 = arith.constant 0 : i32
    return %c0_i32, %c0_i32_0 : i32, i32
  }
  func.func @transform_2(%arg0: i32) -> (i32, i32) {
    %c0_i32 = arith.constant 0 : i32
    %c0_i32_0 = arith.constant 0 : i32
    %c0_i32_1 = arith.constant 0 : i32
    return %c0_i32, %c0_i32_0 : i32, i32
  }
  func.func @transform_3(%arg0: i32) -> (i32, i32) {
    %c0_i32 = arith.constant 0 : i32
    %c0_i32_0 = arith.constant 0 : i32
    %c0_i32_1 = arith.constant 0 : i32
    return %c0_i32, %c0_i32_0 : i32, i32
  }
}

</mosaic_0001>

<llo_original>
// kernel: vl_transformer_itm.11
$region0: #{vl_transformer_itm.11}
  #allocation0 [shape = 'u32[]', space=smem, size = 0x4, offset = 0x4, fixed_abs, tag = 'smem constant byte address 0x4 - core index']
  #allocation1 [shape = 'u32[72,128]{1,0:T(1,128)}', space=vmem, size = 0x9000, scoped, tag = 'internal scratch']
  %s0 = inlined_call_operand.vmem [shape: f32[34,64], index: 0, kind: input, shape index: {}]
  %s1 = inlined_call_operand.vmem [shape: f32[1,64], index: 1, kind: input, shape index: {}]
  %s2 = inlined_call_operand.vmem [shape: f32[1,64], index: 2, kind: input, shape index: {}]
  %s3 = inlined_call_operand.vmem [shape: f32[34,64], index: 3, kind: output, shape index: {}]
  %s4 = sld [smem:[#allocation0]]
  $region22: #{vl_transformer_itm.11} parent=0
    _
  %s6 = ssub.s32 1, %s4
  %s7 = scalar_select 0, %s6, %s4
  // Predicated region
  $region2: #{vl_transformer_itm.11} parent=0 // pred_check
    _
  $region3: #{vl_transformer_itm.11} parent=0 // pred_check_branch
    %9 = sbr.rel (0) target = $region5
  $region4: #{vl_transformer_itm.11} parent=0 // pred_region
    _
  $region5: #{vl_transformer_itm.11} parent=0 // pred_fallthru
    _
  // Predicated region
  $region6: #{vl_transformer_itm.11} parent=0 // pred_check
    _
  $region7: #{vl_transformer_itm.11} parent=0 // pred_check_branch
    %11 = sbr.rel (0) target = $region9
  $region8: #{vl_transformer_itm.11} parent=0 // pred_region
    _
  $region9: #{vl_transformer_itm.11} parent=0 // pred_fallthru
    _
  // Predicated region
  $region10: #{vl_transformer_itm.11} parent=0 // pred_check
    _
  $region11: #{vl_transformer_itm.11} parent=0 // pred_check_branch
    %13 = sbr.rel (0) target = $region13
  $region12: #{vl_transformer_itm.11} parent=0 // pred_region
    _
  $region13: #{vl_transformer_itm.11} parent=0 // pred_fallthru
    _
  %v14 = vld [vmem:[%s0] sm:$0xff]
  %v15 = vld [vmem:[%s0 + $0x8] sm:$0xff]
  %v16 = vld [vmem:[%s0 + $0x10] sm:$0xff]
  %v17 = vld [vmem:[%s0 + $0x18] sm:$0xff]
  %v18 = vld [vmem:[%s0 + $0x20] sm:$0x3]
  %v19 = vld [vmem:[%s1] sm:$0x1]
  %v20 = vld [vmem:[%s2] sm:$0x1]
  %vm21 = vcmask 523264
  %v22 = vsel %vm21, %v14, 0.0
  %23 = vadd.xlane.f32.xlu0 %v22
  %v24 = vpop.xlane.xlu0 %23
  %v25 = vsel %vm21, %v15, 0.0
  %26 = vadd.xlane.f32.xlu0 %v25
  %v27 = vpop.xlane.xlu0 %26
  %v28 = vsel %vm21, %v16, 0.0
  %29 = vadd.xlane.f32.xlu0 %v28
  %v30 = vpop.xlane.xlu0 %29
  %v31 = vsel %vm21, %v17, 0.0
  %32 = vadd.xlane.f32.xlu0 %v31
  %v33 = vpop.xlane.xlu0 %32
  %vm34 = vcmask 517120
  %v35 = vsel %vm34, %v18, 0.0
  %36 = vadd.xlane.f32.xlu0 %v35
  %v37 = vpop.xlane.xlu0 %36
  %v38 = vrcp.pop 64.0
  %v39 = vmul.f32 64.0, %v38
  %v40 = vsub.f32 1.0, %v39
  %v41 = vmul.f32 %v38, %v40
  %v42 = vadd.f32 %v38, %v41
  %vm43 = vweird.f32 %v38
  %v44 = vsel %vm43, %v38, %v42
  %v45 = vmul.f32 %v24, %v44
  %v46 = vmul.f32 %v27, %v44
  %v47 = vmul.f32 %v30, %v44
  %v48 = vmul.f32 %v33, %v44
  %v49 = vmul.f32 %v37, %v44
  %v50 = vsub.f32 %v14, %v45
  %v51 = vsub.f32 %v15, %v46
  %v52 = vsub.f32 %v16, %v47
  %v53 = vsub.f32 %v17, %v48
  %v54 = vsub.f32 %v18, %v49
  %v55 = vmul.f32 %v50, %v50
  %v56 = vmul.f32 %v51, %v51
  %v57 = vmul.f32 %v52, %v52
  %v58 = vmul.f32 %v53, %v53
  %v59 = vmul.f32 %v54, %v54
  %v60 = vsel %vm21, %v55, 0.0
  %61 = vadd.xlane.f32.xlu0 %v60
  %v62 = vpop.xlane.xlu0 %61
  %v63 = vsel %vm21, %v56, 0.0
  %64 = vadd.xlane.f32.xlu0 %v63
  %v65 = vpop.xlane.xlu0 %64
  %v66 = vsel %vm21, %v57, 0.0
  %67 = vadd.xlane.f32.xlu0 %v66
  %v68 = vpop.xlane.xlu0 %67
  %v69 = vsel %vm21, %v58, 0.0
  %70 = vadd.xlane.f32.xlu0 %v69
  %v71 = vpop.xlane.xlu0 %70
  %v72 = vsel %vm34, %v59, 0.0
  %73 = vadd.xlane.f32.xlu0 %v72
  %v74 = vpop.xlane.xlu0 %73
  %v75 = vmul.f32 %v62, %v44
  %v76 = vmul.f32 %v65, %v44
  %v77 = vmul.f32 %v68, %v44
  %v78 = vmul.f32 %v71, %v44
  %v79 = vmul.f32 %v74, %v44
  %v80 = vadd.f32 %v75, 1e-06
  %v81 = vadd.f32 %v76, 1e-06
  %v82 = vadd.f32 %v77, 1e-06
  %v83 = vadd.f32 %v78, 1e-06
  %v84 = vadd.f32 %v79, 1e-06
  %v85 = vrsqrt.pop %v80
  %v86 = vmul.f32 %v85, %v80
  %v87 = vmul.f32 %v86, %v85
  %v88 = vmul.f32 0.5, %v87
  %v89 = vsub.f32 1.5, %v88
  %v90 = vmul.f32 %v85, %v89
  %vm91 = vweird.f32 %v80
  %vm92 = vweird.f32 %v85
  %vm93 = vmor %vm91, %vm92
  %v94 = vsel %vm93, %v85, %v90
  %v95 = vrsqrt.pop %v81
  %v96 = vmul.f32 %v95, %v81
  %v97 = vmul.f32 %v96, %v95
  %v98 = vmul.f32 0.5, %v97
  %v99 = vsub.f32 1.5, %v98
  %v100 = vmul.f32 %v95, %v99
  %vm101 = vweird.f32 %v81
  %vm102 = vweird.f32 %v95
  %vm103 = vmor %vm101, %vm102
  %v104 = vsel %vm103, %v95, %v100
  %v105 = vrsqrt.pop %v82
  %v106 = vmul.f32 %v105, %v82
  %v107 = vmul.f32 %v106, %v105
  %v108 = vmul.f32 0.5, %v107
  %v109 = vsub.f32 1.5, %v108
  %v110 = vmul.f32 %v105, %v109
  %vm111 = vweird.f32 %v82
  %vm112 = vweird.f32 %v105
  %vm113 = vmor %vm111, %vm112
  %v114 = vsel %vm113, %v105, %v110
  %v115 = vrsqrt.pop %v83
  %v116 = vmul.f32 %v115, %v83
  %v117 = vmul.f32 %v116, %v115
  %v118 = vmul.f32 0.5, %v117
  %v119 = vsub.f32 1.5, %v118
  %v120 = vmul.f32 %v115, %v119
  %vm121 = vweird.f32 %v83
  %vm122 = vweird.f32 %v115
  %vm123 = vmor %vm121, %vm122
  %v124 = vsel %vm123, %v115, %v120
  %v125 = vrsqrt.pop %v84
  %v126 = vmul.f32 %v125, %v84
  %v127 = vmul.f32 %v126, %v125
  %v128 = vmul.f32 0.5, %v127
  %v129 = vsub.f32 1.5, %v128
  %v130 = vmul.f32 %v125, %v129
  %vm131 = vweird.f32 %v84
  %vm132 = vweird.f32 %v125
  %vm133 = vmor %vm131, %vm132
  %v134 = vsel %vm133, %v125, %v130
  %v135 = vmul.f32 %v50, %v94
  %v136 = vmul.f32 %v51, %v104
  %v137 = vmul.f32 %v52, %v114
  %v138 = vmul.f32 %v53, %v124
  %v139 = vmul.f32 %v54, %v134
  %v141 = vperm.slane %v19, 0
  %v143 = vmul.f32 %v135, %v141
  %v144 = vmul.f32 %v136, %v141
  %v145 = vmul.f32 %v137, %v141
  %v146 = vmul.f32 %v138, %v141
  %v147 = vmul.f32 %v139, %v141
  %v149 = vperm.slane %v20, 0
  %v151 = vadd.f32 %v143, %v149
  %v152 = vadd.f32 %v144, %v149
  %v153 = vadd.f32 %v145, %v149
  %v154 = vadd.f32 %v146, %v149
  %v155 = vadd.f32 %v147, %v149
  %156 = vst.msk [vmem:[%s3] sm:$0xff] %vm21, %v151
  %157 = vst.msk [vmem:[%s3 + $0x8] sm:$0xff] %vm21, %v152
  %158 = vst.msk [vmem:[%s3 + $0x10] sm:$0xff] %vm21, %v153
  %159 = vst.msk [vmem:[%s3 + $0x18] sm:$0xff] %vm21, %v154
  %160 = vst.msk [vmem:[%s3 + $0x20] sm:$0x3] %vm34, %v155
  // Predicated region
  $region14: #{vl_transformer_itm.11} parent=0 // pred_check
    _
  $region15: #{vl_transformer_itm.11} parent=0 // pred_check_branch
    %162 = sbr.rel (0) target = $region17
  $region16: #{vl_transformer_itm.11} parent=0 // pred_region
    _
  $region17: #{vl_transformer_itm.11} parent=0 // pred_fallthru
    _
  // Predicated region
  $region18: #{vl_transformer_itm.11} parent=0 // pred_check
    _
  $region19: #{vl_transformer_itm.11} parent=0 // pred_check_branch
    %164 = sbr.rel (0) target = $region21
  $region20: #{vl_transformer_itm.11} parent=0 // pred_region
    _
  $region21: #{vl_transformer_itm.11} parent=0 // pred_fallthru
    _

// kernel: vl_transformer_itm.8
$region0: #{vl_transformer_itm.8}
  #allocation0 [shape = 'u32[]', space=smem, size = 0x4, offset = 0x4, fixed_abs, tag = 'smem constant byte address 0x4 - core index']
  #allocation1 [shape = 'u32[72,128]{1,0:T(1,128)}', space=vmem, size = 0x9000, scoped, tag = 'internal scratch']
  %s0 = inlined_call_operand.vmem [shape: f32[32,192], index: 0, kind: input, shape index: {}]
  %s1 = inlined_call_operand.vmem [shape: f32[192,64], index: 1, kind: input, shape index: {}]
  %s2 = inlined_call_operand.vmem [shape: f32[1,64], index: 2, kind: input, shape index: {}]
  %s3 = inlined_call_operand.vmem [shape: f32[32,64], index: 3, kind: output, shape index: {}]
  %s4 = sld [smem:[#allocation0]]
  $region22: #{vl_transformer_itm.8} parent=0
    _
  %s6 = ssub.s32 1, %s4
  %s7 = scalar_select 0, %s6, %s4
  // Predicated region
  $region2: #{vl_transformer_itm.8} parent=0 // pred_check
    _
  $region3: #{vl_transformer_itm.8} parent=0 // pred_check_branch
    %9 = sbr.rel (0) target = $region5
  $region4: #{vl_transformer_itm.8} parent=0 // pred_region
    _
  $region5: #{vl_transformer_itm.8} parent=0 // pred_fallthru
    _
  // Predicated region
  $region6: #{vl_transformer_itm.8} parent=0 // pred_check
    _
  $region7: #{vl_transformer_itm.8} parent=0 // pred_check_branch
    %11 = sbr.rel (0) target = $region9
  $region8: #{vl_transformer_itm.8} parent=0 // pred_region
    _
  $region9: #{vl_transformer_itm.8} parent=0 // pred_fallthru
    _
  // Predicated region
  $region10: #{vl_transformer_itm.8} parent=0 // pred_check
    _
  $region11: #{vl_transformer_itm.8} parent=0 // pred_check_branch
    %13 = sbr.rel (0) target = $region13
  $region12: #{vl_transformer_itm.8} parent=0 // pred_region
    _
  $region13: #{vl_transformer_itm.8} parent=0 // pred_fallthru
    _
  %v14 = vld [vmem:[%s0] sm:$0xff]
  %v15 = vld [vmem:[%s0 + $0x8] sm:$0xff]
  %v16 = vld [vmem:[%s0 + $0x10] sm:$0xff]
  %v17 = vld [vmem:[%s0 + $0x18] sm:$0xff]
  %v18 = vld [vmem:[%s0 + $0x20] sm:$0xff]
  %v19 = vld [vmem:[%s0 + $0x28] sm:$0xff]
  %v20 = vld [vmem:[%s0 + $0x30] sm:$0xff]
  %v21 = vld [vmem:[%s0 + $0x38] sm:$0xff]
  %v22 = vld [vmem:[%s1] sm:$0xff]
  %v23 = vld [vmem:[%s1 + $0x8] sm:$0xff]
  %v24 = vld [vmem:[%s1 + $0x10] sm:$0xff]
  %v25 = vld [vmem:[%s1 + $0x18] sm:$0xff]
  %v26 = vld [vmem:[%s1 + $0x20] sm:$0xff]
  %v27 = vld [vmem:[%s1 + $0x28] sm:$0xff]
  %v28 = vld [vmem:[%s1 + $0x30] sm:$0xff]
  %v29 = vld [vmem:[%s1 + $0x38] sm:$0xff]
  %v30 = vld [vmem:[%s1 + $0x40] sm:$0xff]
  %v31 = vld [vmem:[%s1 + $0x48] sm:$0xff]
  %v32 = vld [vmem:[%s1 + $0x50] sm:$0xff]
  %v33 = vld [vmem:[%s1 + $0x58] sm:$0xff]
  %v34 = vld [vmem:[%s1 + $0x60] sm:$0xff]
  %v35 = vld [vmem:[%s1 + $0x68] sm:$0xff]
  %v36 = vld [vmem:[%s1 + $0x70] sm:$0xff]
  %v37 = vld [vmem:[%s1 + $0x78] sm:$0xff]
  %v38 = vld [vmem:[%s1 + $0x80] sm:$0xff]
  %v39 = vld [vmem:[%s1 + $0x88] sm:$0xff]
  %v40 = vld [vmem:[%s1 + $0x90] sm:$0xff]
  %v41 = vld [vmem:[%s1 + $0x98] sm:$0xff]
  %v42 = vld [vmem:[%s1 + $0xa0] sm:$0xff]
  %v43 = vld [vmem:[%s1 + $0xa8] sm:$0xff]
  %v44 = vld [vmem:[%s1 + $0xb0] sm:$0xff]
  %v45 = vld [vmem:[%s1 + $0xb8] sm:$0xff]
  %v46 = vld [vmem:[%s2] sm:$0x1]
  %v48 = vperm.slane %v46, 0
  %vm50 = vcmask 523264
  %v52 = vsel %vm50, %v15, 0
  %v55 = vsel %vm50, %v17, 0
  %v58 = vsel %vm50, %v19, 0
  %v61 = vsel %vm50, %v21, 0
  %63 = vmatpush.msra.mxu0 %v37
  %64 = vmatpush.msra.mxu0 %v36
  %65 = vmatpush.msra.mxu0 %v35
  %66 = vmatpush.msra.mxu0 %v34
  %67 = vmatpush.msra.mxu0 %v33
  %68 = vmatpush.msra.mxu0 %v32
  %69 = vmatpush.msra.mxu0 %v31
  %70 = vmatpush.msra.mxu0 %v30
  %71 = vmatpush.msra.mxu0 %v29
  %72 = vmatpush.msra.mxu0 %v28
  %73 = vmatpush.msra.mxu0 %v27
  %74 = vmatpush.msra.mxu0 %v26
  %75 = vmatpush.msra.mxu0 %v25
  %76 = vmatpush.msra.mxu0 %v24
  %77 = vmatpush.msra.mxu0 %v23
  %78 = vmatpush.msra.mxu0 %v22
  %79 = vmatmul.f32.gmra.mxu0 %v14
  %v80 = vpop.f32.mrf.mxu0
  %v81 = vadd.f32 %v48, %v80
  %82 = vmatmul.f32.gmra.mxu0 %v16
  %v83 = vpop.f32.mrf.mxu0
  %v84 = vadd.f32 %v48, %v83
  %85 = vmatmul.f32.gmra.mxu0 %v18
  %v86 = vpop.f32.mrf.mxu0
  %v87 = vadd.f32 %v48, %v86
  %88 = vmatmul.f32.gmra.mxu0 %v20
  %v89 = vpop.f32.mrf.mxu0
  %v90 = vadd.f32 %v48, %v89
  %91 = vdwg.mxu0
  %92 = vmatpush.msra.mxu0 0.0
  %93 = vmatpush.msra.mxu0 0.0
  %94 = vmatpush.msra.mxu0 0.0
  %95 = vmatpush.msra.mxu0 0.0
  %96 = vmatpush.msra.mxu0 0.0
  %97 = vmatpush.msra.mxu0 0.0
  %98 = vmatpush.msra.mxu0 0.0
  %99 = vmatpush.msra.mxu0 0.0
  %100 = vmatpush.msra.mxu0 %v45
  %101 = vmatpush.msra.mxu0 %v44
  %102 = vmatpush.msra.mxu0 %v43
  %103 = vmatpush.msra.mxu0 %v42
  %104 = vmatpush.msra.mxu0 %v41
  %105 = vmatpush.msra.mxu0 %v40
  %106 = vmatpush.msra.mxu0 %v39
  %107 = vmatpush.msra.mxu0 %v38
  %108 = vmatmul.f32.gmra.mxu0 %v52
  %v109 = vpop.f32.mrf.mxu0
  %v110 = vadd.f32 %v81, %v109
  %111 = vmatmul.f32.gmra.mxu0 %v55
  %v112 = vpop.f32.mrf.mxu0
  %v113 = vadd.f32 %v84, %v112
  %114 = vmatmul.f32.gmra.mxu0 %v58
  %v115 = vpop.f32.mrf.mxu0
  %v116 = vadd.f32 %v87, %v115
  %117 = vmatmul.f32.gmra.mxu0 %v61
  %v118 = vpop.f32.mrf.mxu0
  %v119 = vadd.f32 %v90, %v118
  %120 = vdwg.mxu0
  %121 = vst.msk [vmem:[%s3] sm:$0xff] %vm50, %v110
  %122 = vst.msk [vmem:[%s3 + $0x8] sm:$0xff] %vm50, %v113
  %123 = vst.msk [vmem:[%s3 + $0x10] sm:$0xff] %vm50, %v116
  %124 = vst.msk [vmem:[%s3 + $0x18] sm:$0xff] %vm50, %v119
  // Predicated region
  $region14: #{vl_transformer_itm.8} parent=0 // pred_check
    _
  $region15: #{vl_transformer_itm.8} parent=0 // pred_check_branch
    %126 = sbr.rel (0) target = $region17
  $region16: #{vl_transformer_itm.8} parent=0 // pred_region
    _
  $region17: #{vl_transformer_itm.8} parent=0 // pred_fallthru
    _
  // Predicated region
  $region18: #{vl_transformer_itm.8} parent=0 // pred_check
    _
  $region19: #{vl_transformer_itm.8} parent=0 // pred_check_branch
    %128 = sbr.rel (0) target = $region21
  $region20: #{vl_transformer_itm.8} parent=0 // pred_region
    _
  $region21: #{vl_transformer_itm.8} parent=0 // pred_fallthru
    _

// kernel: vl_transformer_itm.12
$region0: #{vl_transformer_itm.12}
  #allocation0 [shape = 'u32[]', space=smem, size = 0x4, offset = 0x4, fixed_abs, tag = 'smem constant byte address 0x4 - core index']
  #allocation1 [shape = 'u32[72,128]{1,0:T(1,128)}', space=vmem, size = 0x9000, scoped, tag = 'internal scratch']
  %s0 = inlined_call_operand.vmem [shape: f32[16,64], index: 0, kind: input, shape index: {}]
  %s1 = inlined_call_operand.hbm [shape: f32[1,64], index: 1, kind: input, shape index: {}]
  %s2 = inlined_call_operand.hbm [shape: f32[1,64], index: 2, kind: input, shape index: {}]
  %s3 = inlined_call_operand.vmem [shape: f32[16,64], index: 3, kind: output, shape index: {}]
  %s4 = sld [smem:[#allocation0]]
  $region30: #{vl_transformer_itm.12} parent=0
    _
  %s6 = ssub.s32 1, %s4
  %s7 = scalar_select 0, %s6, %s4
  $region1: #{vl_transformer_itm.12} parent=0
    #allocation2 [shape = 'u8[512]{0}', space=vmem, size = 0x400, scoped, tag = 'input window, operand 1, single buffered']
    #allocation3 [shape = 's32[1]{0}', space=sflag, size = 0x4, scoped, tag = 'scoped memory for vl_transformer_itm.12']
    #allocation4 [shape = 'u8[512]{0}', space=vmem, size = 0x400, scoped, tag = 'input window, operand 2, single buffered']
    #allocation5 [shape = 's32[1]{0}', space=sflag, size = 0x4, scoped, tag = 'scoped memory for vl_transformer_itm.12']
    %8 = vsyncpa [#allocation3], 0
    %9 = vsyncpa [#allocation5], 0
    // Predicated region
    $region2: #{vl_transformer_itm.12} parent=1 // pred_check
      _
    $region3: #{vl_transformer_itm.12} parent=1 // pred_check_branch
      %11 = sbr.rel (0) target = $region5
    $region4: #{vl_transformer_itm.12} parent=1 // pred_region
      _
    $region5: #{vl_transformer_itm.12} parent=1 // pred_fallthru
      _
    // Predicated region
    $region6: #{vl_transformer_itm.12} parent=1 // pred_check
      _
    $region7: #{vl_transformer_itm.12} parent=1 // pred_check_branch
      %13 = sbr.rel (0) target = $region9
    $region8: #{vl_transformer_itm.12} parent=1 // pred_region
      %15 = vsyncadd [#allocation3], 0
      %s17 = sshll.u32 %s1, 4
      %s18 = int_to_ptr.hbm [resolvable:$true] %s17
      %s19 = sshll.u32 [#allocation2], 4
      %s20 = int_to_ptr.vmem [resolvable:$true] %s19
      %22 = dma.hbm_to_vmem [thread:$0]  %s18, 16, %s20, [#allocation3]
    $region9: #{vl_transformer_itm.12} parent=1 // pred_fallthru
      _
    // Predicated region
    $region10: #{vl_transformer_itm.12} parent=1 // pred_check
      _
    $region11: #{vl_transformer_itm.12} parent=1 // pred_check_branch
      %24 = sbr.rel (0) target = $region13
    $region12: #{vl_transformer_itm.12} parent=1 // pred_region
      %26 = vsyncadd [#allocation5], 0
      %s28 = sshll.u32 %s2, 4
      %s29 = int_to_ptr.hbm [resolvable:$true] %s28
      %s30 = sshll.u32 [#allocation4], 4
      %s31 = int_to_ptr.vmem [resolvable:$true] %s30
      %33 = dma.hbm_to_vmem [thread:$0]  %s29, 16, %s31, [#allocation5]
    $region13: #{vl_transformer_itm.12} parent=1 // pred_fallthru
      _
    // Predicated region
    $region14: #{vl_transformer_itm.12} parent=1 // pred_check
      _
    $region15: #{vl_transformer_itm.12} parent=1 // pred_check_branch
      %35 = sbr.rel (0) target = $region17
    $region16: #{vl_transformer_itm.12} parent=1 // pred_region
      %37 = dma.done [#allocation3], 16
    $region17: #{vl_transformer_itm.12} parent=1 // pred_fallthru
      _
    // Predicated region
    $region18: #{vl_transformer_itm.12} parent=1 // pred_check
      _
    $region19: #{vl_transformer_itm.12} parent=1 // pred_check_branch
      %39 = sbr.rel (0) target = $region21
    $region20: #{vl_transformer_itm.12} parent=1 // pred_region
      %41 = dma.done [#allocation5], 16
    $region21: #{vl_transformer_itm.12} parent=1 // pred_fallthru
      _
    %v42 = vld [vmem:[%s0] sm:$0xff]
    %v43 = vld [vmem:[%s0 + $0x8] sm:$0xff]
    %v44 = vld [vmem:[#allocation2] sm:$0x1]
    %v45 = vld [vmem:[#allocation4] sm:$0x1]
    %vm46 = vcmask 523264
    %v47 = vsel %vm46, %v42, 0.0
    %48 = vadd.xlane.f32.xlu0 %v47
    %v49 = vpop.xlane.xlu0 %48
    %v50 = vsel %vm46, %v43, 0.0
    %51 = vadd.xlane.f32.xlu0 %v50
    %v52 = vpop.xlane.xlu0 %51
    %v53 = vrcp.pop 64.0
    %v54 = vmul.f32 64.0, %v53
    %v55 = vsub.f32 1.0, %v54
    %v56 = vmul.f32 %v53, %v55
    %v57 = vadd.f32 %v53, %v56
    %vm58 = vweird.f32 %v53
    %v59 = vsel %vm58, %v53, %v57
    %v60 = vmul.f32 %v49, %v59
    %v61 = vmul.f32 %v52, %v59
    %v62 = vsub.f32 %v42, %v60
    %v63 = vsub.f32 %v43, %v61
    %v64 = vmul.f32 %v62, %v62
    %v65 = vmul.f32 %v63, %v63
    %v66 = vsel %vm46, %v64, 0.0
    %67 = vadd.xlane.f32.xlu0 %v66
    %v68 = vpop.xlane.xlu0 %67
    %v69 = vsel %vm46, %v65, 0.0
    %70 = vadd.xlane.f32.xlu0 %v69
    %v71 = vpop.xlane.xlu0 %70
    %v72 = vmul.f32 %v68, %v59
    %v73 = vmul.f32 %v71, %v59
    %v74 = vadd.f32 %v72, 1e-12
    %v75 = vadd.f32 %v73, 1e-12
    %v76 = vrsqrt.pop %v74
    %v77 = vmul.f32 %v76, %v74
    %v78 = vmul.f32 %v77, %v76
    %v79 = vmul.f32 0.5, %v78
    %v80 = vsub.f32 1.5, %v79
    %v81 = vmul.f32 %v76, %v80
    %vm82 = vweird.f32 %v74
    %vm83 = vweird.f32 %v76
    %vm84 = vmor %vm82, %vm83
    %v85 = vsel %vm84, %v76, %v81
    %v86 = vrsqrt.pop %v75
    %v87 = vmul.f32 %v86, %v75
    %v88 = vmul.f32 %v87, %v86
    %v89 = vmul.f32 0.5, %v88
    %v90 = vsub.f32 1.5, %v89
    %v91 = vmul.f32 %v86, %v90
    %vm92 = vweird.f32 %v75
    %vm93 = vweird.f32 %v86
    %vm94 = vmor %vm92, %vm93
    %v95 = vsel %vm94, %v86, %v91
    %v96 = vmul.f32 %v62, %v85
    %v97 = vmul.f32 %v63, %v95
    %v99 = vperm.slane %v44, 0
    %v101 = vmul.f32 %v96, %v99
    %v102 = vmul.f32 %v97, %v99
    %v104 = vperm.slane %v45, 0
    %v106 = vadd.f32 %v101, %v104
    %v107 = vadd.f32 %v102, %v104
    %108 = vst.msk [vmem:[%s3] sm:$0xff] %vm46, %v106
    %109 = vst.msk [vmem:[%s3 + $0x8] sm:$0xff] %vm46, %v107
    // Predicated region
    $region22: #{vl_transformer_itm.12} parent=1 // pred_check
      _
    $region23: #{vl_transformer_itm.12} parent=1 // pred_check_branch
      %111 = sbr.rel (0) target = $region25
    $region24: #{vl_transformer_itm.12} parent=1 // pred_region
      _
    $region25: #{vl_transformer_itm.12} parent=1 // pred_fallthru
      _
    // Predicated region
    $region26: #{vl_transformer_itm.12} parent=1 // pred_check
      _
    $region27: #{vl_transformer_itm.12} parent=1 // pred_check_branch
      %113 = sbr.rel (0) target = $region29
    $region28: #{vl_transformer_itm.12} parent=1 // pred_region
      _
    $region29: #{vl_transformer_itm.12} parent=1 // pred_fallthru
      _
    %114 = vsyncpa [#allocation3], 1
    %115 = vsyncpa [#allocation5], 1

// kernel: vl_transformer_itm.9
$region0: #{vl_transformer_itm.9}
  #allocation0 [shape = 'u32[]', space=smem, size = 0x4, offset = 0x4, fixed_abs, tag = 'smem constant byte address 0x4 - core index']
  #allocation1 [shape = 'u32[72,128]{1,0:T(1,128)}', space=vmem, size = 0x9000, scoped, tag = 'internal scratch']
  %s0 = inlined_call_operand.vmem [shape: f32[2,17,64], index: 0, kind: input, shape index: {}]
  %s1 = inlined_call_operand.vmem [shape: f32[1,64], index: 1, kind: input, shape index: {}]
  %s2 = inlined_call_operand.vmem [shape: f32[1,64], index: 2, kind: input, shape index: {}]
  %s3 = inlined_call_operand.vmem [shape: f32[64,192], index: 3, kind: input, shape index: {}]
  %s4 = inlined_call_operand.vmem [shape: f32[1,192], index: 4, kind: input, shape index: {}]
  %s5 = inlined_call_operand.vmem [shape: f32[64,64], index: 5, kind: input, shape index: {}]
  %s6 = inlined_call_operand.vmem [shape: f32[1,64], index: 6, kind: input, shape index: {}]
  %s7 = inlined_call_operand.vmem [shape: f32[1,64], index: 7, kind: input, shape index: {}]
  %s8 = inlined_call_operand.vmem [shape: f32[1,64], index: 8, kind: input, shape index: {}]
  %s9 = inlined_call_operand.vmem [shape: f32[64,256], index: 9, kind: input, shape index: {}]
  %s10 = inlined_call_operand.vmem [shape: f32[1,256], index: 10, kind: input, shape index: {}]
  %s11 = inlined_call_operand.vmem [shape: f32[256,64], index: 11, kind: input, shape index: {}]
  %s12 = inlined_call_operand.vmem [shape: f32[1,64], index: 12, kind: input, shape index: {}]
  %s13 = inlined_call_operand.vmem [shape: f32[2,17,64], index: 13, kind: output, shape index: {}]
  %s14 = sld [smem:[#allocation0]]
  $region85: #{vl_transformer_itm.9} parent=0
    _
  %s16 = ssub.s32 1, %s14
  %s17 = scalar_select 0, %s16, %s14
  loop: start=0, step=1, limit=4
  $region2: #{vl_transformer_itm.9} parent=0 // loop_pre_header
    _
  $region3: #{vl_transformer_itm.9} parent=0 // loop_header
    %s19 = sphi 0, %s23
    %p20 = scmp.ge.s32.totalorder %s19, 4
    %s29 = sphi 0, %s31
    %s32 = sphi 0, %s29
    %s33 = sphi 0, %s32
    %s49 = sphi 0, %s33
    %s53 = sphi 0, %s53
    %s55 = sphi 0, %s53
    %s56 = sphi 0, %s55
    %s70 = sphi 0, %s56
    %s74 = sphi 0, %s74
    %s76 = sphi 0, %s74
    %s77 = sphi 0, %s76
    %s91 = sphi 0, %s77
    %s95 = sphi 0, %s95
    %s97 = sphi 0, %s95
    %s98 = sphi 0, %s97
    %s112 = sphi 0, %s98
    %s116 = sphi 0, %s116
    %s118 = sphi 0, %s116
    %s119 = sphi 0, %s118
    %s133 = sphi 0, %s119
    %s137 = sphi 0, %s137
    %s139 = sphi 0, %s137
    %s140 = sphi 0, %s139
    %s154 = sphi 0, %s140
    %s158 = sphi 0, %s158
    %s160 = sphi 0, %s158
    %s161 = sphi 0, %s160
    %s175 = sphi 0, %s161
    %s179 = sphi 0, %s179
    %s181 = sphi 0, %s179
    %s182 = sphi 0, %s181
    %s196 = sphi 0, %s182
    %s200 = sphi 0, %s200
    %s202 = sphi 0, %s200
    %s203 = sphi 0, %s202
    %s217 = sphi 0, %s203
    %s221 = sphi 0, %s221
    %s223 = sphi 0, %s221
    %s224 = sphi 0, %s223
    %s238 = sphi 0, %s224
    %s242 = sphi 0, %s242
    %s244 = sphi 0, %s242
    %s245 = sphi 0, %s244
    %s259 = sphi 0, %s245
    %s263 = sphi 0, %s263
    %s265 = sphi 0, %s263
    %s266 = sphi 0, %s265
    %s280 = sphi 0, %s266
    %s284 = sphi 0, %s284
    %s286 = sphi 0, %s284
    %s287 = sphi 0, %s286
    %s301 = sphi 0, %s287
    %s307 = sphi 0, %s309
    %s310 = sphi 0, %s307
    %s311 = sphi 0, %s310
    %s327 = sphi 0, %s311
  $region4: #{vl_transformer_itm.9} parent=0 // loop_header_branch
    %22 = sbr.rel (%p20) target = $region8
  $region5: #{vl_transformer_itm.9} parent=0 // loop_body
    %s24 = ssub.s32 %s19, 1
    %s25 = ssub.s32 %s19, 2
    %s26 = sadd.s32 %s19, 1
    %s27 = ssub.s32 %s19, %s26
    %p28 = scmp.eq.s32.totalorder %s27, 0
    %s30 = sadd.s32 %s29, 1
    %s31 = scalar_select %p28, %s29, %s30
    %p34 = pneg %p28
    %p35 = scmp.eq.s32.totalorder %s19, 1
    %p36 = por %p34, %p35
    %p37 = scmp.ne.s32.totalorder %s29, %s32
    %p38 = scmp.eq.s32.totalorder %s19, 0
    %p39 = por %p37, %p38
    %p40 = scmp.ne.s32.totalorder %s29, %s32
    %p41 = scmp.eq.s32.totalorder %s24, 1
    %p42 = por %p40, %p41
    %p43 = scmp.ne.s32.totalorder %s32, %s33
    %p44 = scmp.eq.s32.totalorder %s24, 0
    %p45 = por %p43, %p44
    %p46 = scmp.ne.s32.totalorder %s32, %s33
    %p47 = scmp.eq.s32.totalorder %s25, 1
    %p48 = por %p46, %p47
    %p50 = scmp.ne.s32.totalorder %s33, %s49
    %p51 = scmp.eq.s32.totalorder %s25, 0
    %p52 = por %p50, %p51
    %s54 = sadd.s32 %s53, 1
    %p57 = scmp.eq.s32.totalorder %s19, 1
    %p58 = scmp.ne.s32.totalorder %s53, %s55
    %p59 = scmp.eq.s32.totalorder %s19, 0
    %p60 = por %p58, %p59
    %p61 = scmp.ne.s32.totalorder %s53, %s55
    %p62 = scmp.eq.s32.totalorder %s24, 1
    %p63 = por %p61, %p62
    %p64 = scmp.ne.s32.totalorder %s55, %s56
    %p65 = scmp.eq.s32.totalorder %s24, 0
    %p66 = por %p64, %p65
    %p67 = scmp.ne.s32.totalorder %s55, %s56
    %p68 = scmp.eq.s32.totalorder %s25, 1
    %p69 = por %p67, %p68
    %p71 = scmp.ne.s32.totalorder %s56, %s70
    %p72 = scmp.eq.s32.totalorder %s25, 0
    %p73 = por %p71, %p72
    %s75 = sadd.s32 %s74, 1
    %p78 = scmp.eq.s32.totalorder %s19, 1
    %p79 = scmp.ne.s32.totalorder %s74, %s76
    %p80 = scmp.eq.s32.totalorder %s19, 0
    %p81 = por %p79, %p80
    %p82 = scmp.ne.s32.totalorder %s74, %s76
    %p83 = scmp.eq.s32.totalorder %s24, 1
    %p84 = por %p82, %p83
    %p85 = scmp.ne.s32.totalorder %s76, %s77
    %p86 = scmp.eq.s32.totalorder %s24, 0
    %p87 = por %p85, %p86
    %p88 = scmp.ne.s32.totalorder %s76, %s77
    %p89 = scmp.eq.s32.totalorder %s25, 1
    %p90 = por %p88, %p89
    %p92 = scmp.ne.s32.totalorder %s77, %s91
    %p93 = scmp.eq.s32.totalorder %s25, 0
    %p94 = por %p92, %p93
    %s96 = sadd.s32 %s95, 1
    %p99 = scmp.eq.s32.totalorder %s19, 1
    %p100 = scmp.ne.s32.totalorder %s95, %s97
    %p101 = scmp.eq.s32.totalorder %s19, 0
    %p102 = por %p100, %p101
    %p103 = scmp.ne.s32.totalorder %s95, %s97
    %p104 = scmp.eq.s32.totalorder %s24, 1
    %p105 = por %p103, %p104
    %p106 = scmp.ne.s32.totalorder %s97, %s98
    %p107 = scmp.eq.s32.totalorder %s24, 0
    %p108 = por %p106, %p107
    %p109 = scmp.ne.s32.totalorder %s97, %s98
    %p110 = scmp.eq.s32.totalorder %s25, 1
    %p111 = por %p109, %p110
    %p113 = scmp.ne.s32.totalorder %s98, %s112
    %p114 = scmp.eq.s32.totalorder %s25, 0
    %p115 = por %p113, %p114
    %s117 = sadd.s32 %s116, 1
    %p120 = scmp.eq.s32.totalorder %s19, 1
    %p121 = scmp.ne.s32.totalorder %s116, %s118
    %p122 = scmp.eq.s32.totalorder %s19, 0
    %p123 = por %p121, %p122
    %p124 = scmp.ne.s32.totalorder %s116, %s118
    %p125 = scmp.eq.s32.totalorder %s24, 1
    %p126 = por %p124, %p125
    %p127 = scmp.ne.s32.totalorder %s118, %s119
    %p128 = scmp.eq.s32.totalorder %s24, 0
    %p129 = por %p127, %p128
    %p130 = scmp.ne.s32.totalorder %s118, %s119
    %p131 = scmp.eq.s32.totalorder %s25, 1
    %p132 = por %p130, %p131
    %p134 = scmp.ne.s32.totalorder %s119, %s133
    %p135 = scmp.eq.s32.totalorder %s25, 0
    %p136 = por %p134, %p135
    %s138 = sadd.s32 %s137, 1
    %p141 = scmp.eq.s32.totalorder %s19, 1
    %p142 = scmp.ne.s32.totalorder %s137, %s139
    %p143 = scmp.eq.s32.totalorder %s19, 0
    %p144 = por %p142, %p143
    %p145 = scmp.ne.s32.totalorder %s137, %s139
    %p146 = scmp.eq.s32.totalorder %s24, 1
    %p147 = por %p145, %p146
    %p148 = scmp.ne.s32.totalorder %s139, %s140
    %p149 = scmp.eq.s32.totalorder %s24, 0
    %p150 = por %p148, %p149
    %p151 = scmp.ne.s32.totalorder %s139, %s140
    %p152 = scmp.eq.s32.totalorder %s25, 1
    %p153 = por %p151, %p152
    %p155 = scmp.ne.s32.totalorder %s140, %s154
    %p156 = scmp.eq.s32.totalorder %s25, 0
    %p157 = por %p155, %p156
    %s159 = sadd.s32 %s158, 1
    %p162 = scmp.eq.s32.totalorder %s19, 1
    %p163 = scmp.ne.s32.totalorder %s158, %s160
    %p164 = scmp.eq.s32.totalorder %s19, 0
    %p165 = por %p163, %p164
    %p166 = scmp.ne.s32.totalorder %s158, %s160
    %p167 = scmp.eq.s32.totalorder %s24, 1
    %p168 = por %p166, %p167
    %p169 = scmp.ne.s32.totalorder %s160, %s161
    %p170 = scmp.eq.s32.totalorder %s24, 0
    %p171 = por %p169, %p170
    %p172 = scmp.ne.s32.totalorder %s160, %s161
    %p173 = scmp.eq.s32.totalorder %s25, 1
    %p174 = por %p172, %p173
    %p176 = scmp.ne.s32.totalorder %s161, %s175
    %p177 = scmp.eq.s32.totalorder %s25, 0
    %p178 = por %p176, %p177
    %s180 = sadd.s32 %s179, 1
    %p183 = scmp.eq.s32.totalorder %s19, 1
    %p184 = scmp.ne.s32.totalorder %s179, %s181
    %p185 = scmp.eq.s32.totalorder %s19, 0
    %p186 = por %p184, %p185
    %p187 = scmp.ne.s32.totalorder %s179, %s181
    %p188 = scmp.eq.s32.totalorder %s24, 1
    %p189 = por %p187, %p188
    %p190 = scmp.ne.s32.totalorder %s181, %s182
    %p191 = scmp.eq.s32.totalorder %s24, 0
    %p192 = por %p190, %p191
    %p193 = scmp.ne.s32.totalorder %s181, %s182
    %p194 = scmp.eq.s32.totalorder %s25, 1
    %p195 = por %p193, %p194
    %p197 = scmp.ne.s32.totalorder %s182, %s196
    %p198 = scmp.eq.s32.totalorder %s25, 0
    %p199 = por %p197, %p198
    %s201 = sadd.s32 %s200, 1
    %p204 = scmp.eq.s32.totalorder %s19, 1
    %p205 = scmp.ne.s32.totalorder %s200, %s202
    %p206 = scmp.eq.s32.totalorder %s19, 0
    %p207 = por %p205, %p206
    %p208 = scmp.ne.s32.totalorder %s200, %s202
    %p209 = scmp.eq.s32.totalorder %s24, 1
    %p210 = por %p208, %p209
    %p211 = scmp.ne.s32.totalorder %s202, %s203
    %p212 = scmp.eq.s32.totalorder %s24, 0
    %p213 = por %p211, %p212
    %p214 = scmp.ne.s32.totalorder %s202, %s203
    %p215 = scmp.eq.s32.totalorder %s25, 1
    %p216 = por %p214, %p215
    %p218 = scmp.ne.s32.totalorder %s203, %s217
    %p219 = scmp.eq.s32.totalorder %s25, 0
    %p220 = por %p218, %p219
    %s222 = sadd.s32 %s221, 1
    %p225 = scmp.eq.s32.totalorder %s19, 1
    %p226 = scmp.ne.s32.totalorder %s221, %s223
    %p227 = scmp.eq.s32.totalorder %s19, 0
    %p228 = por %p226, %p227
    %p229 = scmp.ne.s32.totalorder %s221, %s223
    %p230 = scmp.eq.s32.totalorder %s24, 1
    %p231 = por %p229, %p230
    %p232 = scmp.ne.s32.totalorder %s223, %s224
    %p233 = scmp.eq.s32.totalorder %s24, 0
    %p234 = por %p232, %p233
    %p235 = scmp.ne.s32.totalorder %s223, %s224
    %p236 = scmp.eq.s32.totalorder %s25, 1
    %p237 = por %p235, %p236
    %p239 = scmp.ne.s32.totalorder %s224, %s238
    %p240 = scmp.eq.s32.totalorder %s25, 0
    %p241 = por %p239, %p240
    %s243 = sadd.s32 %s242, 1
    %p246 = scmp.eq.s32.totalorder %s19, 1
    %p247 = scmp.ne.s32.totalorder %s242, %s244
    %p248 = scmp.eq.s32.totalorder %s19, 0
    %p249 = por %p247, %p248
    %p250 = scmp.ne.s32.totalorder %s242, %s244
    %p251 = scmp.eq.s32.totalorder %s24, 1
    %p252 = por %p250, %p251
    %p253 = scmp.ne.s32.totalorder %s244, %s245
    %p254 = scmp.eq.s32.totalorder %s24, 0
    %p255 = por %p253, %p254
    %p256 = scmp.ne.s32.totalorder %s244, %s245
    %p257 = scmp.eq.s32.totalorder %s25, 1
    %p258 = por %p256, %p257
    %p260 = scmp.ne.s32.totalorder %s245, %s259
    %p261 = scmp.eq.s32.totalorder %s25, 0
    %p262 = por %p260, %p261
    %s264 = sadd.s32 %s263, 1
    %p267 = scmp.eq.s32.totalorder %s19, 1
    %p268 = scmp.ne.s32.totalorder %s263, %s265
    %p269 = scmp.eq.s32.totalorder %s19, 0
    %p270 = por %p268, %p269
    %p271 = scmp.ne.s32.totalorder %s263, %s265
    %p272 = scmp.eq.s32.totalorder %s24, 1
    %p273 = por %p271, %p272
    %p274 = scmp.ne.s32.totalorder %s265, %s266
    %p275 = scmp.eq.s32.totalorder %s24, 0
    %p276 = por %p274, %p275
    %p277 = scmp.ne.s32.totalorder %s265, %s266
    %p278 = scmp.eq.s32.totalorder %s25, 1
    %p279 = por %p277, %p278
    %p281 = scmp.ne.s32.totalorder %s266, %s280
    %p282 = scmp.eq.s32.totalorder %s25, 0
    %p283 = por %p281, %p282
    %s285 = sadd.s32 %s284, 1
    %p288 = scmp.eq.s32.totalorder %s19, 1
    %p289 = scmp.ne.s32.totalorder %s284, %s286
    %p290 = scmp.eq.s32.totalorder %s19, 0
    %p291 = por %p289, %p290
    %p292 = scmp.ne.s32.totalorder %s284, %s286
    %p293 = scmp.eq.s32.totalorder %s24, 1
    %p294 = por %p292, %p293
    %p295 = scmp.ne.s32.totalorder %s286, %s287
    %p296 = scmp.eq.s32.totalorder %s24, 0
    %p297 = por %p295, %p296
    %p298 = scmp.ne.s32.totalorder %s286, %s287
    %p299 = scmp.eq.s32.totalorder %s25, 1
    %p300 = por %p298, %p299
    %p302 = scmp.ne.s32.totalorder %s287, %s301
    %p303 = scmp.eq.s32.totalorder %s25, 0
    %p304 = por %p302, %p303
    %s305 = ssub.s32 %s19, %s26
    %p306 = scmp.eq.s32.totalorder %s305, 0
    %s308 = sadd.s32 %s307, 1
    %s309 = scalar_select %p306, %s307, %s308
    %p312 = pneg %p306
    %p313 = scmp.eq.s32.totalorder %s19, 1
    %p314 = por %p312, %p313
    %p315 = scmp.ne.s32.totalorder %s307, %s310
    %p316 = scmp.eq.s32.totalorder %s19, 0
    %p317 = por %p315, %p316
    %p318 = scmp.ne.s32.totalorder %s307, %s310
    %p319 = scmp.eq.s32.totalorder %s24, 1
    %p320 = por %p318, %p319
    %p321 = scmp.ne.s32.totalorder %s310, %s311
    %p322 = scmp.eq.s32.totalorder %s24, 0
    %p323 = por %p321, %p322
    %p324 = scmp.ne.s32.totalorder %s310, %s311
    %p325 = scmp.eq.s32.totalorder %s25, 1
    %p326 = por %p324, %p325
    %p328 = scmp.ne.s32.totalorder %s311, %s327
    %p329 = scmp.eq.s32.totalorder %s25, 0
    %p330 = por %p328, %p329
    %p331 = scmp.le.s32.totalorder 1, %s19
    %p332 = scmp.lt.s32.totalorder %s19, 3
    %p333 = pnand %p331, %p332
    %p334 = pneg %p333
    // Predicated region
    $region9: #{vl_transformer_itm.9} parent=5 // pred_check
      _
    $region10: #{vl_transformer_itm.9} parent=5 // pred_check_branch
      %336 = sbr.rel (%p333) target = $region12
    $region11: #{vl_transformer_itm.9} parent=5 // pred_region
      %s337 = ssub.s32 %s19, 1
      // Predicated region
      $region13: #{vl_transformer_itm.9} parent=11 // pred_check
        %p338 = pneg %p66
      $region14: #{vl_transformer_itm.9} parent=11 // pred_check_branch
        %340 = sbr.rel (%p338) target = $region16
      $region15: #{vl_transformer_itm.9} parent=11 // pred_region
        _
      $region16: #{vl_transformer_itm.9} parent=11 // pred_fallthru
        _
      // Predicated region
      $region17: #{vl_transformer_itm.9} parent=11 // pred_check
        %p341 = pneg %p87
      $region18: #{vl_transformer_itm.9} parent=11 // pred_check_branch
        %343 = sbr.rel (%p341) target = $region20
      $region19: #{vl_transformer_itm.9} parent=11 // pred_region
        _
      $region20: #{vl_transformer_itm.9} parent=11 // pred_fallthru
        _
      // Predicated region
      $region21: #{vl_transformer_itm.9} parent=11 // pred_check
        %p344 = pneg %p108
      $region22: #{vl_transformer_itm.9} parent=11 // pred_check_branch
        %346 = sbr.rel (%p344) target = $region24
      $region23: #{vl_transformer_itm.9} parent=11 // pred_region
        _
      $region24: #{vl_transformer_itm.9} parent=11 // pred_fallthru
        _
      // Predicated region
      $region25: #{vl_transformer_itm.9} parent=11 // pred_check
        %p347 = pneg %p129
      $region26: #{vl_transformer_itm.9} parent=11 // pred_check_branch
        %349 = sbr.rel (%p347) target = $region28
      $region27: #{vl_transformer_itm.9} parent=11 // pred_region
        _
      $region28: #{vl_transformer_itm.9} parent=11 // pred_fallthru
        _
      // Predicated region
      $region29: #{vl_transformer_itm.9} parent=11 // pred_check
        %p350 = pneg %p150
      $region30: #{vl_transformer_itm.9} parent=11 // pred_check_branch
        %352 = sbr.rel (%p350) target = $region32
      $region31: #{vl_transformer_itm.9} parent=11 // pred_region
        _
      $region32: #{vl_transformer_itm.9} parent=11 // pred_fallthru
        _
      // Predicated region
      $region33: #{vl_transformer_itm.9} parent=11 // pred_check
        %p353 = pneg %p171
      $region34: #{vl_transformer_itm.9} parent=11 // pred_check_branch
        %355 = sbr.rel (%p353) target = $region36
      $region35: #{vl_transformer_itm.9} parent=11 // pred_region
        _
      $region36: #{vl_transformer_itm.9} parent=11 // pred_fallthru
        _
      // Predicated region
      $region37: #{vl_transformer_itm.9} parent=11 // pred_check
        %p356 = pneg %p192
      $region38: #{vl_transformer_itm.9} parent=11 // pred_check_branch
        %358 = sbr.rel (%p356) target = $region40
      $region39: #{vl_transformer_itm.9} parent=11 // pred_region
        _
      $region40: #{vl_transformer_itm.9} parent=11 // pred_fallthru
        _
      // Predicated region
      $region41: #{vl_transformer_itm.9} parent=11 // pred_check
        %p359 = pneg %p213
      $region42: #{vl_transformer_itm.9} parent=11 // pred_check_branch
        %361 = sbr.rel (%p359) target = $region44
      $region43: #{vl_transformer_itm.9} parent=11 // pred_region
        _
      $region44: #{vl_transformer_itm.9} parent=11 // pred_fallthru
        _
      // Predicated region
      $region45: #{vl_transformer_itm.9} parent=11 // pred_check
        %p362 = pneg %p234
      $region46: #{vl_transformer_itm.9} parent=11 // pred_check_branch
        %364 = sbr.rel (%p362) target = $region48
      $region47: #{vl_transformer_itm.9} parent=11 // pred_region
        _
      $region48: #{vl_transformer_itm.9} parent=11 // pred_fallthru
        _
      // Predicated region
      $region49: #{vl_transformer_itm.9} parent=11 // pred_check
        %p365 = pneg %p255
      $region50: #{vl_transformer_itm.9} parent=11 // pred_check_branch
        %367 = sbr.rel (%p365) target = $region52
      $region51: #{vl_transformer_itm.9} parent=11 // pred_region
        _
      $region52: #{vl_transformer_itm.9} parent=11 // pred_fallthru
        _
      // Predicated region
      $region53: #{vl_transformer_itm.9} parent=11 // pred_check
        %p368 = pneg %p276
      $region54: #{vl_transformer_itm.9} parent=11 // pred_check_branch
        %370 = sbr.rel (%p368) target = $region56
      $region55: #{vl_transformer_itm.9} parent=11 // pred_region
        _
      $region56: #{vl_transformer_itm.9} parent=11 // pred_fallthru
        _
      // Predicated region
      $region57: #{vl_transformer_itm.9} parent=11 // pred_check
        %p371 = pneg %p297
      $region58: #{vl_transformer_itm.9} parent=11 // pred_check_branch
        %373 = sbr.rel (%p371) target = $region60
      $region59: #{vl_transformer_itm.9} parent=11 // pred_region
        _
      $region60: #{vl_transformer_itm.9} parent=11 // pred_fallthru
        _
    $region12: #{vl_transformer_itm.9} parent=5 // pred_fallthru
      _
    %p374 = scmp.lt.s32.totalorder %s19, 2
    // Predicated region
    $region61: #{vl_transformer_itm.9} parent=5 // pred_check
      %p375 = pneg %p374
    $region62: #{vl_transformer_itm.9} parent=5 // pred_check_branch
      %377 = sbr.rel (%p375) target = $region64
    $region63: #{vl_transformer_itm.9} parent=5 // pred_region
      // Predicated region
      $region65: #{vl_transformer_itm.9} parent=63 // pred_check
        %p378 = pneg %p39
      $region66: #{vl_transformer_itm.9} parent=63 // pred_check_branch
        %380 = sbr.rel (%p378) target = $region68
      $region67: #{vl_transformer_itm.9} parent=63 // pred_region
        %p381 = scmp.lt.s32.totalorder %s19, 1
        %s382 = scalar_select %p381, %s19, 1
        %s383 = smul.addr %s382, 3
        %s384 = smul.addr %s383, 8
        %s385 = scalar_lea.vmem %s0, %s384
      $region68: #{vl_transformer_itm.9} parent=63 // pred_fallthru
        _
    $region64: #{vl_transformer_itm.9} parent=5 // pred_fallthru
      _
    %p386 = scmp.le.s32.totalorder 1, %s19
    %p387 = scmp.lt.s32.totalorder %s19, 3
    %p388 = pnand %p386, %p387
    %p389 = pneg %p388
    // Predicated region
    $region69: #{vl_transformer_itm.9} parent=5 // pred_check
      _
    $region70: #{vl_transformer_itm.9} parent=5 // pred_check_branch
      %391 = sbr.rel (%p388) target = $region72
    $region71: #{vl_transformer_itm.9} parent=5 // pred_region
      %s392 = ssub.s32 %s19, 1
      %p393 = scmp.lt.s32.totalorder %s24, 1
      %s394 = scalar_select %p393, %s24, 1
      %s395 = smul.addr %s394, 3
      %s396 = smul.addr %s395, 8
      %s397 = scalar_lea.vmem %s0, %s396
      %p398 = pneg %p45
      %p399 = pneg %p42
      %p400 = pneg %p66
      %p401 = pneg %p63
      %p402 = pneg %p87
      %p403 = pneg %p84
      %p404 = pneg %p108
      %p405 = pneg %p105
      %p406 = pneg %p129
      %p407 = pneg %p126
      %p408 = pneg %p150
      %p409 = pneg %p147
      %p410 = pneg %p171
      %p411 = pneg %p168
      %p412 = pneg %p192
      %p413 = pneg %p189
      %p414 = pneg %p213
      %p415 = pneg %p210
      %p416 = pneg %p234
      %p417 = pneg %p231
      %p418 = pneg %p255
      %p419 = pneg %p252
      %p420 = pneg %p276
      %p421 = pneg %p273
      %p422 = pneg %p297
      %p423 = pneg %p294
      %p424 = pneg %p323
      %p425 = pneg %p320
      %p426 = scmp.lt.s32.totalorder %s24, 1
      %s427 = scalar_select %p426, %s24, 1
      %s428 = smul.addr %s427, 3
      %s429 = smul.addr %s428, 8
      %s430 = scalar_lea.vmem %s13, %s429
      %p431 = scmp.lt.s32.totalorder %s24, 1
      %s432 = scalar_select %p431, %s24, 1
      %s433 = smul.addr %s432, 3
      %s434 = smul.addr %s433, 8
      %s435 = scalar_lea.vmem %s0, %s434
      %p436 = scmp.lt.s32.totalorder %s24, 1
      %s437 = scalar_select %p436, %s24, 1
      %s438 = smul.addr %s437, 3
      %s439 = smul.addr %s438, 8
      %s440 = scalar_lea.vmem %s13, %s439
      %v441 = vld [vmem:[%s435] sm:$0xff]
      %v442 = vld [vmem:[%s435 + $0x8] sm:$0xff]
      %v443 = vld [vmem:[%s435 + $0x10] sm:$0x1]
      %v444 = vld [vmem:[%s1] sm:$0x1]
      %v445 = vld [vmem:[%s2] sm:$0x1]
      %vm446 = vcmask 523264
      %v447 = vsel %vm446, %v441, 0.0
      %448 = vadd.xlane.f32.xlu0 %v447
      %v449 = vpop.xlane.xlu0 %448
      %v450 = vsel %vm446, %v442, 0.0
      %451 = vadd.xlane.f32.xlu0 %v450
      %v452 = vpop.xlane.xlu0 %451
      %vm453 = vcmask 516096
      %v454 = vsel %vm453, %v443, 0.0
      %455 = vadd.xlane.f32.xlu0 %v454
      %v456 = vpop.xlane.xlu0 %455
      %v457 = vrcp.pop 64.0
      %v458 = vmul.f32 64.0, %v457
      %v459 = vsub.f32 1.0, %v458
      %v460 = vmul.f32 %v457, %v459
      %v461 = vadd.f32 %v457, %v460
      %vm462 = vweird.f32 %v457
      %v463 = vsel %vm462, %v457, %v461
      %v464 = vmul.f32 %v449, %v463
      %v465 = vmul.f32 %v452, %v463
      %v466 = vmul.f32 %v456, %v463
      %v467 = vsub.f32 %v441, %v464
      %v468 = vsub.f32 %v442, %v465
      %v469 = vsub.f32 %v443, %v466
      %v470 = vmul.f32 %v467, %v467
      %v471 = vmul.f32 %v468, %v468
      %v472 = vmul.f32 %v469, %v469
      %v473 = vsel %vm446, %v470, 0.0
      %474 = vadd.xlane.f32.xlu0 %v473
      %v475 = vpop.xlane.xlu0 %474
      %v476 = vsel %vm446, %v471, 0.0
      %477 = vadd.xlane.f32.xlu0 %v476
      %v478 = vpop.xlane.xlu0 %477
      %v479 = vsel %vm453, %v472, 0.0
      %480 = vadd.xlane.f32.xlu0 %v479
      %v481 = vpop.xlane.xlu0 %480
      %v482 = vmul.f32 %v475, %v463
      %v483 = vmul.f32 %v478, %v463
      %v484 = vmul.f32 %v481, %v463
      %v485 = vadd.f32 %v482, 1e-06
      %v486 = vadd.f32 %v483, 1e-06
      %v487 = vadd.f32 %v484, 1e-06
      %v488 = vrsqrt.pop %v485
      %v489 = vmul.f32 %v488, %v485
      %v490 = vmul.f32 %v489, %v488
      %v491 = vmul.f32 0.5, %v490
      %v492 = vsub.f32 1.5, %v491
      %v493 = vmul.f32 %v488, %v492
      %vm494 = vweird.f32 %v485
      %vm495 = vweird.f32 %v488
      %vm496 = vmor %vm494, %vm495
      %v497 = vsel %vm496, %v488, %v493
      %v498 = vrsqrt.pop %v486
      %v499 = vmul.f32 %v498, %v486
      %v500 = vmul.f32 %v499, %v498
      %v501 = vmul.f32 0.5, %v500
      %v502 = vsub.f32 1.5, %v501
      %v503 = vmul.f32 %v498, %v502
      %vm504 = vweird.f32 %v486
      %vm505 = vweird.f32 %v498
      %vm506 = vmor %vm504, %vm505
      %v507 = vsel %vm506, %v498, %v503
      %v508 = vrsqrt.pop %v487
      %v509 = vmul.f32 %v508, %v487
      %v510 = vmul.f32 %v509, %v508
      %v511 = vmul.f32 0.5, %v510
      %v512 = vsub.f32 1.5, %v511
      %v513 = vmul.f32 %v508, %v512
      %vm514 = vweird.f32 %v487
      %vm515 = vweird.f32 %v508
      %vm516 = vmor %vm514, %vm515
      %v517 = vsel %vm516, %v508, %v513
      %v518 = vmul.f32 %v467, %v497
      %v519 = vmul.f32 %v468, %v507
      %v520 = vmul.f32 %v469, %v517
      %v522 = vperm.slane %v444, 0
      %v524 = vmul.f32 %v518, %v522
      %v525 = vmul.f32 %v519, %v522
      %v526 = vmul.f32 %v520, %v522
      %v528 = vperm.slane %v445, 0
      %v530 = vadd.f32 %v524, %v528
      %v531 = vadd.f32 %v525, %v528
      %v532 = vadd.f32 %v526, %v528
      %v533 = vld [vmem:[%s3] sm:$0xff]
      %v534 = vld [vmem:[%s3 + $0x8] sm:$0xff]
      %v535 = vld [vmem:[%s3 + $0x10] sm:$0xff]
      %v536 = vld [vmem:[%s3 + $0x18] sm:$0xff]
      %v537 = vld [vmem:[%s3 + $0x20] sm:$0xff]
      %v538 = vld [vmem:[%s3 + $0x28] sm:$0xff]
      %v539 = vld [vmem:[%s3 + $0x30] sm:$0xff]
      %v540 = vld [vmem:[%s3 + $0x38] sm:$0xff]
      %v541 = vld [vmem:[%s3 + $0x40] sm:$0xff]
      %v542 = vld [vmem:[%s3 + $0x48] sm:$0xff]
      %v543 = vld [vmem:[%s3 + $0x50] sm:$0xff]
      %v544 = vld [vmem:[%s3 + $0x58] sm:$0xff]
      %v545 = vld [vmem:[%s3 + $0x60] sm:$0xff]
      %v546 = vld [vmem:[%s3 + $0x68] sm:$0xff]
      %v547 = vld [vmem:[%s3 + $0x70] sm:$0xff]
      %v548 = vld [vmem:[%s3 + $0x78] sm:$0xff]
      %v549 = vld [vmem:[%s4] sm:$0x3]
      %v551 = vperm.slane %v549, 0
      %v552 = vperm.slane %v549, 1
      %v556 = vsel %vm446, %v530, 0
      %v559 = vsel %vm446, %v531, 0
      %v562 = vsel %vm446, %v532, 0
      %564 = vmatpush.msra.mxu0 0.0
      %565 = vmatpush.msra.mxu0 0.0
      %566 = vmatpush.msra.mxu0 0.0
      %567 = vmatpush.msra.mxu0 0.0
      %568 = vmatpush.msra.mxu0 0.0
      %569 = vmatpush.msra.mxu0 0.0
      %570 = vmatpush.msra.mxu0 0.0
      %571 = vmatpush.msra.mxu0 0.0
      %572 = vmatpush.msra.mxu0 %v547
      %573 = vmatpush.msra.mxu0 %v545
      %574 = vmatpush.msra.mxu0 %v543
      %575 = vmatpush.msra.mxu0 %v541
      %576 = vmatpush.msra.mxu0 %v539
      %577 = vmatpush.msra.mxu0 %v537
      %578 = vmatpush.msra.mxu0 %v535
      %579 = vmatpush.msra.mxu0 %v533
      %580 = vmatmul.f32.gmra.mxu0 %v556
      %v581 = vpop.f32.mrf.mxu0
      %v582 = vadd.f32 %v551, %v581
      %583 = vmatmul.f32.gmra.mxu0 %v559
      %v584 = vpop.f32.mrf.mxu0
      %v585 = vadd.f32 %v551, %v584
      %586 = vmatmul.f32.gmra.mxu0 %v562
      %v587 = vpop.f32.mrf.mxu0
      %v588 = vadd.f32 %v551, %v587
      %589 = vdwg.mxu0
      %590 = vmatpush.msra.mxu0 0.0
      %591 = vmatpush.msra.mxu0 0.0
      %592 = vmatpush.msra.mxu0 0.0
      %593 = vmatpush.msra.mxu0 0.0
      %594 = vmatpush.msra.mxu0 0.0
      %595 = vmatpush.msra.mxu0 0.0
      %596 = vmatpush.msra.mxu0 0.0
      %597 = vmatpush.msra.mxu0 0.0
      %598 = vmatpush.msra.mxu0 %v548
      %599 = vmatpush.msra.mxu0 %v546
      %600 = vmatpush.msra.mxu0 %v544
      %601 = vmatpush.msra.mxu0 %v542
      %602 = vmatpush.msra.mxu0 %v540
      %603 = vmatpush.msra.mxu0 %v538
      %604 = vmatpush.msra.mxu0 %v536
      %605 = vmatpush.msra.mxu0 %v534
      %606 = vmatmul.f32.gmra.mxu0 %v556
      %v607 = vpop.f32.mrf.mxu0
      %v608 = vadd.f32 %v552, %v607
      %609 = vmatmul.f32.gmra.mxu0 %v559
      %v610 = vpop.f32.mrf.mxu0
      %v611 = vadd.f32 %v552, %v610
      %612 = vmatmul.f32.gmra.mxu0 %v562
      %v613 = vpop.f32.mrf.mxu0
      %v614 = vadd.f32 %v552, %v613
      %615 = vdwg.mxu0
      %v616 = vld [vmem:[%s5] sm:$0xff]
      %v617 = vld [vmem:[%s5 + $0x8] sm:$0xff]
      %v618 = vld [vmem:[%s5 + $0x10] sm:$0xff]
      %v619 = vld [vmem:[%s5 + $0x18] sm:$0xff]
      %v620 = vld [vmem:[%s5 + $0x20] sm:$0xff]
      %v621 = vld [vmem:[%s5 + $0x28] sm:$0xff]
      %v622 = vld [vmem:[%s5 + $0x30] sm:$0xff]
      %v623 = vld [vmem:[%s5 + $0x38] sm:$0xff]
      %627 = vrot.lane.b32.xlu0 %v582, 64
      %v628 = vpop.permute.xlu0 %627
      %629 = vrot.lane.b32.xlu0 %v585, 64
      %v630 = vpop.permute.xlu0 %629
      %631 = vrot.lane.b32.xlu0 %v588, 64
      %v632 = vpop.permute.xlu0 %631
      %vm633 = vcmask 130048
      %v634 = vsel %vm633, %v582, 0
      %v636 = vsel %vm633, %v585, 0
      %v638 = vsel %vm633, %v588, 0
      %v640 = vsel %vm633, %v628, 0
      %v642 = vsel %vm633, %v630, 0
      %v644 = vsel %vm633, %v632, 0
      %646 = vmatpush.xpose.msra.mxu0 0.0
      %647 = vmatpush.xpose.msra.mxu0 0.0
      %648 = vmatpush.xpose.msra.mxu0 0.0
      %649 = vmatpush.xpose.msra.mxu0 0.0
      %650 = vmatpush.xpose.msra.mxu0 0.0
      %651 = vmatpush.xpose.msra.mxu0 0.0
      %652 = vmatpush.xpose.msra.mxu0 0.0
      %653 = vmatpush.xpose.msra.mxu0 0.0
      %654 = vmatpush.xpose.msra.mxu0 0.0
      %655 = vmatpush.xpose.msra.mxu0 0.0
      %656 = vmatpush.xpose.msra.mxu0 0.0
      %657 = vmatpush.xpose.msra.mxu0 0.0
      %658 = vmatpush.xpose.msra.mxu0 0.0
      %659 = vmatpush.xpose.msra.mxu0 %v644
      %660 = vmatpush.xpose.msra.mxu0 %v642
      %661 = vmatpush.xpose.msra.mxu0 %v640
      %662 = vmatmul.f32.gmra.mxu0 %v634
      %v663 = vpop.f32.mrf.mxu0
      %v664 = vadd.f32 0.0, %v663
      %665 = vmatmul.f32.gmra.mxu0 %v636
      %v666 = vpop.f32.mrf.mxu0
      %v667 = vadd.f32 0.0, %v666
      %668 = vmatmul.f32.gmra.mxu0 %v638
      %v669 = vpop.f32.mrf.mxu0
      %v670 = vadd.f32 0.0, %v669
      %671 = vdwg.mxu0
      %v672 = vmul.f32 %v664, 0.25
      %v673 = vmul.f32 %v667, 0.25
      %v674 = vmul.f32 %v670, 0.25
      %vm675 = vcmask 138240
      %v676 = vsel %vm675, %v672, -inf
      %677 = vmax.xlane.f32.xlu0 %v676
      %v678 = vpop.xlane.xlu0 %677
      %v679 = vsel %vm675, %v673, -inf
      %680 = vmax.xlane.f32.xlu0 %v679
      %v681 = vpop.xlane.xlu0 %680
      %vm682 = vcmask 131072
      %v683 = vsel %vm682, %v674, -inf
      %684 = vmax.xlane.f32.xlu0 %v683
      %v685 = vpop.xlane.xlu0 %684
      %v686 = vsub.f32 %v672, %v678
      %v687 = vsub.f32 %v673, %v681
      %v688 = vsub.f32 %v674, %v685
      %v689 = vmul.f32 %v686, 1.442695
      %v690 = vpow.pop %v689
      %v691 = vmul.f32 %v687, 1.442695
      %v692 = vpow.pop %v691
      %v693 = vmul.f32 %v688, 1.442695
      %v694 = vpow.pop %v693
      %v695 = vsel %vm675, %v690, 0.0
      %696 = vadd.xlane.f32.xlu0 %v695
      %v697 = vpop.xlane.xlu0 %696
      %v698 = vsel %vm675, %v692, 0.0
      %699 = vadd.xlane.f32.xlu0 %v698
      %v700 = vpop.xlane.xlu0 %699
      %v701 = vsel %vm682, %v694, 0.0
      %702 = vadd.xlane.f32.xlu0 %v701
      %v703 = vpop.xlane.xlu0 %702
      %v704 = vrcp.pop %v697
      %v705 = vmul.f32 %v697, %v704
      %v706 = vsub.f32 1.0, %v705
      %v707 = vmul.f32 %v704, %v706
      %v708 = vadd.f32 %v704, %v707
      %vm709 = vweird.f32 %v697
      %vm710 = vweird.f32 %v704
      %vm711 = vmor %vm709, %vm710
      %v712 = vsel %vm711, %v704, %v708
      %v713 = vand.u32 2147483647, %v697
      %vm714 = vcmp.eq.f32.partialorder %v713, 8.507059e+37
      %v715 = vand.u32 %v697, 2147483648
      %v716 = vor.u32 1.1754944e-38, %v715
      %v717 = vsel %vm714, %v716, %v712
      %v718 = vmul.f32 %v690, %v717
      %v719 = vrcp.pop %v700
      %v720 = vmul.f32 %v700, %v719
      %v721 = vsub.f32 1.0, %v720
      %v722 = vmul.f32 %v719, %v721
      %v723 = vadd.f32 %v719, %v722
      %vm724 = vweird.f32 %v700
      %vm725 = vweird.f32 %v719
      %vm726 = vmor %vm724, %vm725
      %v727 = vsel %vm726, %v719, %v723
      %v728 = vand.u32 2147483647, %v700
      %vm729 = vcmp.eq.f32.partialorder %v728, 8.507059e+37
      %v730 = vand.u32 %v700, 2147483648
      %v731 = vor.u32 1.1754944e-38, %v730
      %v732 = vsel %vm729, %v731, %v727
      %v733 = vmul.f32 %v692, %v732
      %v734 = vrcp.pop %v703
      %v735 = vmul.f32 %v703, %v734
      %v736 = vsub.f32 1.0, %v735
      %v737 = vmul.f32 %v734, %v736
      %v738 = vadd.f32 %v734, %v737
      %vm739 = vweird.f32 %v703
      %vm740 = vweird.f32 %v734
      %vm741 = vmor %vm739, %vm740
      %v742 = vsel %vm741, %v734, %v738
      %v743 = vand.u32 2147483647, %v703
      %vm744 = vcmp.eq.f32.partialorder %v743, 8.507059e+37
      %v745 = vand.u32 %v703, 2147483648
      %v746 = vor.u32 1.1754944e-38, %v745
      %v747 = vsel %vm744, %v746, %v742
      %v748 = vmul.f32 %v694, %v747
      %v750 = vsel %vm675, %v718, 0
      %v753 = vsel %vm675, %v733, 0
      %v756 = vsel %vm675, %v748, 0
      %vm758 = vcmask 1040384
      %v760 = vsel %vm758, %v614, 0
      %762 = vmatpush.msra.mxu0 0.0
      %763 = vmatpush.msra.mxu0 0.0
      %764 = vmatpush.msra.mxu0 0.0
      %765 = vmatpush.msra.mxu0 0.0
      %766 = vmatpush.msra.mxu0 0.0
      %767 = vmatpush.msra.mxu0 0.0
      %768 = vmatpush.msra.mxu0 0.0
      %769 = vmatpush.msra.mxu0 0.0
      %770 = vmatpush.msra.mxu0 0.0
      %771 = vmatpush.msra.mxu0 0.0
      %772 = vmatpush.msra.mxu0 0.0
      %773 = vmatpush.msra.mxu0 0.0
      %774 = vmatpush.msra.mxu0 0.0
      %775 = vmatpush.msra.mxu0 %v760
      %776 = vmatpush.msra.mxu0 %v611
      %777 = vmatpush.msra.mxu0 %v608
      %778 = vmatmul.f32.gmra.mxu0 %v750
      %v779 = vpop.f32.mrf.mxu0
      %v780 = vadd.f32 0.0, %v779
      %781 = vmatmul.f32.gmra.mxu0 %v753
      %v782 = vpop.f32.mrf.mxu0
      %v783 = vadd.f32 0.0, %v782
      %784 = vmatmul.f32.gmra.mxu0 %v756
      %v785 = vpop.f32.mrf.mxu0
      %v786 = vadd.f32 0.0, %v785
      %787 = vdwg.mxu0
      %788 = vrot.lane.b32.xlu0 %v582, 112
      %v789 = vpop.permute.xlu0 %788
      %790 = vrot.lane.b32.xlu0 %v585, 112
      %v791 = vpop.permute.xlu0 %790
      %792 = vrot.lane.b32.xlu0 %v588, 112
      %v793 = vpop.permute.xlu0 %792
      %794 = vrot.lane.b32.xlu0 %v582, 48
      %v795 = vpop.permute.xlu0 %794
      %796 = vrot.lane.b32.xlu0 %v585, 48
      %v797 = vpop.permute.xlu0 %796
      %798 = vrot.lane.b32.xlu0 %v588, 48
      %v799 = vpop.permute.xlu0 %798
      %v800 = vsel %vm633, %v789, 0
      %v802 = vsel %vm633, %v791, 0
      %v804 = vsel %vm633, %v793, 0
      %v806 = vsel %vm633, %v795, 0
      %v808 = vsel %vm633, %v797, 0
      %v810 = vsel %vm633, %v799, 0
      %812 = vmatpush.xpose.msra.mxu0 0.0
      %813 = vmatpush.xpose.msra.mxu0 0.0
      %814 = vmatpush.xpose.msra.mxu0 0.0
      %815 = vmatpush.xpose.msra.mxu0 0.0
      %816 = vmatpush.xpose.msra.mxu0 0.0
      %817 = vmatpush.xpose.msra.mxu0 0.0
      %818 = vmatpush.xpose.msra.mxu0 0.0
      %819 = vmatpush.xpose.msra.mxu0 0.0
      %820 = vmatpush.xpose.msra.mxu0 0.0
      %821 = vmatpush.xpose.msra.mxu0 0.0
      %822 = vmatpush.xpose.msra.mxu0 0.0
      %823 = vmatpush.xpose.msra.mxu0 0.0
      %824 = vmatpush.xpose.msra.mxu0 0.0
      %825 = vmatpush.xpose.msra.mxu0 %v810
      %826 = vmatpush.xpose.msra.mxu0 %v808
      %827 = vmatpush.xpose.msra.mxu0 %v806
      %828 = vmatmul.f32.gmra.mxu0 %v800
      %v829 = vpop.f32.mrf.mxu0
      %v830 = vadd.f32 0.0, %v829
      %831 = vmatmul.f32.gmra.mxu0 %v802
      %v832 = vpop.f32.mrf.mxu0
      %v833 = vadd.f32 0.0, %v832
      %834 = vmatmul.f32.gmra.mxu0 %v804
      %v835 = vpop.f32.mrf.mxu0
      %v836 = vadd.f32 0.0, %v835
      %837 = vdwg.mxu0
      %v838 = vmul.f32 %v830, 0.25
      %v839 = vmul.f32 %v833, 0.25
      %v840 = vmul.f32 %v836, 0.25
      %v841 = vsel %vm675, %v838, -inf
      %842 = vmax.xlane.f32.xlu0 %v841
      %v843 = vpop.xlane.xlu0 %842
      %v844 = vsel %vm675, %v839, -inf
      %845 = vmax.xlane.f32.xlu0 %v844
      %v846 = vpop.xlane.xlu0 %845
      %v847 = vsel %vm682, %v840, -inf
      %848 = vmax.xlane.f32.xlu0 %v847
      %v849 = vpop.xlane.xlu0 %848
      %v850 = vsub.f32 %v838, %v843
      %v851 = vsub.f32 %v839, %v846
      %v852 = vsub.f32 %v840, %v849
      %v853 = vmul.f32 %v850, 1.442695
      %v854 = vpow.pop %v853
      %v855 = vmul.f32 %v851, 1.442695
      %v856 = vpow.pop %v855
      %v857 = vmul.f32 %v852, 1.442695
      %v858 = vpow.pop %v857
      %v859 = vsel %vm675, %v854, 0.0
      %860 = vadd.xlane.f32.xlu0 %v859
      %v861 = vpop.xlane.xlu0 %860
      %v862 = vsel %vm675, %v856, 0.0
      %863 = vadd.xlane.f32.xlu0 %v862
      %v864 = vpop.xlane.xlu0 %863
      %v865 = vsel %vm682, %v858, 0.0
      %866 = vadd.xlane.f32.xlu0 %v865
      %v867 = vpop.xlane.xlu0 %866
      %v868 = vrcp.pop %v861
      %v869 = vmul.f32 %v861, %v868
      %v870 = vsub.f32 1.0, %v869
      %v871 = vmul.f32 %v868, %v870
      %v872 = vadd.f32 %v868, %v871
      %vm873 = vweird.f32 %v861
      %vm874 = vweird.f32 %v868
      %vm875 = vmor %vm873, %vm874
      %v876 = vsel %vm875, %v868, %v872
      %v877 = vand.u32 2147483647, %v861
      %vm878 = vcmp.eq.f32.partialorder %v877, 8.507059e+37
      %v879 = vand.u32 %v861, 2147483648
      %v880 = vor.u32 1.1754944e-38, %v879
      %v881 = vsel %vm878, %v880, %v876
      %v882 = vmul.f32 %v854, %v881
      %v883 = vrcp.pop %v864
      %v884 = vmul.f32 %v864, %v883
      %v885 = vsub.f32 1.0, %v884
      %v886 = vmul.f32 %v883, %v885
      %v887 = vadd.f32 %v883, %v886
      %vm888 = vweird.f32 %v864
      %vm889 = vweird.f32 %v883
      %vm890 = vmor %vm888, %vm889
      %v891 = vsel %vm890, %v883, %v887
      %v892 = vand.u32 2147483647, %v864
      %vm893 = vcmp.eq.f32.partialorder %v892, 8.507059e+37
      %v894 = vand.u32 %v864, 2147483648
      %v895 = vor.u32 1.1754944e-38, %v894
      %v896 = vsel %vm893, %v895, %v891
      %v897 = vmul.f32 %v856, %v896
      %v898 = vrcp.pop %v867
      %v899 = vmul.f32 %v867, %v898
      %v900 = vsub.f32 1.0, %v899
      %v901 = vmul.f32 %v898, %v900
      %v902 = vadd.f32 %v898, %v901
      %vm903 = vweird.f32 %v867
      %vm904 = vweird.f32 %v898
      %vm905 = vmor %vm903, %vm904
      %v906 = vsel %vm905, %v898, %v902
      %v907 = vand.u32 2147483647, %v867
      %vm908 = vcmp.eq.f32.partialorder %v907, 8.507059e+37
      %v909 = vand.u32 %v867, 2147483648
      %v910 = vor.u32 1.1754944e-38, %v909
      %v911 = vsel %vm908, %v910, %v906
      %v912 = vmul.f32 %v858, %v911
      %915 = vrot.lane.b32.xlu0 %v608, 112
      %v916 = vpop.permute.xlu0 %915
      %917 = vrot.lane.b32.xlu0 %v611, 112
      %v918 = vpop.permute.xlu0 %917
      %919 = vrot.lane.b32.xlu0 %v614, 112
      %v920 = vpop.permute.xlu0 %919
      %v924 = vsel %vm675, %v882, 0
      %v927 = vsel %vm675, %v897, 0
      %v930 = vsel %vm675, %v912, 0
      %v932 = vsel %vm758, %v920, 0
      %934 = vmatpush.msra.mxu0 0.0
      %935 = vmatpush.msra.mxu0 0.0
      %936 = vmatpush.msra.mxu0 0.0
      %937 = vmatpush.msra.mxu0 0.0
      %938 = vmatpush.msra.mxu0 0.0
      %939 = vmatpush.msra.mxu0 0.0
      %940 = vmatpush.msra.mxu0 0.0
      %941 = vmatpush.msra.mxu0 0.0
      %942 = vmatpush.msra.mxu0 0.0
      %943 = vmatpush.msra.mxu0 0.0
      %944 = vmatpush.msra.mxu0 0.0
      %945 = vmatpush.msra.mxu0 0.0
      %946 = vmatpush.msra.mxu0 0.0
      %947 = vmatpush.msra.mxu0 %v932
      %948 = vmatpush.msra.mxu0 %v918
      %949 = vmatpush.msra.mxu0 %v916
      %950 = vmatmul.f32.gmra.mxu0 %v924
      %v951 = vpop.f32.mrf.mxu0
      %v952 = vadd.f32 0.0, %v951
      %953 = vmatmul.f32.gmra.mxu0 %v927
      %v954 = vpop.f32.mrf.mxu0
      %v955 = vadd.f32 0.0, %v954
      %956 = vmatmul.f32.gmra.mxu0 %v930
      %v957 = vpop.f32.mrf.mxu0
      %v958 = vadd.f32 0.0, %v957
      %959 = vdwg.mxu0
      %v961 = vsel %vm633, %v952, 0
      %v964 = vsel %vm633, %v955, 0
      %v967 = vsel %vm633, %v958, 0
      %969 = vmatpush.msra.mxu0 0.0
      %970 = vmatpush.msra.mxu0 0.0
      %971 = vmatpush.msra.mxu0 0.0
      %972 = vmatpush.msra.mxu0 0.0
      %973 = vmatpush.msra.mxu0 0.0
      %974 = vmatpush.msra.mxu0 0.0
      %975 = vmatpush.msra.mxu0 0.0
      %976 = vmatpush.msra.mxu0 0.0
      %977 = vmatpush.msra.mxu0 0.0
      %978 = vmatpush.msra.mxu0 0.0
      %979 = vmatpush.msra.mxu0 0.0
      %980 = vmatpush.msra.mxu0 0.0
      %981 = vmatpush.msra.mxu0 0.0
      %982 = vmatpush.msra.mxu0 0.0
      %983 = vmatpush.msra.mxu0 %v619
      %984 = vmatpush.msra.mxu0 %v618
      %985 = vmatmul.f32.gmra.mxu0 %v961
      %v986 = vpop.f32.mrf.mxu0
      %v987 = vadd.f32 0.0, %v986
      %988 = vmatmul.f32.gmra.mxu0 %v964
      %v989 = vpop.f32.mrf.mxu0
      %v990 = vadd.f32 0.0, %v989
      %991 = vmatmul.f32.gmra.mxu0 %v967
      %v992 = vpop.f32.mrf.mxu0
      %v993 = vadd.f32 0.0, %v992
      %994 = vdwg.mxu0
      %v996 = vsel %vm633, %v780, 0
      %v999 = vsel %vm633, %v783, 0
      %v1002 = vsel %vm633, %v786, 0
      %1004 = vmatpush.msra.mxu0 0.0
      %1005 = vmatpush.msra.mxu0 0.0
      %1006 = vmatpush.msra.mxu0 0.0
      %1007 = vmatpush.msra.mxu0 0.0
      %1008 = vmatpush.msra.mxu0 0.0
      %1009 = vmatpush.msra.mxu0 0.0
      %1010 = vmatpush.msra.mxu0 0.0
      %1011 = vmatpush.msra.mxu0 0.0
      %1012 = vmatpush.msra.mxu0 0.0
      %1013 = vmatpush.msra.mxu0 0.0
      %1014 = vmatpush.msra.mxu0 0.0
      %1015 = vmatpush.msra.mxu0 0.0
      %1016 = vmatpush.msra.mxu0 0.0
      %1017 = vmatpush.msra.mxu0 0.0
      %1018 = vmatpush.msra.mxu0 %v617
      %1019 = vmatpush.msra.mxu0 %v616
      %1020 = vmatmul.f32.gmra.mxu0 %v996
      %v1021 = vpop.f32.mrf.mxu0
      %v1022 = vadd.f32 %v987, %v1021
      %1023 = vmatmul.f32.gmra.mxu0 %v999
      %v1024 = vpop.f32.mrf.mxu0
      %v1025 = vadd.f32 %v990, %v1024
      %1026 = vmatmul.f32.gmra.mxu0 %v1002
      %v1027 = vpop.f32.mrf.mxu0
      %v1028 = vadd.f32 %v993, %v1027
      %1029 = vdwg.mxu0
      %1030 = vrot.lane.b32.xlu0 %v582, 96
      %v1031 = vpop.permute.xlu0 %1030
      %1032 = vrot.lane.b32.xlu0 %v585, 96
      %v1033 = vpop.permute.xlu0 %1032
      %1034 = vrot.lane.b32.xlu0 %v588, 96
      %v1035 = vpop.permute.xlu0 %1034
      %1036 = vrot.lane.b32.xlu0 %v582, 32
      %v1037 = vpop.permute.xlu0 %1036
      %1038 = vrot.lane.b32.xlu0 %v585, 32
      %v1039 = vpop.permute.xlu0 %1038
      %1040 = vrot.lane.b32.xlu0 %v588, 32
      %v1041 = vpop.permute.xlu0 %1040
      %v1042 = vsel %vm633, %v1031, 0
      %v1044 = vsel %vm633, %v1033, 0
      %v1046 = vsel %vm633, %v1035, 0
      %v1048 = vsel %vm633, %v1037, 0
      %v1050 = vsel %vm633, %v1039, 0
      %v1052 = vsel %vm633, %v1041, 0
      %1054 = vmatpush.xpose.msra.mxu0 0.0
      %1055 = vmatpush.xpose.msra.mxu0 0.0
      %1056 = vmatpush.xpose.msra.mxu0 0.0
      %1057 = vmatpush.xpose.msra.mxu0 0.0
      %1058 = vmatpush.xpose.msra.mxu0 0.0
      %1059 = vmatpush.xpose.msra.mxu0 0.0
      %1060 = vmatpush.xpose.msra.mxu0 0.0
      %1061 = vmatpush.xpose.msra.mxu0 0.0
      %1062 = vmatpush.xpose.msra.mxu0 0.0
      %1063 = vmatpush.xpose.msra.mxu0 0.0
      %1064 = vmatpush.xpose.msra.mxu0 0.0
      %1065 = vmatpush.xpose.msra.mxu0 0.0
      %1066 = vmatpush.xpose.msra.mxu0 0.0
      %1067 = vmatpush.xpose.msra.mxu0 %v1052
      %1068 = vmatpush.xpose.msra.mxu0 %v1050
      %1069 = vmatpush.xpose.msra.mxu0 %v1048
      %1070 = vmatmul.f32.gmra.mxu0 %v1042
      %v1071 = vpop.f32.mrf.mxu0
      %v1072 = vadd.f32 0.0, %v1071
      %1073 = vmatmul.f32.gmra.mxu0 %v1044
      %v1074 = vpop.f32.mrf.mxu0
      %v1075 = vadd.f32 0.0, %v1074
      %1076 = vmatmul.f32.gmra.mxu0 %v1046
      %v1077 = vpop.f32.mrf.mxu0
      %v1078 = vadd.f32 0.0, %v1077
      %1079 = vdwg.mxu0
      %v1080 = vmul.f32 %v1072, 0.25
      %v1081 = vmul.f32 %v1075, 0.25
      %v1082 = vmul.f32 %v1078, 0.25
      %v1083 = vsel %vm675, %v1080, -inf
      %1084 = vmax.xlane.f32.xlu0 %v1083
      %v1085 = vpop.xlane.xlu0 %1084
      %v1086 = vsel %vm675, %v1081, -inf
      %1087 = vmax.xlane.f32.xlu0 %v1086
      %v1088 = vpop.xlane.xlu0 %1087
      %v1089 = vsel %vm682, %v1082, -inf
      %1090 = vmax.xlane.f32.xlu0 %v1089
      %v1091 = vpop.xlane.xlu0 %1090
      %v1092 = vsub.f32 %v1080, %v1085
      %v1093 = vsub.f32 %v1081, %v1088
      %v1094 = vsub.f32 %v1082, %v1091
      %v1095 = vmul.f32 %v1092, 1.442695
      %v1096 = vpow.pop %v1095
      %v1097 = vmul.f32 %v1093, 1.442695
      %v1098 = vpow.pop %v1097
      %v1099 = vmul.f32 %v1094, 1.442695
      %v1100 = vpow.pop %v1099
      %v1101 = vsel %vm675, %v1096, 0.0
      %1102 = vadd.xlane.f32.xlu0 %v1101
      %v1103 = vpop.xlane.xlu0 %1102
      %v1104 = vsel %vm675, %v1098, 0.0
      %1105 = vadd.xlane.f32.xlu0 %v1104
      %v1106 = vpop.xlane.xlu0 %1105
      %v1107 = vsel %vm682, %v1100, 0.0
      %1108 = vadd.xlane.f32.xlu0 %v1107
      %v1109 = vpop.xlane.xlu0 %1108
      %v1110 = vrcp.pop %v1103
      %v1111 = vmul.f32 %v1103, %v1110
      %v1112 = vsub.f32 1.0, %v1111
      %v1113 = vmul.f32 %v1110, %v1112
      %v1114 = vadd.f32 %v1110, %v1113
      %vm1115 = vweird.f32 %v1103
      %vm1116 = vweird.f32 %v1110
      %vm1117 = vmor %vm1115, %vm1116
      %v1118 = vsel %vm1117, %v1110, %v1114
      %v1119 = vand.u32 2147483647, %v1103
      %vm1120 = vcmp.eq.f32.partialorder %v1119, 8.507059e+37
      %v1121 = vand.u32 %v1103, 2147483648
      %v1122 = vor.u32 1.1754944e-38, %v1121
      %v1123 = vsel %vm1120, %v1122, %v1118
      %v1124 = vmul.f32 %v1096, %v1123
      %v1125 = vrcp.pop %v1106
      %v1126 = vmul.f32 %v1106, %v1125
      %v1127 = vsub.f32 1.0, %v1126
      %v1128 = vmul.f32 %v1125, %v1127
      %v1129 = vadd.f32 %v1125, %v1128
      %vm1130 = vweird.f32 %v1106
      %vm1131 = vweird.f32 %v1125
      %vm1132 = vmor %vm1130, %vm1131
      %v1133 = vsel %vm1132, %v1125, %v1129
      %v1134 = vand.u32 2147483647, %v1106
      %vm1135 = vcmp.eq.f32.partialorder %v1134, 8.507059e+37
      %v1136 = vand.u32 %v1106, 2147483648
      %v1137 = vor.u32 1.1754944e-38, %v1136
      %v1138 = vsel %vm1135, %v1137, %v1133
      %v1139 = vmul.f32 %v1098, %v1138
      %v1140 = vrcp.pop %v1109
      %v1141 = vmul.f32 %v1109, %v1140
      %v1142 = vsub.f32 1.0, %v1141
      %v1143 = vmul.f32 %v1140, %v1142
      %v1144 = vadd.f32 %v1140, %v1143
      %vm1145 = vweird.f32 %v1109
      %vm1146 = vweird.f32 %v1140
      %vm1147 = vmor %vm1145, %vm1146
      %v1148 = vsel %vm1147, %v1140, %v1144
      %v1149 = vand.u32 2147483647, %v1109
      %vm1150 = vcmp.eq.f32.partialorder %v1149, 8.507059e+37
      %v1151 = vand.u32 %v1109, 2147483648
      %v1152 = vor.u32 1.1754944e-38, %v1151
      %v1153 = vsel %vm1150, %v1152, %v1148
      %v1154 = vmul.f32 %v1100, %v1153
      %1155 = vrot.lane.b32.xlu0 %v608, 96
      %v1156 = vpop.permute.xlu0 %1155
      %1157 = vrot.lane.b32.xlu0 %v611, 96
      %v1158 = vpop.permute.xlu0 %1157
      %1159 = vrot.lane.b32.xlu0 %v614, 96
      %v1160 = vpop.permute.xlu0 %1159
      %v1164 = vsel %vm675, %v1124, 0
      %v1167 = vsel %vm675, %v1139, 0
      %v1170 = vsel %vm675, %v1154, 0
      %v1172 = vsel %vm758, %v1160, 0
      %1174 = vmatpush.msra.mxu0 0.0
      %1175 = vmatpush.msra.mxu0 0.0
      %1176 = vmatpush.msra.mxu0 0.0
      %1177 = vmatpush.msra.mxu0 0.0
      %1178 = vmatpush.msra.mxu0 0.0
      %1179 = vmatpush.msra.mxu0 0.0
      %1180 = vmatpush.msra.mxu0 0.0
      %1181 = vmatpush.msra.mxu0 0.0
      %1182 = vmatpush.msra.mxu0 0.0
      %1183 = vmatpush.msra.mxu0 0.0
      %1184 = vmatpush.msra.mxu0 0.0
      %1185 = vmatpush.msra.mxu0 0.0
      %1186 = vmatpush.msra.mxu0 0.0
      %1187 = vmatpush.msra.mxu0 %v1172
      %1188 = vmatpush.msra.mxu0 %v1158
      %1189 = vmatpush.msra.mxu0 %v1156
      %1190 = vmatmul.f32.gmra.mxu0 %v1164
      %v1191 = vpop.f32.mrf.mxu0
      %v1192 = vadd.f32 0.0, %v1191
      %1193 = vmatmul.f32.gmra.mxu0 %v1167
      %v1194 = vpop.f32.mrf.mxu0
      %v1195 = vadd.f32 0.0, %v1194
      %1196 = vmatmul.f32.gmra.mxu0 %v1170
      %v1197 = vpop.f32.mrf.mxu0
      %v1198 = vadd.f32 0.0, %v1197
      %1199 = vdwg.mxu0
      %v1201 = vsel %vm633, %v1192, 0
      %v1204 = vsel %vm633, %v1195, 0
      %v1207 = vsel %vm633, %v1198, 0
      %1209 = vmatpush.msra.mxu0 0.0
      %1210 = vmatpush.msra.mxu0 0.0
      %1211 = vmatpush.msra.mxu0 0.0
      %1212 = vmatpush.msra.mxu0 0.0
      %1213 = vmatpush.msra.mxu0 0.0
      %1214 = vmatpush.msra.mxu0 0.0
      %1215 = vmatpush.msra.mxu0 0.0
      %1216 = vmatpush.msra.mxu0 0.0
      %1217 = vmatpush.msra.mxu0 0.0
      %1218 = vmatpush.msra.mxu0 0.0
      %1219 = vmatpush.msra.mxu0 0.0
      %1220 = vmatpush.msra.mxu0 0.0
      %1221 = vmatpush.msra.mxu0 0.0
      %1222 = vmatpush.msra.mxu0 0.0
      %1223 = vmatpush.msra.mxu0 %v621
      %1224 = vmatpush.msra.mxu0 %v620
      %1225 = vmatmul.f32.gmra.mxu0 %v1201
      %v1226 = vpop.f32.mrf.mxu0
      %v1227 = vadd.f32 0.0, %v1226
      %1228 = vmatmul.f32.gmra.mxu0 %v1204
      %v1229 = vpop.f32.mrf.mxu0
      %v1230 = vadd.f32 0.0, %v1229
      %1231 = vmatmul.f32.gmra.mxu0 %v1207
      %v1232 = vpop.f32.mrf.mxu0
      %v1233 = vadd.f32 0.0, %v1232
      %1234 = vdwg.mxu0
      %v1235 = vadd.f32 %v1022, %v1227
      %v1236 = vadd.f32 %v1025, %v1230
      %v1237 = vadd.f32 %v1028, %v1233
      %1238 = vrot.lane.b32.xlu0 %v582, 80
      %v1239 = vpop.permute.xlu0 %1238
      %1240 = vrot.lane.b32.xlu0 %v585, 80
      %v1241 = vpop.permute.xlu0 %1240
      %1242 = vrot.lane.b32.xlu0 %v588, 80
      %v1243 = vpop.permute.xlu0 %1242
      %1244 = vrot.lane.b32.xlu0 %v582, 16
      %v1245 = vpop.permute.xlu0 %1244
      %1246 = vrot.lane.b32.xlu0 %v585, 16
      %v1247 = vpop.permute.xlu0 %1246
      %1248 = vrot.lane.b32.xlu0 %v588, 16
      %v1249 = vpop.permute.xlu0 %1248
      %v1250 = vsel %vm633, %v1239, 0
      %v1252 = vsel %vm633, %v1241, 0
      %v1254 = vsel %vm633, %v1243, 0
      %v1256 = vsel %vm633, %v1245, 0
      %v1258 = vsel %vm633, %v1247, 0
      %v1260 = vsel %vm633, %v1249, 0
      %1262 = vmatpush.xpose.msra.mxu0 0.0
      %1263 = vmatpush.xpose.msra.mxu0 0.0
      %1264 = vmatpush.xpose.msra.mxu0 0.0
      %1265 = vmatpush.xpose.msra.mxu0 0.0
      %1266 = vmatpush.xpose.msra.mxu0 0.0
      %1267 = vmatpush.xpose.msra.mxu0 0.0
      %1268 = vmatpush.xpose.msra.mxu0 0.0
      %1269 = vmatpush.xpose.msra.mxu0 0.0
      %1270 = vmatpush.xpose.msra.mxu0 0.0
      %1271 = vmatpush.xpose.msra.mxu0 0.0
      %1272 = vmatpush.xpose.msra.mxu0 0.0
      %1273 = vmatpush.xpose.msra.mxu0 0.0
      %1274 = vmatpush.xpose.msra.mxu0 0.0
      %1275 = vmatpush.xpose.msra.mxu0 %v1260
      %1276 = vmatpush.xpose.msra.mxu0 %v1258
      %1277 = vmatpush.xpose.msra.mxu0 %v1256
      %1278 = vmatmul.f32.gmra.mxu0 %v1250
      %v1279 = vpop.f32.mrf.mxu0
      %v1280 = vadd.f32 0.0, %v1279
      %1281 = vmatmul.f32.gmra.mxu0 %v1252
      %v1282 = vpop.f32.mrf.mxu0
      %v1283 = vadd.f32 0.0, %v1282
      %1284 = vmatmul.f32.gmra.mxu0 %v1254
      %v1285 = vpop.f32.mrf.mxu0
      %v1286 = vadd.f32 0.0, %v1285
      %1287 = vdwg.mxu0
      %v1288 = vmul.f32 %v1280, 0.25
      %v1289 = vmul.f32 %v1283, 0.25
      %v1290 = vmul.f32 %v1286, 0.25
      %v1291 = vsel %vm675, %v1288, -inf
      %1292 = vmax.xlane.f32.xlu0 %v1291
      %v1293 = vpop.xlane.xlu0 %1292
      %v1294 = vsel %vm675, %v1289, -inf
      %1295 = vmax.xlane.f32.xlu0 %v1294
      %v1296 = vpop.xlane.xlu0 %1295
      %v1297 = vsel %vm682, %v1290, -inf
      %1298 = vmax.xlane.f32.xlu0 %v1297
      %v1299 = vpop.xlane.xlu0 %1298
      %v1300 = vsub.f32 %v1288, %v1293
      %v1301 = vsub.f32 %v1289, %v1296
      %v1302 = vsub.f32 %v1290, %v1299
      %v1303 = vmul.f32 %v1300, 1.442695
      %v1304 = vpow.pop %v1303
      %v1305 = vmul.f32 %v1301, 1.442695
      %v1306 = vpow.pop %v1305
      %v1307 = vmul.f32 %v1302, 1.442695
      %v1308 = vpow.pop %v1307
      %v1309 = vsel %vm675, %v1304, 0.0
      %1310 = vadd.xlane.f32.xlu0 %v1309
      %v1311 = vpop.xlane.xlu0 %1310
      %v1312 = vsel %vm675, %v1306, 0.0
      %1313 = vadd.xlane.f32.xlu0 %v1312
      %v1314 = vpop.xlane.xlu0 %1313
      %v1315 = vsel %vm682, %v1308, 0.0
      %1316 = vadd.xlane.f32.xlu0 %v1315
      %v1317 = vpop.xlane.xlu0 %1316
      %v1318 = vrcp.pop %v1311
      %v1319 = vmul.f32 %v1311, %v1318
      %v1320 = vsub.f32 1.0, %v1319
      %v1321 = vmul.f32 %v1318, %v1320
      %v1322 = vadd.f32 %v1318, %v1321
      %vm1323 = vweird.f32 %v1311
      %vm1324 = vweird.f32 %v1318
      %vm1325 = vmor %vm1323, %vm1324
      %v1326 = vsel %vm1325, %v1318, %v1322
      %v1327 = vand.u32 2147483647, %v1311
      %vm1328 = vcmp.eq.f32.partialorder %v1327, 8.507059e+37
      %v1329 = vand.u32 %v1311, 2147483648
      %v1330 = vor.u32 1.1754944e-38, %v1329
      %v1331 = vsel %vm1328, %v1330, %v1326
      %v1332 = vmul.f32 %v1304, %v1331
      %v1333 = vrcp.pop %v1314
      %v1334 = vmul.f32 %v1314, %v1333
      %v1335 = vsub.f32 1.0, %v1334
      %v1336 = vmul.f32 %v1333, %v1335
      %v1337 = vadd.f32 %v1333, %v1336
      %vm1338 = vweird.f32 %v1314
      %vm1339 = vweird.f32 %v1333
      %vm1340 = vmor %vm1338, %vm1339
      %v1341 = vsel %vm1340, %v1333, %v1337
      %v1342 = vand.u32 2147483647, %v1314
      %vm1343 = vcmp.eq.f32.partialorder %v1342, 8.507059e+37
      %v1344 = vand.u32 %v1314, 2147483648
      %v1345 = vor.u32 1.1754944e-38, %v1344
      %v1346 = vsel %vm1343, %v1345, %v1341
      %v1347 = vmul.f32 %v1306, %v1346
      %v1348 = vrcp.pop %v1317
      %v1349 = vmul.f32 %v1317, %v1348
      %v1350 = vsub.f32 1.0, %v1349
      %v1351 = vmul.f32 %v1348, %v1350
      %v1352 = vadd.f32 %v1348, %v1351
      %vm1353 = vweird.f32 %v1317
      %vm1354 = vweird.f32 %v1348
      %vm1355 = vmor %vm1353, %vm1354
      %v1356 = vsel %vm1355, %v1348, %v1352
      %v1357 = vand.u32 2147483647, %v1317
      %vm1358 = vcmp.eq.f32.partialorder %v1357, 8.507059e+37
      %v1359 = vand.u32 %v1317, 2147483648
      %v1360 = vor.u32 1.1754944e-38, %v1359
      %v1361 = vsel %vm1358, %v1360, %v1356
      %v1362 = vmul.f32 %v1308, %v1361
      %1363 = vrot.lane.b32.xlu0 %v608, 80
      %v1364 = vpop.permute.xlu0 %1363
      %1365 = vrot.lane.b32.xlu0 %v611, 80
      %v1366 = vpop.permute.xlu0 %1365
      %1367 = vrot.lane.b32.xlu0 %v614, 80
      %v1368 = vpop.permute.xlu0 %1367
      %v1372 = vsel %vm675, %v1332, 0
      %v1375 = vsel %vm675, %v1347, 0
      %v1378 = vsel %vm675, %v1362, 0
      %v1380 = vsel %vm758, %v1368, 0
      %1382 = vmatpush.msra.mxu0 0.0
      %1383 = vmatpush.msra.mxu0 0.0
      %1384 = vmatpush.msra.mxu0 0.0
      %1385 = vmatpush.msra.mxu0 0.0
      %1386 = vmatpush.msra.mxu0 0.0
      %1387 = vmatpush.msra.mxu0 0.0
      %1388 = vmatpush.msra.mxu0 0.0
      %1389 = vmatpush.msra.mxu0 0.0
      %1390 = vmatpush.msra.mxu0 0.0
      %1391 = vmatpush.msra.mxu0 0.0
      %1392 = vmatpush.msra.mxu0 0.0
      %1393 = vmatpush.msra.mxu0 0.0
      %1394 = vmatpush.msra.mxu0 0.0
      %1395 = vmatpush.msra.mxu0 %v1380
      %1396 = vmatpush.msra.mxu0 %v1366
      %1397 = vmatpush.msra.mxu0 %v1364
      %1398 = vmatmul.f32.gmra.mxu0 %v1372
      %v1399 = vpop.f32.mrf.mxu0
      %v1400 = vadd.f32 0.0, %v1399
      %1401 = vmatmul.f32.gmra.mxu0 %v1375
      %v1402 = vpop.f32.mrf.mxu0
      %v1403 = vadd.f32 0.0, %v1402
      %1404 = vmatmul.f32.gmra.mxu0 %v1378
      %v1405 = vpop.f32.mrf.mxu0
      %v1406 = vadd.f32 0.0, %v1405
      %1407 = vdwg.mxu0
      %v1409 = vsel %vm633, %v1400, 0
      %v1412 = vsel %vm633, %v1403, 0
      %v1415 = vsel %vm633, %v1406, 0
      %1417 = vmatpush.msra.mxu0 0.0
      %1418 = vmatpush.msra.mxu0 0.0
      %1419 = vmatpush.msra.mxu0 0.0
      %1420 = vmatpush.msra.mxu0 0.0
      %1421 = vmatpush.msra.mxu0 0.0
      %1422 = vmatpush.msra.mxu0 0.0
      %1423 = vmatpush.msra.mxu0 0.0
      %1424 = vmatpush.msra.mxu0 0.0
      %1425 = vmatpush.msra.mxu0 0.0
      %1426 = vmatpush.msra.mxu0 0.0
      %1427 = vmatpush.msra.mxu0 0.0
      %1428 = vmatpush.msra.mxu0 0.0
      %1429 = vmatpush.msra.mxu0 0.0
      %1430 = vmatpush.msra.mxu0 0.0
      %1431 = vmatpush.msra.mxu0 %v623
      %1432 = vmatpush.msra.mxu0 %v622
      %1433 = vmatmul.f32.gmra.mxu0 %v1409
      %v1434 = vpop.f32.mrf.mxu0
      %v1435 = vadd.f32 0.0, %v1434
      %1436 = vmatmul.f32.gmra.mxu0 %v1412
      %v1437 = vpop.f32.mrf.mxu0
      %v1438 = vadd.f32 0.0, %v1437
      %1439 = vmatmul.f32.gmra.mxu0 %v1415
      %v1440 = vpop.f32.mrf.mxu0
      %v1441 = vadd.f32 0.0, %v1440
      %1442 = vdwg.mxu0
      %v1443 = vadd.f32 %v1235, %v1435
      %v1444 = vadd.f32 %v1236, %v1438
      %v1445 = vadd.f32 %v1237, %v1441
      %v1446 = vadd.f32 %v441, %v1443
      %v1447 = vadd.f32 %v442, %v1444
      %v1448 = vadd.f32 %v443, %v1445
      %v1449 = vld [vmem:[%s6] sm:$0x1]
      %v1451 = vperm.slane %v1449, 0
      %v1453 = vadd.f32 %v1446, %v1451
      %v1454 = vadd.f32 %v1447, %v1451
      %v1455 = vadd.f32 %v1448, %v1451
      %v1456 = vld [vmem:[%s7] sm:$0x1]
      %v1457 = vld [vmem:[%s8] sm:$0x1]
      %v1458 = vsel %vm446, %v1453, 0.0
      %1459 = vadd.xlane.f32.xlu0 %v1458
      %v1460 = vpop.xlane.xlu0 %1459
      %v1461 = vsel %vm446, %v1454, 0.0
      %1462 = vadd.xlane.f32.xlu0 %v1461
      %v1463 = vpop.xlane.xlu0 %1462
      %v1464 = vsel %vm453, %v1455, 0.0
      %1465 = vadd.xlane.f32.xlu0 %v1464
      %v1466 = vpop.xlane.xlu0 %1465
      %v1467 = vmul.f32 %v1460, %v463
      %v1468 = vmul.f32 %v1463, %v463
      %v1469 = vmul.f32 %v1466, %v463
      %v1470 = vsub.f32 %v1453, %v1467
      %v1471 = vsub.f32 %v1454, %v1468
      %v1472 = vsub.f32 %v1455, %v1469
      %v1473 = vmul.f32 %v1470, %v1470
      %v1474 = vmul.f32 %v1471, %v1471
      %v1475 = vmul.f32 %v1472, %v1472
      %v1476 = vsel %vm446, %v1473, 0.0
      %1477 = vadd.xlane.f32.xlu0 %v1476
      %v1478 = vpop.xlane.xlu0 %1477
      %v1479 = vsel %vm446, %v1474, 0.0
      %1480 = vadd.xlane.f32.xlu0 %v1479
      %v1481 = vpop.xlane.xlu0 %1480
      %v1482 = vsel %vm453, %v1475, 0.0
      %1483 = vadd.xlane.f32.xlu0 %v1482
      %v1484 = vpop.xlane.xlu0 %1483
      %v1485 = vmul.f32 %v1478, %v463
      %v1486 = vmul.f32 %v1481, %v463
      %v1487 = vmul.f32 %v1484, %v463
      %v1488 = vadd.f32 %v1485, 1e-06
      %v1489 = vadd.f32 %v1486, 1e-06
      %v1490 = vadd.f32 %v1487, 1e-06
      %v1491 = vrsqrt.pop %v1488
      %v1492 = vmul.f32 %v1491, %v1488
      %v1493 = vmul.f32 %v1492, %v1491
      %v1494 = vmul.f32 0.5, %v1493
      %v1495 = vsub.f32 1.5, %v1494
      %v1496 = vmul.f32 %v1491, %v1495
      %vm1497 = vweird.f32 %v1488
      %vm1498 = vweird.f32 %v1491
      %vm1499 = vmor %vm1497, %vm1498
      %v1500 = vsel %vm1499, %v1491, %v1496
      %v1501 = vrsqrt.pop %v1489
      %v1502 = vmul.f32 %v1501, %v1489
      %v1503 = vmul.f32 %v1502, %v1501
      %v1504 = vmul.f32 0.5, %v1503
      %v1505 = vsub.f32 1.5, %v1504
      %v1506 = vmul.f32 %v1501, %v1505
      %vm1507 = vweird.f32 %v1489
      %vm1508 = vweird.f32 %v1501
      %vm1509 = vmor %vm1507, %vm1508
      %v1510 = vsel %vm1509, %v1501, %v1506
      %v1511 = vrsqrt.pop %v1490
      %v1512 = vmul.f32 %v1511, %v1490
      %v1513 = vmul.f32 %v1512, %v1511
      %v1514 = vmul.f32 0.5, %v1513
      %v1515 = vsub.f32 1.5, %v1514
      %v1516 = vmul.f32 %v1511, %v1515
      %vm1517 = vweird.f32 %v1490
      %vm1518 = vweird.f32 %v1511
      %vm1519 = vmor %vm1517, %vm1518
      %v1520 = vsel %vm1519, %v1511, %v1516
      %v1521 = vmul.f32 %v1470, %v1500
      %v1522 = vmul.f32 %v1471, %v1510
      %v1523 = vmul.f32 %v1472, %v1520
      %v1525 = vperm.slane %v1456, 0
      %v1527 = vmul.f32 %v1521, %v1525
      %v1528 = vmul.f32 %v1522, %v1525
      %v1529 = vmul.f32 %v1523, %v1525
      %v1531 = vperm.slane %v1457, 0
      %v1533 = vadd.f32 %v1527, %v1531
      %v1534 = vadd.f32 %v1528, %v1531
      %v1535 = vadd.f32 %v1529, %v1531
      %v1536 = vld [vmem:[%s9] sm:$0xff]
      %v1537 = vld [vmem:[%s9 + $0x8] sm:$0xff]
      %v1538 = vld [vmem:[%s9 + $0x10] sm:$0xff]
      %v1539 = vld [vmem:[%s9 + $0x18] sm:$0xff]
      %v1540 = vld [vmem:[%s9 + $0x20] sm:$0xff]
      %v1541 = vld [vmem:[%s9 + $0x28] sm:$0xff]
      %v1542 = vld [vmem:[%s9 + $0x30] sm:$0xff]
      %v1543 = vld [vmem:[%s9 + $0x38] sm:$0xff]
      %v1544 = vld [vmem:[%s9 + $0x40] sm:$0xff]
      %v1545 = vld [vmem:[%s9 + $0x48] sm:$0xff]
      %v1546 = vld [vmem:[%s9 + $0x50] sm:$0xff]
      %v1547 = vld [vmem:[%s9 + $0x58] sm:$0xff]
      %v1548 = vld [vmem:[%s9 + $0x60] sm:$0xff]
      %v1549 = vld [vmem:[%s9 + $0x68] sm:$0xff]
      %v1550 = vld [vmem:[%s9 + $0x70] sm:$0xff]
      %v1551 = vld [vmem:[%s9 + $0x78] sm:$0xff]
      %v1552 = vld [vmem:[%s10] sm:$0x3]
      %v1554 = vperm.slane %v1552, 0
      %v1555 = vperm.slane %v1552, 1
      %v1559 = vsel %vm446, %v1533, 0
      %v1562 = vsel %vm446, %v1534, 0
      %v1565 = vsel %vm446, %v1535, 0
      %1567 = vmatpush.msra.mxu0 0.0
      %1568 = vmatpush.msra.mxu0 0.0
      %1569 = vmatpush.msra.mxu0 0.0
      %1570 = vmatpush.msra.mxu0 0.0
      %1571 = vmatpush.msra.mxu0 0.0
      %1572 = vmatpush.msra.mxu0 0.0
      %1573 = vmatpush.msra.mxu0 0.0
      %1574 = vmatpush.msra.mxu0 0.0
      %1575 = vmatpush.msra.mxu0 %v1550
      %1576 = vmatpush.msra.mxu0 %v1548
      %1577 = vmatpush.msra.mxu0 %v1546
      %1578 = vmatpush.msra.mxu0 %v1544
      %1579 = vmatpush.msra.mxu0 %v1542
      %1580 = vmatpush.msra.mxu0 %v1540
      %1581 = vmatpush.msra.mxu0 %v1538
      %1582 = vmatpush.msra.mxu0 %v1536
      %1583 = vmatmul.f32.gmra.mxu0 %v1559
      %v1584 = vpop.f32.mrf.mxu0
      %v1585 = vadd.f32 %v1554, %v1584
      %1586 = vmatmul.f32.gmra.mxu0 %v1562
      %v1587 = vpop.f32.mrf.mxu0
      %v1588 = vadd.f32 %v1554, %v1587
      %1589 = vmatmul.f32.gmra.mxu0 %v1565
      %v1590 = vpop.f32.mrf.mxu0
      %v1591 = vadd.f32 %v1554, %v1590
      %1592 = vdwg.mxu0
      %1593 = vmatpush.msra.mxu0 0.0
      %1594 = vmatpush.msra.mxu0 0.0
      %1595 = vmatpush.msra.mxu0 0.0
      %1596 = vmatpush.msra.mxu0 0.0
      %1597 = vmatpush.msra.mxu0 0.0
      %1598 = vmatpush.msra.mxu0 0.0
      %1599 = vmatpush.msra.mxu0 0.0
      %1600 = vmatpush.msra.mxu0 0.0
      %1601 = vmatpush.msra.mxu0 %v1551
      %1602 = vmatpush.msra.mxu0 %v1549
      %1603 = vmatpush.msra.mxu0 %v1547
      %1604 = vmatpush.msra.mxu0 %v1545
      %1605 = vmatpush.msra.mxu0 %v1543
      %1606 = vmatpush.msra.mxu0 %v1541
      %1607 = vmatpush.msra.mxu0 %v1539
      %1608 = vmatpush.msra.mxu0 %v1537
      %1609 = vmatmul.f32.gmra.mxu0 %v1559
      %v1610 = vpop.f32.mrf.mxu0
      %v1611 = vadd.f32 %v1555, %v1610
      %1612 = vmatmul.f32.gmra.mxu0 %v1562
      %v1613 = vpop.f32.mrf.mxu0
      %v1614 = vadd.f32 %v1555, %v1613
      %1615 = vmatmul.f32.gmra.mxu0 %v1565
      %v1616 = vpop.f32.mrf.mxu0
      %v1617 = vadd.f32 %v1555, %v1616
      %1618 = vdwg.mxu0
      %v1619 = vmul.f32 %v1585, 0.5
      %v1620 = vmul.f32 %v1611, 0.5
      %v1621 = vmul.f32 %v1588, 0.5
      %v1622 = vmul.f32 %v1614, 0.5
      %v1623 = vmul.f32 %v1591, 0.5
      %v1624 = vmul.f32 %v1617, 0.5
      %v1625 = vmul.f32 %v1585, 0.70710677
      %v1626 = vmul.f32 %v1611, 0.70710677
      %v1627 = vmul.f32 %v1588, 0.70710677
      %v1628 = vmul.f32 %v1614, 0.70710677
      %v1629 = vmul.f32 %v1591, 0.70710677
      %v1630 = vmul.f32 %v1617, 0.70710677
      %v1631 = vmul.f32 %v1625, %v1625
      %v1632 = vmin.f32 16.0, %v1631
      %v1633 = vmul.f32 %v1632, 2.1237322e-06
      %v1634 = vadd.f32 %v1633, 0.00028619796
      %v1635 = vmul.f32 %v1632, %v1634
      %v1636 = vadd.f32 %v1635, 0.0036580483
      %v1637 = vmul.f32 %v1632, %v1636
      %v1638 = vadd.f32 %v1637, 0.05243302
      %v1639 = vmul.f32 %v1632, %v1638
      %v1640 = vadd.f32 %v1639, 0.18741608
      %v1641 = vmul.f32 %v1632, %v1640
      %v1642 = vadd.f32 %v1641, 1.1283791
      %v1643 = vmul.f32 %v1625, %v1642
      %v1644 = vmul.f32 %v1632, 3.8918573e-05
      %v1645 = vadd.f32 %v1644, 0.001143296
      %v1646 = vmul.f32 %v1632, %v1645
      %v1647 = vadd.f32 %v1646, 0.014752088
      %v1648 = vmul.f32 %v1632, %v1647
      %v1649 = vadd.f32 %v1648, 0.112945676
      %v1650 = vmul.f32 %v1632, %v1649
      %v1651 = vadd.f32 %v1650, 0.4994258
      %v1652 = vmul.f32 %v1632, %v1651
      %v1653 = vadd.f32 %v1652, 1.0
      %v1654 = vrcp.pop %v1653
      %v1655 = vmul.f32 %v1653, %v1654
      %v1656 = vsub.f32 1.0, %v1655
      %v1657 = vmul.f32 %v1654, %v1656
      %v1658 = vadd.f32 %v1654, %v1657
      %vm1659 = vweird.f32 %v1653
      %vm1660 = vweird.f32 %v1654
      %vm1661 = vmor %vm1659, %vm1660
      %v1662 = vsel %vm1661, %v1654, %v1658
      %v1663 = vand.u32 2147483647, %v1653
      %vm1664 = vcmp.eq.f32.partialorder %v1663, 8.507059e+37
      %v1665 = vand.u32 %v1653, 2147483648
      %v1666 = vor.u32 1.1754944e-38, %v1665
      %v1667 = vsel %vm1664, %v1666, %v1662
      %v1668 = vmul.f32 %v1643, %v1667
      %v1669 = vmin.f32 %v1668, 1.0
      %v1670 = vmax.f32 %v1669, -1.0
      %v1671 = vmul.f32 %v1626, %v1626
      %v1672 = vmin.f32 16.0, %v1671
      %v1673 = vmul.f32 %v1672, 2.1237322e-06
      %v1674 = vadd.f32 %v1673, 0.00028619796
      %v1675 = vmul.f32 %v1672, %v1674
      %v1676 = vadd.f32 %v1675, 0.0036580483
      %v1677 = vmul.f32 %v1672, %v1676
      %v1678 = vadd.f32 %v1677, 0.05243302
      %v1679 = vmul.f32 %v1672, %v1678
      %v1680 = vadd.f32 %v1679, 0.18741608
      %v1681 = vmul.f32 %v1672, %v1680
      %v1682 = vadd.f32 %v1681, 1.1283791
      %v1683 = vmul.f32 %v1626, %v1682
      %v1684 = vmul.f32 %v1672, 3.8918573e-05
      %v1685 = vadd.f32 %v1684, 0.001143296
      %v1686 = vmul.f32 %v1672, %v1685
      %v1687 = vadd.f32 %v1686, 0.014752088
      %v1688 = vmul.f32 %v1672, %v1687
      %v1689 = vadd.f32 %v1688, 0.112945676
      %v1690 = vmul.f32 %v1672, %v1689
      %v1691 = vadd.f32 %v1690, 0.4994258
      %v1692 = vmul.f32 %v1672, %v1691
      %v1693 = vadd.f32 %v1692, 1.0
      %v1694 = vrcp.pop %v1693
      %v1695 = vmul.f32 %v1693, %v1694
      %v1696 = vsub.f32 1.0, %v1695
      %v1697 = vmul.f32 %v1694, %v1696
      %v1698 = vadd.f32 %v1694, %v1697
      %vm1699 = vweird.f32 %v1693
      %vm1700 = vweird.f32 %v1694
      %vm1701 = vmor %vm1699, %vm1700
      %v1702 = vsel %vm1701, %v1694, %v1698
      %v1703 = vand.u32 2147483647, %v1693
      %vm1704 = vcmp.eq.f32.partialorder %v1703, 8.507059e+37
      %v1705 = vand.u32 %v1693, 2147483648
      %v1706 = vor.u32 1.1754944e-38, %v1705
      %v1707 = vsel %vm1704, %v1706, %v1702
      %v1708 = vmul.f32 %v1683, %v1707
      %v1709 = vmin.f32 %v1708, 1.0
      %v1710 = vmax.f32 %v1709, -1.0
      %v1711 = vmul.f32 %v1627, %v1627
      %v1712 = vmin.f32 16.0, %v1711
      %v1713 = vmul.f32 %v1712, 2.1237322e-06
      %v1714 = vadd.f32 %v1713, 0.00028619796
      %v1715 = vmul.f32 %v1712, %v1714
      %v1716 = vadd.f32 %v1715, 0.0036580483
      %v1717 = vmul.f32 %v1712, %v1716
      %v1718 = vadd.f32 %v1717, 0.05243302
      %v1719 = vmul.f32 %v1712, %v1718
      %v1720 = vadd.f32 %v1719, 0.18741608
      %v1721 = vmul.f32 %v1712, %v1720
      %v1722 = vadd.f32 %v1721, 1.1283791
      %v1723 = vmul.f32 %v1627, %v1722
      %v1724 = vmul.f32 %v1712, 3.8918573e-05
      %v1725 = vadd.f32 %v1724, 0.001143296
      %v1726 = vmul.f32 %v1712, %v1725
      %v1727 = vadd.f32 %v1726, 0.014752088
      %v1728 = vmul.f32 %v1712, %v1727
      %v1729 = vadd.f32 %v1728, 0.112945676
      %v1730 = vmul.f32 %v1712, %v1729
      %v1731 = vadd.f32 %v1730, 0.4994258
      %v1732 = vmul.f32 %v1712, %v1731
      %v1733 = vadd.f32 %v1732, 1.0
      %v1734 = vrcp.pop %v1733
      %v1735 = vmul.f32 %v1733, %v1734
      %v1736 = vsub.f32 1.0, %v1735
      %v1737 = vmul.f32 %v1734, %v1736
      %v1738 = vadd.f32 %v1734, %v1737
      %vm1739 = vweird.f32 %v1733
      %vm1740 = vweird.f32 %v1734
      %vm1741 = vmor %vm1739, %vm1740
      %v1742 = vsel %vm1741, %v1734, %v1738
      %v1743 = vand.u32 2147483647, %v1733
      %vm1744 = vcmp.eq.f32.partialorder %v1743, 8.507059e+37
      %v1745 = vand.u32 %v1733, 2147483648
      %v1746 = vor.u32 1.1754944e-38, %v1745
      %v1747 = vsel %vm1744, %v1746, %v1742
      %v1748 = vmul.f32 %v1723, %v1747
      %v1749 = vmin.f32 %v1748, 1.0
      %v1750 = vmax.f32 %v1749, -1.0
      %v1751 = vmul.f32 %v1628, %v1628
      %v1752 = vmin.f32 16.0, %v1751
      %v1753 = vmul.f32 %v1752, 2.1237322e-06
      %v1754 = vadd.f32 %v1753, 0.00028619796
      %v1755 = vmul.f32 %v1752, %v1754
      %v1756 = vadd.f32 %v1755, 0.0036580483
      %v1757 = vmul.f32 %v1752, %v1756
      %v1758 = vadd.f32 %v1757, 0.05243302
      %v1759 = vmul.f32 %v1752, %v1758
      %v1760 = vadd.f32 %v1759, 0.18741608
      %v1761 = vmul.f32 %v1752, %v1760
      %v1762 = vadd.f32 %v1761, 1.1283791
      %v1763 = vmul.f32 %v1628, %v1762
      %v1764 = vmul.f32 %v1752, 3.8918573e-05
      %v1765 = vadd.f32 %v1764, 0.001143296
      %v1766 = vmul.f32 %v1752, %v1765
      %v1767 = vadd.f32 %v1766, 0.014752088
      %v1768 = vmul.f32 %v1752, %v1767
      %v1769 = vadd.f32 %v1768, 0.112945676
      %v1770 = vmul.f32 %v1752, %v1769
      %v1771 = vadd.f32 %v1770, 0.4994258
      %v1772 = vmul.f32 %v1752, %v1771
      %v1773 = vadd.f32 %v1772, 1.0
      %v1774 = vrcp.pop %v1773
      %v1775 = vmul.f32 %v1773, %v1774
      %v1776 = vsub.f32 1.0, %v1775
      %v1777 = vmul.f32 %v1774, %v1776
      %v1778 = vadd.f32 %v1774, %v1777
      %vm1779 = vweird.f32 %v1773
      %vm1780 = vweird.f32 %v1774
      %vm1781 = vmor %vm1779, %vm1780
      %v1782 = vsel %vm1781, %v1774, %v1778
      %v1783 = vand.u32 2147483647, %v1773
      %vm1784 = vcmp.eq.f32.partialorder %v1783, 8.507059e+37
      %v1785 = vand.u32 %v1773, 2147483648
      %v1786 = vor.u32 1.1754944e-38, %v1785
      %v1787 = vsel %vm1784, %v1786, %v1782
      %v1788 = vmul.f32 %v1763, %v1787
      %v1789 = vmin.f32 %v1788, 1.0
      %v1790 = vmax.f32 %v1789, -1.0
      %v1791 = vmul.f32 %v1629, %v1629
      %v1792 = vmin.f32 16.0, %v1791
      %v1793 = vmul.f32 %v1792, 2.1237322e-06
      %v1794 = vadd.f32 %v1793, 0.00028619796
      %v1795 = vmul.f32 %v1792, %v1794
      %v1796 = vadd.f32 %v1795, 0.0036580483
      %v1797 = vmul.f32 %v1792, %v1796
      %v1798 = vadd.f32 %v1797, 0.05243302
      %v1799 = vmul.f32 %v1792, %v1798
      %v1800 = vadd.f32 %v1799, 0.18741608
      %v1801 = vmul.f32 %v1792, %v1800
      %v1802 = vadd.f32 %v1801, 1.1283791
      %v1803 = vmul.f32 %v1629, %v1802
      %v1804 = vmul.f32 %v1792, 3.8918573e-05
      %v1805 = vadd.f32 %v1804, 0.001143296
      %v1806 = vmul.f32 %v1792, %v1805
      %v1807 = vadd.f32 %v1806, 0.014752088
      %v1808 = vmul.f32 %v1792, %v1807
      %v1809 = vadd.f32 %v1808, 0.112945676
      %v1810 = vmul.f32 %v1792, %v1809
      %v1811 = vadd.f32 %v1810, 0.4994258
      %v1812 = vmul.f32 %v1792, %v1811
      %v1813 = vadd.f32 %v1812, 1.0
      %v1814 = vrcp.pop %v1813
      %v1815 = vmul.f32 %v1813, %v1814
      %v1816 = vsub.f32 1.0, %v1815
      %v1817 = vmul.f32 %v1814, %v1816
      %v1818 = vadd.f32 %v1814, %v1817
      %vm1819 = vweird.f32 %v1813
      %vm1820 = vweird.f32 %v1814
      %vm1821 = vmor %vm1819, %vm1820
      %v1822 = vsel %vm1821, %v1814, %v1818
      %v1823 = vand.u32 2147483647, %v1813
      %vm1824 = vcmp.eq.f32.partialorder %v1823, 8.507059e+37
      %v1825 = vand.u32 %v1813, 2147483648
      %v1826 = vor.u32 1.1754944e-38, %v1825
      %v1827 = vsel %vm1824, %v1826, %v1822
      %v1828 = vmul.f32 %v1803, %v1827
      %v1829 = vmin.f32 %v1828, 1.0
      %v1830 = vmax.f32 %v1829, -1.0
      %v1831 = vmul.f32 %v1630, %v1630
      %v1832 = vmin.f32 16.0, %v1831
      %v1833 = vmul.f32 %v1832, 2.1237322e-06
      %v1834 = vadd.f32 %v1833, 0.00028619796
      %v1835 = vmul.f32 %v1832, %v1834
      %v1836 = vadd.f32 %v1835, 0.0036580483
      %v1837 = vmul.f32 %v1832, %v1836
      %v1838 = vadd.f32 %v1837, 0.05243302
      %v1839 = vmul.f32 %v1832, %v1838
      %v1840 = vadd.f32 %v1839, 0.18741608
      %v1841 = vmul.f32 %v1832, %v1840
      %v1842 = vadd.f32 %v1841, 1.1283791
      %v1843 = vmul.f32 %v1630, %v1842
      %v1844 = vmul.f32 %v1832, 3.8918573e-05
      %v1845 = vadd.f32 %v1844, 0.001143296
      %v1846 = vmul.f32 %v1832, %v1845
      %v1847 = vadd.f32 %v1846, 0.014752088
      %v1848 = vmul.f32 %v1832, %v1847
      %v1849 = vadd.f32 %v1848, 0.112945676
      %v1850 = vmul.f32 %v1832, %v1849
      %v1851 = vadd.f32 %v1850, 0.4994258
      %v1852 = vmul.f32 %v1832, %v1851
      %v1853 = vadd.f32 %v1852, 1.0
      %v1854 = vrcp.pop %v1853
      %v1855 = vmul.f32 %v1853, %v1854
      %v1856 = vsub.f32 1.0, %v1855
      %v1857 = vmul.f32 %v1854, %v1856
      %v1858 = vadd.f32 %v1854, %v1857
      %vm1859 = vweird.f32 %v1853
      %vm1860 = vweird.f32 %v1854
      %vm1861 = vmor %vm1859, %vm1860
      %v1862 = vsel %vm1861, %v1854, %v1858
      %v1863 = vand.u32 2147483647, %v1853
      %vm1864 = vcmp.eq.f32.partialorder %v1863, 8.507059e+37
      %v1865 = vand.u32 %v1853, 2147483648
      %v1866 = vor.u32 1.1754944e-38, %v1865
      %v1867 = vsel %vm1864, %v1866, %v1862
      %v1868 = vmul.f32 %v1843, %v1867
      %v1869 = vmin.f32 %v1868, 1.0
      %v1870 = vmax.f32 %v1869, -1.0
      %v1871 = vadd.f32 %v1670, 1.0
      %v1872 = vadd.f32 %v1710, 1.0
      %v1873 = vadd.f32 %v1750, 1.0
      %v1874 = vadd.f32 %v1790, 1.0
      %v1875 = vadd.f32 %v1830, 1.0
      %v1876 = vadd.f32 %v1870, 1.0
      %v1877 = vmul.f32 %v1619, %v1871
      %v1878 = vmul.f32 %v1620, %v1872
      %v1879 = vmul.f32 %v1621, %v1873
      %v1880 = vmul.f32 %v1622, %v1874
      %v1881 = vmul.f32 %v1623, %v1875
      %v1882 = vmul.f32 %v1624, %v1876
      %v1883 = vld [vmem:[%s11] sm:$0xff]
      %v1884 = vld [vmem:[%s11 + $0x8] sm:$0xff]
      %v1885 = vld [vmem:[%s11 + $0x10] sm:$0xff]
      %v1886 = vld [vmem:[%s11 + $0x18] sm:$0xff]
      %v1887 = vld [vmem:[%s11 + $0x20] sm:$0xff]
      %v1888 = vld [vmem:[%s11 + $0x28] sm:$0xff]
      %v1889 = vld [vmem:[%s11 + $0x30] sm:$0xff]
      %v1890 = vld [vmem:[%s11 + $0x38] sm:$0xff]
      %v1891 = vld [vmem:[%s11 + $0x40] sm:$0xff]
      %v1892 = vld [vmem:[%s11 + $0x48] sm:$0xff]
      %v1893 = vld [vmem:[%s11 + $0x50] sm:$0xff]
      %v1894 = vld [vmem:[%s11 + $0x58] sm:$0xff]
      %v1895 = vld [vmem:[%s11 + $0x60] sm:$0xff]
      %v1896 = vld [vmem:[%s11 + $0x68] sm:$0xff]
      %v1897 = vld [vmem:[%s11 + $0x70] sm:$0xff]
      %v1898 = vld [vmem:[%s11 + $0x78] sm:$0xff]
      %v1899 = vld [vmem:[%s11 + $0x80] sm:$0xff]
      %v1900 = vld [vmem:[%s11 + $0x88] sm:$0xff]
      %v1901 = vld [vmem:[%s11 + $0x90] sm:$0xff]
      %v1902 = vld [vmem:[%s11 + $0x98] sm:$0xff]
      %v1903 = vld [vmem:[%s11 + $0xa0] sm:$0xff]
      %v1904 = vld [vmem:[%s11 + $0xa8] sm:$0xff]
      %v1905 = vld [vmem:[%s11 + $0xb0] sm:$0xff]
      %v1906 = vld [vmem:[%s11 + $0xb8] sm:$0xff]
      %v1907 = vld [vmem:[%s11 + $0xc0] sm:$0xff]
      %v1908 = vld [vmem:[%s11 + $0xc8] sm:$0xff]
      %v1909 = vld [vmem:[%s11 + $0xd0] sm:$0xff]
      %v1910 = vld [vmem:[%s11 + $0xd8] sm:$0xff]
      %v1911 = vld [vmem:[%s11 + $0xe0] sm:$0xff]
      %v1912 = vld [vmem:[%s11 + $0xe8] sm:$0xff]
      %v1913 = vld [vmem:[%s11 + $0xf0] sm:$0xff]
      %v1914 = vld [vmem:[%s11 + $0xf8] sm:$0xff]
      %v1915 = vld [vmem:[%s12] sm:$0x1]
      %v1917 = vperm.slane %v1915, 0
      %1919 = vmatpush.msra.mxu0 %v1898
      %1920 = vmatpush.msra.mxu0 %v1897
      %1921 = vmatpush.msra.mxu0 %v1896
      %1922 = vmatpush.msra.mxu0 %v1895
      %1923 = vmatpush.msra.mxu0 %v1894
      %1924 = vmatpush.msra.mxu0 %v1893
      %1925 = vmatpush.msra.mxu0 %v1892
      %1926 = vmatpush.msra.mxu0 %v1891
      %1927 = vmatpush.msra.mxu0 %v1890
      %1928 = vmatpush.msra.mxu0 %v1889
      %1929 = vmatpush.msra.mxu0 %v1888
      %1930 = vmatpush.msra.mxu0 %v1887
      %1931 = vmatpush.msra.mxu0 %v1886
      %1932 = vmatpush.msra.mxu0 %v1885
      %1933 = vmatpush.msra.mxu0 %v1884
      %1934 = vmatpush.msra.mxu0 %v1883
      %1935 = vmatmul.f32.gmra.mxu0 %v1877
      %v1936 = vpop.f32.mrf.mxu0
      %v1937 = vadd.f32 %v1917, %v1936
      %1938 = vmatmul.f32.gmra.mxu0 %v1879
      %v1939 = vpop.f32.mrf.mxu0
      %v1940 = vadd.f32 %v1917, %v1939
      %1941 = vmatmul.f32.gmra.mxu0 %v1881
      %v1942 = vpop.f32.mrf.mxu0
      %v1943 = vadd.f32 %v1917, %v1942
      %1944 = vdwg.mxu0
      %1945 = vmatpush.msra.mxu0 %v1914
      %1946 = vmatpush.msra.mxu0 %v1913
      %1947 = vmatpush.msra.mxu0 %v1912
      %1948 = vmatpush.msra.mxu0 %v1911
      %1949 = vmatpush.msra.mxu0 %v1910
      %1950 = vmatpush.msra.mxu0 %v1909
      %1951 = vmatpush.msra.mxu0 %v1908
      %1952 = vmatpush.msra.mxu0 %v1907
      %1953 = vmatpush.msra.mxu0 %v1906
      %1954 = vmatpush.msra.mxu0 %v1905
      %1955 = vmatpush.msra.mxu0 %v1904
      %1956 = vmatpush.msra.mxu0 %v1903
      %1957 = vmatpush.msra.mxu0 %v1902
      %1958 = vmatpush.msra.mxu0 %v1901
      %1959 = vmatpush.msra.mxu0 %v1900
      %1960 = vmatpush.msra.mxu0 %v1899
      %1961 = vmatmul.f32.gmra.mxu0 %v1878
      %v1962 = vpop.f32.mrf.mxu0
      %v1963 = vadd.f32 %v1937, %v1962
      %1964 = vmatmul.f32.gmra.mxu0 %v1880
      %v1965 = vpop.f32.mrf.mxu0
      %v1966 = vadd.f32 %v1940, %v1965
      %1967 = vmatmul.f32.gmra.mxu0 %v1882
      %v1968 = vpop.f32.mrf.mxu0
      %v1969 = vadd.f32 %v1943, %v1968
      %1970 = vdwg.mxu0
      %v1971 = vadd.f32 %v1453, %v1963
      %v1972 = vadd.f32 %v1454, %v1966
      %v1973 = vadd.f32 %v1455, %v1969
      %1974 = vst.msk [vmem:[%s440] sm:$0xff] %vm446, %v1971
      %1975 = vst.msk [vmem:[%s440 + $0x8] sm:$0xff] %vm446, %v1972
      %1976 = vst.msk [vmem:[%s440 + $0x10] sm:$0x1] %vm453, %v1973
      %p1977 = scmp.lt.s32.totalorder %s24, 1
      %s1978 = scalar_select %p1977, %s24, 1
      %s1979 = smul.addr %s1978, 3
      %s1980 = smul.addr %s1979, 8
      %s1981 = scalar_lea.vmem %s13, %s1980
      // Predicated region
      $region73: #{vl_transformer_itm.9} parent=71 // pred_check
        %p1982 = pneg %p320
      $region74: #{vl_transformer_itm.9} parent=71 // pred_check_branch
        %1984 = sbr.rel (%p1982) target = $region76
      $region75: #{vl_transformer_itm.9} parent=71 // pred_region
        _
      $region76: #{vl_transformer_itm.9} parent=71 // pred_fallthru
        _
    $region72: #{vl_transformer_itm.9} parent=5 // pred_fallthru
      _
    %p1985 = scmp.le.s32.totalorder 2, %s19
    // Predicated region
    $region77: #{vl_transformer_itm.9} parent=5 // pred_check
      %p1986 = pneg %p1985
    $region78: #{vl_transformer_itm.9} parent=5 // pred_check_branch
      %1988 = sbr.rel (%p1986) target = $region80
    $region79: #{vl_transformer_itm.9} parent=5 // pred_region
      %s1989 = ssub.s32 %s19, 2
      // Predicated region
      $region81: #{vl_transformer_itm.9} parent=79 // pred_check
        %p1990 = pneg %p326
      $region82: #{vl_transformer_itm.9} parent=79 // pred_check_branch
        %1992 = sbr.rel (%p1990) target = $region84
      $region83: #{vl_transformer_itm.9} parent=79 // pred_region
        %p1993 = scmp.lt.s32.totalorder %s25, 1
        %s1994 = scalar_select %p1993, %s25, 1
        %s1995 = smul.addr %s1994, 3
        %s1996 = smul.addr %s1995, 8
        %s1997 = scalar_lea.vmem %s13, %s1996
      $region84: #{vl_transformer_itm.9} parent=79 // pred_fallthru
        _
    $region80: #{vl_transformer_itm.9} parent=5 // pred_fallthru
      _
  $region6: #{vl_transformer_itm.9} parent=0 // loop_footer
    %s23 = sadd.s32 1, %s19
  $region7: #{vl_transformer_itm.9} parent=0 // loop_footer_branch
    %18 = sbr.rel target = $region3
  $region8: #{vl_transformer_itm.9} parent=0 // loop_exit
    _

// kernel: vl_transformer_itm.15
$region0: #{vl_transformer_itm.15}
  #allocation0 [shape = 'u32[]', space=smem, size = 0x4, offset = 0x4, fixed_abs, tag = 'smem constant byte address 0x4 - core index']
  #allocation1 [shape = 'u32[72,128]{1,0:T(1,128)}', space=vmem, size = 0x9000, scoped, tag = 'internal scratch']
  %s0 = inlined_call_operand.vmem [shape: f32[2,64], index: 0, kind: input, shape index: {}]
  %s1 = inlined_call_operand.vmem [shape: f32[64,2], index: 1, kind: input, shape index: {}]
  %s2 = inlined_call_operand.vmem [shape: f32[1,2], index: 2, kind: input, shape index: {}]
  %s3 = inlined_call_operand.hbm [shape: f32[2,2], index: 3, kind: output, shape index: {}]
  %s4 = sld [smem:[#allocation0]]
  $region22: #{vl_transformer_itm.15} parent=0
    _
  %s6 = ssub.s32 1, %s4
  %s7 = scalar_select 0, %s6, %s4
  $region1: #{vl_transformer_itm.15} parent=0
    #allocation2 [shape = 'u8[1024]{0}', space=vmem, size = 0x400, scoped, tag = 'output window, operand 0, single buffered']
    #allocation3 [shape = 's32[1]{0}', space=sflag, size = 0x4, scoped, tag = 'scoped memory for vl_transformer_itm.15']
    %8 = vsyncpa [#allocation3], 0
    // Predicated region
    $region2: #{vl_transformer_itm.15} parent=1 // pred_check
      _
    $region3: #{vl_transformer_itm.15} parent=1 // pred_check_branch
      %10 = sbr.rel (0) target = $region5
    $region4: #{vl_transformer_itm.15} parent=1 // pred_region
      _
    $region5: #{vl_transformer_itm.15} parent=1 // pred_fallthru
      _
    // Predicated region
    $region6: #{vl_transformer_itm.15} parent=1 // pred_check
      _
    $region7: #{vl_transformer_itm.15} parent=1 // pred_check_branch
      %12 = sbr.rel (0) target = $region9
    $region8: #{vl_transformer_itm.15} parent=1 // pred_region
      _
    $region9: #{vl_transformer_itm.15} parent=1 // pred_fallthru
      _
    // Predicated region
    $region10: #{vl_transformer_itm.15} parent=1 // pred_check
      _
    $region11: #{vl_transformer_itm.15} parent=1 // pred_check_branch
      %14 = sbr.rel (0) target = $region13
    $region12: #{vl_transformer_itm.15} parent=1 // pred_region
      _
    $region13: #{vl_transformer_itm.15} parent=1 // pred_fallthru
      _
    %v15 = vld [vmem:[%s0] sm:$0x3]
    %v16 = vld [vmem:[%s1] sm:$0xff]
    %v17 = vld [vmem:[%s1 + $0x8] sm:$0xff]
    %v18 = vld [vmem:[%s1 + $0x10] sm:$0xff]
    %v19 = vld [vmem:[%s1 + $0x18] sm:$0xff]
    %v20 = vld [vmem:[%s1 + $0x20] sm:$0xff]
    %v21 = vld [vmem:[%s1 + $0x28] sm:$0xff]
    %v22 = vld [vmem:[%s1 + $0x30] sm:$0xff]
    %v23 = vld [vmem:[%s1 + $0x38] sm:$0xff]
    %v24 = vld [vmem:[%s2] sm:$0x1]
    %v26 = vperm.slane %v24, 0
    %vm28 = vcmask 523264
    %v30 = vsel %vm28, %v15, 0
    %32 = vmatpush.msra.mxu0 0.0
    %33 = vmatpush.msra.mxu0 0.0
    %34 = vmatpush.msra.mxu0 0.0
    %35 = vmatpush.msra.mxu0 0.0
    %36 = vmatpush.msra.mxu0 0.0
    %37 = vmatpush.msra.mxu0 0.0
    %38 = vmatpush.msra.mxu0 0.0
    %39 = vmatpush.msra.mxu0 0.0
    %40 = vmatpush.msra.mxu0 %v23
    %41 = vmatpush.msra.mxu0 %v22
    %42 = vmatpush.msra.mxu0 %v21
    %43 = vmatpush.msra.mxu0 %v20
    %44 = vmatpush.msra.mxu0 %v19
    %45 = vmatpush.msra.mxu0 %v18
    %46 = vmatpush.msra.mxu0 %v17
    %47 = vmatpush.msra.mxu0 %v16
    %48 = vmatmul.f32.gmra.mxu0 %v30
    %v49 = vpop.f32.mrf.mxu0
    %v50 = vadd.f32 %v26, %v49
    %51 = vdwg.mxu0
    %vm52 = vcmask 9216
    %53 = vst.msk [vmem:[#allocation2] sm:$0x3] %vm52, %v50
    // Predicated region
    $region14: #{vl_transformer_itm.15} parent=1 // pred_check
      _
    $region15: #{vl_transformer_itm.15} parent=1 // pred_check_branch
      %55 = sbr.rel (0) target = $region17
    $region16: #{vl_transformer_itm.15} parent=1 // pred_region
      %57 = vsyncadd [#allocation3], 0
      %s59 = sshll.u32 [#allocation2], 4
      %s60 = int_to_ptr.vmem [resolvable:$true] %s59
      %s61 = sshll.u32 %s3, 4
      %s62 = int_to_ptr.hbm [resolvable:$true] %s61
      %64 = dma.vmem_to_hbm [thread:$0]  %s60, 32, %s62, [#allocation3]
    $region17: #{vl_transformer_itm.15} parent=1 // pred_fallthru
      _
    // Predicated region
    $region18: #{vl_transformer_itm.15} parent=1 // pred_check
      _
    $region19: #{vl_transformer_itm.15} parent=1 // pred_check_branch
      %66 = sbr.rel (0) target = $region21
    $region20: #{vl_transformer_itm.15} parent=1 // pred_region
      %68 = dma.done [#allocation3], 32
    $region21: #{vl_transformer_itm.15} parent=1 // pred_fallthru
      _
    %69 = vsyncpa [#allocation3], 1

// kernel: vl_transformer_itm.13
$region0: #{vl_transformer_itm.13}
  #allocation0 [shape = 'u32[]', space=smem, size = 0x4, offset = 0x4, fixed_abs, tag = 'smem constant byte address 0x4 - core index']
  #allocation1 [shape = 'u32[72,128]{1,0:T(1,128)}', space=vmem, size = 0x9000, scoped, tag = 'internal scratch']
  %s0 = inlined_call_operand.smem [shape: u32[30], index: -1, kind: input, shape index: {}]
  %s1 = sld [smem:[%s0]]
  %s2 = scalar_lea.smem %s0, 1
  %s3 = sld [smem:[%s2]]
  %s4 = scalar_lea.smem %s0, 2
  %s5 = sld [smem:[%s4]]
  %s6 = scalar_lea.smem %s0, 3
  %s7 = sld [smem:[%s6]]
  %s8 = scalar_lea.smem %s0, 4
  %s9 = sld [smem:[%s8]]
  %s10 = scalar_lea.smem %s0, 5
  %s11 = sld [smem:[%s10]]
  %s12 = scalar_lea.smem %s0, 6
  %s13 = sld [smem:[%s12]]
  %s14 = scalar_lea.smem %s0, 7
  %s15 = sld [smem:[%s14]]
  %s16 = scalar_lea.smem %s0, 8
  %s17 = sld [smem:[%s16]]
  %s18 = scalar_lea.smem %s0, 9
  %s19 = sld [smem:[%s18]]
  %s20 = scalar_lea.smem %s0, 10
  %s21 = sld [smem:[%s20]]
  %s22 = scalar_lea.smem %s0, 11
  %s23 = sld [smem:[%s22]]
  %s24 = scalar_lea.smem %s0, 12
  %s25 = sld [smem:[%s24]]
  %s26 = scalar_lea.smem %s0, 13
  %s27 = sld [smem:[%s26]]
  %s28 = scalar_lea.smem %s0, 14
  %s29 = sld [smem:[%s28]]
  %s30 = scalar_lea.smem %s0, 15
  %s31 = sld [smem:[%s30]]
  %s32 = scalar_lea.smem %s0, 16
  %s33 = sld [smem:[%s32]]
  %s34 = scalar_lea.smem %s0, 17
  %s35 = sld [smem:[%s34]]
  %s36 = scalar_lea.smem %s0, 18
  %s37 = sld [smem:[%s36]]
  %s38 = scalar_lea.smem %s0, 19
  %s39 = sld [smem:[%s38]]
  %s40 = scalar_lea.smem %s0, 20
  %s41 = sld [smem:[%s40]]
  %s42 = scalar_lea.smem %s0, 21
  %s43 = sld [smem:[%s42]]
  %s44 = scalar_lea.smem %s0, 22
  %s45 = sld [smem:[%s44]]
  %s46 = scalar_lea.smem %s0, 23
  %s47 = sld [smem:[%s46]]
  %s48 = scalar_lea.smem %s0, 24
  %s49 = sld [smem:[%s48]]
  %s50 = scalar_lea.smem %s0, 25
  %s51 = sld [smem:[%s50]]
  %s52 = scalar_lea.smem %s0, 26
  %s53 = sld [smem:[%s52]]
  %s54 = scalar_lea.smem %s0, 27
  %s55 = sld [smem:[%s54]]
  %s56 = scalar_lea.smem %s0, 28
  %s57 = sld [smem:[%s56]]
  %s58 = scalar_lea.smem %s0, 29
  %s59 = sld [smem:[%s58]]
  %s60 = sld [smem:[#allocation0]]
  $region209: #{vl_transformer_itm.13} parent=0
    _
  %s62 = ssub.s32 1, %s60
  %s63 = scalar_select 0, %s62, %s60
  $region1: #{vl_transformer_itm.13} parent=0
    #allocation2 [shape = 'u8[512]{0}', space=vmem, size = 0x400, scoped, tag = 'input window, operand 4, single buffered']
    #allocation3 [shape = 's32[2]{0}', space=sflag, size = 0x8, scoped, tag = 'scoped memory for vl_transformer_itm.13']
    #allocation4 [shape = 'u8[512]{0}', space=vmem, size = 0x400, scoped, tag = 'input window, operand 6, single buffered']
    #allocation5 [shape = 's32[1]{0}', space=sflag, size = 0x4, scoped, tag = 'scoped memory for vl_transformer_itm.13']
    #allocation6 [shape = 'u8[512]{0}', space=vmem, size = 0x400, scoped, tag = 'input window, operand 8, single buffered']
    #allocation7 [shape = 'u8[512]{0}', space=vmem, size = 0x400, scoped, tag = 'input window, operand 10, single buffered']
    #allocation8 [shape = 's32[1]{0}', space=sflag, size = 0x4, scoped, tag = 'scoped memory for vl_transformer_itm.13']
    #allocation9 [shape = 'u8[512]{0}', space=vmem, size = 0x400, scoped, tag = 'input window, operand 11, single buffered']
    #allocation10 [shape = 'u8[512]{0}', space=vmem, size = 0x400, scoped, tag = 'input window, operand 12, single buffered']
    #allocation11 [shape = 's32[1]{0}', space=sflag, size = 0x4, scoped, tag = 'scoped memory for vl_transformer_itm.13']
    #allocation12 [shape = 'u8[512]{0}', space=vmem, size = 0x400, scoped, tag = 'input window, operand 14, single buffered']
    #allocation13 [shape = 'u8[512]{0}', space=vmem, size = 0x400, scoped, tag = 'input window, operand 16, single buffered']
    #allocation14 [shape = 's32[1]{0}', space=sflag, size = 0x4, scoped, tag = 'scoped memory for vl_transformer_itm.13']
    #allocation15 [shape = 'u8[512]{0}', space=vmem, size = 0x400, scoped, tag = 'input window, operand 18, single buffered']
    #allocation16 [shape = 'u8[512]{0}', space=vmem, size = 0x400, scoped, tag = 'input window, operand 20, single buffered']
    #allocation17 [shape = 's32[1]{0}', space=sflag, size = 0x4, scoped, tag = 'scoped memory for vl_transformer_itm.13']
    #allocation18 [shape = 'u8[512]{0}', space=vmem, size = 0x400, scoped, tag = 'input window, operand 21, single buffered']
    #allocation19 [shape = 'u8[512]{0}', space=vmem, size = 0x400, scoped, tag = 'input window, operand 22, single buffered']
    #allocation20 [shape = 's32[1]{0}', space=sflag, size = 0x4, scoped, tag = 'scoped memory for vl_transformer_itm.13']
    #allocation21 [shape = 'u8[512]{0}', space=vmem, size = 0x400, scoped, tag = 'input window, operand 26, single buffered']
    #allocation22 [shape = 'u8[512]{0}', space=vmem, size = 0x400, scoped, tag = 'input window, operand 27, single buffered']
    #allocation23 [shape = 's32[1]{0}', space=sflag, size = 0x4, scoped, tag = 'scoped memory for vl_transformer_itm.13']
    #allocation24 [shape = 'u8[512]{0}', space=vmem, size = 0x400, scoped, tag = 'input window, operand 28, single buffered']
    %64 = vsyncpa [#allocation3], 0
    %65 = vsyncpa [#allocation5], 0
    %66 = vsyncpa [#allocation8], 0
    %67 = vsyncpa [#allocation11], 0
    %68 = vsyncpa [#allocation14], 0
    %69 = vsyncpa [#allocation17], 0
    %70 = vsyncpa [#allocation20], 0
    %71 = vsyncpa [#allocation23], 0
    loop: start=0, step=1, limit=4
    $region2: #{vl_transformer_itm.13} parent=1 // loop_pre_header
      _
    $region3: #{vl_transformer_itm.13} parent=1 // loop_header
      %s73 = sphi 0, %s77
      %p74 = scmp.ge.s32.totalorder %s73, 4
      %s83 = sphi 0, %s85
      %s86 = sphi 0, %s83
      %s87 = sphi 0, %s86
      %s103 = sphi 0, %s87
      %s109 = sphi 0, %s111
      %s112 = sphi 0, %s109
      %s113 = sphi 0, %s112
      %s129 = sphi 0, %s113
      %s135 = sphi 0, %s137
      %s138 = sphi 0, %s135
      %s139 = sphi 0, %s138
      %s155 = sphi 0, %s139
      %s159 = sphi 0, %s159
      %s161 = sphi 0, %s159
      %s162 = sphi 0, %s161
      %s176 = sphi 0, %s162
      %s180 = sphi 0, %s180
      %s182 = sphi 0, %s180
      %s183 = sphi 0, %s182
      %s197 = sphi 0, %s183
      %s201 = sphi 0, %s201
      %s203 = sphi 0, %s201
      %s204 = sphi 0, %s203
      %s218 = sphi 0, %s204
      %s222 = sphi 0, %s222
      %s224 = sphi 0, %s222
      %s225 = sphi 0, %s224
      %s239 = sphi 0, %s225
      %s243 = sphi 0, %s243
      %s245 = sphi 0, %s243
      %s246 = sphi 0, %s245
      %s260 = sphi 0, %s246
      %s264 = sphi 0, %s264
      %s266 = sphi 0, %s264
      %s267 = sphi 0, %s266
      %s281 = sphi 0, %s267
      %s285 = sphi 0, %s285
      %s287 = sphi 0, %s285
      %s288 = sphi 0, %s287
      %s302 = sphi 0, %s288
      %s306 = sphi 0, %s306
      %s308 = sphi 0, %s306
      %s309 = sphi 0, %s308
      %s323 = sphi 0, %s309
      %s327 = sphi 0, %s327
      %s329 = sphi 0, %s327
      %s330 = sphi 0, %s329
      %s344 = sphi 0, %s330
      %s348 = sphi 0, %s348
      %s350 = sphi 0, %s348
      %s351 = sphi 0, %s350
      %s365 = sphi 0, %s351
      %s369 = sphi 0, %s369
      %s371 = sphi 0, %s369
      %s372 = sphi 0, %s371
      %s386 = sphi 0, %s372
      %s390 = sphi 0, %s390
      %s392 = sphi 0, %s390
      %s393 = sphi 0, %s392
      %s407 = sphi 0, %s393
      %s411 = sphi 0, %s411
      %s413 = sphi 0, %s411
      %s414 = sphi 0, %s413
      %s428 = sphi 0, %s414
      %s432 = sphi 0, %s432
      %s434 = sphi 0, %s432
      %s435 = sphi 0, %s434
      %s449 = sphi 0, %s435
      %s453 = sphi 0, %s453
      %s455 = sphi 0, %s453
      %s456 = sphi 0, %s455
      %s470 = sphi 0, %s456
      %s474 = sphi 0, %s474
      %s476 = sphi 0, %s474
      %s477 = sphi 0, %s476
      %s491 = sphi 0, %s477
      %s495 = sphi 0, %s495
      %s497 = sphi 0, %s495
      %s498 = sphi 0, %s497
      %s512 = sphi 0, %s498
      %s516 = sphi 0, %s516
      %s518 = sphi 0, %s516
      %s519 = sphi 0, %s518
      %s533 = sphi 0, %s519
      %s537 = sphi 0, %s537
      %s539 = sphi 0, %s537
      %s540 = sphi 0, %s539
      %s554 = sphi 0, %s540
      %s558 = sphi 0, %s558
      %s560 = sphi 0, %s558
      %s561 = sphi 0, %s560
      %s575 = sphi 0, %s561
      %s579 = sphi 0, %s579
      %s581 = sphi 0, %s579
      %s582 = sphi 0, %s581
      %s596 = sphi 0, %s582
      %s600 = sphi 0, %s600
      %s602 = sphi 0, %s600
      %s603 = sphi 0, %s602
      %s617 = sphi 0, %s603
      %s621 = sphi 0, %s621
      %s623 = sphi 0, %s621
      %s624 = sphi 0, %s623
      %s638 = sphi 0, %s624
      %s642 = sphi 0, %s642
      %s644 = sphi 0, %s642
      %s645 = sphi 0, %s644
      %s659 = sphi 0, %s645
      %s663 = sphi 0, %s663
      %s665 = sphi 0, %s663
      %s666 = sphi 0, %s665
      %s680 = sphi 0, %s666
      %s684 = sphi 0, %s684
      %s686 = sphi 0, %s684
      %s687 = sphi 0, %s686
      %s701 = sphi 0, %s687
      %s707 = sphi 0, %s709
      %s710 = sphi 0, %s707
      %s711 = sphi 0, %s710
      %s727 = sphi 0, %s711
    $region4: #{vl_transformer_itm.13} parent=1 // loop_header_branch
      %76 = sbr.rel (%p74) target = $region8
    $region5: #{vl_transformer_itm.13} parent=1 // loop_body
      %s78 = ssub.s32 %s73, 1
      %s79 = ssub.s32 %s73, 2
      %s80 = sadd.s32 %s73, 1
      %s81 = ssub.s32 %s73, %s80
      %p82 = scmp.eq.s32.totalorder %s81, 0
      %s84 = sadd.s32 %s83, 1
      %s85 = scalar_select %p82, %s83, %s84
      %p88 = pneg %p82
      %p89 = scmp.eq.s32.totalorder %s73, 1
      %p90 = por %p88, %p89
      %p91 = scmp.ne.s32.totalorder %s83, %s86
      %p92 = scmp.eq.s32.totalorder %s73, 0
      %p93 = por %p91, %p92
      %p94 = scmp.ne.s32.totalorder %s83, %s86
      %p95 = scmp.eq.s32.totalorder %s78, 1
      %p96 = por %p94, %p95
      %p97 = scmp.ne.s32.totalorder %s86, %s87
      %p98 = scmp.eq.s32.totalorder %s78, 0
      %p99 = por %p97, %p98
      %p100 = scmp.ne.s32.totalorder %s86, %s87
      %p101 = scmp.eq.s32.totalorder %s79, 1
      %p102 = por %p100, %p101
      %p104 = scmp.ne.s32.totalorder %s87, %s103
      %p105 = scmp.eq.s32.totalorder %s79, 0
      %p106 = por %p104, %p105
      %s107 = ssub.s32 %s73, %s80
      %p108 = scmp.eq.s32.totalorder %s107, 0
      %s110 = sadd.s32 %s109, 1
      %s111 = scalar_select %p108, %s109, %s110
      %p114 = pneg %p108
      %p115 = scmp.eq.s32.totalorder %s73, 1
      %p116 = por %p114, %p115
      %p117 = scmp.ne.s32.totalorder %s109, %s112
      %p118 = scmp.eq.s32.totalorder %s73, 0
      %p119 = por %p117, %p118
      %p120 = scmp.ne.s32.totalorder %s109, %s112
      %p121 = scmp.eq.s32.totalorder %s78, 1
      %p122 = por %p120, %p121
      %p123 = scmp.ne.s32.totalorder %s112, %s113
      %p124 = scmp.eq.s32.totalorder %s78, 0
      %p125 = por %p123, %p124
      %p126 = scmp.ne.s32.totalorder %s112, %s113
      %p127 = scmp.eq.s32.totalorder %s79, 1
      %p128 = por %p126, %p127
      %p130 = scmp.ne.s32.totalorder %s113, %s129
      %p131 = scmp.eq.s32.totalorder %s79, 0
      %p132 = por %p130, %p131
      %s133 = ssub.s32 %s73, %s80
      %p134 = scmp.eq.s32.totalorder %s133, 0
      %s136 = sadd.s32 %s135, 1
      %s137 = scalar_select %p134, %s135, %s136
      %p140 = pneg %p134
      %p141 = scmp.eq.s32.totalorder %s73, 1
      %p142 = por %p140, %p141
      %p143 = scmp.ne.s32.totalorder %s135, %s138
      %p144 = scmp.eq.s32.totalorder %s73, 0
      %p145 = por %p143, %p144
      %p146 = scmp.ne.s32.totalorder %s135, %s138
      %p147 = scmp.eq.s32.totalorder %s78, 1
      %p148 = por %p146, %p147
      %p149 = scmp.ne.s32.totalorder %s138, %s139
      %p150 = scmp.eq.s32.totalorder %s78, 0
      %p151 = por %p149, %p150
      %p152 = scmp.ne.s32.totalorder %s138, %s139
      %p153 = scmp.eq.s32.totalorder %s79, 1
      %p154 = por %p152, %p153
      %p156 = scmp.ne.s32.totalorder %s139, %s155
      %p157 = scmp.eq.s32.totalorder %s79, 0
      %p158 = por %p156, %p157
      %s160 = sadd.s32 %s159, 1
      %p163 = scmp.eq.s32.totalorder %s73, 1
      %p164 = scmp.ne.s32.totalorder %s159, %s161
      %p165 = scmp.eq.s32.totalorder %s73, 0
      %p166 = por %p164, %p165
      %p167 = scmp.ne.s32.totalorder %s159, %s161
      %p168 = scmp.eq.s32.totalorder %s78, 1
      %p169 = por %p167, %p168
      %p170 = scmp.ne.s32.totalorder %s161, %s162
      %p171 = scmp.eq.s32.totalorder %s78, 0
      %p172 = por %p170, %p171
      %p173 = scmp.ne.s32.totalorder %s161, %s162
      %p174 = scmp.eq.s32.totalorder %s79, 1
      %p175 = por %p173, %p174
      %p177 = scmp.ne.s32.totalorder %s162, %s176
      %p178 = scmp.eq.s32.totalorder %s79, 0
      %p179 = por %p177, %p178
      %s181 = sadd.s32 %s180, 1
      %p184 = scmp.eq.s32.totalorder %s73, 1
      %p185 = scmp.ne.s32.totalorder %s180, %s182
      %p186 = scmp.eq.s32.totalorder %s73, 0
      %p187 = por %p185, %p186
      %p188 = scmp.ne.s32.totalorder %s180, %s182
      %p189 = scmp.eq.s32.totalorder %s78, 1
      %p190 = por %p188, %p189
      %p191 = scmp.ne.s32.totalorder %s182, %s183
      %p192 = scmp.eq.s32.totalorder %s78, 0
      %p193 = por %p191, %p192
      %p194 = scmp.ne.s32.totalorder %s182, %s183
      %p195 = scmp.eq.s32.totalorder %s79, 1
      %p196 = por %p194, %p195
      %p198 = scmp.ne.s32.totalorder %s183, %s197
      %p199 = scmp.eq.s32.totalorder %s79, 0
      %p200 = por %p198, %p199
      %s202 = sadd.s32 %s201, 1
      %p205 = scmp.eq.s32.totalorder %s73, 1
      %p206 = scmp.ne.s32.totalorder %s201, %s203
      %p207 = scmp.eq.s32.totalorder %s73, 0
      %p208 = por %p206, %p207
      %p209 = scmp.ne.s32.totalorder %s201, %s203
      %p210 = scmp.eq.s32.totalorder %s78, 1
      %p211 = por %p209, %p210
      %p212 = scmp.ne.s32.totalorder %s203, %s204
      %p213 = scmp.eq.s32.totalorder %s78, 0
      %p214 = por %p212, %p213
      %p215 = scmp.ne.s32.totalorder %s203, %s204
      %p216 = scmp.eq.s32.totalorder %s79, 1
      %p217 = por %p215, %p216
      %p219 = scmp.ne.s32.totalorder %s204, %s218
      %p220 = scmp.eq.s32.totalorder %s79, 0
      %p221 = por %p219, %p220
      %s223 = sadd.s32 %s222, 1
      %p226 = scmp.eq.s32.totalorder %s73, 1
      %p227 = scmp.ne.s32.totalorder %s222, %s224
      %p228 = scmp.eq.s32.totalorder %s73, 0
      %p229 = por %p227, %p228
      %p230 = scmp.ne.s32.totalorder %s222, %s224
      %p231 = scmp.eq.s32.totalorder %s78, 1
      %p232 = por %p230, %p231
      %p233 = scmp.ne.s32.totalorder %s224, %s225
      %p234 = scmp.eq.s32.totalorder %s78, 0
      %p235 = por %p233, %p234
      %p236 = scmp.ne.s32.totalorder %s224, %s225
      %p237 = scmp.eq.s32.totalorder %s79, 1
      %p238 = por %p236, %p237
      %p240 = scmp.ne.s32.totalorder %s225, %s239
      %p241 = scmp.eq.s32.totalorder %s79, 0
      %p242 = por %p240, %p241
      %s244 = sadd.s32 %s243, 1
      %p247 = scmp.eq.s32.totalorder %s73, 1
      %p248 = scmp.ne.s32.totalorder %s243, %s245
      %p249 = scmp.eq.s32.totalorder %s73, 0
      %p250 = por %p248, %p249
      %p251 = scmp.ne.s32.totalorder %s243, %s245
      %p252 = scmp.eq.s32.totalorder %s78, 1
      %p253 = por %p251, %p252
      %p254 = scmp.ne.s32.totalorder %s245, %s246
      %p255 = scmp.eq.s32.totalorder %s78, 0
      %p256 = por %p254, %p255
      %p257 = scmp.ne.s32.totalorder %s245, %s246
      %p258 = scmp.eq.s32.totalorder %s79, 1
      %p259 = por %p257, %p258
      %p261 = scmp.ne.s32.totalorder %s246, %s260
      %p262 = scmp.eq.s32.totalorder %s79, 0
      %p263 = por %p261, %p262
      %s265 = sadd.s32 %s264, 1
      %p268 = scmp.eq.s32.totalorder %s73, 1
      %p269 = scmp.ne.s32.totalorder %s264, %s266
      %p270 = scmp.eq.s32.totalorder %s73, 0
      %p271 = por %p269, %p270
      %p272 = scmp.ne.s32.totalorder %s264, %s266
      %p273 = scmp.eq.s32.totalorder %s78, 1
      %p274 = por %p272, %p273
      %p275 = scmp.ne.s32.totalorder %s266, %s267
      %p276 = scmp.eq.s32.totalorder %s78, 0
      %p277 = por %p275, %p276
      %p278 = scmp.ne.s32.totalorder %s266, %s267
      %p279 = scmp.eq.s32.totalorder %s79, 1
      %p280 = por %p278, %p279
      %p282 = scmp.ne.s32.totalorder %s267, %s281
      %p283 = scmp.eq.s32.totalorder %s79, 0
      %p284 = por %p282, %p283
      %s286 = sadd.s32 %s285, 1
      %p289 = scmp.eq.s32.totalorder %s73, 1
      %p290 = scmp.ne.s32.totalorder %s285, %s287
      %p291 = scmp.eq.s32.totalorder %s73, 0
      %p292 = por %p290, %p291
      %p293 = scmp.ne.s32.totalorder %s285, %s287
      %p294 = scmp.eq.s32.totalorder %s78, 1
      %p295 = por %p293, %p294
      %p296 = scmp.ne.s32.totalorder %s287, %s288
      %p297 = scmp.eq.s32.totalorder %s78, 0
      %p298 = por %p296, %p297
      %p299 = scmp.ne.s32.totalorder %s287, %s288
      %p300 = scmp.eq.s32.totalorder %s79, 1
      %p301 = por %p299, %p300
      %p303 = scmp.ne.s32.totalorder %s288, %s302
      %p304 = scmp.eq.s32.totalorder %s79, 0
      %p305 = por %p303, %p304
      %s307 = sadd.s32 %s306, 1
      %p310 = scmp.eq.s32.totalorder %s73, 1
      %p311 = scmp.ne.s32.totalorder %s306, %s308
      %p312 = scmp.eq.s32.totalorder %s73, 0
      %p313 = por %p311, %p312
      %p314 = scmp.ne.s32.totalorder %s306, %s308
      %p315 = scmp.eq.s32.totalorder %s78, 1
      %p316 = por %p314, %p315
      %p317 = scmp.ne.s32.totalorder %s308, %s309
      %p318 = scmp.eq.s32.totalorder %s78, 0
      %p319 = por %p317, %p318
      %p320 = scmp.ne.s32.totalorder %s308, %s309
      %p321 = scmp.eq.s32.totalorder %s79, 1
      %p322 = por %p320, %p321
      %p324 = scmp.ne.s32.totalorder %s309, %s323
      %p325 = scmp.eq.s32.totalorder %s79, 0
      %p326 = por %p324, %p325
      %s328 = sadd.s32 %s327, 1
      %p331 = scmp.eq.s32.totalorder %s73, 1
      %p332 = scmp.ne.s32.totalorder %s327, %s329
      %p333 = scmp.eq.s32.totalorder %s73, 0
      %p334 = por %p332, %p333
      %p335 = scmp.ne.s32.totalorder %s327, %s329
      %p336 = scmp.eq.s32.totalorder %s78, 1
      %p337 = por %p335, %p336
      %p338 = scmp.ne.s32.totalorder %s329, %s330
      %p339 = scmp.eq.s32.totalorder %s78, 0
      %p340 = por %p338, %p339
      %p341 = scmp.ne.s32.totalorder %s329, %s330
      %p342 = scmp.eq.s32.totalorder %s79, 1
      %p343 = por %p341, %p342
      %p345 = scmp.ne.s32.totalorder %s330, %s344
      %p346 = scmp.eq.s32.totalorder %s79, 0
      %p347 = por %p345, %p346
      %s349 = sadd.s32 %s348, 1
      %p352 = scmp.eq.s32.totalorder %s73, 1
      %p353 = scmp.ne.s32.totalorder %s348, %s350
      %p354 = scmp.eq.s32.totalorder %s73, 0
      %p355 = por %p353, %p354
      %p356 = scmp.ne.s32.totalorder %s348, %s350
      %p357 = scmp.eq.s32.totalorder %s78, 1
      %p358 = por %p356, %p357
      %p359 = scmp.ne.s32.totalorder %s350, %s351
      %p360 = scmp.eq.s32.totalorder %s78, 0
      %p361 = por %p359, %p360
      %p362 = scmp.ne.s32.totalorder %s350, %s351
      %p363 = scmp.eq.s32.totalorder %s79, 1
      %p364 = por %p362, %p363
      %p366 = scmp.ne.s32.totalorder %s351, %s365
      %p367 = scmp.eq.s32.totalorder %s79, 0
      %p368 = por %p366, %p367
      %s370 = sadd.s32 %s369, 1
      %p373 = scmp.eq.s32.totalorder %s73, 1
      %p374 = scmp.ne.s32.totalorder %s369, %s371
      %p375 = scmp.eq.s32.totalorder %s73, 0
      %p376 = por %p374, %p375
      %p377 = scmp.ne.s32.totalorder %s369, %s371
      %p378 = scmp.eq.s32.totalorder %s78, 1
      %p379 = por %p377, %p378
      %p380 = scmp.ne.s32.totalorder %s371, %s372
      %p381 = scmp.eq.s32.totalorder %s78, 0
      %p382 = por %p380, %p381
      %p383 = scmp.ne.s32.totalorder %s371, %s372
      %p384 = scmp.eq.s32.totalorder %s79, 1
      %p385 = por %p383, %p384
      %p387 = scmp.ne.s32.totalorder %s372, %s386
      %p388 = scmp.eq.s32.totalorder %s79, 0
      %p389 = por %p387, %p388
      %s391 = sadd.s32 %s390, 1
      %p394 = scmp.eq.s32.totalorder %s73, 1
      %p395 = scmp.ne.s32.totalorder %s390, %s392
      %p396 = scmp.eq.s32.totalorder %s73, 0
      %p397 = por %p395, %p396
      %p398 = scmp.ne.s32.totalorder %s390, %s392
      %p399 = scmp.eq.s32.totalorder %s78, 1
      %p400 = por %p398, %p399
      %p401 = scmp.ne.s32.totalorder %s392, %s393
      %p402 = scmp.eq.s32.totalorder %s78, 0
      %p403 = por %p401, %p402
      %p404 = scmp.ne.s32.totalorder %s392, %s393
      %p405 = scmp.eq.s32.totalorder %s79, 1
      %p406 = por %p404, %p405
      %p408 = scmp.ne.s32.totalorder %s393, %s407
      %p409 = scmp.eq.s32.totalorder %s79, 0
      %p410 = por %p408, %p409
      %s412 = sadd.s32 %s411, 1
      %p415 = scmp.eq.s32.totalorder %s73, 1
      %p416 = scmp.ne.s32.totalorder %s411, %s413
      %p417 = scmp.eq.s32.totalorder %s73, 0
      %p418 = por %p416, %p417
      %p419 = scmp.ne.s32.totalorder %s411, %s413
      %p420 = scmp.eq.s32.totalorder %s78, 1
      %p421 = por %p419, %p420
      %p422 = scmp.ne.s32.totalorder %s413, %s414
      %p423 = scmp.eq.s32.totalorder %s78, 0
      %p424 = por %p422, %p423
      %p425 = scmp.ne.s32.totalorder %s413, %s414
      %p426 = scmp.eq.s32.totalorder %s79, 1
      %p427 = por %p425, %p426
      %p429 = scmp.ne.s32.totalorder %s414, %s428
      %p430 = scmp.eq.s32.totalorder %s79, 0
      %p431 = por %p429, %p430
      %s433 = sadd.s32 %s432, 1
      %p436 = scmp.eq.s32.totalorder %s73, 1
      %p437 = scmp.ne.s32.totalorder %s432, %s434
      %p438 = scmp.eq.s32.totalorder %s73, 0
      %p439 = por %p437, %p438
      %p440 = scmp.ne.s32.totalorder %s432, %s434
      %p441 = scmp.eq.s32.totalorder %s78, 1
      %p442 = por %p440, %p441
      %p443 = scmp.ne.s32.totalorder %s434, %s435
      %p444 = scmp.eq.s32.totalorder %s78, 0
      %p445 = por %p443, %p444
      %p446 = scmp.ne.s32.totalorder %s434, %s435
      %p447 = scmp.eq.s32.totalorder %s79, 1
      %p448 = por %p446, %p447
      %p450 = scmp.ne.s32.totalorder %s435, %s449
      %p451 = scmp.eq.s32.totalorder %s79, 0
      %p452 = por %p450, %p451
      %s454 = sadd.s32 %s453, 1
      %p457 = scmp.eq.s32.totalorder %s73, 1
      %p458 = scmp.ne.s32.totalorder %s453, %s455
      %p459 = scmp.eq.s32.totalorder %s73, 0
      %p460 = por %p458, %p459
      %p461 = scmp.ne.s32.totalorder %s453, %s455
      %p462 = scmp.eq.s32.totalorder %s78, 1
      %p463 = por %p461, %p462
      %p464 = scmp.ne.s32.totalorder %s455, %s456
      %p465 = scmp.eq.s32.totalorder %s78, 0
      %p466 = por %p464, %p465
      %p467 = scmp.ne.s32.totalorder %s455, %s456
      %p468 = scmp.eq.s32.totalorder %s79, 1
      %p469 = por %p467, %p468
      %p471 = scmp.ne.s32.totalorder %s456, %s470
      %p472 = scmp.eq.s32.totalorder %s79, 0
      %p473 = por %p471, %p472
      %s475 = sadd.s32 %s474, 1
      %p478 = scmp.eq.s32.totalorder %s73, 1
      %p479 = scmp.ne.s32.totalorder %s474, %s476
      %p480 = scmp.eq.s32.totalorder %s73, 0
      %p481 = por %p479, %p480
      %p482 = scmp.ne.s32.totalorder %s474, %s476
      %p483 = scmp.eq.s32.totalorder %s78, 1
      %p484 = por %p482, %p483
      %p485 = scmp.ne.s32.totalorder %s476, %s477
      %p486 = scmp.eq.s32.totalorder %s78, 0
      %p487 = por %p485, %p486
      %p488 = scmp.ne.s32.totalorder %s476, %s477
      %p489 = scmp.eq.s32.totalorder %s79, 1
      %p490 = por %p488, %p489
      %p492 = scmp.ne.s32.totalorder %s477, %s491
      %p493 = scmp.eq.s32.totalorder %s79, 0
      %p494 = por %p492, %p493
      %s496 = sadd.s32 %s495, 1
      %p499 = scmp.eq.s32.totalorder %s73, 1
      %p500 = scmp.ne.s32.totalorder %s495, %s497
      %p501 = scmp.eq.s32.totalorder %s73, 0
      %p502 = por %p500, %p501
      %p503 = scmp.ne.s32.totalorder %s495, %s497
      %p504 = scmp.eq.s32.totalorder %s78, 1
      %p505 = por %p503, %p504
      %p506 = scmp.ne.s32.totalorder %s497, %s498
      %p507 = scmp.eq.s32.totalorder %s78, 0
      %p508 = por %p506, %p507
      %p509 = scmp.ne.s32.totalorder %s497, %s498
      %p510 = scmp.eq.s32.totalorder %s79, 1
      %p511 = por %p509, %p510
      %p513 = scmp.ne.s32.totalorder %s498, %s512
      %p514 = scmp.eq.s32.totalorder %s79, 0
      %p515 = por %p513, %p514
      %s517 = sadd.s32 %s516, 1
      %p520 = scmp.eq.s32.totalorder %s73, 1
      %p521 = scmp.ne.s32.totalorder %s516, %s518
      %p522 = scmp.eq.s32.totalorder %s73, 0
      %p523 = por %p521, %p522
      %p524 = scmp.ne.s32.totalorder %s516, %s518
      %p525 = scmp.eq.s32.totalorder %s78, 1
      %p526 = por %p524, %p525
      %p527 = scmp.ne.s32.totalorder %s518, %s519
      %p528 = scmp.eq.s32.totalorder %s78, 0
      %p529 = por %p527, %p528
      %p530 = scmp.ne.s32.totalorder %s518, %s519
      %p531 = scmp.eq.s32.totalorder %s79, 1
      %p532 = por %p530, %p531
      %p534 = scmp.ne.s32.totalorder %s519, %s533
      %p535 = scmp.eq.s32.totalorder %s79, 0
      %p536 = por %p534, %p535
      %s538 = sadd.s32 %s537, 1
      %p541 = scmp.eq.s32.totalorder %s73, 1
      %p542 = scmp.ne.s32.totalorder %s537, %s539
      %p543 = scmp.eq.s32.totalorder %s73, 0
      %p544 = por %p542, %p543
      %p545 = scmp.ne.s32.totalorder %s537, %s539
      %p546 = scmp.eq.s32.totalorder %s78, 1
      %p547 = por %p545, %p546
      %p548 = scmp.ne.s32.totalorder %s539, %s540
      %p549 = scmp.eq.s32.totalorder %s78, 0
      %p550 = por %p548, %p549
      %p551 = scmp.ne.s32.totalorder %s539, %s540
      %p552 = scmp.eq.s32.totalorder %s79, 1
      %p553 = por %p551, %p552
      %p555 = scmp.ne.s32.totalorder %s540, %s554
      %p556 = scmp.eq.s32.totalorder %s79, 0
      %p557 = por %p555, %p556
      %s559 = sadd.s32 %s558, 1
      %p562 = scmp.eq.s32.totalorder %s73, 1
      %p563 = scmp.ne.s32.totalorder %s558, %s560
      %p564 = scmp.eq.s32.totalorder %s73, 0
      %p565 = por %p563, %p564
      %p566 = scmp.ne.s32.totalorder %s558, %s560
      %p567 = scmp.eq.s32.totalorder %s78, 1
      %p568 = por %p566, %p567
      %p569 = scmp.ne.s32.totalorder %s560, %s561
      %p570 = scmp.eq.s32.totalorder %s78, 0
      %p571 = por %p569, %p570
      %p572 = scmp.ne.s32.totalorder %s560, %s561
      %p573 = scmp.eq.s32.totalorder %s79, 1
      %p574 = por %p572, %p573
      %p576 = scmp.ne.s32.totalorder %s561, %s575
      %p577 = scmp.eq.s32.totalorder %s79, 0
      %p578 = por %p576, %p577
      %s580 = sadd.s32 %s579, 1
      %p583 = scmp.eq.s32.totalorder %s73, 1
      %p584 = scmp.ne.s32.totalorder %s579, %s581
      %p585 = scmp.eq.s32.totalorder %s73, 0
      %p586 = por %p584, %p585
      %p587 = scmp.ne.s32.totalorder %s579, %s581
      %p588 = scmp.eq.s32.totalorder %s78, 1
      %p589 = por %p587, %p588
      %p590 = scmp.ne.s32.totalorder %s581, %s582
      %p591 = scmp.eq.s32.totalorder %s78, 0
      %p592 = por %p590, %p591
      %p593 = scmp.ne.s32.totalorder %s581, %s582
      %p594 = scmp.eq.s32.totalorder %s79, 1
      %p595 = por %p593, %p594
      %p597 = scmp.ne.s32.totalorder %s582, %s596
      %p598 = scmp.eq.s32.totalorder %s79, 0
      %p599 = por %p597, %p598
      %s601 = sadd.s32 %s600, 1
      %p604 = scmp.eq.s32.totalorder %s73, 1
      %p605 = scmp.ne.s32.totalorder %s600, %s602
      %p606 = scmp.eq.s32.totalorder %s73, 0
      %p607 = por %p605, %p606
      %p608 = scmp.ne.s32.totalorder %s600, %s602
      %p609 = scmp.eq.s32.totalorder %s78, 1
      %p610 = por %p608, %p609
      %p611 = scmp.ne.s32.totalorder %s602, %s603
      %p612 = scmp.eq.s32.totalorder %s78, 0
      %p613 = por %p611, %p612
      %p614 = scmp.ne.s32.totalorder %s602, %s603
      %p615 = scmp.eq.s32.totalorder %s79, 1
      %p616 = por %p614, %p615
      %p618 = scmp.ne.s32.totalorder %s603, %s617
      %p619 = scmp.eq.s32.totalorder %s79, 0
      %p620 = por %p618, %p619
      %s622 = sadd.s32 %s621, 1
      %p625 = scmp.eq.s32.totalorder %s73, 1
      %p626 = scmp.ne.s32.totalorder %s621, %s623
      %p627 = scmp.eq.s32.totalorder %s73, 0
      %p628 = por %p626, %p627
      %p629 = scmp.ne.s32.totalorder %s621, %s623
      %p630 = scmp.eq.s32.totalorder %s78, 1
      %p631 = por %p629, %p630
      %p632 = scmp.ne.s32.totalorder %s623, %s624
      %p633 = scmp.eq.s32.totalorder %s78, 0
      %p634 = por %p632, %p633
      %p635 = scmp.ne.s32.totalorder %s623, %s624
      %p636 = scmp.eq.s32.totalorder %s79, 1
      %p637 = por %p635, %p636
      %p639 = scmp.ne.s32.totalorder %s624, %s638
      %p640 = scmp.eq.s32.totalorder %s79, 0
      %p641 = por %p639, %p640
      %s643 = sadd.s32 %s642, 1
      %p646 = scmp.eq.s32.totalorder %s73, 1
      %p647 = scmp.ne.s32.totalorder %s642, %s644
      %p648 = scmp.eq.s32.totalorder %s73, 0
      %p649 = por %p647, %p648
      %p650 = scmp.ne.s32.totalorder %s642, %s644
      %p651 = scmp.eq.s32.totalorder %s78, 1
      %p652 = por %p650, %p651
      %p653 = scmp.ne.s32.totalorder %s644, %s645
      %p654 = scmp.eq.s32.totalorder %s78, 0
      %p655 = por %p653, %p654
      %p656 = scmp.ne.s32.totalorder %s644, %s645
      %p657 = scmp.eq.s32.totalorder %s79, 1
      %p658 = por %p656, %p657
      %p660 = scmp.ne.s32.totalorder %s645, %s659
      %p661 = scmp.eq.s32.totalorder %s79, 0
      %p662 = por %p660, %p661
      %s664 = sadd.s32 %s663, 1
      %p667 = scmp.eq.s32.totalorder %s73, 1
      %p668 = scmp.ne.s32.totalorder %s663, %s665
      %p669 = scmp.eq.s32.totalorder %s73, 0
      %p670 = por %p668, %p669
      %p671 = scmp.ne.s32.totalorder %s663, %s665
      %p672 = scmp.eq.s32.totalorder %s78, 1
      %p673 = por %p671, %p672
      %p674 = scmp.ne.s32.totalorder %s665, %s666
      %p675 = scmp.eq.s32.totalorder %s78, 0
      %p676 = por %p674, %p675
      %p677 = scmp.ne.s32.totalorder %s665, %s666
      %p678 = scmp.eq.s32.totalorder %s79, 1
      %p679 = por %p677, %p678
      %p681 = scmp.ne.s32.totalorder %s666, %s680
      %p682 = scmp.eq.s32.totalorder %s79, 0
      %p683 = por %p681, %p682
      %s685 = sadd.s32 %s684, 1
      %p688 = scmp.eq.s32.totalorder %s73, 1
      %p689 = scmp.ne.s32.totalorder %s684, %s686
      %p690 = scmp.eq.s32.totalorder %s73, 0
      %p691 = por %p689, %p690
      %p692 = scmp.ne.s32.totalorder %s684, %s686
      %p693 = scmp.eq.s32.totalorder %s78, 1
      %p694 = por %p692, %p693
      %p695 = scmp.ne.s32.totalorder %s686, %s687
      %p696 = scmp.eq.s32.totalorder %s78, 0
      %p697 = por %p695, %p696
      %p698 = scmp.ne.s32.totalorder %s686, %s687
      %p699 = scmp.eq.s32.totalorder %s79, 1
      %p700 = por %p698, %p699
      %p702 = scmp.ne.s32.totalorder %s687, %s701
      %p703 = scmp.eq.s32.totalorder %s79, 0
      %p704 = por %p702, %p703
      %s705 = ssub.s32 %s73, %s80
      %p706 = scmp.eq.s32.totalorder %s705, 0
      %s708 = sadd.s32 %s707, 1
      %s709 = scalar_select %p706, %s707, %s708
      %p712 = pneg %p706
      %p713 = scmp.eq.s32.totalorder %s73, 1
      %p714 = por %p712, %p713
      %p715 = scmp.ne.s32.totalorder %s707, %s710
      %p716 = scmp.eq.s32.totalorder %s73, 0
      %p717 = por %p715, %p716
      %p718 = scmp.ne.s32.totalorder %s707, %s710
      %p719 = scmp.eq.s32.totalorder %s78, 1
      %p720 = por %p718, %p719
      %p721 = scmp.ne.s32.totalorder %s710, %s711
      %p722 = scmp.eq.s32.totalorder %s78, 0
      %p723 = por %p721, %p722
      %p724 = scmp.ne.s32.totalorder %s710, %s711
      %p725 = scmp.eq.s32.totalorder %s79, 1
      %p726 = por %p724, %p725
      %p728 = scmp.ne.s32.totalorder %s711, %s727
      %p729 = scmp.eq.s32.totalorder %s79, 0
      %p730 = por %p728, %p729
      %p731 = scmp.le.s32.totalorder 1, %s73
      %p732 = scmp.lt.s32.totalorder %s73, 3
      %p733 = pnand %p731, %p732
      %p734 = pneg %p733
      // Predicated region
      $region9: #{vl_transformer_itm.13} parent=5 // pred_check
        _
      $region10: #{vl_transformer_itm.13} parent=5 // pred_check_branch
        %736 = sbr.rel (%p733) target = $region12
      $region11: #{vl_transformer_itm.13} parent=5 // pred_region
        %s737 = ssub.s32 %s73, 1
        // Predicated region
        $region13: #{vl_transformer_itm.13} parent=11 // pred_check
          %p738 = pneg %p172
        $region14: #{vl_transformer_itm.13} parent=11 // pred_check_branch
          %740 = sbr.rel (%p738) target = $region16
        $region15: #{vl_transformer_itm.13} parent=11 // pred_region
          _
        $region16: #{vl_transformer_itm.13} parent=11 // pred_fallthru
          _
        // Predicated region
        $region17: #{vl_transformer_itm.13} parent=11 // pred_check
          %p741 = pneg %p193
        $region18: #{vl_transformer_itm.13} parent=11 // pred_check_branch
          %743 = sbr.rel (%p741) target = $region20
        $region19: #{vl_transformer_itm.13} parent=11 // pred_region
          %745 = vsyncadd [#allocation3], 0
          %s747 = sshll.u32 %s9, 4
          %s748 = int_to_ptr.hbm [resolvable:$true] %s747
          %s749 = sshll.u32 [#allocation2], 4
          %s750 = int_to_ptr.vmem [resolvable:$true] %s749
          %752 = dma.hbm_to_vmem [thread:$0]  %s748, 16, %s750, [#allocation3]
        $region20: #{vl_transformer_itm.13} parent=11 // pred_fallthru
          _
        // Predicated region
        $region21: #{vl_transformer_itm.13} parent=11 // pred_check
          %p753 = pneg %p214
        $region22: #{vl_transformer_itm.13} parent=11 // pred_check_branch
          %755 = sbr.rel (%p753) target = $region24
        $region23: #{vl_transformer_itm.13} parent=11 // pred_region
          _
        $region24: #{vl_transformer_itm.13} parent=11 // pred_fallthru
          _
        // Predicated region
        $region25: #{vl_transformer_itm.13} parent=11 // pred_check
          %p756 = pneg %p235
        $region26: #{vl_transformer_itm.13} parent=11 // pred_check_branch
          %758 = sbr.rel (%p756) target = $region28
        $region27: #{vl_transformer_itm.13} parent=11 // pred_region
          %760 = vsyncadd [#allocation5], 0
          %s762 = sshll.u32 %s13, 4
          %s763 = int_to_ptr.hbm [resolvable:$true] %s762
          %s764 = sshll.u32 [#allocation4], 4
          %s765 = int_to_ptr.vmem [resolvable:$true] %s764
          %767 = dma.hbm_to_vmem [thread:$0]  %s763, 16, %s765, [#allocation5]
        $region28: #{vl_transformer_itm.13} parent=11 // pred_fallthru
          _
        // Predicated region
        $region29: #{vl_transformer_itm.13} parent=11 // pred_check
          %p768 = pneg %p256
        $region30: #{vl_transformer_itm.13} parent=11 // pred_check_branch
          %770 = sbr.rel (%p768) target = $region32
        $region31: #{vl_transformer_itm.13} parent=11 // pred_region
          _
        $region32: #{vl_transformer_itm.13} parent=11 // pred_fallthru
          _
        // Predicated region
        $region33: #{vl_transformer_itm.13} parent=11 // pred_check
          %p771 = pneg %p277
        $region34: #{vl_transformer_itm.13} parent=11 // pred_check_branch
          %773 = sbr.rel (%p771) target = $region36
        $region35: #{vl_transformer_itm.13} parent=11 // pred_region
          %775 = vsyncadd [#allocation5], 0
          %s777 = sshll.u32 %s17, 4
          %s778 = int_to_ptr.hbm [resolvable:$true] %s777
          %s779 = sshll.u32 [#allocation6], 4
          %s780 = int_to_ptr.vmem [resolvable:$true] %s779
          %782 = dma.hbm_to_vmem [thread:$0]  %s778, 16, %s780, [#allocation5]
        $region36: #{vl_transformer_itm.13} parent=11 // pred_fallthru
          _
        // Predicated region
        $region37: #{vl_transformer_itm.13} parent=11 // pred_check
          %p783 = pneg %p298
        $region38: #{vl_transformer_itm.13} parent=11 // pred_check_branch
          %785 = sbr.rel (%p783) target = $region40
        $region39: #{vl_transformer_itm.13} parent=11 // pred_region
          _
        $region40: #{vl_transformer_itm.13} parent=11 // pred_fallthru
          _
        // Predicated region
        $region41: #{vl_transformer_itm.13} parent=11 // pred_check
          %p786 = pneg %p319
        $region42: #{vl_transformer_itm.13} parent=11 // pred_check_branch
          %788 = sbr.rel (%p786) target = $region44
        $region43: #{vl_transformer_itm.13} parent=11 // pred_region
          %790 = vsyncadd [#allocation8], 0
          %s792 = sshll.u32 %s21, 4
          %s793 = int_to_ptr.hbm [resolvable:$true] %s792
          %s794 = sshll.u32 [#allocation7], 4
          %s795 = int_to_ptr.vmem [resolvable:$true] %s794
          %797 = dma.hbm_to_vmem [thread:$0]  %s793, 16, %s795, [#allocation8]
        $region44: #{vl_transformer_itm.13} parent=11 // pred_fallthru
          _
        // Predicated region
        $region45: #{vl_transformer_itm.13} parent=11 // pred_check
          %p798 = pneg %p340
        $region46: #{vl_transformer_itm.13} parent=11 // pred_check_branch
          %800 = sbr.rel (%p798) target = $region48
        $region47: #{vl_transformer_itm.13} parent=11 // pred_region
          %802 = vsyncadd [#allocation8], 0
          %s804 = sshll.u32 %s23, 4
          %s805 = int_to_ptr.hbm [resolvable:$true] %s804
          %s806 = sshll.u32 [#allocation9], 4
          %s807 = int_to_ptr.vmem [resolvable:$true] %s806
          %809 = dma.hbm_to_vmem [thread:$0]  %s805, 16, %s807, [#allocation8]
        $region48: #{vl_transformer_itm.13} parent=11 // pred_fallthru
          _
        // Predicated region
        $region49: #{vl_transformer_itm.13} parent=11 // pred_check
          %p810 = pneg %p361
        $region50: #{vl_transformer_itm.13} parent=11 // pred_check_branch
          %812 = sbr.rel (%p810) target = $region52
        $region51: #{vl_transformer_itm.13} parent=11 // pred_region
          %814 = vsyncadd [#allocation11], 0
          %s816 = sshll.u32 %s25, 4
          %s817 = int_to_ptr.hbm [resolvable:$true] %s816
          %s818 = sshll.u32 [#allocation10], 4
          %s819 = int_to_ptr.vmem [resolvable:$true] %s818
          %821 = dma.hbm_to_vmem [thread:$0]  %s817, 16, %s819, [#allocation11]
        $region52: #{vl_transformer_itm.13} parent=11 // pred_fallthru
          _
        // Predicated region
        $region53: #{vl_transformer_itm.13} parent=11 // pred_check
          %p822 = pneg %p382
        $region54: #{vl_transformer_itm.13} parent=11 // pred_check_branch
          %824 = sbr.rel (%p822) target = $region56
        $region55: #{vl_transformer_itm.13} parent=11 // pred_region
          _
        $region56: #{vl_transformer_itm.13} parent=11 // pred_fallthru
          _
        // Predicated region
        $region57: #{vl_transformer_itm.13} parent=11 // pred_check
          %p825 = pneg %p403
        $region58: #{vl_transformer_itm.13} parent=11 // pred_check_branch
          %827 = sbr.rel (%p825) target = $region60
        $region59: #{vl_transformer_itm.13} parent=11 // pred_region
          %829 = vsyncadd [#allocation11], 0
          %s831 = sshll.u32 %s29, 4
          %s832 = int_to_ptr.hbm [resolvable:$true] %s831
          %s833 = sshll.u32 [#allocation12], 4
          %s834 = int_to_ptr.vmem [resolvable:$true] %s833
          %836 = dma.hbm_to_vmem [thread:$0]  %s832, 16, %s834, [#allocation11]
        $region60: #{vl_transformer_itm.13} parent=11 // pred_fallthru
          _
        // Predicated region
        $region61: #{vl_transformer_itm.13} parent=11 // pred_check
          %p837 = pneg %p424
        $region62: #{vl_transformer_itm.13} parent=11 // pred_check_branch
          %839 = sbr.rel (%p837) target = $region64
        $region63: #{vl_transformer_itm.13} parent=11 // pred_region
          _
        $region64: #{vl_transformer_itm.13} parent=11 // pred_fallthru
          _
        // Predicated region
        $region65: #{vl_transformer_itm.13} parent=11 // pred_check
          %p840 = pneg %p445
        $region66: #{vl_transformer_itm.13} parent=11 // pred_check_branch
          %842 = sbr.rel (%p840) target = $region68
        $region67: #{vl_transformer_itm.13} parent=11 // pred_region
          %844 = vsyncadd [#allocation14], 0
          %s846 = sshll.u32 %s33, 4
          %s847 = int_to_ptr.hbm [resolvable:$true] %s846
          %s848 = sshll.u32 [#allocation13], 4
          %s849 = int_to_ptr.vmem [resolvable:$true] %s848
          %851 = dma.hbm_to_vmem [thread:$0]  %s847, 16, %s849, [#allocation14]
        $region68: #{vl_transformer_itm.13} parent=11 // pred_fallthru
          _
        // Predicated region
        $region69: #{vl_transformer_itm.13} parent=11 // pred_check
          %p852 = pneg %p466
        $region70: #{vl_transformer_itm.13} parent=11 // pred_check_branch
          %854 = sbr.rel (%p852) target = $region72
        $region71: #{vl_transformer_itm.13} parent=11 // pred_region
          _
        $region72: #{vl_transformer_itm.13} parent=11 // pred_fallthru
          _
        // Predicated region
        $region73: #{vl_transformer_itm.13} parent=11 // pred_check
          %p855 = pneg %p487
        $region74: #{vl_transformer_itm.13} parent=11 // pred_check_branch
          %857 = sbr.rel (%p855) target = $region76
        $region75: #{vl_transformer_itm.13} parent=11 // pred_region
          %859 = vsyncadd [#allocation14], 0
          %s861 = sshll.u32 %s37, 4
          %s862 = int_to_ptr.hbm [resolvable:$true] %s861
          %s863 = sshll.u32 [#allocation15], 4
          %s864 = int_to_ptr.vmem [resolvable:$true] %s863
          %866 = dma.hbm_to_vmem [thread:$0]  %s862, 16, %s864, [#allocation14]
        $region76: #{vl_transformer_itm.13} parent=11 // pred_fallthru
          _
        // Predicated region
        $region77: #{vl_transformer_itm.13} parent=11 // pred_check
          %p867 = pneg %p508
        $region78: #{vl_transformer_itm.13} parent=11 // pred_check_branch
          %869 = sbr.rel (%p867) target = $region80
        $region79: #{vl_transformer_itm.13} parent=11 // pred_region
          _
        $region80: #{vl_transformer_itm.13} parent=11 // pred_fallthru
          _
        // Predicated region
        $region81: #{vl_transformer_itm.13} parent=11 // pred_check
          %p870 = pneg %p529
        $region82: #{vl_transformer_itm.13} parent=11 // pred_check_branch
          %872 = sbr.rel (%p870) target = $region84
        $region83: #{vl_transformer_itm.13} parent=11 // pred_region
          %874 = vsyncadd [#allocation17], 0
          %s876 = sshll.u32 %s41, 4
          %s877 = int_to_ptr.hbm [resolvable:$true] %s876
          %s878 = sshll.u32 [#allocation16], 4
          %s879 = int_to_ptr.vmem [resolvable:$true] %s878
          %881 = dma.hbm_to_vmem [thread:$0]  %s877, 16, %s879, [#allocation17]
        $region84: #{vl_transformer_itm.13} parent=11 // pred_fallthru
          _
        // Predicated region
        $region85: #{vl_transformer_itm.13} parent=11 // pred_check
          %p882 = pneg %p550
        $region86: #{vl_transformer_itm.13} parent=11 // pred_check_branch
          %884 = sbr.rel (%p882) target = $region88
        $region87: #{vl_transformer_itm.13} parent=11 // pred_region
          %886 = vsyncadd [#allocation17], 0
          %s888 = sshll.u32 %s43, 4
          %s889 = int_to_ptr.hbm [resolvable:$true] %s888
          %s890 = sshll.u32 [#allocation18], 4
          %s891 = int_to_ptr.vmem [resolvable:$true] %s890
          %893 = dma.hbm_to_vmem [thread:$0]  %s889, 16, %s891, [#allocation17]
        $region88: #{vl_transformer_itm.13} parent=11 // pred_fallthru
          _
        // Predicated region
        $region89: #{vl_transformer_itm.13} parent=11 // pred_check
          %p894 = pneg %p571
        $region90: #{vl_transformer_itm.13} parent=11 // pred_check_branch
          %896 = sbr.rel (%p894) target = $region92
        $region91: #{vl_transformer_itm.13} parent=11 // pred_region
          %898 = vsyncadd [#allocation20], 0
          %s900 = sshll.u32 %s45, 4
          %s901 = int_to_ptr.hbm [resolvable:$true] %s900
          %s902 = sshll.u32 [#allocation19], 4
          %s903 = int_to_ptr.vmem [resolvable:$true] %s902
          %905 = dma.hbm_to_vmem [thread:$0]  %s901, 16, %s903, [#allocation20]
        $region92: #{vl_transformer_itm.13} parent=11 // pred_fallthru
          _
        // Predicated region
        $region93: #{vl_transformer_itm.13} parent=11 // pred_check
          %p906 = pneg %p592
        $region94: #{vl_transformer_itm.13} parent=11 // pred_check_branch
          %908 = sbr.rel (%p906) target = $region96
        $region95: #{vl_transformer_itm.13} parent=11 // pred_region
          _
        $region96: #{vl_transformer_itm.13} parent=11 // pred_fallthru
          _
        // Predicated region
        $region97: #{vl_transformer_itm.13} parent=11 // pred_check
          %p909 = pneg %p613
        $region98: #{vl_transformer_itm.13} parent=11 // pred_check_branch
          %911 = sbr.rel (%p909) target = $region100
        $region99: #{vl_transformer_itm.13} parent=11 // pred_region
          _
        $region100: #{vl_transformer_itm.13} parent=11 // pred_fallthru
          _
        // Predicated region
        $region101: #{vl_transformer_itm.13} parent=11 // pred_check
          %p912 = pneg %p634
        $region102: #{vl_transformer_itm.13} parent=11 // pred_check_branch
          %914 = sbr.rel (%p912) target = $region104
        $region103: #{vl_transformer_itm.13} parent=11 // pred_region
          _
        $region104: #{vl_transformer_itm.13} parent=11 // pred_fallthru
          _
        // Predicated region
        $region105: #{vl_transformer_itm.13} parent=11 // pred_check
          %p915 = pneg %p655
        $region106: #{vl_transformer_itm.13} parent=11 // pred_check_branch
          %917 = sbr.rel (%p915) target = $region108
        $region107: #{vl_transformer_itm.13} parent=11 // pred_region
          %919 = vsyncadd [#allocation20], 0
          %s921 = sshll.u32 %s53, 4
          %s922 = int_to_ptr.hbm [resolvable:$true] %s921
          %s923 = sshll.u32 [#allocation21], 4
          %s924 = int_to_ptr.vmem [resolvable:$true] %s923
          %926 = dma.hbm_to_vmem [thread:$0]  %s922, 16, %s924, [#allocation20]
        $region108: #{vl_transformer_itm.13} parent=11 // pred_fallthru
          _
        // Predicated region
        $region109: #{vl_transformer_itm.13} parent=11 // pred_check
          %p927 = pneg %p676
        $region110: #{vl_transformer_itm.13} parent=11 // pred_check_branch
          %929 = sbr.rel (%p927) target = $region112
        $region111: #{vl_transformer_itm.13} parent=11 // pred_region
          %931 = vsyncadd [#allocation23], 0
          %s933 = sshll.u32 %s55, 4
          %s934 = int_to_ptr.hbm [resolvable:$true] %s933
          %s935 = sshll.u32 [#allocation22], 4
          %s936 = int_to_ptr.vmem [resolvable:$true] %s935
          %938 = dma.hbm_to_vmem [thread:$0]  %s934, 16, %s936, [#allocation23]
        $region112: #{vl_transformer_itm.13} parent=11 // pred_fallthru
          _
        // Predicated region
        $region113: #{vl_transformer_itm.13} parent=11 // pred_check
          %p939 = pneg %p697
        $region114: #{vl_transformer_itm.13} parent=11 // pred_check_branch
          %941 = sbr.rel (%p939) target = $region116
        $region115: #{vl_transformer_itm.13} parent=11 // pred_region
          %943 = vsyncadd [#allocation23], 0
          %s945 = sshll.u32 %s57, 4
          %s946 = int_to_ptr.hbm [resolvable:$true] %s945
          %s947 = sshll.u32 [#allocation24], 4
          %s948 = int_to_ptr.vmem [resolvable:$true] %s947
          %950 = dma.hbm_to_vmem [thread:$0]  %s946, 16, %s948, [#allocation23]
        $region116: #{vl_transformer_itm.13} parent=11 // pred_fallthru
          _
      $region12: #{vl_transformer_itm.13} parent=5 // pred_fallthru
        _
      %p951 = scmp.lt.s32.totalorder %s73, 2
      // Predicated region
      $region117: #{vl_transformer_itm.13} parent=5 // pred_check
        %p952 = pneg %p951
      $region118: #{vl_transformer_itm.13} parent=5 // pred_check_branch
        %954 = sbr.rel (%p952) target = $region120
      $region119: #{vl_transformer_itm.13} parent=5 // pred_region
        // Predicated region
        $region121: #{vl_transformer_itm.13} parent=119 // pred_check
          %p955 = pneg %p93
        $region122: #{vl_transformer_itm.13} parent=119 // pred_check_branch
          %957 = sbr.rel (%p955) target = $region124
        $region123: #{vl_transformer_itm.13} parent=119 // pred_region
          %p958 = scmp.lt.s32.totalorder %s73, 1
          %s959 = scalar_select %p958, %s73, 1
          %s960 = smul.addr %s959, 8
          %s961 = scalar_lea.vmem %s1, %s960
        $region124: #{vl_transformer_itm.13} parent=119 // pred_fallthru
          _
        // Predicated region
        $region125: #{vl_transformer_itm.13} parent=119 // pred_check
          %p962 = pneg %p119
        $region126: #{vl_transformer_itm.13} parent=119 // pred_check_branch
          %964 = sbr.rel (%p962) target = $region128
        $region127: #{vl_transformer_itm.13} parent=119 // pred_region
          %p965 = scmp.lt.s32.totalorder %s73, 1
          %s966 = scalar_select %p965, %s73, 1
          %s967 = smul.addr %s966, 3
          %s968 = smul.addr %s967, 8
          %s969 = scalar_lea.vmem %s3, %s968
        $region128: #{vl_transformer_itm.13} parent=119 // pred_fallthru
          _
        // Predicated region
        $region129: #{vl_transformer_itm.13} parent=119 // pred_check
          %p970 = pneg %p145
        $region130: #{vl_transformer_itm.13} parent=119 // pred_check_branch
          %972 = sbr.rel (%p970) target = $region132
        $region131: #{vl_transformer_itm.13} parent=119 // pred_region
          %p973 = scmp.lt.s32.totalorder %s73, 1
          %s974 = scalar_select %p973, %s73, 1
          %s975 = scalar_lea.vmem %s5, %s974
        $region132: #{vl_transformer_itm.13} parent=119 // pred_fallthru
          _
      $region120: #{vl_transformer_itm.13} parent=5 // pred_fallthru
        _
      %p976 = scmp.le.s32.totalorder 1, %s73
      %p977 = scmp.lt.s32.totalorder %s73, 3
      %p978 = pnand %p976, %p977
      %p979 = pneg %p978
      // Predicated region
      $region133: #{vl_transformer_itm.13} parent=5 // pred_check
        _
      $region134: #{vl_transformer_itm.13} parent=5 // pred_check_branch
        %981 = sbr.rel (%p978) target = $region136
      $region135: #{vl_transformer_itm.13} parent=5 // pred_region
        %s982 = ssub.s32 %s73, 1
        // Predicated region
        $region137: #{vl_transformer_itm.13} parent=135 // pred_check
          %p983 = pneg %p193
        $region138: #{vl_transformer_itm.13} parent=135 // pred_check_branch
          %985 = sbr.rel (%p983) target = $region140
        $region139: #{vl_transformer_itm.13} parent=135 // pred_region
          %987 = dma.done [#allocation3], 16
        $region140: #{vl_transformer_itm.13} parent=135 // pred_fallthru
          _
        // Predicated region
        $region141: #{vl_transformer_itm.13} parent=135 // pred_check
          %p988 = pneg %p235
        $region142: #{vl_transformer_itm.13} parent=135 // pred_check_branch
          %990 = sbr.rel (%p988) target = $region144
        $region143: #{vl_transformer_itm.13} parent=135 // pred_region
          %992 = dma.done [#allocation5], 16
        $region144: #{vl_transformer_itm.13} parent=135 // pred_fallthru
          _
        // Predicated region
        $region145: #{vl_transformer_itm.13} parent=135 // pred_check
          %p993 = pneg %p277
        $region146: #{vl_transformer_itm.13} parent=135 // pred_check_branch
          %995 = sbr.rel (%p993) target = $region148
        $region147: #{vl_transformer_itm.13} parent=135 // pred_region
          %997 = dma.done [#allocation5], 16
        $region148: #{vl_transformer_itm.13} parent=135 // pred_fallthru
          _
        // Predicated region
        $region149: #{vl_transformer_itm.13} parent=135 // pred_check
          %p998 = pneg %p319
        $region150: #{vl_transformer_itm.13} parent=135 // pred_check_branch
          %1000 = sbr.rel (%p998) target = $region152
        $region151: #{vl_transformer_itm.13} parent=135 // pred_region
          %1002 = dma.done [#allocation8], 16
        $region152: #{vl_transformer_itm.13} parent=135 // pred_fallthru
          _
        // Predicated region
        $region153: #{vl_transformer_itm.13} parent=135 // pred_check
          %p1003 = pneg %p340
        $region154: #{vl_transformer_itm.13} parent=135 // pred_check_branch
          %1005 = sbr.rel (%p1003) target = $region156
        $region155: #{vl_transformer_itm.13} parent=135 // pred_region
          %1007 = dma.done [#allocation8], 16
        $region156: #{vl_transformer_itm.13} parent=135 // pred_fallthru
          _
        // Predicated region
        $region157: #{vl_transformer_itm.13} parent=135 // pred_check
          %p1008 = pneg %p361
        $region158: #{vl_transformer_itm.13} parent=135 // pred_check_branch
          %1010 = sbr.rel (%p1008) target = $region160
        $region159: #{vl_transformer_itm.13} parent=135 // pred_region
          %1012 = dma.done [#allocation11], 16
        $region160: #{vl_transformer_itm.13} parent=135 // pred_fallthru
          _
        // Predicated region
        $region161: #{vl_transformer_itm.13} parent=135 // pred_check
          %p1013 = pneg %p403
        $region162: #{vl_transformer_itm.13} parent=135 // pred_check_branch
          %1015 = sbr.rel (%p1013) target = $region164
        $region163: #{vl_transformer_itm.13} parent=135 // pred_region
          %1017 = dma.done [#allocation11], 16
        $region164: #{vl_transformer_itm.13} parent=135 // pred_fallthru
          _
        // Predicated region
        $region165: #{vl_transformer_itm.13} parent=135 // pred_check
          %p1018 = pneg %p445
        $region166: #{vl_transformer_itm.13} parent=135 // pred_check_branch
          %1020 = sbr.rel (%p1018) target = $region168
        $region167: #{vl_transformer_itm.13} parent=135 // pred_region
          %1022 = dma.done [#allocation14], 16
        $region168: #{vl_transformer_itm.13} parent=135 // pred_fallthru
          _
        // Predicated region
        $region169: #{vl_transformer_itm.13} parent=135 // pred_check
          %p1023 = pneg %p487
        $region170: #{vl_transformer_itm.13} parent=135 // pred_check_branch
          %1025 = sbr.rel (%p1023) target = $region172
        $region171: #{vl_transformer_itm.13} parent=135 // pred_region
          %1027 = dma.done [#allocation14], 16
        $region172: #{vl_transformer_itm.13} parent=135 // pred_fallthru
          _
        // Predicated region
        $region173: #{vl_transformer_itm.13} parent=135 // pred_check
          %p1028 = pneg %p529
        $region174: #{vl_transformer_itm.13} parent=135 // pred_check_branch
          %1030 = sbr.rel (%p1028) target = $region176
        $region175: #{vl_transformer_itm.13} parent=135 // pred_region
          %1032 = dma.done [#allocation17], 16
        $region176: #{vl_transformer_itm.13} parent=135 // pred_fallthru
          _
        // Predicated region
        $region177: #{vl_transformer_itm.13} parent=135 // pred_check
          %p1033 = pneg %p550
        $region178: #{vl_transformer_itm.13} parent=135 // pred_check_branch
          %1035 = sbr.rel (%p1033) target = $region180
        $region179: #{vl_transformer_itm.13} parent=135 // pred_region
          %1037 = dma.done [#allocation17], 16
        $region180: #{vl_transformer_itm.13} parent=135 // pred_fallthru
          _
        // Predicated region
        $region181: #{vl_transformer_itm.13} parent=135 // pred_check
          %p1038 = pneg %p571
        $region182: #{vl_transformer_itm.13} parent=135 // pred_check_branch
          %1040 = sbr.rel (%p1038) target = $region184
        $region183: #{vl_transformer_itm.13} parent=135 // pred_region
          %1042 = dma.done [#allocation20], 16
        $region184: #{vl_transformer_itm.13} parent=135 // pred_fallthru
          _
        // Predicated region
        $region185: #{vl_transformer_itm.13} parent=135 // pred_check
          %p1043 = pneg %p655
        $region186: #{vl_transformer_itm.13} parent=135 // pred_check_branch
          %1045 = sbr.rel (%p1043) target = $region188
        $region187: #{vl_transformer_itm.13} parent=135 // pred_region
          %1047 = dma.done [#allocation20], 16
        $region188: #{vl_transformer_itm.13} parent=135 // pred_fallthru
          _
        // Predicated region
        $region189: #{vl_transformer_itm.13} parent=135 // pred_check
          %p1048 = pneg %p676
        $region190: #{vl_transformer_itm.13} parent=135 // pred_check_branch
          %1050 = sbr.rel (%p1048) target = $region192
        $region191: #{vl_transformer_itm.13} parent=135 // pred_region
          %1052 = dma.done [#allocation23], 16
        $region192: #{vl_transformer_itm.13} parent=135 // pred_fallthru
          _
        // Predicated region
        $region193: #{vl_transformer_itm.13} parent=135 // pred_check
          %p1053 = pneg %p697
        $region194: #{vl_transformer_itm.13} parent=135 // pred_check_branch
          %1055 = sbr.rel (%p1053) target = $region196
        $region195: #{vl_transformer_itm.13} parent=135 // pred_region
          %1057 = dma.done [#allocation23], 16
        $region196: #{vl_transformer_itm.13} parent=135 // pred_fallthru
          _
        %p1058 = scmp.lt.s32.totalorder %s78, 1
        %s1059 = scalar_select %p1058, %s78, 1
        %s1060 = smul.addr %s1059, 8
        %s1061 = scalar_lea.vmem %s1, %s1060
        %p1062 = pneg %p99
        %p1063 = pneg %p96
        %p1064 = scmp.lt.s32.totalorder %s78, 1
        %s1065 = scalar_select %p1064, %s78, 1
        %s1066 = smul.addr %s1065, 3
        %s1067 = smul.addr %s1066, 8
        %s1068 = scalar_lea.vmem %s3, %s1067
        %p1069 = pneg %p125
        %p1070 = pneg %p122
        %p1071 = scmp.lt.s32.totalorder %s78, 1
        %s1072 = scalar_select %p1071, %s78, 1
        %s1073 = scalar_lea.vmem %s5, %s1072
        %p1074 = pneg %p151
        %p1075 = pneg %p148
        %p1076 = pneg %p172
        %p1077 = pneg %p169
        %p1078 = pneg %p193
        %p1079 = pneg %p190
        %p1080 = pneg %p214
        %p1081 = pneg %p211
        %p1082 = pneg %p235
        %p1083 = pneg %p232
        %p1084 = pneg %p256
        %p1085 = pneg %p253
        %p1086 = pneg %p277
        %p1087 = pneg %p274
        %p1088 = pneg %p298
        %p1089 = pneg %p295
        %p1090 = pneg %p319
        %p1091 = pneg %p316
        %p1092 = pneg %p340
        %p1093 = pneg %p337
        %p1094 = pneg %p361
        %p1095 = pneg %p358
        %p1096 = pneg %p382
        %p1097 = pneg %p379
        %p1098 = pneg %p403
        %p1099 = pneg %p400
        %p1100 = pneg %p424
        %p1101 = pneg %p421
        %p1102 = pneg %p445
        %p1103 = pneg %p442
        %p1104 = pneg %p466
        %p1105 = pneg %p463
        %p1106 = pneg %p487
        %p1107 = pneg %p484
        %p1108 = pneg %p508
        %p1109 = pneg %p505
        %p1110 = pneg %p529
        %p1111 = pneg %p526
        %p1112 = pneg %p550
        %p1113 = pneg %p547
        %p1114 = pneg %p571
        %p1115 = pneg %p568
        %p1116 = pneg %p592
        %p1117 = pneg %p589
        %p1118 = pneg %p613
        %p1119 = pneg %p610
        %p1120 = pneg %p634
        %p1121 = pneg %p631
        %p1122 = pneg %p655
        %p1123 = pneg %p652
        %p1124 = pneg %p676
        %p1125 = pneg %p673
        %p1126 = pneg %p697
        %p1127 = pneg %p694
        %p1128 = pneg %p723
        %p1129 = pneg %p720
        %p1130 = scmp.lt.s32.totalorder %s78, 1
        %s1131 = scalar_select %p1130, %s78, 1
        %s1132 = smul.addr %s1131, 8
        %s1133 = scalar_lea.vmem %s59, %s1132
        %p1134 = scmp.lt.s32.totalorder %s78, 1
        %s1135 = scalar_select %p1134, %s78, 1
        %s1136 = smul.addr %s1135, 8
        %s1137 = scalar_lea.vmem %s1, %s1136
        %p1138 = scmp.lt.s32.totalorder %s78, 1
        %s1139 = scalar_select %p1138, %s78, 1
        %s1140 = smul.addr %s1139, 3
        %s1141 = smul.addr %s1140, 8
        %s1142 = scalar_lea.vmem %s3, %s1141
        %p1143 = scmp.lt.s32.totalorder %s78, 1
        %s1144 = scalar_select %p1143, %s78, 1
        %s1145 = scalar_lea.vmem %s5, %s1144
        %p1146 = scmp.lt.s32.totalorder %s78, 1
        %s1147 = scalar_select %p1146, %s78, 1
        %s1148 = smul.addr %s1147, 8
        %s1149 = scalar_lea.vmem %s59, %s1148
        %v1150 = vld [vmem:[%s1137] sm:$0xff]
        %v1151 = vld [vmem:[%s1142] sm:$0xff]
        %v1152 = vld [vmem:[%s1142 + $0x8] sm:$0xff]
        %v1153 = vld [vmem:[%s1142 + $0x10] sm:$0x1]
        %v1154 = vld [vmem:[%s1145] sm:$0x1]
        %v1155 = vsub.f32 1.0, %v1154
        %v1156 = vmul.f32 %v1155, -10000.0
        %v1157 = vld [vmem:[%s7] sm:$0xff]
        %v1158 = vld [vmem:[%s7 + $0x8] sm:$0xff]
        %v1159 = vld [vmem:[%s7 + $0x10] sm:$0xff]
        %v1160 = vld [vmem:[%s7 + $0x18] sm:$0xff]
        %v1161 = vld [vmem:[%s7 + $0x20] sm:$0xff]
        %v1162 = vld [vmem:[%s7 + $0x28] sm:$0xff]
        %v1163 = vld [vmem:[%s7 + $0x30] sm:$0xff]
        %v1164 = vld [vmem:[%s7 + $0x38] sm:$0xff]
        %v1165 = vld [vmem:[#allocation2] sm:$0x1]
        %v1167 = vperm.slane %v1165, 0
        %vm1169 = vcmask 523264
        %v1171 = vsel %vm1169, %v1150, 0
        %1173 = vmatpush.msra.mxu0 0.0
        %1174 = vmatpush.msra.mxu0 0.0
        %1175 = vmatpush.msra.mxu0 0.0
        %1176 = vmatpush.msra.mxu0 0.0
        %1177 = vmatpush.msra.mxu0 0.0
        %1178 = vmatpush.msra.mxu0 0.0
        %1179 = vmatpush.msra.mxu0 0.0
        %1180 = vmatpush.msra.mxu0 0.0
        %1181 = vmatpush.msra.mxu0 %v1164
        %1182 = vmatpush.msra.mxu0 %v1163
        %1183 = vmatpush.msra.mxu0 %v1162
        %1184 = vmatpush.msra.mxu0 %v1161
        %1185 = vmatpush.msra.mxu0 %v1160
        %1186 = vmatpush.msra.mxu0 %v1159
        %1187 = vmatpush.msra.mxu0 %v1158
        %1188 = vmatpush.msra.mxu0 %v1157
        %1189 = vmatmul.f32.gmra.mxu0 %v1171
        %v1190 = vpop.f32.mrf.mxu0
        %v1191 = vadd.f32 %v1167, %v1190
        %1192 = vdwg.mxu0
        %v1193 = vld [vmem:[%s11] sm:$0xff]
        %v1194 = vld [vmem:[%s11 + $0x8] sm:$0xff]
        %v1195 = vld [vmem:[%s11 + $0x10] sm:$0xff]
        %v1196 = vld [vmem:[%s11 + $0x18] sm:$0xff]
        %v1197 = vld [vmem:[%s11 + $0x20] sm:$0xff]
        %v1198 = vld [vmem:[%s11 + $0x28] sm:$0xff]
        %v1199 = vld [vmem:[%s11 + $0x30] sm:$0xff]
        %v1200 = vld [vmem:[%s11 + $0x38] sm:$0xff]
        %v1201 = vld [vmem:[#allocation4] sm:$0x1]
        %v1203 = vperm.slane %v1201, 0
        %1205 = vmatpush.msra.mxu0 0.0
        %1206 = vmatpush.msra.mxu0 0.0
        %1207 = vmatpush.msra.mxu0 0.0
        %1208 = vmatpush.msra.mxu0 0.0
        %1209 = vmatpush.msra.mxu0 0.0
        %1210 = vmatpush.msra.mxu0 0.0
        %1211 = vmatpush.msra.mxu0 0.0
        %1212 = vmatpush.msra.mxu0 0.0
        %1213 = vmatpush.msra.mxu0 %v1200
        %1214 = vmatpush.msra.mxu0 %v1199
        %1215 = vmatpush.msra.mxu0 %v1198
        %1216 = vmatpush.msra.mxu0 %v1197
        %1217 = vmatpush.msra.mxu0 %v1196
        %1218 = vmatpush.msra.mxu0 %v1195
        %1219 = vmatpush.msra.mxu0 %v1194
        %1220 = vmatpush.msra.mxu0 %v1193
        %1221 = vmatmul.f32.gmra.mxu0 %v1171
        %v1222 = vpop.f32.mrf.mxu0
        %v1223 = vadd.f32 %v1203, %v1222
        %1224 = vdwg.mxu0
        %v1225 = vld [vmem:[%s15] sm:$0xff]
        %v1226 = vld [vmem:[%s15 + $0x8] sm:$0xff]
        %v1227 = vld [vmem:[%s15 + $0x10] sm:$0xff]
        %v1228 = vld [vmem:[%s15 + $0x18] sm:$0xff]
        %v1229 = vld [vmem:[%s15 + $0x20] sm:$0xff]
        %v1230 = vld [vmem:[%s15 + $0x28] sm:$0xff]
        %v1231 = vld [vmem:[%s15 + $0x30] sm:$0xff]
        %v1232 = vld [vmem:[%s15 + $0x38] sm:$0xff]
        %v1233 = vld [vmem:[#allocation6] sm:$0x1]
        %v1235 = vperm.slane %v1233, 0
        %1237 = vmatpush.msra.mxu0 0.0
        %1238 = vmatpush.msra.mxu0 0.0
        %1239 = vmatpush.msra.mxu0 0.0
        %1240 = vmatpush.msra.mxu0 0.0
        %1241 = vmatpush.msra.mxu0 0.0
        %1242 = vmatpush.msra.mxu0 0.0
        %1243 = vmatpush.msra.mxu0 0.0
        %1244 = vmatpush.msra.mxu0 0.0
        %1245 = vmatpush.msra.mxu0 %v1232
        %1246 = vmatpush.msra.mxu0 %v1231
        %1247 = vmatpush.msra.mxu0 %v1230
        %1248 = vmatpush.msra.mxu0 %v1229
        %1249 = vmatpush.msra.mxu0 %v1228
        %1250 = vmatpush.msra.mxu0 %v1227
        %1251 = vmatpush.msra.mxu0 %v1226
        %1252 = vmatpush.msra.mxu0 %v1225
        %1253 = vmatmul.f32.gmra.mxu0 %v1171
        %v1254 = vpop.f32.mrf.mxu0
        %v1255 = vadd.f32 %v1235, %v1254
        %1256 = vdwg.mxu0
        %v1257 = vld [vmem:[%s19] sm:$0xff]
        %v1258 = vld [vmem:[%s19 + $0x8] sm:$0xff]
        %v1259 = vld [vmem:[%s19 + $0x10] sm:$0xff]
        %v1260 = vld [vmem:[%s19 + $0x18] sm:$0xff]
        %v1261 = vld [vmem:[%s19 + $0x20] sm:$0xff]
        %v1262 = vld [vmem:[%s19 + $0x28] sm:$0xff]
        %v1263 = vld [vmem:[%s19 + $0x30] sm:$0xff]
        %v1264 = vld [vmem:[%s19 + $0x38] sm:$0xff]
        %vm1265 = vcmask 130048
        %v1267 = vsel %vm1265, %v1191, 0
        %v1270 = vsel %vm1265, %v1223, 0
        %1272 = vmatpush.xpose.msra.mxu0 0.0
        %1273 = vmatpush.xpose.msra.mxu0 0.0
        %1274 = vmatpush.xpose.msra.mxu0 0.0
        %1275 = vmatpush.xpose.msra.mxu0 0.0
        %1276 = vmatpush.xpose.msra.mxu0 0.0
        %1277 = vmatpush.xpose.msra.mxu0 0.0
        %1278 = vmatpush.xpose.msra.mxu0 0.0
        %1279 = vmatpush.xpose.msra.mxu0 0.0
        %1280 = vmatpush.xpose.msra.mxu0 0.0
        %1281 = vmatpush.xpose.msra.mxu0 0.0
        %1282 = vmatpush.xpose.msra.mxu0 0.0
        %1283 = vmatpush.xpose.msra.mxu0 0.0
        %1284 = vmatpush.xpose.msra.mxu0 0.0
        %1285 = vmatpush.xpose.msra.mxu0 0.0
        %1286 = vmatpush.xpose.msra.mxu0 0.0
        %1287 = vmatpush.xpose.msra.mxu0 %v1270
        %1288 = vmatmul.f32.gmra.mxu0 %v1267
        %v1289 = vpop.f32.mrf.mxu0
        %v1290 = vadd.f32 0.0, %v1289
        %1291 = vdwg.mxu0
        %v1292 = vmul.f32 %v1290, 0.25
        %v1294 = vperm.slane %v1156, 0
        %v1296 = vadd.f32 %v1292, %v1294
        %vm1297 = vcmask 64512
        %v1298 = vsel %vm1297, %v1296, -inf
        %1299 = vmax.xlane.f32.xlu0 %v1298
        %v1300 = vpop.xlane.xlu0 %1299
        %v1301 = vsub.f32 %v1296, %v1300
        %v1302 = vmul.f32 %v1301, 1.442695
        %v1303 = vpow.pop %v1302
        %v1304 = vsel %vm1297, %v1303, 0.0
        %1305 = vadd.xlane.f32.xlu0 %v1304
        %v1306 = vpop.xlane.xlu0 %1305
        %v1307 = vrcp.pop %v1306
        %v1308 = vmul.f32 %v1306, %v1307
        %v1309 = vsub.f32 1.0, %v1308
        %v1310 = vmul.f32 %v1307, %v1309
        %v1311 = vadd.f32 %v1307, %v1310
        %vm1312 = vweird.f32 %v1306
        %vm1313 = vweird.f32 %v1307
        %vm1314 = vmor %vm1312, %vm1313
        %v1315 = vsel %vm1314, %v1307, %v1311
        %v1316 = vand.u32 2147483647, %v1306
        %vm1317 = vcmp.eq.f32.partialorder %v1316, 8.507059e+37
        %v1318 = vand.u32 %v1306, 2147483648
        %v1319 = vor.u32 1.1754944e-38, %v1318
        %v1320 = vsel %vm1317, %v1319, %v1315
        %v1321 = vmul.f32 %v1303, %v1320
        %v1323 = vsel %vm1297, %v1321, 0
        %1325 = vmatpush.msra.mxu0 0.0
        %1326 = vmatpush.msra.mxu0 0.0
        %1327 = vmatpush.msra.mxu0 0.0
        %1328 = vmatpush.msra.mxu0 0.0
        %1329 = vmatpush.msra.mxu0 0.0
        %1330 = vmatpush.msra.mxu0 0.0
        %1331 = vmatpush.msra.mxu0 0.0
        %1332 = vmatpush.msra.mxu0 0.0
        %1333 = vmatpush.msra.mxu0 0.0
        %1334 = vmatpush.msra.mxu0 0.0
        %1335 = vmatpush.msra.mxu0 0.0
        %1336 = vmatpush.msra.mxu0 0.0
        %1337 = vmatpush.msra.mxu0 0.0
        %1338 = vmatpush.msra.mxu0 0.0
        %1339 = vmatpush.msra.mxu0 0.0
        %1340 = vmatpush.msra.mxu0 %v1255
        %1341 = vmatmul.f32.gmra.mxu0 %v1323
        %v1342 = vpop.f32.mrf.mxu0
        %v1343 = vadd.f32 0.0, %v1342
        %1344 = vdwg.mxu0
        %1345 = vrot.lane.b32.xlu0 %v1191, 112
        %v1346 = vpop.permute.xlu0 %1345
        %1347 = vrot.lane.b32.xlu0 %v1223, 112
        %v1348 = vpop.permute.xlu0 %1347
        %v1349 = vsel %vm1265, %v1346, 0
        %v1351 = vsel %vm1265, %v1348, 0
        %1353 = vmatpush.xpose.msra.mxu0 0.0
        %1354 = vmatpush.xpose.msra.mxu0 0.0
        %1355 = vmatpush.xpose.msra.mxu0 0.0
        %1356 = vmatpush.xpose.msra.mxu0 0.0
        %1357 = vmatpush.xpose.msra.mxu0 0.0
        %1358 = vmatpush.xpose.msra.mxu0 0.0
        %1359 = vmatpush.xpose.msra.mxu0 0.0
        %1360 = vmatpush.xpose.msra.mxu0 0.0
        %1361 = vmatpush.xpose.msra.mxu0 0.0
        %1362 = vmatpush.xpose.msra.mxu0 0.0
        %1363 = vmatpush.xpose.msra.mxu0 0.0
        %1364 = vmatpush.xpose.msra.mxu0 0.0
        %1365 = vmatpush.xpose.msra.mxu0 0.0
        %1366 = vmatpush.xpose.msra.mxu0 0.0
        %1367 = vmatpush.xpose.msra.mxu0 0.0
        %1368 = vmatpush.xpose.msra.mxu0 %v1351
        %1369 = vmatmul.f32.gmra.mxu0 %v1349
        %v1370 = vpop.f32.mrf.mxu0
        %v1371 = vadd.f32 0.0, %v1370
        %1372 = vdwg.mxu0
        %v1373 = vmul.f32 %v1371, 0.25
        %v1374 = vadd.f32 %v1373, %v1294
        %v1375 = vsel %vm1297, %v1374, -inf
        %1376 = vmax.xlane.f32.xlu0 %v1375
        %v1377 = vpop.xlane.xlu0 %1376
        %v1378 = vsub.f32 %v1374, %v1377
        %v1379 = vmul.f32 %v1378, 1.442695
        %v1380 = vpow.pop %v1379
        %v1381 = vsel %vm1297, %v1380, 0.0
        %1382 = vadd.xlane.f32.xlu0 %v1381
        %v1383 = vpop.xlane.xlu0 %1382
        %v1384 = vrcp.pop %v1383
        %v1385 = vmul.f32 %v1383, %v1384
        %v1386 = vsub.f32 1.0, %v1385
        %v1387 = vmul.f32 %v1384, %v1386
        %v1388 = vadd.f32 %v1384, %v1387
        %vm1389 = vweird.f32 %v1383
        %vm1390 = vweird.f32 %v1384
        %vm1391 = vmor %vm1389, %vm1390
        %v1392 = vsel %vm1391, %v1384, %v1388
        %v1393 = vand.u32 2147483647, %v1383
        %vm1394 = vcmp.eq.f32.partialorder %v1393, 8.507059e+37
        %v1395 = vand.u32 %v1383, 2147483648
        %v1396 = vor.u32 1.1754944e-38, %v1395
        %v1397 = vsel %vm1394, %v1396, %v1392
        %v1398 = vmul.f32 %v1380, %v1397
        %1400 = vrot.lane.b32.xlu0 %v1255, 112
        %v1401 = vpop.permute.xlu0 %1400
        %v1404 = vsel %vm1297, %v1398, 0
        %1406 = vmatpush.msra.mxu0 0.0
        %1407 = vmatpush.msra.mxu0 0.0
        %1408 = vmatpush.msra.mxu0 0.0
        %1409 = vmatpush.msra.mxu0 0.0
        %1410 = vmatpush.msra.mxu0 0.0
        %1411 = vmatpush.msra.mxu0 0.0
        %1412 = vmatpush.msra.mxu0 0.0
        %1413 = vmatpush.msra.mxu0 0.0
        %1414 = vmatpush.msra.mxu0 0.0
        %1415 = vmatpush.msra.mxu0 0.0
        %1416 = vmatpush.msra.mxu0 0.0
        %1417 = vmatpush.msra.mxu0 0.0
        %1418 = vmatpush.msra.mxu0 0.0
        %1419 = vmatpush.msra.mxu0 0.0
        %1420 = vmatpush.msra.mxu0 0.0
        %1421 = vmatpush.msra.mxu0 %v1401
        %1422 = vmatmul.f32.gmra.mxu0 %v1404
        %v1423 = vpop.f32.mrf.mxu0
        %v1424 = vadd.f32 0.0, %v1423
        %1425 = vdwg.mxu0
        %v1427 = vsel %vm1265, %v1424, 0
        %1429 = vmatpush.msra.mxu0 0.0
        %1430 = vmatpush.msra.mxu0 0.0
        %1431 = vmatpush.msra.mxu0 0.0
        %1432 = vmatpush.msra.mxu0 0.0
        %1433 = vmatpush.msra.mxu0 0.0
        %1434 = vmatpush.msra.mxu0 0.0
        %1435 = vmatpush.msra.mxu0 0.0
        %1436 = vmatpush.msra.mxu0 0.0
        %1437 = vmatpush.msra.mxu0 0.0
        %1438 = vmatpush.msra.mxu0 0.0
        %1439 = vmatpush.msra.mxu0 0.0
        %1440 = vmatpush.msra.mxu0 0.0
        %1441 = vmatpush.msra.mxu0 0.0
        %1442 = vmatpush.msra.mxu0 0.0
        %1443 = vmatpush.msra.mxu0 %v1260
        %1444 = vmatpush.msra.mxu0 %v1259
        %1445 = vmatmul.f32.gmra.mxu0 %v1427
        %v1446 = vpop.f32.mrf.mxu0
        %v1447 = vadd.f32 0.0, %v1446
        %1448 = vdwg.mxu0
        %v1450 = vsel %vm1265, %v1343, 0
        %1452 = vmatpush.msra.mxu0 0.0
        %1453 = vmatpush.msra.mxu0 0.0
        %1454 = vmatpush.msra.mxu0 0.0
        %1455 = vmatpush.msra.mxu0 0.0
        %1456 = vmatpush.msra.mxu0 0.0
        %1457 = vmatpush.msra.mxu0 0.0
        %1458 = vmatpush.msra.mxu0 0.0
        %1459 = vmatpush.msra.mxu0 0.0
        %1460 = vmatpush.msra.mxu0 0.0
        %1461 = vmatpush.msra.mxu0 0.0
        %1462 = vmatpush.msra.mxu0 0.0
        %1463 = vmatpush.msra.mxu0 0.0
        %1464 = vmatpush.msra.mxu0 0.0
        %1465 = vmatpush.msra.mxu0 0.0
        %1466 = vmatpush.msra.mxu0 %v1258
        %1467 = vmatpush.msra.mxu0 %v1257
        %1468 = vmatmul.f32.gmra.mxu0 %v1450
        %v1469 = vpop.f32.mrf.mxu0
        %v1470 = vadd.f32 %v1447, %v1469
        %1471 = vdwg.mxu0
        %1472 = vrot.lane.b32.xlu0 %v1191, 96
        %v1473 = vpop.permute.xlu0 %1472
        %1474 = vrot.lane.b32.xlu0 %v1223, 96
        %v1475 = vpop.permute.xlu0 %1474
        %v1476 = vsel %vm1265, %v1473, 0
        %v1478 = vsel %vm1265, %v1475, 0
        %1480 = vmatpush.xpose.msra.mxu0 0.0
        %1481 = vmatpush.xpose.msra.mxu0 0.0
        %1482 = vmatpush.xpose.msra.mxu0 0.0
        %1483 = vmatpush.xpose.msra.mxu0 0.0
        %1484 = vmatpush.xpose.msra.mxu0 0.0
        %1485 = vmatpush.xpose.msra.mxu0 0.0
        %1486 = vmatpush.xpose.msra.mxu0 0.0
        %1487 = vmatpush.xpose.msra.mxu0 0.0
        %1488 = vmatpush.xpose.msra.mxu0 0.0
        %1489 = vmatpush.xpose.msra.mxu0 0.0
        %1490 = vmatpush.xpose.msra.mxu0 0.0
        %1491 = vmatpush.xpose.msra.mxu0 0.0
        %1492 = vmatpush.xpose.msra.mxu0 0.0
        %1493 = vmatpush.xpose.msra.mxu0 0.0
        %1494 = vmatpush.xpose.msra.mxu0 0.0
        %1495 = vmatpush.xpose.msra.mxu0 %v1478
        %1496 = vmatmul.f32.gmra.mxu0 %v1476
        %v1497 = vpop.f32.mrf.mxu0
        %v1498 = vadd.f32 0.0, %v1497
        %1499 = vdwg.mxu0
        %v1500 = vmul.f32 %v1498, 0.25
        %v1501 = vadd.f32 %v1500, %v1294
        %v1502 = vsel %vm1297, %v1501, -inf
        %1503 = vmax.xlane.f32.xlu0 %v1502
        %v1504 = vpop.xlane.xlu0 %1503
        %v1505 = vsub.f32 %v1501, %v1504
        %v1506 = vmul.f32 %v1505, 1.442695
        %v1507 = vpow.pop %v1506
        %v1508 = vsel %vm1297, %v1507, 0.0
        %1509 = vadd.xlane.f32.xlu0 %v1508
        %v1510 = vpop.xlane.xlu0 %1509
        %v1511 = vrcp.pop %v1510
        %v1512 = vmul.f32 %v1510, %v1511
        %v1513 = vsub.f32 1.0, %v1512
        %v1514 = vmul.f32 %v1511, %v1513
        %v1515 = vadd.f32 %v1511, %v1514
        %vm1516 = vweird.f32 %v1510
        %vm1517 = vweird.f32 %v1511
        %vm1518 = vmor %vm1516, %vm1517
        %v1519 = vsel %vm1518, %v1511, %v1515
        %v1520 = vand.u32 2147483647, %v1510
        %vm1521 = vcmp.eq.f32.partialorder %v1520, 8.507059e+37
        %v1522 = vand.u32 %v1510, 2147483648
        %v1523 = vor.u32 1.1754944e-38, %v1522
        %v1524 = vsel %vm1521, %v1523, %v1519
        %v1525 = vmul.f32 %v1507, %v1524
        %1526 = vrot.lane.b32.xlu0 %v1255, 96
        %v1527 = vpop.permute.xlu0 %1526
        %v1530 = vsel %vm1297, %v1525, 0
        %1532 = vmatpush.msra.mxu0 0.0
        %1533 = vmatpush.msra.mxu0 0.0
        %1534 = vmatpush.msra.mxu0 0.0
        %1535 = vmatpush.msra.mxu0 0.0
        %1536 = vmatpush.msra.mxu0 0.0
        %1537 = vmatpush.msra.mxu0 0.0
        %1538 = vmatpush.msra.mxu0 0.0
        %1539 = vmatpush.msra.mxu0 0.0
        %1540 = vmatpush.msra.mxu0 0.0
        %1541 = vmatpush.msra.mxu0 0.0
        %1542 = vmatpush.msra.mxu0 0.0
        %1543 = vmatpush.msra.mxu0 0.0
        %1544 = vmatpush.msra.mxu0 0.0
        %1545 = vmatpush.msra.mxu0 0.0
        %1546 = vmatpush.msra.mxu0 0.0
        %1547 = vmatpush.msra.mxu0 %v1527
        %1548 = vmatmul.f32.gmra.mxu0 %v1530
        %v1549 = vpop.f32.mrf.mxu0
        %v1550 = vadd.f32 0.0, %v1549
        %1551 = vdwg.mxu0
        %v1553 = vsel %vm1265, %v1550, 0
        %1555 = vmatpush.msra.mxu0 0.0
        %1556 = vmatpush.msra.mxu0 0.0
        %1557 = vmatpush.msra.mxu0 0.0
        %1558 = vmatpush.msra.mxu0 0.0
        %1559 = vmatpush.msra.mxu0 0.0
        %1560 = vmatpush.msra.mxu0 0.0
        %1561 = vmatpush.msra.mxu0 0.0
        %1562 = vmatpush.msra.mxu0 0.0
        %1563 = vmatpush.msra.mxu0 0.0
        %1564 = vmatpush.msra.mxu0 0.0
        %1565 = vmatpush.msra.mxu0 0.0
        %1566 = vmatpush.msra.mxu0 0.0
        %1567 = vmatpush.msra.mxu0 0.0
        %1568 = vmatpush.msra.mxu0 0.0
        %1569 = vmatpush.msra.mxu0 %v1262
        %1570 = vmatpush.msra.mxu0 %v1261
        %1571 = vmatmul.f32.gmra.mxu0 %v1553
        %v1572 = vpop.f32.mrf.mxu0
        %v1573 = vadd.f32 0.0, %v1572
        %1574 = vdwg.mxu0
        %v1575 = vadd.f32 %v1470, %v1573
        %1576 = vrot.lane.b32.xlu0 %v1191, 80
        %v1577 = vpop.permute.xlu0 %1576
        %1578 = vrot.lane.b32.xlu0 %v1223, 80
        %v1579 = vpop.permute.xlu0 %1578
        %v1580 = vsel %vm1265, %v1577, 0
        %v1582 = vsel %vm1265, %v1579, 0
        %1584 = vmatpush.xpose.msra.mxu0 0.0
        %1585 = vmatpush.xpose.msra.mxu0 0.0
        %1586 = vmatpush.xpose.msra.mxu0 0.0
        %1587 = vmatpush.xpose.msra.mxu0 0.0
        %1588 = vmatpush.xpose.msra.mxu0 0.0
        %1589 = vmatpush.xpose.msra.mxu0 0.0
        %1590 = vmatpush.xpose.msra.mxu0 0.0
        %1591 = vmatpush.xpose.msra.mxu0 0.0
        %1592 = vmatpush.xpose.msra.mxu0 0.0
        %1593 = vmatpush.xpose.msra.mxu0 0.0
        %1594 = vmatpush.xpose.msra.mxu0 0.0
        %1595 = vmatpush.xpose.msra.mxu0 0.0
        %1596 = vmatpush.xpose.msra.mxu0 0.0
        %1597 = vmatpush.xpose.msra.mxu0 0.0
        %1598 = vmatpush.xpose.msra.mxu0 0.0
        %1599 = vmatpush.xpose.msra.mxu0 %v1582
        %1600 = vmatmul.f32.gmra.mxu0 %v1580
        %v1601 = vpop.f32.mrf.mxu0
        %v1602 = vadd.f32 0.0, %v1601
        %1603 = vdwg.mxu0
        %v1604 = vmul.f32 %v1602, 0.25
        %v1605 = vadd.f32 %v1604, %v1294
        %v1606 = vsel %vm1297, %v1605, -inf
        %1607 = vmax.xlane.f32.xlu0 %v1606
        %v1608 = vpop.xlane.xlu0 %1607
        %v1609 = vsub.f32 %v1605, %v1608
        %v1610 = vmul.f32 %v1609, 1.442695
        %v1611 = vpow.pop %v1610
        %v1612 = vsel %vm1297, %v1611, 0.0
        %1613 = vadd.xlane.f32.xlu0 %v1612
        %v1614 = vpop.xlane.xlu0 %1613
        %v1615 = vrcp.pop %v1614
        %v1616 = vmul.f32 %v1614, %v1615
        %v1617 = vsub.f32 1.0, %v1616
        %v1618 = vmul.f32 %v1615, %v1617
        %v1619 = vadd.f32 %v1615, %v1618
        %vm1620 = vweird.f32 %v1614
        %vm1621 = vweird.f32 %v1615
        %vm1622 = vmor %vm1620, %vm1621
        %v1623 = vsel %vm1622, %v1615, %v1619
        %v1624 = vand.u32 2147483647, %v1614
        %vm1625 = vcmp.eq.f32.partialorder %v1624, 8.507059e+37
        %v1626 = vand.u32 %v1614, 2147483648
        %v1627 = vor.u32 1.1754944e-38, %v1626
        %v1628 = vsel %vm1625, %v1627, %v1623
        %v1629 = vmul.f32 %v1611, %v1628
        %1630 = vrot.lane.b32.xlu0 %v1255, 80
        %v1631 = vpop.permute.xlu0 %1630
        %v1634 = vsel %vm1297, %v1629, 0
        %1636 = vmatpush.msra.mxu0 0.0
        %1637 = vmatpush.msra.mxu0 0.0
        %1638 = vmatpush.msra.mxu0 0.0
        %1639 = vmatpush.msra.mxu0 0.0
        %1640 = vmatpush.msra.mxu0 0.0
        %1641 = vmatpush.msra.mxu0 0.0
        %1642 = vmatpush.msra.mxu0 0.0
        %1643 = vmatpush.msra.mxu0 0.0
        %1644 = vmatpush.msra.mxu0 0.0
        %1645 = vmatpush.msra.mxu0 0.0
        %1646 = vmatpush.msra.mxu0 0.0
        %1647 = vmatpush.msra.mxu0 0.0
        %1648 = vmatpush.msra.mxu0 0.0
        %1649 = vmatpush.msra.mxu0 0.0
        %1650 = vmatpush.msra.mxu0 0.0
        %1651 = vmatpush.msra.mxu0 %v1631
        %1652 = vmatmul.f32.gmra.mxu0 %v1634
        %v1653 = vpop.f32.mrf.mxu0
        %v1654 = vadd.f32 0.0, %v1653
        %1655 = vdwg.mxu0
        %v1657 = vsel %vm1265, %v1654, 0
        %1659 = vmatpush.msra.mxu0 0.0
        %1660 = vmatpush.msra.mxu0 0.0
        %1661 = vmatpush.msra.mxu0 0.0
        %1662 = vmatpush.msra.mxu0 0.0
        %1663 = vmatpush.msra.mxu0 0.0
        %1664 = vmatpush.msra.mxu0 0.0
        %1665 = vmatpush.msra.mxu0 0.0
        %1666 = vmatpush.msra.mxu0 0.0
        %1667 = vmatpush.msra.mxu0 0.0
        %1668 = vmatpush.msra.mxu0 0.0
        %1669 = vmatpush.msra.mxu0 0.0
        %1670 = vmatpush.msra.mxu0 0.0
        %1671 = vmatpush.msra.mxu0 0.0
        %1672 = vmatpush.msra.mxu0 0.0
        %1673 = vmatpush.msra.mxu0 %v1264
        %1674 = vmatpush.msra.mxu0 %v1263
        %1675 = vmatmul.f32.gmra.mxu0 %v1657
        %v1676 = vpop.f32.mrf.mxu0
        %v1677 = vadd.f32 0.0, %v1676
        %1678 = vdwg.mxu0
        %v1679 = vadd.f32 %v1575, %v1677
        %v1680 = vld [vmem:[#allocation7] sm:$0x1]
        %v1682 = vperm.slane %v1680, 0
        %v1684 = vadd.f32 %v1679, %v1682
        %v1685 = vadd.f32 %v1150, %v1684
        %v1686 = vld [vmem:[#allocation9] sm:$0x1]
        %v1687 = vld [vmem:[#allocation10] sm:$0x1]
        %v1688 = vsel %vm1169, %v1685, 0.0
        %1689 = vadd.xlane.f32.xlu0 %v1688
        %v1690 = vpop.xlane.xlu0 %1689
        %v1691 = vrcp.pop 64.0
        %v1692 = vmul.f32 64.0, %v1691
        %v1693 = vsub.f32 1.0, %v1692
        %v1694 = vmul.f32 %v1691, %v1693
        %v1695 = vadd.f32 %v1691, %v1694
        %vm1696 = vweird.f32 %v1691
        %v1697 = vsel %vm1696, %v1691, %v1695
        %v1698 = vmul.f32 %v1690, %v1697
        %v1699 = vsub.f32 %v1685, %v1698
        %v1700 = vmul.f32 %v1699, %v1699
        %v1701 = vsel %vm1169, %v1700, 0.0
        %1702 = vadd.xlane.f32.xlu0 %v1701
        %v1703 = vpop.xlane.xlu0 %1702
        %v1704 = vmul.f32 %v1703, %v1697
        %v1705 = vadd.f32 %v1704, 1e-12
        %v1706 = vrsqrt.pop %v1705
        %v1707 = vmul.f32 %v1706, %v1705
        %v1708 = vmul.f32 %v1707, %v1706
        %v1709 = vmul.f32 0.5, %v1708
        %v1710 = vsub.f32 1.5, %v1709
        %v1711 = vmul.f32 %v1706, %v1710
        %vm1712 = vweird.f32 %v1705
        %vm1713 = vweird.f32 %v1706
        %vm1714 = vmor %vm1712, %vm1713
        %v1715 = vsel %vm1714, %v1706, %v1711
        %v1716 = vmul.f32 %v1699, %v1715
        %v1718 = vperm.slane %v1686, 0
        %v1720 = vmul.f32 %v1716, %v1718
        %v1722 = vperm.slane %v1687, 0
        %v1724 = vadd.f32 %v1720, %v1722
        %v1725 = vld [vmem:[%s27] sm:$0xff]
        %v1726 = vld [vmem:[%s27 + $0x8] sm:$0xff]
        %v1727 = vld [vmem:[%s27 + $0x10] sm:$0xff]
        %v1728 = vld [vmem:[%s27 + $0x18] sm:$0xff]
        %v1729 = vld [vmem:[%s27 + $0x20] sm:$0xff]
        %v1730 = vld [vmem:[%s27 + $0x28] sm:$0xff]
        %v1731 = vld [vmem:[%s27 + $0x30] sm:$0xff]
        %v1732 = vld [vmem:[%s27 + $0x38] sm:$0xff]
        %v1733 = vld [vmem:[#allocation12] sm:$0x1]
        %v1735 = vperm.slane %v1733, 0
        %v1738 = vsel %vm1169, %v1724, 0
        %1740 = vmatpush.msra.mxu0 0.0
        %1741 = vmatpush.msra.mxu0 0.0
        %1742 = vmatpush.msra.mxu0 0.0
        %1743 = vmatpush.msra.mxu0 0.0
        %1744 = vmatpush.msra.mxu0 0.0
        %1745 = vmatpush.msra.mxu0 0.0
        %1746 = vmatpush.msra.mxu0 0.0
        %1747 = vmatpush.msra.mxu0 0.0
        %1748 = vmatpush.msra.mxu0 %v1732
        %1749 = vmatpush.msra.mxu0 %v1731
        %1750 = vmatpush.msra.mxu0 %v1730
        %1751 = vmatpush.msra.mxu0 %v1729
        %1752 = vmatpush.msra.mxu0 %v1728
        %1753 = vmatpush.msra.mxu0 %v1727
        %1754 = vmatpush.msra.mxu0 %v1726
        %1755 = vmatpush.msra.mxu0 %v1725
        %1756 = vmatmul.f32.gmra.mxu0 %v1738
        %v1757 = vpop.f32.mrf.mxu0
        %v1758 = vadd.f32 %v1735, %v1757
        %1759 = vdwg.mxu0
        %v1760 = vld [vmem:[%s31] sm:$0xff]
        %v1761 = vld [vmem:[%s31 + $0x8] sm:$0xff]
        %v1762 = vld [vmem:[%s31 + $0x10] sm:$0xff]
        %v1763 = vld [vmem:[%s31 + $0x18] sm:$0xff]
        %v1764 = vld [vmem:[%s31 + $0x20] sm:$0xff]
        %v1765 = vld [vmem:[%s31 + $0x28] sm:$0xff]
        %v1766 = vld [vmem:[%s31 + $0x30] sm:$0xff]
        %v1767 = vld [vmem:[%s31 + $0x38] sm:$0xff]
        %v1768 = vld [vmem:[#allocation13] sm:$0x1]
        %v1770 = vperm.slane %v1768, 0
        %v1773 = vsel %vm1169, %v1151, 0
        %v1776 = vsel %vm1169, %v1152, 0
        %v1779 = vsel %vm1169, %v1153, 0
        %1781 = vmatpush.msra.mxu0 0.0
        %1782 = vmatpush.msra.mxu0 0.0
        %1783 = vmatpush.msra.mxu0 0.0
        %1784 = vmatpush.msra.mxu0 0.0
        %1785 = vmatpush.msra.mxu0 0.0
        %1786 = vmatpush.msra.mxu0 0.0
        %1787 = vmatpush.msra.mxu0 0.0
        %1788 = vmatpush.msra.mxu0 0.0
        %1789 = vmatpush.msra.mxu0 %v1767
        %1790 = vmatpush.msra.mxu0 %v1766
        %1791 = vmatpush.msra.mxu0 %v1765
        %1792 = vmatpush.msra.mxu0 %v1764
        %1793 = vmatpush.msra.mxu0 %v1763
        %1794 = vmatpush.msra.mxu0 %v1762
        %1795 = vmatpush.msra.mxu0 %v1761
        %1796 = vmatpush.msra.mxu0 %v1760
        %1797 = vmatmul.f32.gmra.mxu0 %v1773
        %v1798 = vpop.f32.mrf.mxu0
        %v1799 = vadd.f32 %v1770, %v1798
        %1800 = vmatmul.f32.gmra.mxu0 %v1776
        %v1801 = vpop.f32.mrf.mxu0
        %v1802 = vadd.f32 %v1770, %v1801
        %1803 = vmatmul.f32.gmra.mxu0 %v1779
        %v1804 = vpop.f32.mrf.mxu0
        %v1805 = vadd.f32 %v1770, %v1804
        %1806 = vdwg.mxu0
        %v1807 = vld [vmem:[%s35] sm:$0xff]
        %v1808 = vld [vmem:[%s35 + $0x8] sm:$0xff]
        %v1809 = vld [vmem:[%s35 + $0x10] sm:$0xff]
        %v1810 = vld [vmem:[%s35 + $0x18] sm:$0xff]
        %v1811 = vld [vmem:[%s35 + $0x20] sm:$0xff]
        %v1812 = vld [vmem:[%s35 + $0x28] sm:$0xff]
        %v1813 = vld [vmem:[%s35 + $0x30] sm:$0xff]
        %v1814 = vld [vmem:[%s35 + $0x38] sm:$0xff]
        %v1815 = vld [vmem:[#allocation15] sm:$0x1]
        %v1817 = vperm.slane %v1815, 0
        %1819 = vmatpush.msra.mxu0 0.0
        %1820 = vmatpush.msra.mxu0 0.0
        %1821 = vmatpush.msra.mxu0 0.0
        %1822 = vmatpush.msra.mxu0 0.0
        %1823 = vmatpush.msra.mxu0 0.0
        %1824 = vmatpush.msra.mxu0 0.0
        %1825 = vmatpush.msra.mxu0 0.0
        %1826 = vmatpush.msra.mxu0 0.0
        %1827 = vmatpush.msra.mxu0 %v1814
        %1828 = vmatpush.msra.mxu0 %v1813
        %1829 = vmatpush.msra.mxu0 %v1812
        %1830 = vmatpush.msra.mxu0 %v1811
        %1831 = vmatpush.msra.mxu0 %v1810
        %1832 = vmatpush.msra.mxu0 %v1809
        %1833 = vmatpush.msra.mxu0 %v1808
        %1834 = vmatpush.msra.mxu0 %v1807
        %1835 = vmatmul.f32.gmra.mxu0 %v1773
        %v1836 = vpop.f32.mrf.mxu0
        %v1837 = vadd.f32 %v1817, %v1836
        %1838 = vmatmul.f32.gmra.mxu0 %v1776
        %v1839 = vpop.f32.mrf.mxu0
        %v1840 = vadd.f32 %v1817, %v1839
        %1841 = vmatmul.f32.gmra.mxu0 %v1779
        %v1842 = vpop.f32.mrf.mxu0
        %v1843 = vadd.f32 %v1817, %v1842
        %1844 = vdwg.mxu0
        %v1845 = vld [vmem:[%s39] sm:$0xff]
        %v1846 = vld [vmem:[%s39 + $0x8] sm:$0xff]
        %v1847 = vld [vmem:[%s39 + $0x10] sm:$0xff]
        %v1848 = vld [vmem:[%s39 + $0x18] sm:$0xff]
        %v1849 = vld [vmem:[%s39 + $0x20] sm:$0xff]
        %v1850 = vld [vmem:[%s39 + $0x28] sm:$0xff]
        %v1851 = vld [vmem:[%s39 + $0x30] sm:$0xff]
        %v1852 = vld [vmem:[%s39 + $0x38] sm:$0xff]
        %v1854 = vsel %vm1265, %v1758, 0
        %v1857 = vsel %vm1265, %v1799, 0
        %v1860 = vsel %vm1265, %v1802, 0
        %v1863 = vsel %vm1265, %v1805, 0
        %1865 = vmatpush.xpose.msra.mxu0 0.0
        %1866 = vmatpush.xpose.msra.mxu0 0.0
        %1867 = vmatpush.xpose.msra.mxu0 0.0
        %1868 = vmatpush.xpose.msra.mxu0 0.0
        %1869 = vmatpush.xpose.msra.mxu0 0.0
        %1870 = vmatpush.xpose.msra.mxu0 0.0
        %1871 = vmatpush.xpose.msra.mxu0 0.0
        %1872 = vmatpush.xpose.msra.mxu0 0.0
        %1873 = vmatpush.xpose.msra.mxu0 0.0
        %1874 = vmatpush.xpose.msra.mxu0 0.0
        %1875 = vmatpush.xpose.msra.mxu0 0.0
        %1876 = vmatpush.xpose.msra.mxu0 0.0
        %1877 = vmatpush.xpose.msra.mxu0 0.0
        %1878 = vmatpush.xpose.msra.mxu0 %v1863
        %1879 = vmatpush.xpose.msra.mxu0 %v1860
        %1880 = vmatpush.xpose.msra.mxu0 %v1857
        %1881 = vmatmul.f32.gmra.mxu0 %v1854
        %v1882 = vpop.f32.mrf.mxu0
        %v1883 = vadd.f32 0.0, %v1882
        %1884 = vdwg.mxu0
        %v1885 = vmul.f32 %v1883, 0.25
        %vm1886 = vcmask 138240
        %v1887 = vsel %vm1886, %v1885, -inf
        %1888 = vmax.xlane.f32.xlu0 %v1887
        %v1889 = vpop.xlane.xlu0 %1888
        %v1890 = vsub.f32 %v1885, %v1889
        %v1891 = vmul.f32 %v1890, 1.442695
        %v1892 = vpow.pop %v1891
        %v1893 = vsel %vm1886, %v1892, 0.0
        %1894 = vadd.xlane.f32.xlu0 %v1893
        %v1895 = vpop.xlane.xlu0 %1894
        %v1896 = vrcp.pop %v1895
        %v1897 = vmul.f32 %v1895, %v1896
        %v1898 = vsub.f32 1.0, %v1897
        %v1899 = vmul.f32 %v1896, %v1898
        %v1900 = vadd.f32 %v1896, %v1899
        %vm1901 = vweird.f32 %v1895
        %vm1902 = vweird.f32 %v1896
        %vm1903 = vmor %vm1901, %vm1902
        %v1904 = vsel %vm1903, %v1896, %v1900
        %v1905 = vand.u32 2147483647, %v1895
        %vm1906 = vcmp.eq.f32.partialorder %v1905, 8.507059e+37
        %v1907 = vand.u32 %v1895, 2147483648
        %v1908 = vor.u32 1.1754944e-38, %v1907
        %v1909 = vsel %vm1906, %v1908, %v1904
        %v1910 = vmul.f32 %v1892, %v1909
        %v1912 = vsel %vm1886, %v1910, 0
        %vm1914 = vcmask 1040384
        %v1916 = vsel %vm1914, %v1843, 0
        %1918 = vmatpush.msra.mxu0 0.0
        %1919 = vmatpush.msra.mxu0 0.0
        %1920 = vmatpush.msra.mxu0 0.0
        %1921 = vmatpush.msra.mxu0 0.0
        %1922 = vmatpush.msra.mxu0 0.0
        %1923 = vmatpush.msra.mxu0 0.0
        %1924 = vmatpush.msra.mxu0 0.0
        %1925 = vmatpush.msra.mxu0 0.0
        %1926 = vmatpush.msra.mxu0 0.0
        %1927 = vmatpush.msra.mxu0 0.0
        %1928 = vmatpush.msra.mxu0 0.0
        %1929 = vmatpush.msra.mxu0 0.0
        %1930 = vmatpush.msra.mxu0 0.0
        %1931 = vmatpush.msra.mxu0 %v1916
        %1932 = vmatpush.msra.mxu0 %v1840
        %1933 = vmatpush.msra.mxu0 %v1837
        %1934 = vmatmul.f32.gmra.mxu0 %v1912
        %v1935 = vpop.f32.mrf.mxu0
        %v1936 = vadd.f32 0.0, %v1935
        %1937 = vdwg.mxu0
        %1938 = vrot.lane.b32.xlu0 %v1758, 112
        %v1939 = vpop.permute.xlu0 %1938
        %1940 = vrot.lane.b32.xlu0 %v1799, 112
        %v1941 = vpop.permute.xlu0 %1940
        %1942 = vrot.lane.b32.xlu0 %v1802, 112
        %v1943 = vpop.permute.xlu0 %1942
        %1944 = vrot.lane.b32.xlu0 %v1805, 112
        %v1945 = vpop.permute.xlu0 %1944
        %v1946 = vsel %vm1265, %v1939, 0
        %v1948 = vsel %vm1265, %v1941, 0
        %v1950 = vsel %vm1265, %v1943, 0
        %v1952 = vsel %vm1265, %v1945, 0
        %1954 = vmatpush.xpose.msra.mxu0 0.0
        %1955 = vmatpush.xpose.msra.mxu0 0.0
        %1956 = vmatpush.xpose.msra.mxu0 0.0
        %1957 = vmatpush.xpose.msra.mxu0 0.0
        %1958 = vmatpush.xpose.msra.mxu0 0.0
        %1959 = vmatpush.xpose.msra.mxu0 0.0
        %1960 = vmatpush.xpose.msra.mxu0 0.0
        %1961 = vmatpush.xpose.msra.mxu0 0.0
        %1962 = vmatpush.xpose.msra.mxu0 0.0
        %1963 = vmatpush.xpose.msra.mxu0 0.0
        %1964 = vmatpush.xpose.msra.mxu0 0.0
        %1965 = vmatpush.xpose.msra.mxu0 0.0
        %1966 = vmatpush.xpose.msra.mxu0 0.0
        %1967 = vmatpush.xpose.msra.mxu0 %v1952
        %1968 = vmatpush.xpose.msra.mxu0 %v1950
        %1969 = vmatpush.xpose.msra.mxu0 %v1948
        %1970 = vmatmul.f32.gmra.mxu0 %v1946
        %v1971 = vpop.f32.mrf.mxu0
        %v1972 = vadd.f32 0.0, %v1971
        %1973 = vdwg.mxu0
        %v1974 = vmul.f32 %v1972, 0.25
        %v1975 = vsel %vm1886, %v1974, -inf
        %1976 = vmax.xlane.f32.xlu0 %v1975
        %v1977 = vpop.xlane.xlu0 %1976
        %v1978 = vsub.f32 %v1974, %v1977
        %v1979 = vmul.f32 %v1978, 1.442695
        %v1980 = vpow.pop %v1979
        %v1981 = vsel %vm1886, %v1980, 0.0
        %1982 = vadd.xlane.f32.xlu0 %v1981
        %v1983 = vpop.xlane.xlu0 %1982
        %v1984 = vrcp.pop %v1983
        %v1985 = vmul.f32 %v1983, %v1984
        %v1986 = vsub.f32 1.0, %v1985
        %v1987 = vmul.f32 %v1984, %v1986
        %v1988 = vadd.f32 %v1984, %v1987
        %vm1989 = vweird.f32 %v1983
        %vm1990 = vweird.f32 %v1984
        %vm1991 = vmor %vm1989, %vm1990
        %v1992 = vsel %vm1991, %v1984, %v1988
        %v1993 = vand.u32 2147483647, %v1983
        %vm1994 = vcmp.eq.f32.partialorder %v1993, 8.507059e+37
        %v1995 = vand.u32 %v1983, 2147483648
        %v1996 = vor.u32 1.1754944e-38, %v1995
        %v1997 = vsel %vm1994, %v1996, %v1992
        %v1998 = vmul.f32 %v1980, %v1997
        %2001 = vrot.lane.b32.xlu0 %v1837, 112
        %v2002 = vpop.permute.xlu0 %2001
        %2003 = vrot.lane.b32.xlu0 %v1840, 112
        %v2004 = vpop.permute.xlu0 %2003
        %2005 = vrot.lane.b32.xlu0 %v1843, 112
        %v2006 = vpop.permute.xlu0 %2005
        %v2010 = vsel %vm1886, %v1998, 0
        %v2012 = vsel %vm1914, %v2006, 0
        %2014 = vmatpush.msra.mxu0 0.0
        %2015 = vmatpush.msra.mxu0 0.0
        %2016 = vmatpush.msra.mxu0 0.0
        %2017 = vmatpush.msra.mxu0 0.0
        %2018 = vmatpush.msra.mxu0 0.0
        %2019 = vmatpush.msra.mxu0 0.0
        %2020 = vmatpush.msra.mxu0 0.0
        %2021 = vmatpush.msra.mxu0 0.0
        %2022 = vmatpush.msra.mxu0 0.0
        %2023 = vmatpush.msra.mxu0 0.0
        %2024 = vmatpush.msra.mxu0 0.0
        %2025 = vmatpush.msra.mxu0 0.0
        %2026 = vmatpush.msra.mxu0 0.0
        %2027 = vmatpush.msra.mxu0 %v2012
        %2028 = vmatpush.msra.mxu0 %v2004
        %2029 = vmatpush.msra.mxu0 %v2002
        %2030 = vmatmul.f32.gmra.mxu0 %v2010
        %v2031 = vpop.f32.mrf.mxu0
        %v2032 = vadd.f32 0.0, %v2031
        %2033 = vdwg.mxu0
        %v2035 = vsel %vm1265, %v2032, 0
        %2037 = vmatpush.msra.mxu0 0.0
        %2038 = vmatpush.msra.mxu0 0.0
        %2039 = vmatpush.msra.mxu0 0.0
        %2040 = vmatpush.msra.mxu0 0.0
        %2041 = vmatpush.msra.mxu0 0.0
        %2042 = vmatpush.msra.mxu0 0.0
        %2043 = vmatpush.msra.mxu0 0.0
        %2044 = vmatpush.msra.mxu0 0.0
        %2045 = vmatpush.msra.mxu0 0.0
        %2046 = vmatpush.msra.mxu0 0.0
        %2047 = vmatpush.msra.mxu0 0.0
        %2048 = vmatpush.msra.mxu0 0.0
        %2049 = vmatpush.msra.mxu0 0.0
        %2050 = vmatpush.msra.mxu0 0.0
        %2051 = vmatpush.msra.mxu0 %v1848
        %2052 = vmatpush.msra.mxu0 %v1847
        %2053 = vmatmul.f32.gmra.mxu0 %v2035
        %v2054 = vpop.f32.mrf.mxu0
        %v2055 = vadd.f32 0.0, %v2054
        %2056 = vdwg.mxu0
        %v2058 = vsel %vm1265, %v1936, 0
        %2060 = vmatpush.msra.mxu0 0.0
        %2061 = vmatpush.msra.mxu0 0.0
        %2062 = vmatpush.msra.mxu0 0.0
        %2063 = vmatpush.msra.mxu0 0.0
        %2064 = vmatpush.msra.mxu0 0.0
        %2065 = vmatpush.msra.mxu0 0.0
        %2066 = vmatpush.msra.mxu0 0.0
        %2067 = vmatpush.msra.mxu0 0.0
        %2068 = vmatpush.msra.mxu0 0.0
        %2069 = vmatpush.msra.mxu0 0.0
        %2070 = vmatpush.msra.mxu0 0.0
        %2071 = vmatpush.msra.mxu0 0.0
        %2072 = vmatpush.msra.mxu0 0.0
        %2073 = vmatpush.msra.mxu0 0.0
        %2074 = vmatpush.msra.mxu0 %v1846
        %2075 = vmatpush.msra.mxu0 %v1845
        %2076 = vmatmul.f32.gmra.mxu0 %v2058
        %v2077 = vpop.f32.mrf.mxu0
        %v2078 = vadd.f32 %v2055, %v2077
        %2079 = vdwg.mxu0
        %2080 = vrot.lane.b32.xlu0 %v1758, 96
        %v2081 = vpop.permute.xlu0 %2080
        %2082 = vrot.lane.b32.xlu0 %v1799, 96
        %v2083 = vpop.permute.xlu0 %2082
        %2084 = vrot.lane.b32.xlu0 %v1802, 96
        %v2085 = vpop.permute.xlu0 %2084
        %2086 = vrot.lane.b32.xlu0 %v1805, 96
        %v2087 = vpop.permute.xlu0 %2086
        %v2088 = vsel %vm1265, %v2081, 0
        %v2090 = vsel %vm1265, %v2083, 0
        %v2092 = vsel %vm1265, %v2085, 0
        %v2094 = vsel %vm1265, %v2087, 0
        %2096 = vmatpush.xpose.msra.mxu0 0.0
        %2097 = vmatpush.xpose.msra.mxu0 0.0
        %2098 = vmatpush.xpose.msra.mxu0 0.0
        %2099 = vmatpush.xpose.msra.mxu0 0.0
        %2100 = vmatpush.xpose.msra.mxu0 0.0
        %2101 = vmatpush.xpose.msra.mxu0 0.0
        %2102 = vmatpush.xpose.msra.mxu0 0.0
        %2103 = vmatpush.xpose.msra.mxu0 0.0
        %2104 = vmatpush.xpose.msra.mxu0 0.0
        %2105 = vmatpush.xpose.msra.mxu0 0.0
        %2106 = vmatpush.xpose.msra.mxu0 0.0
        %2107 = vmatpush.xpose.msra.mxu0 0.0
        %2108 = vmatpush.xpose.msra.mxu0 0.0
        %2109 = vmatpush.xpose.msra.mxu0 %v2094
        %2110 = vmatpush.xpose.msra.mxu0 %v2092
        %2111 = vmatpush.xpose.msra.mxu0 %v2090
        %2112 = vmatmul.f32.gmra.mxu0 %v2088
        %v2113 = vpop.f32.mrf.mxu0
        %v2114 = vadd.f32 0.0, %v2113
        %2115 = vdwg.mxu0
        %v2116 = vmul.f32 %v2114, 0.25
        %v2117 = vsel %vm1886, %v2116, -inf
        %2118 = vmax.xlane.f32.xlu0 %v2117
        %v2119 = vpop.xlane.xlu0 %2118
        %v2120 = vsub.f32 %v2116, %v2119
        %v2121 = vmul.f32 %v2120, 1.442695
        %v2122 = vpow.pop %v2121
        %v2123 = vsel %vm1886, %v2122, 0.0
        %2124 = vadd.xlane.f32.xlu0 %v2123
        %v2125 = vpop.xlane.xlu0 %2124
        %v2126 = vrcp.pop %v2125
        %v2127 = vmul.f32 %v2125, %v2126
        %v2128 = vsub.f32 1.0, %v2127
        %v2129 = vmul.f32 %v2126, %v2128
        %v2130 = vadd.f32 %v2126, %v2129
        %vm2131 = vweird.f32 %v2125
        %vm2132 = vweird.f32 %v2126
        %vm2133 = vmor %vm2131, %vm2132
        %v2134 = vsel %vm2133, %v2126, %v2130
        %v2135 = vand.u32 2147483647, %v2125
        %vm2136 = vcmp.eq.f32.partialorder %v2135, 8.507059e+37
        %v2137 = vand.u32 %v2125, 2147483648
        %v2138 = vor.u32 1.1754944e-38, %v2137
        %v2139 = vsel %vm2136, %v2138, %v2134
        %v2140 = vmul.f32 %v2122, %v2139
        %2141 = vrot.lane.b32.xlu0 %v1837, 96
        %v2142 = vpop.permute.xlu0 %2141
        %2143 = vrot.lane.b32.xlu0 %v1840, 96
        %v2144 = vpop.permute.xlu0 %2143
        %2145 = vrot.lane.b32.xlu0 %v1843, 96
        %v2146 = vpop.permute.xlu0 %2145
        %v2150 = vsel %vm1886, %v2140, 0
        %v2152 = vsel %vm1914, %v2146, 0
        %2154 = vmatpush.msra.mxu0 0.0
        %2155 = vmatpush.msra.mxu0 0.0
        %2156 = vmatpush.msra.mxu0 0.0
        %2157 = vmatpush.msra.mxu0 0.0
        %2158 = vmatpush.msra.mxu0 0.0
        %2159 = vmatpush.msra.mxu0 0.0
        %2160 = vmatpush.msra.mxu0 0.0
        %2161 = vmatpush.msra.mxu0 0.0
        %2162 = vmatpush.msra.mxu0 0.0
        %2163 = vmatpush.msra.mxu0 0.0
        %2164 = vmatpush.msra.mxu0 0.0
        %2165 = vmatpush.msra.mxu0 0.0
        %2166 = vmatpush.msra.mxu0 0.0
        %2167 = vmatpush.msra.mxu0 %v2152
        %2168 = vmatpush.msra.mxu0 %v2144
        %2169 = vmatpush.msra.mxu0 %v2142
        %2170 = vmatmul.f32.gmra.mxu0 %v2150
        %v2171 = vpop.f32.mrf.mxu0
        %v2172 = vadd.f32 0.0, %v2171
        %2173 = vdwg.mxu0
        %v2175 = vsel %vm1265, %v2172, 0
        %2177 = vmatpush.msra.mxu0 0.0
        %2178 = vmatpush.msra.mxu0 0.0
        %2179 = vmatpush.msra.mxu0 0.0
        %2180 = vmatpush.msra.mxu0 0.0
        %2181 = vmatpush.msra.mxu0 0.0
        %2182 = vmatpush.msra.mxu0 0.0
        %2183 = vmatpush.msra.mxu0 0.0
        %2184 = vmatpush.msra.mxu0 0.0
        %2185 = vmatpush.msra.mxu0 0.0
        %2186 = vmatpush.msra.mxu0 0.0
        %2187 = vmatpush.msra.mxu0 0.0
        %2188 = vmatpush.msra.mxu0 0.0
        %2189 = vmatpush.msra.mxu0 0.0
        %2190 = vmatpush.msra.mxu0 0.0
        %2191 = vmatpush.msra.mxu0 %v1850
        %2192 = vmatpush.msra.mxu0 %v1849
        %2193 = vmatmul.f32.gmra.mxu0 %v2175
        %v2194 = vpop.f32.mrf.mxu0
        %v2195 = vadd.f32 0.0, %v2194
        %2196 = vdwg.mxu0
        %v2197 = vadd.f32 %v2078, %v2195
        %2198 = vrot.lane.b32.xlu0 %v1758, 80
        %v2199 = vpop.permute.xlu0 %2198
        %2200 = vrot.lane.b32.xlu0 %v1799, 80
        %v2201 = vpop.permute.xlu0 %2200
        %2202 = vrot.lane.b32.xlu0 %v1802, 80
        %v2203 = vpop.permute.xlu0 %2202
        %2204 = vrot.lane.b32.xlu0 %v1805, 80
        %v2205 = vpop.permute.xlu0 %2204
        %v2206 = vsel %vm1265, %v2199, 0
        %v2208 = vsel %vm1265, %v2201, 0
        %v2210 = vsel %vm1265, %v2203, 0
        %v2212 = vsel %vm1265, %v2205, 0
        %2214 = vmatpush.xpose.msra.mxu0 0.0
        %2215 = vmatpush.xpose.msra.mxu0 0.0
        %2216 = vmatpush.xpose.msra.mxu0 0.0
        %2217 = vmatpush.xpose.msra.mxu0 0.0
        %2218 = vmatpush.xpose.msra.mxu0 0.0
        %2219 = vmatpush.xpose.msra.mxu0 0.0
        %2220 = vmatpush.xpose.msra.mxu0 0.0
        %2221 = vmatpush.xpose.msra.mxu0 0.0
        %2222 = vmatpush.xpose.msra.mxu0 0.0
        %2223 = vmatpush.xpose.msra.mxu0 0.0
        %2224 = vmatpush.xpose.msra.mxu0 0.0
        %2225 = vmatpush.xpose.msra.mxu0 0.0
        %2226 = vmatpush.xpose.msra.mxu0 0.0
        %2227 = vmatpush.xpose.msra.mxu0 %v2212
        %2228 = vmatpush.xpose.msra.mxu0 %v2210
        %2229 = vmatpush.xpose.msra.mxu0 %v2208
        %2230 = vmatmul.f32.gmra.mxu0 %v2206
        %v2231 = vpop.f32.mrf.mxu0
        %v2232 = vadd.f32 0.0, %v2231
        %2233 = vdwg.mxu0
        %v2234 = vmul.f32 %v2232, 0.25
        %v2235 = vsel %vm1886, %v2234, -inf
        %2236 = vmax.xlane.f32.xlu0 %v2235
        %v2237 = vpop.xlane.xlu0 %2236
        %v2238 = vsub.f32 %v2234, %v2237
        %v2239 = vmul.f32 %v2238, 1.442695
        %v2240 = vpow.pop %v2239
        %v2241 = vsel %vm1886, %v2240, 0.0
        %2242 = vadd.xlane.f32.xlu0 %v2241
        %v2243 = vpop.xlane.xlu0 %2242
        %v2244 = vrcp.pop %v2243
        %v2245 = vmul.f32 %v2243, %v2244
        %v2246 = vsub.f32 1.0, %v2245
        %v2247 = vmul.f32 %v2244, %v2246
        %v2248 = vadd.f32 %v2244, %v2247
        %vm2249 = vweird.f32 %v2243
        %vm2250 = vweird.f32 %v2244
        %vm2251 = vmor %vm2249, %vm2250
        %v2252 = vsel %vm2251, %v2244, %v2248
        %v2253 = vand.u32 2147483647, %v2243
        %vm2254 = vcmp.eq.f32.partialorder %v2253, 8.507059e+37
        %v2255 = vand.u32 %v2243, 2147483648
        %v2256 = vor.u32 1.1754944e-38, %v2255
        %v2257 = vsel %vm2254, %v2256, %v2252
        %v2258 = vmul.f32 %v2240, %v2257
        %2259 = vrot.lane.b32.xlu0 %v1837, 80
        %v2260 = vpop.permute.xlu0 %2259
        %2261 = vrot.lane.b32.xlu0 %v1840, 80
        %v2262 = vpop.permute.xlu0 %2261
        %2263 = vrot.lane.b32.xlu0 %v1843, 80
        %v2264 = vpop.permute.xlu0 %2263
        %v2268 = vsel %vm1886, %v2258, 0
        %v2270 = vsel %vm1914, %v2264, 0
        %2272 = vmatpush.msra.mxu0 0.0
        %2273 = vmatpush.msra.mxu0 0.0
        %2274 = vmatpush.msra.mxu0 0.0
        %2275 = vmatpush.msra.mxu0 0.0
        %2276 = vmatpush.msra.mxu0 0.0
        %2277 = vmatpush.msra.mxu0 0.0
        %2278 = vmatpush.msra.mxu0 0.0
        %2279 = vmatpush.msra.mxu0 0.0
        %2280 = vmatpush.msra.mxu0 0.0
        %2281 = vmatpush.msra.mxu0 0.0
        %2282 = vmatpush.msra.mxu0 0.0
        %2283 = vmatpush.msra.mxu0 0.0
        %2284 = vmatpush.msra.mxu0 0.0
        %2285 = vmatpush.msra.mxu0 %v2270
        %2286 = vmatpush.msra.mxu0 %v2262
        %2287 = vmatpush.msra.mxu0 %v2260
        %2288 = vmatmul.f32.gmra.mxu0 %v2268
        %v2289 = vpop.f32.mrf.mxu0
        %v2290 = vadd.f32 0.0, %v2289
        %2291 = vdwg.mxu0
        %v2293 = vsel %vm1265, %v2290, 0
        %2295 = vmatpush.msra.mxu0 0.0
        %2296 = vmatpush.msra.mxu0 0.0
        %2297 = vmatpush.msra.mxu0 0.0
        %2298 = vmatpush.msra.mxu0 0.0
        %2299 = vmatpush.msra.mxu0 0.0
        %2300 = vmatpush.msra.mxu0 0.0
        %2301 = vmatpush.msra.mxu0 0.0
        %2302 = vmatpush.msra.mxu0 0.0
        %2303 = vmatpush.msra.mxu0 0.0
        %2304 = vmatpush.msra.mxu0 0.0
        %2305 = vmatpush.msra.mxu0 0.0
        %2306 = vmatpush.msra.mxu0 0.0
        %2307 = vmatpush.msra.mxu0 0.0
        %2308 = vmatpush.msra.mxu0 0.0
        %2309 = vmatpush.msra.mxu0 %v1852
        %2310 = vmatpush.msra.mxu0 %v1851
        %2311 = vmatmul.f32.gmra.mxu0 %v2293
        %v2312 = vpop.f32.mrf.mxu0
        %v2313 = vadd.f32 0.0, %v2312
        %2314 = vdwg.mxu0
        %v2315 = vadd.f32 %v2197, %v2313
        %v2316 = vld [vmem:[#allocation16] sm:$0x1]
        %v2318 = vperm.slane %v2316, 0
        %v2320 = vadd.f32 %v2315, %v2318
        %v2321 = vadd.f32 %v1724, %v2320
        %v2322 = vld [vmem:[#allocation18] sm:$0x1]
        %v2323 = vld [vmem:[#allocation19] sm:$0x1]
        %v2324 = vsel %vm1169, %v2321, 0.0
        %2325 = vadd.xlane.f32.xlu0 %v2324
        %v2326 = vpop.xlane.xlu0 %2325
        %v2327 = vmul.f32 %v2326, %v1697
        %v2328 = vsub.f32 %v2321, %v2327
        %v2329 = vmul.f32 %v2328, %v2328
        %v2330 = vsel %vm1169, %v2329, 0.0
        %2331 = vadd.xlane.f32.xlu0 %v2330
        %v2332 = vpop.xlane.xlu0 %2331
        %v2333 = vmul.f32 %v2332, %v1697
        %v2334 = vadd.f32 %v2333, 1e-12
        %v2335 = vrsqrt.pop %v2334
        %v2336 = vmul.f32 %v2335, %v2334
        %v2337 = vmul.f32 %v2336, %v2335
        %v2338 = vmul.f32 0.5, %v2337
        %v2339 = vsub.f32 1.5, %v2338
        %v2340 = vmul.f32 %v2335, %v2339
        %vm2341 = vweird.f32 %v2334
        %vm2342 = vweird.f32 %v2335
        %vm2343 = vmor %vm2341, %vm2342
        %v2344 = vsel %vm2343, %v2335, %v2340
        %v2345 = vmul.f32 %v2328, %v2344
        %v2347 = vperm.slane %v2322, 0
        %v2349 = vmul.f32 %v2345, %v2347
        %v2351 = vperm.slane %v2323, 0
        %v2353 = vadd.f32 %v2349, %v2351
        %v2354 = vld [vmem:[%s47] sm:$0xff]
        %v2355 = vld [vmem:[%s47 + $0x8] sm:$0xff]
        %v2356 = vld [vmem:[%s47 + $0x10] sm:$0xff]
        %v2357 = vld [vmem:[%s47 + $0x18] sm:$0xff]
        %v2358 = vld [vmem:[%s47 + $0x20] sm:$0xff]
        %v2359 = vld [vmem:[%s47 + $0x28] sm:$0xff]
        %v2360 = vld [vmem:[%s47 + $0x30] sm:$0xff]
        %v2361 = vld [vmem:[%s47 + $0x38] sm:$0xff]
        %v2362 = vld [vmem:[%s47 + $0x40] sm:$0xff]
        %v2363 = vld [vmem:[%s47 + $0x48] sm:$0xff]
        %v2364 = vld [vmem:[%s47 + $0x50] sm:$0xff]
        %v2365 = vld [vmem:[%s47 + $0x58] sm:$0xff]
        %v2366 = vld [vmem:[%s47 + $0x60] sm:$0xff]
        %v2367 = vld [vmem:[%s47 + $0x68] sm:$0xff]
        %v2368 = vld [vmem:[%s47 + $0x70] sm:$0xff]
        %v2369 = vld [vmem:[%s47 + $0x78] sm:$0xff]
        %v2370 = vld [vmem:[%s49] sm:$0x3]
        %v2372 = vperm.slane %v2370, 0
        %v2373 = vperm.slane %v2370, 1
        %v2377 = vsel %vm1169, %v2353, 0
        %2379 = vmatpush.msra.mxu0 0.0
        %2380 = vmatpush.msra.mxu0 0.0
        %2381 = vmatpush.msra.mxu0 0.0
        %2382 = vmatpush.msra.mxu0 0.0
        %2383 = vmatpush.msra.mxu0 0.0
        %2384 = vmatpush.msra.mxu0 0.0
        %2385 = vmatpush.msra.mxu0 0.0
        %2386 = vmatpush.msra.mxu0 0.0
        %2387 = vmatpush.msra.mxu0 %v2368
        %2388 = vmatpush.msra.mxu0 %v2366
        %2389 = vmatpush.msra.mxu0 %v2364
        %2390 = vmatpush.msra.mxu0 %v2362
        %2391 = vmatpush.msra.mxu0 %v2360
        %2392 = vmatpush.msra.mxu0 %v2358
        %2393 = vmatpush.msra.mxu0 %v2356
        %2394 = vmatpush.msra.mxu0 %v2354
        %2395 = vmatmul.f32.gmra.mxu0 %v2377
        %v2396 = vpop.f32.mrf.mxu0
        %v2397 = vadd.f32 %v2372, %v2396
        %2398 = vdwg.mxu0
        %2399 = vmatpush.msra.mxu0 0.0
        %2400 = vmatpush.msra.mxu0 0.0
        %2401 = vmatpush.msra.mxu0 0.0
        %2402 = vmatpush.msra.mxu0 0.0
        %2403 = vmatpush.msra.mxu0 0.0
        %2404 = vmatpush.msra.mxu0 0.0
        %2405 = vmatpush.msra.mxu0 0.0
        %2406 = vmatpush.msra.mxu0 0.0
        %2407 = vmatpush.msra.mxu0 %v2369
        %2408 = vmatpush.msra.mxu0 %v2367
        %2409 = vmatpush.msra.mxu0 %v2365
        %2410 = vmatpush.msra.mxu0 %v2363
        %2411 = vmatpush.msra.mxu0 %v2361
        %2412 = vmatpush.msra.mxu0 %v2359
        %2413 = vmatpush.msra.mxu0 %v2357
        %2414 = vmatpush.msra.mxu0 %v2355
        %2415 = vmatmul.f32.gmra.mxu0 %v2377
        %v2416 = vpop.f32.mrf.mxu0
        %v2417 = vadd.f32 %v2373, %v2416
        %2418 = vdwg.mxu0
        %v2419 = vmul.f32 %v2397, 0.5
        %v2420 = vmul.f32 %v2417, 0.5
        %v2421 = vmul.f32 %v2397, 0.70710677
        %v2422 = vmul.f32 %v2417, 0.70710677
        %v2423 = vmul.f32 %v2421, %v2421
        %v2424 = vmin.f32 16.0, %v2423
        %v2425 = vmul.f32 %v2424, 2.1237322e-06
        %v2426 = vadd.f32 %v2425, 0.00028619796
        %v2427 = vmul.f32 %v2424, %v2426
        %v2428 = vadd.f32 %v2427, 0.0036580483
        %v2429 = vmul.f32 %v2424, %v2428
        %v2430 = vadd.f32 %v2429, 0.05243302
        %v2431 = vmul.f32 %v2424, %v2430
        %v2432 = vadd.f32 %v2431, 0.18741608
        %v2433 = vmul.f32 %v2424, %v2432
        %v2434 = vadd.f32 %v2433, 1.1283791
        %v2435 = vmul.f32 %v2421, %v2434
        %v2436 = vmul.f32 %v2424, 3.8918573e-05
        %v2437 = vadd.f32 %v2436, 0.001143296
        %v2438 = vmul.f32 %v2424, %v2437
        %v2439 = vadd.f32 %v2438, 0.014752088
        %v2440 = vmul.f32 %v2424, %v2439
        %v2441 = vadd.f32 %v2440, 0.112945676
        %v2442 = vmul.f32 %v2424, %v2441
        %v2443 = vadd.f32 %v2442, 0.4994258
        %v2444 = vmul.f32 %v2424, %v2443
        %v2445 = vadd.f32 %v2444, 1.0
        %v2446 = vrcp.pop %v2445
        %v2447 = vmul.f32 %v2445, %v2446
        %v2448 = vsub.f32 1.0, %v2447
        %v2449 = vmul.f32 %v2446, %v2448
        %v2450 = vadd.f32 %v2446, %v2449
        %vm2451 = vweird.f32 %v2445
        %vm2452 = vweird.f32 %v2446
        %vm2453 = vmor %vm2451, %vm2452
        %v2454 = vsel %vm2453, %v2446, %v2450
        %v2455 = vand.u32 2147483647, %v2445
        %vm2456 = vcmp.eq.f32.partialorder %v2455, 8.507059e+37
        %v2457 = vand.u32 %v2445, 2147483648
        %v2458 = vor.u32 1.1754944e-38, %v2457
        %v2459 = vsel %vm2456, %v2458, %v2454
        %v2460 = vmul.f32 %v2435, %v2459
        %v2461 = vmin.f32 %v2460, 1.0
        %v2462 = vmax.f32 %v2461, -1.0
        %v2463 = vmul.f32 %v2422, %v2422
        %v2464 = vmin.f32 16.0, %v2463
        %v2465 = vmul.f32 %v2464, 2.1237322e-06
        %v2466 = vadd.f32 %v2465, 0.00028619796
        %v2467 = vmul.f32 %v2464, %v2466
        %v2468 = vadd.f32 %v2467, 0.0036580483
        %v2469 = vmul.f32 %v2464, %v2468
        %v2470 = vadd.f32 %v2469, 0.05243302
        %v2471 = vmul.f32 %v2464, %v2470
        %v2472 = vadd.f32 %v2471, 0.18741608
        %v2473 = vmul.f32 %v2464, %v2472
        %v2474 = vadd.f32 %v2473, 1.1283791
        %v2475 = vmul.f32 %v2422, %v2474
        %v2476 = vmul.f32 %v2464, 3.8918573e-05
        %v2477 = vadd.f32 %v2476, 0.001143296
        %v2478 = vmul.f32 %v2464, %v2477
        %v2479 = vadd.f32 %v2478, 0.014752088
        %v2480 = vmul.f32 %v2464, %v2479
        %v2481 = vadd.f32 %v2480, 0.112945676
        %v2482 = vmul.f32 %v2464, %v2481
        %v2483 = vadd.f32 %v2482, 0.4994258
        %v2484 = vmul.f32 %v2464, %v2483
        %v2485 = vadd.f32 %v2484, 1.0
        %v2486 = vrcp.pop %v2485
        %v2487 = vmul.f32 %v2485, %v2486
        %v2488 = vsub.f32 1.0, %v2487
        %v2489 = vmul.f32 %v2486, %v2488
        %v2490 = vadd.f32 %v2486, %v2489
        %vm2491 = vweird.f32 %v2485
        %vm2492 = vweird.f32 %v2486
        %vm2493 = vmor %vm2491, %vm2492
        %v2494 = vsel %vm2493, %v2486, %v2490
        %v2495 = vand.u32 2147483647, %v2485
        %vm2496 = vcmp.eq.f32.partialorder %v2495, 8.507059e+37
        %v2497 = vand.u32 %v2485, 2147483648
        %v2498 = vor.u32 1.1754944e-38, %v2497
        %v2499 = vsel %vm2496, %v2498, %v2494
        %v2500 = vmul.f32 %v2475, %v2499
        %v2501 = vmin.f32 %v2500, 1.0
        %v2502 = vmax.f32 %v2501, -1.0
        %v2503 = vadd.f32 %v2462, 1.0
        %v2504 = vadd.f32 %v2502, 1.0
        %v2505 = vmul.f32 %v2419, %v2503
        %v2506 = vmul.f32 %v2420, %v2504
        %v2507 = vld [vmem:[%s51] sm:$0xff]
        %v2508 = vld [vmem:[%s51 + $0x8] sm:$0xff]
        %v2509 = vld [vmem:[%s51 + $0x10] sm:$0xff]
        %v2510 = vld [vmem:[%s51 + $0x18] sm:$0xff]
        %v2511 = vld [vmem:[%s51 + $0x20] sm:$0xff]
        %v2512 = vld [vmem:[%s51 + $0x28] sm:$0xff]
        %v2513 = vld [vmem:[%s51 + $0x30] sm:$0xff]
        %v2514 = vld [vmem:[%s51 + $0x38] sm:$0xff]
        %v2515 = vld [vmem:[%s51 + $0x40] sm:$0xff]
        %v2516 = vld [vmem:[%s51 + $0x48] sm:$0xff]
        %v2517 = vld [vmem:[%s51 + $0x50] sm:$0xff]
        %v2518 = vld [vmem:[%s51 + $0x58] sm:$0xff]
        %v2519 = vld [vmem:[%s51 + $0x60] sm:$0xff]
        %v2520 = vld [vmem:[%s51 + $0x68] sm:$0xff]
        %v2521 = vld [vmem:[%s51 + $0x70] sm:$0xff]
        %v2522 = vld [vmem:[%s51 + $0x78] sm:$0xff]
        %v2523 = vld [vmem:[%s51 + $0x80] sm:$0xff]
        %v2524 = vld [vmem:[%s51 + $0x88] sm:$0xff]
        %v2525 = vld [vmem:[%s51 + $0x90] sm:$0xff]
        %v2526 = vld [vmem:[%s51 + $0x98] sm:$0xff]
        %v2527 = vld [vmem:[%s51 + $0xa0] sm:$0xff]
        %v2528 = vld [vmem:[%s51 + $0xa8] sm:$0xff]
        %v2529 = vld [vmem:[%s51 + $0xb0] sm:$0xff]
        %v2530 = vld [vmem:[%s51 + $0xb8] sm:$0xff]
        %v2531 = vld [vmem:[%s51 + $0xc0] sm:$0xff]
        %v2532 = vld [vmem:[%s51 + $0xc8] sm:$0xff]
        %v2533 = vld [vmem:[%s51 + $0xd0] sm:$0xff]
        %v2534 = vld [vmem:[%s51 + $0xd8] sm:$0xff]
        %v2535 = vld [vmem:[%s51 + $0xe0] sm:$0xff]
        %v2536 = vld [vmem:[%s51 + $0xe8] sm:$0xff]
        %v2537 = vld [vmem:[%s51 + $0xf0] sm:$0xff]
        %v2538 = vld [vmem:[%s51 + $0xf8] sm:$0xff]
        %v2539 = vld [vmem:[#allocation21] sm:$0x1]
        %v2541 = vperm.slane %v2539, 0
        %2543 = vmatpush.msra.mxu0 %v2522
        %2544 = vmatpush.msra.mxu0 %v2521
        %2545 = vmatpush.msra.mxu0 %v2520
        %2546 = vmatpush.msra.mxu0 %v2519
        %2547 = vmatpush.msra.mxu0 %v2518
        %2548 = vmatpush.msra.mxu0 %v2517
        %2549 = vmatpush.msra.mxu0 %v2516
        %2550 = vmatpush.msra.mxu0 %v2515
        %2551 = vmatpush.msra.mxu0 %v2514
        %2552 = vmatpush.msra.mxu0 %v2513
        %2553 = vmatpush.msra.mxu0 %v2512
        %2554 = vmatpush.msra.mxu0 %v2511
        %2555 = vmatpush.msra.mxu0 %v2510
        %2556 = vmatpush.msra.mxu0 %v2509
        %2557 = vmatpush.msra.mxu0 %v2508
        %2558 = vmatpush.msra.mxu0 %v2507
        %2559 = vmatmul.f32.gmra.mxu0 %v2505
        %v2560 = vpop.f32.mrf.mxu0
        %v2561 = vadd.f32 %v2541, %v2560
        %2562 = vdwg.mxu0
        %2563 = vmatpush.msra.mxu0 %v2538
        %2564 = vmatpush.msra.mxu0 %v2537
        %2565 = vmatpush.msra.mxu0 %v2536
        %2566 = vmatpush.msra.mxu0 %v2535
        %2567 = vmatpush.msra.mxu0 %v2534
        %2568 = vmatpush.msra.mxu0 %v2533
        %2569 = vmatpush.msra.mxu0 %v2532
        %2570 = vmatpush.msra.mxu0 %v2531
        %2571 = vmatpush.msra.mxu0 %v2530
        %2572 = vmatpush.msra.mxu0 %v2529
        %2573 = vmatpush.msra.mxu0 %v2528
        %2574 = vmatpush.msra.mxu0 %v2527
        %2575 = vmatpush.msra.mxu0 %v2526
        %2576 = vmatpush.msra.mxu0 %v2525
        %2577 = vmatpush.msra.mxu0 %v2524
        %2578 = vmatpush.msra.mxu0 %v2523
        %2579 = vmatmul.f32.gmra.mxu0 %v2506
        %v2580 = vpop.f32.mrf.mxu0
        %v2581 = vadd.f32 %v2561, %v2580
        %2582 = vdwg.mxu0
        %v2583 = vadd.f32 %v2353, %v2581
        %v2584 = vld [vmem:[#allocation22] sm:$0x1]
        %v2585 = vld [vmem:[#allocation24] sm:$0x1]
        %v2586 = vsel %vm1169, %v2583, 0.0
        %2587 = vadd.xlane.f32.xlu0 %v2586
        %v2588 = vpop.xlane.xlu0 %2587
        %v2589 = vmul.f32 %v2588, %v1697
        %v2590 = vsub.f32 %v2583, %v2589
        %v2591 = vmul.f32 %v2590, %v2590
        %v2592 = vsel %vm1169, %v2591, 0.0
        %2593 = vadd.xlane.f32.xlu0 %v2592
        %v2594 = vpop.xlane.xlu0 %2593
        %v2595 = vmul.f32 %v2594, %v1697
        %v2596 = vadd.f32 %v2595, 1e-12
        %v2597 = vrsqrt.pop %v2596
        %v2598 = vmul.f32 %v2597, %v2596
        %v2599 = vmul.f32 %v2598, %v2597
        %v2600 = vmul.f32 0.5, %v2599
        %v2601 = vsub.f32 1.5, %v2600
        %v2602 = vmul.f32 %v2597, %v2601
        %vm2603 = vweird.f32 %v2596
        %vm2604 = vweird.f32 %v2597
        %vm2605 = vmor %vm2603, %vm2604
        %v2606 = vsel %vm2605, %v2597, %v2602
        %v2607 = vmul.f32 %v2590, %v2606
        %v2609 = vperm.slane %v2584, 0
        %v2611 = vmul.f32 %v2607, %v2609
        %v2613 = vperm.slane %v2585, 0
        %v2615 = vadd.f32 %v2611, %v2613
        %2616 = vst.msk [vmem:[%s1149] sm:$0xff] %vm1169, %v2615
        %p2617 = scmp.lt.s32.totalorder %s78, 1
        %s2618 = scalar_select %p2617, %s78, 1
        %s2619 = smul.addr %s2618, 8
        %s2620 = scalar_lea.vmem %s59, %s2619
        // Predicated region
        $region197: #{vl_transformer_itm.13} parent=135 // pred_check
          %p2621 = pneg %p720
        $region198: #{vl_transformer_itm.13} parent=135 // pred_check_branch
          %2623 = sbr.rel (%p2621) target = $region200
        $region199: #{vl_transformer_itm.13} parent=135 // pred_region
          _
        $region200: #{vl_transformer_itm.13} parent=135 // pred_fallthru
          _
      $region136: #{vl_transformer_itm.13} parent=5 // pred_fallthru
        _
      %p2624 = scmp.le.s32.totalorder 2, %s73
      // Predicated region
      $region201: #{vl_transformer_itm.13} parent=5 // pred_check
        %p2625 = pneg %p2624
      $region202: #{vl_transformer_itm.13} parent=5 // pred_check_branch
        %2627 = sbr.rel (%p2625) target = $region204
      $region203: #{vl_transformer_itm.13} parent=5 // pred_region
        %s2628 = ssub.s32 %s73, 2
        // Predicated region
        $region205: #{vl_transformer_itm.13} parent=203 // pred_check
          %p2629 = pneg %p726
        $region206: #{vl_transformer_itm.13} parent=203 // pred_check_branch
          %2631 = sbr.rel (%p2629) target = $region208
        $region207: #{vl_transformer_itm.13} parent=203 // pred_region
          %p2632 = scmp.lt.s32.totalorder %s79, 1
          %s2633 = scalar_select %p2632, %s79, 1
          %s2634 = smul.addr %s2633, 8
          %s2635 = scalar_lea.vmem %s59, %s2634
        $region208: #{vl_transformer_itm.13} parent=203 // pred_fallthru
          _
      $region204: #{vl_transformer_itm.13} parent=5 // pred_fallthru
        _
    $region6: #{vl_transformer_itm.13} parent=1 // loop_footer
      %s77 = sadd.s32 1, %s73
    $region7: #{vl_transformer_itm.13} parent=1 // loop_footer_branch
      %72 = sbr.rel target = $region3
    $region8: #{vl_transformer_itm.13} parent=1 // loop_exit
      _
    %2636 = vsyncpa [#allocation3], 1
    %s2637 = scalar_lea.sflag [#allocation3], 1
    %2638 = vsyncpa %s2637, 1
    %2639 = vsyncpa [#allocation5], 1
    %2640 = vsyncpa [#allocation8], 1
    %2641 = vsyncpa [#allocation11], 1
    %2642 = vsyncpa [#allocation14], 1
    %2643 = vsyncpa [#allocation17], 1
    %2644 = vsyncpa [#allocation20], 1
    %2645 = vsyncpa [#allocation23], 1

// kernel: vl_transformer_itm.14
$region0: #{vl_transformer_itm.14}
  #allocation0 [shape = 'u32[]', space=smem, size = 0x4, offset = 0x4, fixed_abs, tag = 'smem constant byte address 0x4 - core index']
  #allocation1 [shape = 'u32[72,128]{1,0:T(1,128)}', space=vmem, size = 0x9000, scoped, tag = 'internal scratch']
  %s0 = inlined_call_operand.smem [shape: u32[30], index: -1, kind: input, shape index: {}]
  %s1 = sld [smem:[%s0]]
  %s2 = scalar_lea.smem %s0, 1
  %s3 = sld [smem:[%s2]]
  %s4 = scalar_lea.smem %s0, 2
  %s5 = sld [smem:[%s4]]
  %s6 = scalar_lea.smem %s0, 3
  %s7 = sld [smem:[%s6]]
  %s8 = scalar_lea.smem %s0, 4
  %s9 = sld [smem:[%s8]]
  %s10 = scalar_lea.smem %s0, 5
  %s11 = sld [smem:[%s10]]
  %s12 = scalar_lea.smem %s0, 6
  %s13 = sld [smem:[%s12]]
  %s14 = scalar_lea.smem %s0, 7
  %s15 = sld [smem:[%s14]]
  %s16 = scalar_lea.smem %s0, 8
  %s17 = sld [smem:[%s16]]
  %s18 = scalar_lea.smem %s0, 9
  %s19 = sld [smem:[%s18]]
  %s20 = scalar_lea.smem %s0, 10
  %s21 = sld [smem:[%s20]]
  %s22 = scalar_lea.smem %s0, 11
  %s23 = sld [smem:[%s22]]
  %s24 = scalar_lea.smem %s0, 12
  %s25 = sld [smem:[%s24]]
  %s26 = scalar_lea.smem %s0, 13
  %s27 = sld [smem:[%s26]]
  %s28 = scalar_lea.smem %s0, 14
  %s29 = sld [smem:[%s28]]
  %s30 = scalar_lea.smem %s0, 15
  %s31 = sld [smem:[%s30]]
  %s32 = scalar_lea.smem %s0, 16
  %s33 = sld [smem:[%s32]]
  %s34 = scalar_lea.smem %s0, 17
  %s35 = sld [smem:[%s34]]
  %s36 = scalar_lea.smem %s0, 18
  %s37 = sld [smem:[%s36]]
  %s38 = scalar_lea.smem %s0, 19
  %s39 = sld [smem:[%s38]]
  %s40 = scalar_lea.smem %s0, 20
  %s41 = sld [smem:[%s40]]
  %s42 = scalar_lea.smem %s0, 21
  %s43 = sld [smem:[%s42]]
  %s44 = scalar_lea.smem %s0, 22
  %s45 = sld [smem:[%s44]]
  %s46 = scalar_lea.smem %s0, 23
  %s47 = sld [smem:[%s46]]
  %s48 = scalar_lea.smem %s0, 24
  %s49 = sld [smem:[%s48]]
  %s50 = scalar_lea.smem %s0, 25
  %s51 = sld [smem:[%s50]]
  %s52 = scalar_lea.smem %s0, 26
  %s53 = sld [smem:[%s52]]
  %s54 = scalar_lea.smem %s0, 27
  %s55 = sld [smem:[%s54]]
  %s56 = scalar_lea.smem %s0, 28
  %s57 = sld [smem:[%s56]]
  %s58 = scalar_lea.smem %s0, 29
  %s59 = sld [smem:[%s58]]
  %s60 = sld [smem:[#allocation0]]
  $region157: #{vl_transformer_itm.14} parent=0
    _
  %s62 = ssub.s32 1, %s60
  %s63 = scalar_select 0, %s62, %s60
  $region1: #{vl_transformer_itm.14} parent=0
    #allocation2 [shape = 'u8[512]{0}', space=vmem, size = 0x400, scoped, tag = 'input window, operand 27, single buffered']
    #allocation3 [shape = 's32[2]{0}', space=sflag, size = 0x8, scoped, tag = 'scoped memory for vl_transformer_itm.14']
    #allocation4 [shape = 'u8[512]{0}', space=vmem, size = 0x400, scoped, tag = 'input window, operand 28, single buffered']
    #allocation5 [shape = 's32[1]{0}', space=sflag, size = 0x4, scoped, tag = 'scoped memory for vl_transformer_itm.14']
    %64 = vsyncpa [#allocation3], 0
    %65 = vsyncpa [#allocation5], 0
    loop: start=0, step=1, limit=4
    $region2: #{vl_transformer_itm.14} parent=1 // loop_pre_header
      _
    $region3: #{vl_transformer_itm.14} parent=1 // loop_header
      %s67 = sphi 0, %s71
      %p68 = scmp.ge.s32.totalorder %s67, 4
      %s77 = sphi 0, %s79
      %s80 = sphi 0, %s77
      %s81 = sphi 0, %s80
      %s97 = sphi 0, %s81
      %s103 = sphi 0, %s105
      %s106 = sphi 0, %s103
      %s107 = sphi 0, %s106
      %s123 = sphi 0, %s107
      %s129 = sphi 0, %s131
      %s132 = sphi 0, %s129
      %s133 = sphi 0, %s132
      %s149 = sphi 0, %s133
      %s153 = sphi 0, %s153
      %s155 = sphi 0, %s153
      %s156 = sphi 0, %s155
      %s170 = sphi 0, %s156
      %s174 = sphi 0, %s174
      %s176 = sphi 0, %s174
      %s177 = sphi 0, %s176
      %s191 = sphi 0, %s177
      %s195 = sphi 0, %s195
      %s197 = sphi 0, %s195
      %s198 = sphi 0, %s197
      %s212 = sphi 0, %s198
      %s216 = sphi 0, %s216
      %s218 = sphi 0, %s216
      %s219 = sphi 0, %s218
      %s233 = sphi 0, %s219
      %s237 = sphi 0, %s237
      %s239 = sphi 0, %s237
      %s240 = sphi 0, %s239
      %s254 = sphi 0, %s240
      %s258 = sphi 0, %s258
      %s260 = sphi 0, %s258
      %s261 = sphi 0, %s260
      %s275 = sphi 0, %s261
      %s279 = sphi 0, %s279
      %s281 = sphi 0, %s279
      %s282 = sphi 0, %s281
      %s296 = sphi 0, %s282
      %s300 = sphi 0, %s300
      %s302 = sphi 0, %s300
      %s303 = sphi 0, %s302
      %s317 = sphi 0, %s303
      %s321 = sphi 0, %s321
      %s323 = sphi 0, %s321
      %s324 = sphi 0, %s323
      %s338 = sphi 0, %s324
      %s342 = sphi 0, %s342
      %s344 = sphi 0, %s342
      %s345 = sphi 0, %s344
      %s359 = sphi 0, %s345
      %s363 = sphi 0, %s363
      %s365 = sphi 0, %s363
      %s366 = sphi 0, %s365
      %s380 = sphi 0, %s366
      %s384 = sphi 0, %s384
      %s386 = sphi 0, %s384
      %s387 = sphi 0, %s386
      %s401 = sphi 0, %s387
      %s405 = sphi 0, %s405
      %s407 = sphi 0, %s405
      %s408 = sphi 0, %s407
      %s422 = sphi 0, %s408
      %s426 = sphi 0, %s426
      %s428 = sphi 0, %s426
      %s429 = sphi 0, %s428
      %s443 = sphi 0, %s429
      %s447 = sphi 0, %s447
      %s449 = sphi 0, %s447
      %s450 = sphi 0, %s449
      %s464 = sphi 0, %s450
      %s468 = sphi 0, %s468
      %s470 = sphi 0, %s468
      %s471 = sphi 0, %s470
      %s485 = sphi 0, %s471
      %s489 = sphi 0, %s489
      %s491 = sphi 0, %s489
      %s492 = sphi 0, %s491
      %s506 = sphi 0, %s492
      %s510 = sphi 0, %s510
      %s512 = sphi 0, %s510
      %s513 = sphi 0, %s512
      %s527 = sphi 0, %s513
      %s531 = sphi 0, %s531
      %s533 = sphi 0, %s531
      %s534 = sphi 0, %s533
      %s548 = sphi 0, %s534
      %s552 = sphi 0, %s552
      %s554 = sphi 0, %s552
      %s555 = sphi 0, %s554
      %s569 = sphi 0, %s555
      %s573 = sphi 0, %s573
      %s575 = sphi 0, %s573
      %s576 = sphi 0, %s575
      %s590 = sphi 0, %s576
      %s594 = sphi 0, %s594
      %s596 = sphi 0, %s594
      %s597 = sphi 0, %s596
      %s611 = sphi 0, %s597
      %s615 = sphi 0, %s615
      %s617 = sphi 0, %s615
      %s618 = sphi 0, %s617
      %s632 = sphi 0, %s618
      %s636 = sphi 0, %s636
      %s638 = sphi 0, %s636
      %s639 = sphi 0, %s638
      %s653 = sphi 0, %s639
      %s657 = sphi 0, %s657
      %s659 = sphi 0, %s657
      %s660 = sphi 0, %s659
      %s674 = sphi 0, %s660
      %s678 = sphi 0, %s678
      %s680 = sphi 0, %s678
      %s681 = sphi 0, %s680
      %s695 = sphi 0, %s681
      %s701 = sphi 0, %s703
      %s704 = sphi 0, %s701
      %s705 = sphi 0, %s704
      %s721 = sphi 0, %s705
    $region4: #{vl_transformer_itm.14} parent=1 // loop_header_branch
      %70 = sbr.rel (%p68) target = $region8
    $region5: #{vl_transformer_itm.14} parent=1 // loop_body
      %s72 = ssub.s32 %s67, 1
      %s73 = ssub.s32 %s67, 2
      %s74 = sadd.s32 %s67, 1
      %s75 = ssub.s32 %s67, %s74
      %p76 = scmp.eq.s32.totalorder %s75, 0
      %s78 = sadd.s32 %s77, 1
      %s79 = scalar_select %p76, %s77, %s78
      %p82 = pneg %p76
      %p83 = scmp.eq.s32.totalorder %s67, 1
      %p84 = por %p82, %p83
      %p85 = scmp.ne.s32.totalorder %s77, %s80
      %p86 = scmp.eq.s32.totalorder %s67, 0
      %p87 = por %p85, %p86
      %p88 = scmp.ne.s32.totalorder %s77, %s80
      %p89 = scmp.eq.s32.totalorder %s72, 1
      %p90 = por %p88, %p89
      %p91 = scmp.ne.s32.totalorder %s80, %s81
      %p92 = scmp.eq.s32.totalorder %s72, 0
      %p93 = por %p91, %p92
      %p94 = scmp.ne.s32.totalorder %s80, %s81
      %p95 = scmp.eq.s32.totalorder %s73, 1
      %p96 = por %p94, %p95
      %p98 = scmp.ne.s32.totalorder %s81, %s97
      %p99 = scmp.eq.s32.totalorder %s73, 0
      %p100 = por %p98, %p99
      %s101 = ssub.s32 %s67, %s74
      %p102 = scmp.eq.s32.totalorder %s101, 0
      %s104 = sadd.s32 %s103, 1
      %s105 = scalar_select %p102, %s103, %s104
      %p108 = pneg %p102
      %p109 = scmp.eq.s32.totalorder %s67, 1
      %p110 = por %p108, %p109
      %p111 = scmp.ne.s32.totalorder %s103, %s106
      %p112 = scmp.eq.s32.totalorder %s67, 0
      %p113 = por %p111, %p112
      %p114 = scmp.ne.s32.totalorder %s103, %s106
      %p115 = scmp.eq.s32.totalorder %s72, 1
      %p116 = por %p114, %p115
      %p117 = scmp.ne.s32.totalorder %s106, %s107
      %p118 = scmp.eq.s32.totalorder %s72, 0
      %p119 = por %p117, %p118
      %p120 = scmp.ne.s32.totalorder %s106, %s107
      %p121 = scmp.eq.s32.totalorder %s73, 1
      %p122 = por %p120, %p121
      %p124 = scmp.ne.s32.totalorder %s107, %s123
      %p125 = scmp.eq.s32.totalorder %s73, 0
      %p126 = por %p124, %p125
      %s127 = ssub.s32 %s67, %s74
      %p128 = scmp.eq.s32.totalorder %s127, 0
      %s130 = sadd.s32 %s129, 1
      %s131 = scalar_select %p128, %s129, %s130
      %p134 = pneg %p128
      %p135 = scmp.eq.s32.totalorder %s67, 1
      %p136 = por %p134, %p135
      %p137 = scmp.ne.s32.totalorder %s129, %s132
      %p138 = scmp.eq.s32.totalorder %s67, 0
      %p139 = por %p137, %p138
      %p140 = scmp.ne.s32.totalorder %s129, %s132
      %p141 = scmp.eq.s32.totalorder %s72, 1
      %p142 = por %p140, %p141
      %p143 = scmp.ne.s32.totalorder %s132, %s133
      %p144 = scmp.eq.s32.totalorder %s72, 0
      %p145 = por %p143, %p144
      %p146 = scmp.ne.s32.totalorder %s132, %s133
      %p147 = scmp.eq.s32.totalorder %s73, 1
      %p148 = por %p146, %p147
      %p150 = scmp.ne.s32.totalorder %s133, %s149
      %p151 = scmp.eq.s32.totalorder %s73, 0
      %p152 = por %p150, %p151
      %s154 = sadd.s32 %s153, 1
      %p157 = scmp.eq.s32.totalorder %s67, 1
      %p158 = scmp.ne.s32.totalorder %s153, %s155
      %p159 = scmp.eq.s32.totalorder %s67, 0
      %p160 = por %p158, %p159
      %p161 = scmp.ne.s32.totalorder %s153, %s155
      %p162 = scmp.eq.s32.totalorder %s72, 1
      %p163 = por %p161, %p162
      %p164 = scmp.ne.s32.totalorder %s155, %s156
      %p165 = scmp.eq.s32.totalorder %s72, 0
      %p166 = por %p164, %p165
      %p167 = scmp.ne.s32.totalorder %s155, %s156
      %p168 = scmp.eq.s32.totalorder %s73, 1
      %p169 = por %p167, %p168
      %p171 = scmp.ne.s32.totalorder %s156, %s170
      %p172 = scmp.eq.s32.totalorder %s73, 0
      %p173 = por %p171, %p172
      %s175 = sadd.s32 %s174, 1
      %p178 = scmp.eq.s32.totalorder %s67, 1
      %p179 = scmp.ne.s32.totalorder %s174, %s176
      %p180 = scmp.eq.s32.totalorder %s67, 0
      %p181 = por %p179, %p180
      %p182 = scmp.ne.s32.totalorder %s174, %s176
      %p183 = scmp.eq.s32.totalorder %s72, 1
      %p184 = por %p182, %p183
      %p185 = scmp.ne.s32.totalorder %s176, %s177
      %p186 = scmp.eq.s32.totalorder %s72, 0
      %p187 = por %p185, %p186
      %p188 = scmp.ne.s32.totalorder %s176, %s177
      %p189 = scmp.eq.s32.totalorder %s73, 1
      %p190 = por %p188, %p189
      %p192 = scmp.ne.s32.totalorder %s177, %s191
      %p193 = scmp.eq.s32.totalorder %s73, 0
      %p194 = por %p192, %p193
      %s196 = sadd.s32 %s195, 1
      %p199 = scmp.eq.s32.totalorder %s67, 1
      %p200 = scmp.ne.s32.totalorder %s195, %s197
      %p201 = scmp.eq.s32.totalorder %s67, 0
      %p202 = por %p200, %p201
      %p203 = scmp.ne.s32.totalorder %s195, %s197
      %p204 = scmp.eq.s32.totalorder %s72, 1
      %p205 = por %p203, %p204
      %p206 = scmp.ne.s32.totalorder %s197, %s198
      %p207 = scmp.eq.s32.totalorder %s72, 0
      %p208 = por %p206, %p207
      %p209 = scmp.ne.s32.totalorder %s197, %s198
      %p210 = scmp.eq.s32.totalorder %s73, 1
      %p211 = por %p209, %p210
      %p213 = scmp.ne.s32.totalorder %s198, %s212
      %p214 = scmp.eq.s32.totalorder %s73, 0
      %p215 = por %p213, %p214
      %s217 = sadd.s32 %s216, 1
      %p220 = scmp.eq.s32.totalorder %s67, 1
      %p221 = scmp.ne.s32.totalorder %s216, %s218
      %p222 = scmp.eq.s32.totalorder %s67, 0
      %p223 = por %p221, %p222
      %p224 = scmp.ne.s32.totalorder %s216, %s218
      %p225 = scmp.eq.s32.totalorder %s72, 1
      %p226 = por %p224, %p225
      %p227 = scmp.ne.s32.totalorder %s218, %s219
      %p228 = scmp.eq.s32.totalorder %s72, 0
      %p229 = por %p227, %p228
      %p230 = scmp.ne.s32.totalorder %s218, %s219
      %p231 = scmp.eq.s32.totalorder %s73, 1
      %p232 = por %p230, %p231
      %p234 = scmp.ne.s32.totalorder %s219, %s233
      %p235 = scmp.eq.s32.totalorder %s73, 0
      %p236 = por %p234, %p235
      %s238 = sadd.s32 %s237, 1
      %p241 = scmp.eq.s32.totalorder %s67, 1
      %p242 = scmp.ne.s32.totalorder %s237, %s239
      %p243 = scmp.eq.s32.totalorder %s67, 0
      %p244 = por %p242, %p243
      %p245 = scmp.ne.s32.totalorder %s237, %s239
      %p246 = scmp.eq.s32.totalorder %s72, 1
      %p247 = por %p245, %p246
      %p248 = scmp.ne.s32.totalorder %s239, %s240
      %p249 = scmp.eq.s32.totalorder %s72, 0
      %p250 = por %p248, %p249
      %p251 = scmp.ne.s32.totalorder %s239, %s240
      %p252 = scmp.eq.s32.totalorder %s73, 1
      %p253 = por %p251, %p252
      %p255 = scmp.ne.s32.totalorder %s240, %s254
      %p256 = scmp.eq.s32.totalorder %s73, 0
      %p257 = por %p255, %p256
      %s259 = sadd.s32 %s258, 1
      %p262 = scmp.eq.s32.totalorder %s67, 1
      %p263 = scmp.ne.s32.totalorder %s258, %s260
      %p264 = scmp.eq.s32.totalorder %s67, 0
      %p265 = por %p263, %p264
      %p266 = scmp.ne.s32.totalorder %s258, %s260
      %p267 = scmp.eq.s32.totalorder %s72, 1
      %p268 = por %p266, %p267
      %p269 = scmp.ne.s32.totalorder %s260, %s261
      %p270 = scmp.eq.s32.totalorder %s72, 0
      %p271 = por %p269, %p270
      %p272 = scmp.ne.s32.totalorder %s260, %s261
      %p273 = scmp.eq.s32.totalorder %s73, 1
      %p274 = por %p272, %p273
      %p276 = scmp.ne.s32.totalorder %s261, %s275
      %p277 = scmp.eq.s32.totalorder %s73, 0
      %p278 = por %p276, %p277
      %s280 = sadd.s32 %s279, 1
      %p283 = scmp.eq.s32.totalorder %s67, 1
      %p284 = scmp.ne.s32.totalorder %s279, %s281
      %p285 = scmp.eq.s32.totalorder %s67, 0
      %p286 = por %p284, %p285
      %p287 = scmp.ne.s32.totalorder %s279, %s281
      %p288 = scmp.eq.s32.totalorder %s72, 1
      %p289 = por %p287, %p288
      %p290 = scmp.ne.s32.totalorder %s281, %s282
      %p291 = scmp.eq.s32.totalorder %s72, 0
      %p292 = por %p290, %p291
      %p293 = scmp.ne.s32.totalorder %s281, %s282
      %p294 = scmp.eq.s32.totalorder %s73, 1
      %p295 = por %p293, %p294
      %p297 = scmp.ne.s32.totalorder %s282, %s296
      %p298 = scmp.eq.s32.totalorder %s73, 0
      %p299 = por %p297, %p298
      %s301 = sadd.s32 %s300, 1
      %p304 = scmp.eq.s32.totalorder %s67, 1
      %p305 = scmp.ne.s32.totalorder %s300, %s302
      %p306 = scmp.eq.s32.totalorder %s67, 0
      %p307 = por %p305, %p306
      %p308 = scmp.ne.s32.totalorder %s300, %s302
      %p309 = scmp.eq.s32.totalorder %s72, 1
      %p310 = por %p308, %p309
      %p311 = scmp.ne.s32.totalorder %s302, %s303
      %p312 = scmp.eq.s32.totalorder %s72, 0
      %p313 = por %p311, %p312
      %p314 = scmp.ne.s32.totalorder %s302, %s303
      %p315 = scmp.eq.s32.totalorder %s73, 1
      %p316 = por %p314, %p315
      %p318 = scmp.ne.s32.totalorder %s303, %s317
      %p319 = scmp.eq.s32.totalorder %s73, 0
      %p320 = por %p318, %p319
      %s322 = sadd.s32 %s321, 1
      %p325 = scmp.eq.s32.totalorder %s67, 1
      %p326 = scmp.ne.s32.totalorder %s321, %s323
      %p327 = scmp.eq.s32.totalorder %s67, 0
      %p328 = por %p326, %p327
      %p329 = scmp.ne.s32.totalorder %s321, %s323
      %p330 = scmp.eq.s32.totalorder %s72, 1
      %p331 = por %p329, %p330
      %p332 = scmp.ne.s32.totalorder %s323, %s324
      %p333 = scmp.eq.s32.totalorder %s72, 0
      %p334 = por %p332, %p333
      %p335 = scmp.ne.s32.totalorder %s323, %s324
      %p336 = scmp.eq.s32.totalorder %s73, 1
      %p337 = por %p335, %p336
      %p339 = scmp.ne.s32.totalorder %s324, %s338
      %p340 = scmp.eq.s32.totalorder %s73, 0
      %p341 = por %p339, %p340
      %s343 = sadd.s32 %s342, 1
      %p346 = scmp.eq.s32.totalorder %s67, 1
      %p347 = scmp.ne.s32.totalorder %s342, %s344
      %p348 = scmp.eq.s32.totalorder %s67, 0
      %p349 = por %p347, %p348
      %p350 = scmp.ne.s32.totalorder %s342, %s344
      %p351 = scmp.eq.s32.totalorder %s72, 1
      %p352 = por %p350, %p351
      %p353 = scmp.ne.s32.totalorder %s344, %s345
      %p354 = scmp.eq.s32.totalorder %s72, 0
      %p355 = por %p353, %p354
      %p356 = scmp.ne.s32.totalorder %s344, %s345
      %p357 = scmp.eq.s32.totalorder %s73, 1
      %p358 = por %p356, %p357
      %p360 = scmp.ne.s32.totalorder %s345, %s359
      %p361 = scmp.eq.s32.totalorder %s73, 0
      %p362 = por %p360, %p361
      %s364 = sadd.s32 %s363, 1
      %p367 = scmp.eq.s32.totalorder %s67, 1
      %p368 = scmp.ne.s32.totalorder %s363, %s365
      %p369 = scmp.eq.s32.totalorder %s67, 0
      %p370 = por %p368, %p369
      %p371 = scmp.ne.s32.totalorder %s363, %s365
      %p372 = scmp.eq.s32.totalorder %s72, 1
      %p373 = por %p371, %p372
      %p374 = scmp.ne.s32.totalorder %s365, %s366
      %p375 = scmp.eq.s32.totalorder %s72, 0
      %p376 = por %p374, %p375
      %p377 = scmp.ne.s32.totalorder %s365, %s366
      %p378 = scmp.eq.s32.totalorder %s73, 1
      %p379 = por %p377, %p378
      %p381 = scmp.ne.s32.totalorder %s366, %s380
      %p382 = scmp.eq.s32.totalorder %s73, 0
      %p383 = por %p381, %p382
      %s385 = sadd.s32 %s384, 1
      %p388 = scmp.eq.s32.totalorder %s67, 1
      %p389 = scmp.ne.s32.totalorder %s384, %s386
      %p390 = scmp.eq.s32.totalorder %s67, 0
      %p391 = por %p389, %p390
      %p392 = scmp.ne.s32.totalorder %s384, %s386
      %p393 = scmp.eq.s32.totalorder %s72, 1
      %p394 = por %p392, %p393
      %p395 = scmp.ne.s32.totalorder %s386, %s387
      %p396 = scmp.eq.s32.totalorder %s72, 0
      %p397 = por %p395, %p396
      %p398 = scmp.ne.s32.totalorder %s386, %s387
      %p399 = scmp.eq.s32.totalorder %s73, 1
      %p400 = por %p398, %p399
      %p402 = scmp.ne.s32.totalorder %s387, %s401
      %p403 = scmp.eq.s32.totalorder %s73, 0
      %p404 = por %p402, %p403
      %s406 = sadd.s32 %s405, 1
      %p409 = scmp.eq.s32.totalorder %s67, 1
      %p410 = scmp.ne.s32.totalorder %s405, %s407
      %p411 = scmp.eq.s32.totalorder %s67, 0
      %p412 = por %p410, %p411
      %p413 = scmp.ne.s32.totalorder %s405, %s407
      %p414 = scmp.eq.s32.totalorder %s72, 1
      %p415 = por %p413, %p414
      %p416 = scmp.ne.s32.totalorder %s407, %s408
      %p417 = scmp.eq.s32.totalorder %s72, 0
      %p418 = por %p416, %p417
      %p419 = scmp.ne.s32.totalorder %s407, %s408
      %p420 = scmp.eq.s32.totalorder %s73, 1
      %p421 = por %p419, %p420
      %p423 = scmp.ne.s32.totalorder %s408, %s422
      %p424 = scmp.eq.s32.totalorder %s73, 0
      %p425 = por %p423, %p424
      %s427 = sadd.s32 %s426, 1
      %p430 = scmp.eq.s32.totalorder %s67, 1
      %p431 = scmp.ne.s32.totalorder %s426, %s428
      %p432 = scmp.eq.s32.totalorder %s67, 0
      %p433 = por %p431, %p432
      %p434 = scmp.ne.s32.totalorder %s426, %s428
      %p435 = scmp.eq.s32.totalorder %s72, 1
      %p436 = por %p434, %p435
      %p437 = scmp.ne.s32.totalorder %s428, %s429
      %p438 = scmp.eq.s32.totalorder %s72, 0
      %p439 = por %p437, %p438
      %p440 = scmp.ne.s32.totalorder %s428, %s429
      %p441 = scmp.eq.s32.totalorder %s73, 1
      %p442 = por %p440, %p441
      %p444 = scmp.ne.s32.totalorder %s429, %s443
      %p445 = scmp.eq.s32.totalorder %s73, 0
      %p446 = por %p444, %p445
      %s448 = sadd.s32 %s447, 1
      %p451 = scmp.eq.s32.totalorder %s67, 1
      %p452 = scmp.ne.s32.totalorder %s447, %s449
      %p453 = scmp.eq.s32.totalorder %s67, 0
      %p454 = por %p452, %p453
      %p455 = scmp.ne.s32.totalorder %s447, %s449
      %p456 = scmp.eq.s32.totalorder %s72, 1
      %p457 = por %p455, %p456
      %p458 = scmp.ne.s32.totalorder %s449, %s450
      %p459 = scmp.eq.s32.totalorder %s72, 0
      %p460 = por %p458, %p459
      %p461 = scmp.ne.s32.totalorder %s449, %s450
      %p462 = scmp.eq.s32.totalorder %s73, 1
      %p463 = por %p461, %p462
      %p465 = scmp.ne.s32.totalorder %s450, %s464
      %p466 = scmp.eq.s32.totalorder %s73, 0
      %p467 = por %p465, %p466
      %s469 = sadd.s32 %s468, 1
      %p472 = scmp.eq.s32.totalorder %s67, 1
      %p473 = scmp.ne.s32.totalorder %s468, %s470
      %p474 = scmp.eq.s32.totalorder %s67, 0
      %p475 = por %p473, %p474
      %p476 = scmp.ne.s32.totalorder %s468, %s470
      %p477 = scmp.eq.s32.totalorder %s72, 1
      %p478 = por %p476, %p477
      %p479 = scmp.ne.s32.totalorder %s470, %s471
      %p480 = scmp.eq.s32.totalorder %s72, 0
      %p481 = por %p479, %p480
      %p482 = scmp.ne.s32.totalorder %s470, %s471
      %p483 = scmp.eq.s32.totalorder %s73, 1
      %p484 = por %p482, %p483
      %p486 = scmp.ne.s32.totalorder %s471, %s485
      %p487 = scmp.eq.s32.totalorder %s73, 0
      %p488 = por %p486, %p487
      %s490 = sadd.s32 %s489, 1
      %p493 = scmp.eq.s32.totalorder %s67, 1
      %p494 = scmp.ne.s32.totalorder %s489, %s491
      %p495 = scmp.eq.s32.totalorder %s67, 0
      %p496 = por %p494, %p495
      %p497 = scmp.ne.s32.totalorder %s489, %s491
      %p498 = scmp.eq.s32.totalorder %s72, 1
      %p499 = por %p497, %p498
      %p500 = scmp.ne.s32.totalorder %s491, %s492
      %p501 = scmp.eq.s32.totalorder %s72, 0
      %p502 = por %p500, %p501
      %p503 = scmp.ne.s32.totalorder %s491, %s492
      %p504 = scmp.eq.s32.totalorder %s73, 1
      %p505 = por %p503, %p504
      %p507 = scmp.ne.s32.totalorder %s492, %s506
      %p508 = scmp.eq.s32.totalorder %s73, 0
      %p509 = por %p507, %p508
      %s511 = sadd.s32 %s510, 1
      %p514 = scmp.eq.s32.totalorder %s67, 1
      %p515 = scmp.ne.s32.totalorder %s510, %s512
      %p516 = scmp.eq.s32.totalorder %s67, 0
      %p517 = por %p515, %p516
      %p518 = scmp.ne.s32.totalorder %s510, %s512
      %p519 = scmp.eq.s32.totalorder %s72, 1
      %p520 = por %p518, %p519
      %p521 = scmp.ne.s32.totalorder %s512, %s513
      %p522 = scmp.eq.s32.totalorder %s72, 0
      %p523 = por %p521, %p522
      %p524 = scmp.ne.s32.totalorder %s512, %s513
      %p525 = scmp.eq.s32.totalorder %s73, 1
      %p526 = por %p524, %p525
      %p528 = scmp.ne.s32.totalorder %s513, %s527
      %p529 = scmp.eq.s32.totalorder %s73, 0
      %p530 = por %p528, %p529
      %s532 = sadd.s32 %s531, 1
      %p535 = scmp.eq.s32.totalorder %s67, 1
      %p536 = scmp.ne.s32.totalorder %s531, %s533
      %p537 = scmp.eq.s32.totalorder %s67, 0
      %p538 = por %p536, %p537
      %p539 = scmp.ne.s32.totalorder %s531, %s533
      %p540 = scmp.eq.s32.totalorder %s72, 1
      %p541 = por %p539, %p540
      %p542 = scmp.ne.s32.totalorder %s533, %s534
      %p543 = scmp.eq.s32.totalorder %s72, 0
      %p544 = por %p542, %p543
      %p545 = scmp.ne.s32.totalorder %s533, %s534
      %p546 = scmp.eq.s32.totalorder %s73, 1
      %p547 = por %p545, %p546
      %p549 = scmp.ne.s32.totalorder %s534, %s548
      %p550 = scmp.eq.s32.totalorder %s73, 0
      %p551 = por %p549, %p550
      %s553 = sadd.s32 %s552, 1
      %p556 = scmp.eq.s32.totalorder %s67, 1
      %p557 = scmp.ne.s32.totalorder %s552, %s554
      %p558 = scmp.eq.s32.totalorder %s67, 0
      %p559 = por %p557, %p558
      %p560 = scmp.ne.s32.totalorder %s552, %s554
      %p561 = scmp.eq.s32.totalorder %s72, 1
      %p562 = por %p560, %p561
      %p563 = scmp.ne.s32.totalorder %s554, %s555
      %p564 = scmp.eq.s32.totalorder %s72, 0
      %p565 = por %p563, %p564
      %p566 = scmp.ne.s32.totalorder %s554, %s555
      %p567 = scmp.eq.s32.totalorder %s73, 1
      %p568 = por %p566, %p567
      %p570 = scmp.ne.s32.totalorder %s555, %s569
      %p571 = scmp.eq.s32.totalorder %s73, 0
      %p572 = por %p570, %p571
      %s574 = sadd.s32 %s573, 1
      %p577 = scmp.eq.s32.totalorder %s67, 1
      %p578 = scmp.ne.s32.totalorder %s573, %s575
      %p579 = scmp.eq.s32.totalorder %s67, 0
      %p580 = por %p578, %p579
      %p581 = scmp.ne.s32.totalorder %s573, %s575
      %p582 = scmp.eq.s32.totalorder %s72, 1
      %p583 = por %p581, %p582
      %p584 = scmp.ne.s32.totalorder %s575, %s576
      %p585 = scmp.eq.s32.totalorder %s72, 0
      %p586 = por %p584, %p585
      %p587 = scmp.ne.s32.totalorder %s575, %s576
      %p588 = scmp.eq.s32.totalorder %s73, 1
      %p589 = por %p587, %p588
      %p591 = scmp.ne.s32.totalorder %s576, %s590
      %p592 = scmp.eq.s32.totalorder %s73, 0
      %p593 = por %p591, %p592
      %s595 = sadd.s32 %s594, 1
      %p598 = scmp.eq.s32.totalorder %s67, 1
      %p599 = scmp.ne.s32.totalorder %s594, %s596
      %p600 = scmp.eq.s32.totalorder %s67, 0
      %p601 = por %p599, %p600
      %p602 = scmp.ne.s32.totalorder %s594, %s596
      %p603 = scmp.eq.s32.totalorder %s72, 1
      %p604 = por %p602, %p603
      %p605 = scmp.ne.s32.totalorder %s596, %s597
      %p606 = scmp.eq.s32.totalorder %s72, 0
      %p607 = por %p605, %p606
      %p608 = scmp.ne.s32.totalorder %s596, %s597
      %p609 = scmp.eq.s32.totalorder %s73, 1
      %p610 = por %p608, %p609
      %p612 = scmp.ne.s32.totalorder %s597, %s611
      %p613 = scmp.eq.s32.totalorder %s73, 0
      %p614 = por %p612, %p613
      %s616 = sadd.s32 %s615, 1
      %p619 = scmp.eq.s32.totalorder %s67, 1
      %p620 = scmp.ne.s32.totalorder %s615, %s617
      %p621 = scmp.eq.s32.totalorder %s67, 0
      %p622 = por %p620, %p621
      %p623 = scmp.ne.s32.totalorder %s615, %s617
      %p624 = scmp.eq.s32.totalorder %s72, 1
      %p625 = por %p623, %p624
      %p626 = scmp.ne.s32.totalorder %s617, %s618
      %p627 = scmp.eq.s32.totalorder %s72, 0
      %p628 = por %p626, %p627
      %p629 = scmp.ne.s32.totalorder %s617, %s618
      %p630 = scmp.eq.s32.totalorder %s73, 1
      %p631 = por %p629, %p630
      %p633 = scmp.ne.s32.totalorder %s618, %s632
      %p634 = scmp.eq.s32.totalorder %s73, 0
      %p635 = por %p633, %p634
      %s637 = sadd.s32 %s636, 1
      %p640 = scmp.eq.s32.totalorder %s67, 1
      %p641 = scmp.ne.s32.totalorder %s636, %s638
      %p642 = scmp.eq.s32.totalorder %s67, 0
      %p643 = por %p641, %p642
      %p644 = scmp.ne.s32.totalorder %s636, %s638
      %p645 = scmp.eq.s32.totalorder %s72, 1
      %p646 = por %p644, %p645
      %p647 = scmp.ne.s32.totalorder %s638, %s639
      %p648 = scmp.eq.s32.totalorder %s72, 0
      %p649 = por %p647, %p648
      %p650 = scmp.ne.s32.totalorder %s638, %s639
      %p651 = scmp.eq.s32.totalorder %s73, 1
      %p652 = por %p650, %p651
      %p654 = scmp.ne.s32.totalorder %s639, %s653
      %p655 = scmp.eq.s32.totalorder %s73, 0
      %p656 = por %p654, %p655
      %s658 = sadd.s32 %s657, 1
      %p661 = scmp.eq.s32.totalorder %s67, 1
      %p662 = scmp.ne.s32.totalorder %s657, %s659
      %p663 = scmp.eq.s32.totalorder %s67, 0
      %p664 = por %p662, %p663
      %p665 = scmp.ne.s32.totalorder %s657, %s659
      %p666 = scmp.eq.s32.totalorder %s72, 1
      %p667 = por %p665, %p666
      %p668 = scmp.ne.s32.totalorder %s659, %s660
      %p669 = scmp.eq.s32.totalorder %s72, 0
      %p670 = por %p668, %p669
      %p671 = scmp.ne.s32.totalorder %s659, %s660
      %p672 = scmp.eq.s32.totalorder %s73, 1
      %p673 = por %p671, %p672
      %p675 = scmp.ne.s32.totalorder %s660, %s674
      %p676 = scmp.eq.s32.totalorder %s73, 0
      %p677 = por %p675, %p676
      %s679 = sadd.s32 %s678, 1
      %p682 = scmp.eq.s32.totalorder %s67, 1
      %p683 = scmp.ne.s32.totalorder %s678, %s680
      %p684 = scmp.eq.s32.totalorder %s67, 0
      %p685 = por %p683, %p684
      %p686 = scmp.ne.s32.totalorder %s678, %s680
      %p687 = scmp.eq.s32.totalorder %s72, 1
      %p688 = por %p686, %p687
      %p689 = scmp.ne.s32.totalorder %s680, %s681
      %p690 = scmp.eq.s32.totalorder %s72, 0
      %p691 = por %p689, %p690
      %p692 = scmp.ne.s32.totalorder %s680, %s681
      %p693 = scmp.eq.s32.totalorder %s73, 1
      %p694 = por %p692, %p693
      %p696 = scmp.ne.s32.totalorder %s681, %s695
      %p697 = scmp.eq.s32.totalorder %s73, 0
      %p698 = por %p696, %p697
      %s699 = ssub.s32 %s67, %s74
      %p700 = scmp.eq.s32.totalorder %s699, 0
      %s702 = sadd.s32 %s701, 1
      %s703 = scalar_select %p700, %s701, %s702
      %p706 = pneg %p700
      %p707 = scmp.eq.s32.totalorder %s67, 1
      %p708 = por %p706, %p707
      %p709 = scmp.ne.s32.totalorder %s701, %s704
      %p710 = scmp.eq.s32.totalorder %s67, 0
      %p711 = por %p709, %p710
      %p712 = scmp.ne.s32.totalorder %s701, %s704
      %p713 = scmp.eq.s32.totalorder %s72, 1
      %p714 = por %p712, %p713
      %p715 = scmp.ne.s32.totalorder %s704, %s705
      %p716 = scmp.eq.s32.totalorder %s72, 0
      %p717 = por %p715, %p716
      %p718 = scmp.ne.s32.totalorder %s704, %s705
      %p719 = scmp.eq.s32.totalorder %s73, 1
      %p720 = por %p718, %p719
      %p722 = scmp.ne.s32.totalorder %s705, %s721
      %p723 = scmp.eq.s32.totalorder %s73, 0
      %p724 = por %p722, %p723
      %p725 = scmp.le.s32.totalorder 1, %s67
      %p726 = scmp.lt.s32.totalorder %s67, 3
      %p727 = pnand %p725, %p726
      %p728 = pneg %p727
      // Predicated region
      $region9: #{vl_transformer_itm.14} parent=5 // pred_check
        _
      $region10: #{vl_transformer_itm.14} parent=5 // pred_check_branch
        %730 = sbr.rel (%p727) target = $region12
      $region11: #{vl_transformer_itm.14} parent=5 // pred_region
        %s731 = ssub.s32 %s67, 1
        // Predicated region
        $region13: #{vl_transformer_itm.14} parent=11 // pred_check
          %p732 = pneg %p166
        $region14: #{vl_transformer_itm.14} parent=11 // pred_check_branch
          %734 = sbr.rel (%p732) target = $region16
        $region15: #{vl_transformer_itm.14} parent=11 // pred_region
          _
        $region16: #{vl_transformer_itm.14} parent=11 // pred_fallthru
          _
        // Predicated region
        $region17: #{vl_transformer_itm.14} parent=11 // pred_check
          %p735 = pneg %p187
        $region18: #{vl_transformer_itm.14} parent=11 // pred_check_branch
          %737 = sbr.rel (%p735) target = $region20
        $region19: #{vl_transformer_itm.14} parent=11 // pred_region
          _
        $region20: #{vl_transformer_itm.14} parent=11 // pred_fallthru
          _
        // Predicated region
        $region21: #{vl_transformer_itm.14} parent=11 // pred_check
          %p738 = pneg %p208
        $region22: #{vl_transformer_itm.14} parent=11 // pred_check_branch
          %740 = sbr.rel (%p738) target = $region24
        $region23: #{vl_transformer_itm.14} parent=11 // pred_region
          _
        $region24: #{vl_transformer_itm.14} parent=11 // pred_fallthru
          _
        // Predicated region
        $region25: #{vl_transformer_itm.14} parent=11 // pred_check
          %p741 = pneg %p229
        $region26: #{vl_transformer_itm.14} parent=11 // pred_check_branch
          %743 = sbr.rel (%p741) target = $region28
        $region27: #{vl_transformer_itm.14} parent=11 // pred_region
          _
        $region28: #{vl_transformer_itm.14} parent=11 // pred_fallthru
          _
        // Predicated region
        $region29: #{vl_transformer_itm.14} parent=11 // pred_check
          %p744 = pneg %p250
        $region30: #{vl_transformer_itm.14} parent=11 // pred_check_branch
          %746 = sbr.rel (%p744) target = $region32
        $region31: #{vl_transformer_itm.14} parent=11 // pred_region
          _
        $region32: #{vl_transformer_itm.14} parent=11 // pred_fallthru
          _
        // Predicated region
        $region33: #{vl_transformer_itm.14} parent=11 // pred_check
          %p747 = pneg %p271
        $region34: #{vl_transformer_itm.14} parent=11 // pred_check_branch
          %749 = sbr.rel (%p747) target = $region36
        $region35: #{vl_transformer_itm.14} parent=11 // pred_region
          _
        $region36: #{vl_transformer_itm.14} parent=11 // pred_fallthru
          _
        // Predicated region
        $region37: #{vl_transformer_itm.14} parent=11 // pred_check
          %p750 = pneg %p292
        $region38: #{vl_transformer_itm.14} parent=11 // pred_check_branch
          %752 = sbr.rel (%p750) target = $region40
        $region39: #{vl_transformer_itm.14} parent=11 // pred_region
          _
        $region40: #{vl_transformer_itm.14} parent=11 // pred_fallthru
          _
        // Predicated region
        $region41: #{vl_transformer_itm.14} parent=11 // pred_check
          %p753 = pneg %p313
        $region42: #{vl_transformer_itm.14} parent=11 // pred_check_branch
          %755 = sbr.rel (%p753) target = $region44
        $region43: #{vl_transformer_itm.14} parent=11 // pred_region
          _
        $region44: #{vl_transformer_itm.14} parent=11 // pred_fallthru
          _
        // Predicated region
        $region45: #{vl_transformer_itm.14} parent=11 // pred_check
          %p756 = pneg %p334
        $region46: #{vl_transformer_itm.14} parent=11 // pred_check_branch
          %758 = sbr.rel (%p756) target = $region48
        $region47: #{vl_transformer_itm.14} parent=11 // pred_region
          _
        $region48: #{vl_transformer_itm.14} parent=11 // pred_fallthru
          _
        // Predicated region
        $region49: #{vl_transformer_itm.14} parent=11 // pred_check
          %p759 = pneg %p355
        $region50: #{vl_transformer_itm.14} parent=11 // pred_check_branch
          %761 = sbr.rel (%p759) target = $region52
        $region51: #{vl_transformer_itm.14} parent=11 // pred_region
          _
        $region52: #{vl_transformer_itm.14} parent=11 // pred_fallthru
          _
        // Predicated region
        $region53: #{vl_transformer_itm.14} parent=11 // pred_check
          %p762 = pneg %p376
        $region54: #{vl_transformer_itm.14} parent=11 // pred_check_branch
          %764 = sbr.rel (%p762) target = $region56
        $region55: #{vl_transformer_itm.14} parent=11 // pred_region
          _
        $region56: #{vl_transformer_itm.14} parent=11 // pred_fallthru
          _
        // Predicated region
        $region57: #{vl_transformer_itm.14} parent=11 // pred_check
          %p765 = pneg %p397
        $region58: #{vl_transformer_itm.14} parent=11 // pred_check_branch
          %767 = sbr.rel (%p765) target = $region60
        $region59: #{vl_transformer_itm.14} parent=11 // pred_region
          _
        $region60: #{vl_transformer_itm.14} parent=11 // pred_fallthru
          _
        // Predicated region
        $region61: #{vl_transformer_itm.14} parent=11 // pred_check
          %p768 = pneg %p418
        $region62: #{vl_transformer_itm.14} parent=11 // pred_check_branch
          %770 = sbr.rel (%p768) target = $region64
        $region63: #{vl_transformer_itm.14} parent=11 // pred_region
          _
        $region64: #{vl_transformer_itm.14} parent=11 // pred_fallthru
          _
        // Predicated region
        $region65: #{vl_transformer_itm.14} parent=11 // pred_check
          %p771 = pneg %p439
        $region66: #{vl_transformer_itm.14} parent=11 // pred_check_branch
          %773 = sbr.rel (%p771) target = $region68
        $region67: #{vl_transformer_itm.14} parent=11 // pred_region
          _
        $region68: #{vl_transformer_itm.14} parent=11 // pred_fallthru
          _
        // Predicated region
        $region69: #{vl_transformer_itm.14} parent=11 // pred_check
          %p774 = pneg %p460
        $region70: #{vl_transformer_itm.14} parent=11 // pred_check_branch
          %776 = sbr.rel (%p774) target = $region72
        $region71: #{vl_transformer_itm.14} parent=11 // pred_region
          _
        $region72: #{vl_transformer_itm.14} parent=11 // pred_fallthru
          _
        // Predicated region
        $region73: #{vl_transformer_itm.14} parent=11 // pred_check
          %p777 = pneg %p481
        $region74: #{vl_transformer_itm.14} parent=11 // pred_check_branch
          %779 = sbr.rel (%p777) target = $region76
        $region75: #{vl_transformer_itm.14} parent=11 // pred_region
          _
        $region76: #{vl_transformer_itm.14} parent=11 // pred_fallthru
          _
        // Predicated region
        $region77: #{vl_transformer_itm.14} parent=11 // pred_check
          %p780 = pneg %p502
        $region78: #{vl_transformer_itm.14} parent=11 // pred_check_branch
          %782 = sbr.rel (%p780) target = $region80
        $region79: #{vl_transformer_itm.14} parent=11 // pred_region
          _
        $region80: #{vl_transformer_itm.14} parent=11 // pred_fallthru
          _
        // Predicated region
        $region81: #{vl_transformer_itm.14} parent=11 // pred_check
          %p783 = pneg %p523
        $region82: #{vl_transformer_itm.14} parent=11 // pred_check_branch
          %785 = sbr.rel (%p783) target = $region84
        $region83: #{vl_transformer_itm.14} parent=11 // pred_region
          _
        $region84: #{vl_transformer_itm.14} parent=11 // pred_fallthru
          _
        // Predicated region
        $region85: #{vl_transformer_itm.14} parent=11 // pred_check
          %p786 = pneg %p544
        $region86: #{vl_transformer_itm.14} parent=11 // pred_check_branch
          %788 = sbr.rel (%p786) target = $region88
        $region87: #{vl_transformer_itm.14} parent=11 // pred_region
          _
        $region88: #{vl_transformer_itm.14} parent=11 // pred_fallthru
          _
        // Predicated region
        $region89: #{vl_transformer_itm.14} parent=11 // pred_check
          %p789 = pneg %p565
        $region90: #{vl_transformer_itm.14} parent=11 // pred_check_branch
          %791 = sbr.rel (%p789) target = $region92
        $region91: #{vl_transformer_itm.14} parent=11 // pred_region
          _
        $region92: #{vl_transformer_itm.14} parent=11 // pred_fallthru
          _
        // Predicated region
        $region93: #{vl_transformer_itm.14} parent=11 // pred_check
          %p792 = pneg %p586
        $region94: #{vl_transformer_itm.14} parent=11 // pred_check_branch
          %794 = sbr.rel (%p792) target = $region96
        $region95: #{vl_transformer_itm.14} parent=11 // pred_region
          _
        $region96: #{vl_transformer_itm.14} parent=11 // pred_fallthru
          _
        // Predicated region
        $region97: #{vl_transformer_itm.14} parent=11 // pred_check
          %p795 = pneg %p607
        $region98: #{vl_transformer_itm.14} parent=11 // pred_check_branch
          %797 = sbr.rel (%p795) target = $region100
        $region99: #{vl_transformer_itm.14} parent=11 // pred_region
          _
        $region100: #{vl_transformer_itm.14} parent=11 // pred_fallthru
          _
        // Predicated region
        $region101: #{vl_transformer_itm.14} parent=11 // pred_check
          %p798 = pneg %p628
        $region102: #{vl_transformer_itm.14} parent=11 // pred_check_branch
          %800 = sbr.rel (%p798) target = $region104
        $region103: #{vl_transformer_itm.14} parent=11 // pred_region
          _
        $region104: #{vl_transformer_itm.14} parent=11 // pred_fallthru
          _
        // Predicated region
        $region105: #{vl_transformer_itm.14} parent=11 // pred_check
          %p801 = pneg %p649
        $region106: #{vl_transformer_itm.14} parent=11 // pred_check_branch
          %803 = sbr.rel (%p801) target = $region108
        $region107: #{vl_transformer_itm.14} parent=11 // pred_region
          _
        $region108: #{vl_transformer_itm.14} parent=11 // pred_fallthru
          _
        // Predicated region
        $region109: #{vl_transformer_itm.14} parent=11 // pred_check
          %p804 = pneg %p670
        $region110: #{vl_transformer_itm.14} parent=11 // pred_check_branch
          %806 = sbr.rel (%p804) target = $region112
        $region111: #{vl_transformer_itm.14} parent=11 // pred_region
          %808 = vsyncadd [#allocation3], 0
          %s810 = sshll.u32 %s55, 4
          %s811 = int_to_ptr.hbm [resolvable:$true] %s810
          %s812 = sshll.u32 [#allocation2], 4
          %s813 = int_to_ptr.vmem [resolvable:$true] %s812
          %815 = dma.hbm_to_vmem [thread:$0]  %s811, 16, %s813, [#allocation3]
        $region112: #{vl_transformer_itm.14} parent=11 // pred_fallthru
          _
        // Predicated region
        $region113: #{vl_transformer_itm.14} parent=11 // pred_check
          %p816 = pneg %p691
        $region114: #{vl_transformer_itm.14} parent=11 // pred_check_branch
          %818 = sbr.rel (%p816) target = $region116
        $region115: #{vl_transformer_itm.14} parent=11 // pred_region
          %820 = vsyncadd [#allocation5], 0
          %s822 = sshll.u32 %s57, 4
          %s823 = int_to_ptr.hbm [resolvable:$true] %s822
          %s824 = sshll.u32 [#allocation4], 4
          %s825 = int_to_ptr.vmem [resolvable:$true] %s824
          %827 = dma.hbm_to_vmem [thread:$0]  %s823, 16, %s825, [#allocation5]
        $region116: #{vl_transformer_itm.14} parent=11 // pred_fallthru
          _
      $region12: #{vl_transformer_itm.14} parent=5 // pred_fallthru
        _
      %p828 = scmp.lt.s32.totalorder %s67, 2
      // Predicated region
      $region117: #{vl_transformer_itm.14} parent=5 // pred_check
        %p829 = pneg %p828
      $region118: #{vl_transformer_itm.14} parent=5 // pred_check_branch
        %831 = sbr.rel (%p829) target = $region120
      $region119: #{vl_transformer_itm.14} parent=5 // pred_region
        // Predicated region
        $region121: #{vl_transformer_itm.14} parent=119 // pred_check
          %p832 = pneg %p87
        $region122: #{vl_transformer_itm.14} parent=119 // pred_check_branch
          %834 = sbr.rel (%p832) target = $region124
        $region123: #{vl_transformer_itm.14} parent=119 // pred_region
          %p835 = scmp.lt.s32.totalorder %s67, 1
          %s836 = scalar_select %p835, %s67, 1
          %s837 = smul.addr %s836, 8
          %s838 = scalar_lea.vmem %s1, %s837
        $region124: #{vl_transformer_itm.14} parent=119 // pred_fallthru
          _
        // Predicated region
        $region125: #{vl_transformer_itm.14} parent=119 // pred_check
          %p839 = pneg %p113
        $region126: #{vl_transformer_itm.14} parent=119 // pred_check_branch
          %841 = sbr.rel (%p839) target = $region128
        $region127: #{vl_transformer_itm.14} parent=119 // pred_region
          %p842 = scmp.lt.s32.totalorder %s67, 1
          %s843 = scalar_select %p842, %s67, 1
          %s844 = smul.addr %s843, 3
          %s845 = smul.addr %s844, 8
          %s846 = scalar_lea.vmem %s3, %s845
        $region128: #{vl_transformer_itm.14} parent=119 // pred_fallthru
          _
        // Predicated region
        $region129: #{vl_transformer_itm.14} parent=119 // pred_check
          %p847 = pneg %p139
        $region130: #{vl_transformer_itm.14} parent=119 // pred_check_branch
          %849 = sbr.rel (%p847) target = $region132
        $region131: #{vl_transformer_itm.14} parent=119 // pred_region
          %p850 = scmp.lt.s32.totalorder %s67, 1
          %s851 = scalar_select %p850, %s67, 1
          %s852 = scalar_lea.vmem %s5, %s851
        $region132: #{vl_transformer_itm.14} parent=119 // pred_fallthru
          _
      $region120: #{vl_transformer_itm.14} parent=5 // pred_fallthru
        _
      %p853 = scmp.le.s32.totalorder 1, %s67
      %p854 = scmp.lt.s32.totalorder %s67, 3
      %p855 = pnand %p853, %p854
      %p856 = pneg %p855
      // Predicated region
      $region133: #{vl_transformer_itm.14} parent=5 // pred_check
        _
      $region134: #{vl_transformer_itm.14} parent=5 // pred_check_branch
        %858 = sbr.rel (%p855) target = $region136
      $region135: #{vl_transformer_itm.14} parent=5 // pred_region
        %s859 = ssub.s32 %s67, 1
        // Predicated region
        $region137: #{vl_transformer_itm.14} parent=135 // pred_check
          %p860 = pneg %p670
        $region138: #{vl_transformer_itm.14} parent=135 // pred_check_branch
          %862 = sbr.rel (%p860) target = $region140
        $region139: #{vl_transformer_itm.14} parent=135 // pred_region
          %864 = dma.done [#allocation3], 16
        $region140: #{vl_transformer_itm.14} parent=135 // pred_fallthru
          _
        // Predicated region
        $region141: #{vl_transformer_itm.14} parent=135 // pred_check
          %p865 = pneg %p691
        $region142: #{vl_transformer_itm.14} parent=135 // pred_check_branch
          %867 = sbr.rel (%p865) target = $region144
        $region143: #{vl_transformer_itm.14} parent=135 // pred_region
          %869 = dma.done [#allocation5], 16
        $region144: #{vl_transformer_itm.14} parent=135 // pred_fallthru
          _
        %p870 = scmp.lt.s32.totalorder %s72, 1
        %s871 = scalar_select %p870, %s72, 1
        %s872 = smul.addr %s871, 8
        %s873 = scalar_lea.vmem %s1, %s872
        %p874 = pneg %p93
        %p875 = pneg %p90
        %p876 = scmp.lt.s32.totalorder %s72, 1
        %s877 = scalar_select %p876, %s72, 1
        %s878 = smul.addr %s877, 3
        %s879 = smul.addr %s878, 8
        %s880 = scalar_lea.vmem %s3, %s879
        %p881 = pneg %p119
        %p882 = pneg %p116
        %p883 = scmp.lt.s32.totalorder %s72, 1
        %s884 = scalar_select %p883, %s72, 1
        %s885 = scalar_lea.vmem %s5, %s884
        %p886 = pneg %p145
        %p887 = pneg %p142
        %p888 = pneg %p166
        %p889 = pneg %p163
        %p890 = pneg %p187
        %p891 = pneg %p184
        %p892 = pneg %p208
        %p893 = pneg %p205
        %p894 = pneg %p229
        %p895 = pneg %p226
        %p896 = pneg %p250
        %p897 = pneg %p247
        %p898 = pneg %p271
        %p899 = pneg %p268
        %p900 = pneg %p292
        %p901 = pneg %p289
        %p902 = pneg %p313
        %p903 = pneg %p310
        %p904 = pneg %p334
        %p905 = pneg %p331
        %p906 = pneg %p355
        %p907 = pneg %p352
        %p908 = pneg %p376
        %p909 = pneg %p373
        %p910 = pneg %p397
        %p911 = pneg %p394
        %p912 = pneg %p418
        %p913 = pneg %p415
        %p914 = pneg %p439
        %p915 = pneg %p436
        %p916 = pneg %p460
        %p917 = pneg %p457
        %p918 = pneg %p481
        %p919 = pneg %p478
        %p920 = pneg %p502
        %p921 = pneg %p499
        %p922 = pneg %p523
        %p923 = pneg %p520
        %p924 = pneg %p544
        %p925 = pneg %p541
        %p926 = pneg %p565
        %p927 = pneg %p562
        %p928 = pneg %p586
        %p929 = pneg %p583
        %p930 = pneg %p607
        %p931 = pneg %p604
        %p932 = pneg %p628
        %p933 = pneg %p625
        %p934 = pneg %p649
        %p935 = pneg %p646
        %p936 = pneg %p670
        %p937 = pneg %p667
        %p938 = pneg %p691
        %p939 = pneg %p688
        %p940 = pneg %p717
        %p941 = pneg %p714
        %p942 = scmp.lt.s32.totalorder %s72, 1
        %s943 = scalar_select %p942, %s72, 1
        %s944 = smul.addr %s943, 8
        %s945 = scalar_lea.vmem %s59, %s944
        %p946 = scmp.lt.s32.totalorder %s72, 1
        %s947 = scalar_select %p946, %s72, 1
        %s948 = smul.addr %s947, 8
        %s949 = scalar_lea.vmem %s1, %s948
        %p950 = scmp.lt.s32.totalorder %s72, 1
        %s951 = scalar_select %p950, %s72, 1
        %s952 = smul.addr %s951, 3
        %s953 = smul.addr %s952, 8
        %s954 = scalar_lea.vmem %s3, %s953
        %p955 = scmp.lt.s32.totalorder %s72, 1
        %s956 = scalar_select %p955, %s72, 1
        %s957 = scalar_lea.vmem %s5, %s956
        %p958 = scmp.lt.s32.totalorder %s72, 1
        %s959 = scalar_select %p958, %s72, 1
        %s960 = smul.addr %s959, 8
        %s961 = scalar_lea.vmem %s59, %s960
        %v962 = vld [vmem:[%s949] sm:$0xff]
        %v963 = vld [vmem:[%s954] sm:$0xff]
        %v964 = vld [vmem:[%s954 + $0x8] sm:$0xff]
        %v965 = vld [vmem:[%s954 + $0x10] sm:$0x1]
        %v966 = vld [vmem:[%s957] sm:$0x1]
        %v967 = vsub.f32 1.0, %v966
        %v968 = vmul.f32 %v967, -10000.0
        %v969 = vld [vmem:[%s7] sm:$0xff]
        %v970 = vld [vmem:[%s7 + $0x8] sm:$0xff]
        %v971 = vld [vmem:[%s7 + $0x10] sm:$0xff]
        %v972 = vld [vmem:[%s7 + $0x18] sm:$0xff]
        %v973 = vld [vmem:[%s7 + $0x20] sm:$0xff]
        %v974 = vld [vmem:[%s7 + $0x28] sm:$0xff]
        %v975 = vld [vmem:[%s7 + $0x30] sm:$0xff]
        %v976 = vld [vmem:[%s7 + $0x38] sm:$0xff]
        %v977 = vld [vmem:[%s9] sm:$0x1]
        %v979 = vperm.slane %v977, 0
        %vm981 = vcmask 523264
        %v983 = vsel %vm981, %v962, 0
        %985 = vmatpush.msra.mxu0 0.0
        %986 = vmatpush.msra.mxu0 0.0
        %987 = vmatpush.msra.mxu0 0.0
        %988 = vmatpush.msra.mxu0 0.0
        %989 = vmatpush.msra.mxu0 0.0
        %990 = vmatpush.msra.mxu0 0.0
        %991 = vmatpush.msra.mxu0 0.0
        %992 = vmatpush.msra.mxu0 0.0
        %993 = vmatpush.msra.mxu0 %v976
        %994 = vmatpush.msra.mxu0 %v975
        %995 = vmatpush.msra.mxu0 %v974
        %996 = vmatpush.msra.mxu0 %v973
        %997 = vmatpush.msra.mxu0 %v972
        %998 = vmatpush.msra.mxu0 %v971
        %999 = vmatpush.msra.mxu0 %v970
        %1000 = vmatpush.msra.mxu0 %v969
        %1001 = vmatmul.f32.gmra.mxu0 %v983
        %v1002 = vpop.f32.mrf.mxu0
        %v1003 = vadd.f32 %v979, %v1002
        %1004 = vdwg.mxu0
        %v1005 = vld [vmem:[%s11] sm:$0xff]
        %v1006 = vld [vmem:[%s11 + $0x8] sm:$0xff]
        %v1007 = vld [vmem:[%s11 + $0x10] sm:$0xff]
        %v1008 = vld [vmem:[%s11 + $0x18] sm:$0xff]
        %v1009 = vld [vmem:[%s11 + $0x20] sm:$0xff]
        %v1010 = vld [vmem:[%s11 + $0x28] sm:$0xff]
        %v1011 = vld [vmem:[%s11 + $0x30] sm:$0xff]
        %v1012 = vld [vmem:[%s11 + $0x38] sm:$0xff]
        %v1013 = vld [vmem:[%s13] sm:$0x1]
        %v1015 = vperm.slane %v1013, 0
        %1017 = vmatpush.msra.mxu0 0.0
        %1018 = vmatpush.msra.mxu0 0.0
        %1019 = vmatpush.msra.mxu0 0.0
        %1020 = vmatpush.msra.mxu0 0.0
        %1021 = vmatpush.msra.mxu0 0.0
        %1022 = vmatpush.msra.mxu0 0.0
        %1023 = vmatpush.msra.mxu0 0.0
        %1024 = vmatpush.msra.mxu0 0.0
        %1025 = vmatpush.msra.mxu0 %v1012
        %1026 = vmatpush.msra.mxu0 %v1011
        %1027 = vmatpush.msra.mxu0 %v1010
        %1028 = vmatpush.msra.mxu0 %v1009
        %1029 = vmatpush.msra.mxu0 %v1008
        %1030 = vmatpush.msra.mxu0 %v1007
        %1031 = vmatpush.msra.mxu0 %v1006
        %1032 = vmatpush.msra.mxu0 %v1005
        %1033 = vmatmul.f32.gmra.mxu0 %v983
        %v1034 = vpop.f32.mrf.mxu0
        %v1035 = vadd.f32 %v1015, %v1034
        %1036 = vdwg.mxu0
        %v1037 = vld [vmem:[%s15] sm:$0xff]
        %v1038 = vld [vmem:[%s15 + $0x8] sm:$0xff]
        %v1039 = vld [vmem:[%s15 + $0x10] sm:$0xff]
        %v1040 = vld [vmem:[%s15 + $0x18] sm:$0xff]
        %v1041 = vld [vmem:[%s15 + $0x20] sm:$0xff]
        %v1042 = vld [vmem:[%s15 + $0x28] sm:$0xff]
        %v1043 = vld [vmem:[%s15 + $0x30] sm:$0xff]
        %v1044 = vld [vmem:[%s15 + $0x38] sm:$0xff]
        %v1045 = vld [vmem:[%s17] sm:$0x1]
        %v1047 = vperm.slane %v1045, 0
        %1049 = vmatpush.msra.mxu0 0.0
        %1050 = vmatpush.msra.mxu0 0.0
        %1051 = vmatpush.msra.mxu0 0.0
        %1052 = vmatpush.msra.mxu0 0.0
        %1053 = vmatpush.msra.mxu0 0.0
        %1054 = vmatpush.msra.mxu0 0.0
        %1055 = vmatpush.msra.mxu0 0.0
        %1056 = vmatpush.msra.mxu0 0.0
        %1057 = vmatpush.msra.mxu0 %v1044
        %1058 = vmatpush.msra.mxu0 %v1043
        %1059 = vmatpush.msra.mxu0 %v1042
        %1060 = vmatpush.msra.mxu0 %v1041
        %1061 = vmatpush.msra.mxu0 %v1040
        %1062 = vmatpush.msra.mxu0 %v1039
        %1063 = vmatpush.msra.mxu0 %v1038
        %1064 = vmatpush.msra.mxu0 %v1037
        %1065 = vmatmul.f32.gmra.mxu0 %v983
        %v1066 = vpop.f32.mrf.mxu0
        %v1067 = vadd.f32 %v1047, %v1066
        %1068 = vdwg.mxu0
        %v1069 = vld [vmem:[%s19] sm:$0xff]
        %v1070 = vld [vmem:[%s19 + $0x8] sm:$0xff]
        %v1071 = vld [vmem:[%s19 + $0x10] sm:$0xff]
        %v1072 = vld [vmem:[%s19 + $0x18] sm:$0xff]
        %v1073 = vld [vmem:[%s19 + $0x20] sm:$0xff]
        %v1074 = vld [vmem:[%s19 + $0x28] sm:$0xff]
        %v1075 = vld [vmem:[%s19 + $0x30] sm:$0xff]
        %v1076 = vld [vmem:[%s19 + $0x38] sm:$0xff]
        %vm1077 = vcmask 130048
        %v1079 = vsel %vm1077, %v1003, 0
        %v1082 = vsel %vm1077, %v1035, 0
        %1084 = vmatpush.xpose.msra.mxu0 0.0
        %1085 = vmatpush.xpose.msra.mxu0 0.0
        %1086 = vmatpush.xpose.msra.mxu0 0.0
        %1087 = vmatpush.xpose.msra.mxu0 0.0
        %1088 = vmatpush.xpose.msra.mxu0 0.0
        %1089 = vmatpush.xpose.msra.mxu0 0.0
        %1090 = vmatpush.xpose.msra.mxu0 0.0
        %1091 = vmatpush.xpose.msra.mxu0 0.0
        %1092 = vmatpush.xpose.msra.mxu0 0.0
        %1093 = vmatpush.xpose.msra.mxu0 0.0
        %1094 = vmatpush.xpose.msra.mxu0 0.0
        %1095 = vmatpush.xpose.msra.mxu0 0.0
        %1096 = vmatpush.xpose.msra.mxu0 0.0
        %1097 = vmatpush.xpose.msra.mxu0 0.0
        %1098 = vmatpush.xpose.msra.mxu0 0.0
        %1099 = vmatpush.xpose.msra.mxu0 %v1082
        %1100 = vmatmul.f32.gmra.mxu0 %v1079
        %v1101 = vpop.f32.mrf.mxu0
        %v1102 = vadd.f32 0.0, %v1101
        %1103 = vdwg.mxu0
        %v1104 = vmul.f32 %v1102, 0.25
        %v1106 = vperm.slane %v968, 0
        %v1108 = vadd.f32 %v1104, %v1106
        %vm1109 = vcmask 64512
        %v1110 = vsel %vm1109, %v1108, -inf
        %1111 = vmax.xlane.f32.xlu0 %v1110
        %v1112 = vpop.xlane.xlu0 %1111
        %v1113 = vsub.f32 %v1108, %v1112
        %v1114 = vmul.f32 %v1113, 1.442695
        %v1115 = vpow.pop %v1114
        %v1116 = vsel %vm1109, %v1115, 0.0
        %1117 = vadd.xlane.f32.xlu0 %v1116
        %v1118 = vpop.xlane.xlu0 %1117
        %v1119 = vrcp.pop %v1118
        %v1120 = vmul.f32 %v1118, %v1119
        %v1121 = vsub.f32 1.0, %v1120
        %v1122 = vmul.f32 %v1119, %v1121
        %v1123 = vadd.f32 %v1119, %v1122
        %vm1124 = vweird.f32 %v1118
        %vm1125 = vweird.f32 %v1119
        %vm1126 = vmor %vm1124, %vm1125
        %v1127 = vsel %vm1126, %v1119, %v1123
        %v1128 = vand.u32 2147483647, %v1118
        %vm1129 = vcmp.eq.f32.partialorder %v1128, 8.507059e+37
        %v1130 = vand.u32 %v1118, 2147483648
        %v1131 = vor.u32 1.1754944e-38, %v1130
        %v1132 = vsel %vm1129, %v1131, %v1127
        %v1133 = vmul.f32 %v1115, %v1132
        %v1135 = vsel %vm1109, %v1133, 0
        %1137 = vmatpush.msra.mxu0 0.0
        %1138 = vmatpush.msra.mxu0 0.0
        %1139 = vmatpush.msra.mxu0 0.0
        %1140 = vmatpush.msra.mxu0 0.0
        %1141 = vmatpush.msra.mxu0 0.0
        %1142 = vmatpush.msra.mxu0 0.0
        %1143 = vmatpush.msra.mxu0 0.0
        %1144 = vmatpush.msra.mxu0 0.0
        %1145 = vmatpush.msra.mxu0 0.0
        %1146 = vmatpush.msra.mxu0 0.0
        %1147 = vmatpush.msra.mxu0 0.0
        %1148 = vmatpush.msra.mxu0 0.0
        %1149 = vmatpush.msra.mxu0 0.0
        %1150 = vmatpush.msra.mxu0 0.0
        %1151 = vmatpush.msra.mxu0 0.0
        %1152 = vmatpush.msra.mxu0 %v1067
        %1153 = vmatmul.f32.gmra.mxu0 %v1135
        %v1154 = vpop.f32.mrf.mxu0
        %v1155 = vadd.f32 0.0, %v1154
        %1156 = vdwg.mxu0
        %1157 = vrot.lane.b32.xlu0 %v1003, 112
        %v1158 = vpop.permute.xlu0 %1157
        %1159 = vrot.lane.b32.xlu0 %v1035, 112
        %v1160 = vpop.permute.xlu0 %1159
        %v1161 = vsel %vm1077, %v1158, 0
        %v1163 = vsel %vm1077, %v1160, 0
        %1165 = vmatpush.xpose.msra.mxu0 0.0
        %1166 = vmatpush.xpose.msra.mxu0 0.0
        %1167 = vmatpush.xpose.msra.mxu0 0.0
        %1168 = vmatpush.xpose.msra.mxu0 0.0
        %1169 = vmatpush.xpose.msra.mxu0 0.0
        %1170 = vmatpush.xpose.msra.mxu0 0.0
        %1171 = vmatpush.xpose.msra.mxu0 0.0
        %1172 = vmatpush.xpose.msra.mxu0 0.0
        %1173 = vmatpush.xpose.msra.mxu0 0.0
        %1174 = vmatpush.xpose.msra.mxu0 0.0
        %1175 = vmatpush.xpose.msra.mxu0 0.0
        %1176 = vmatpush.xpose.msra.mxu0 0.0
        %1177 = vmatpush.xpose.msra.mxu0 0.0
        %1178 = vmatpush.xpose.msra.mxu0 0.0
        %1179 = vmatpush.xpose.msra.mxu0 0.0
        %1180 = vmatpush.xpose.msra.mxu0 %v1163
        %1181 = vmatmul.f32.gmra.mxu0 %v1161
        %v1182 = vpop.f32.mrf.mxu0
        %v1183 = vadd.f32 0.0, %v1182
        %1184 = vdwg.mxu0
        %v1185 = vmul.f32 %v1183, 0.25
        %v1186 = vadd.f32 %v1185, %v1106
        %v1187 = vsel %vm1109, %v1186, -inf
        %1188 = vmax.xlane.f32.xlu0 %v1187
        %v1189 = vpop.xlane.xlu0 %1188
        %v1190 = vsub.f32 %v1186, %v1189
        %v1191 = vmul.f32 %v1190, 1.442695
        %v1192 = vpow.pop %v1191
        %v1193 = vsel %vm1109, %v1192, 0.0
        %1194 = vadd.xlane.f32.xlu0 %v1193
        %v1195 = vpop.xlane.xlu0 %1194
        %v1196 = vrcp.pop %v1195
        %v1197 = vmul.f32 %v1195, %v1196
        %v1198 = vsub.f32 1.0, %v1197
        %v1199 = vmul.f32 %v1196, %v1198
        %v1200 = vadd.f32 %v1196, %v1199
        %vm1201 = vweird.f32 %v1195
        %vm1202 = vweird.f32 %v1196
        %vm1203 = vmor %vm1201, %vm1202
        %v1204 = vsel %vm1203, %v1196, %v1200
        %v1205 = vand.u32 2147483647, %v1195
        %vm1206 = vcmp.eq.f32.partialorder %v1205, 8.507059e+37
        %v1207 = vand.u32 %v1195, 2147483648
        %v1208 = vor.u32 1.1754944e-38, %v1207
        %v1209 = vsel %vm1206, %v1208, %v1204
        %v1210 = vmul.f32 %v1192, %v1209
        %1212 = vrot.lane.b32.xlu0 %v1067, 112
        %v1213 = vpop.permute.xlu0 %1212
        %v1216 = vsel %vm1109, %v1210, 0
        %1218 = vmatpush.msra.mxu0 0.0
        %1219 = vmatpush.msra.mxu0 0.0
        %1220 = vmatpush.msra.mxu0 0.0
        %1221 = vmatpush.msra.mxu0 0.0
        %1222 = vmatpush.msra.mxu0 0.0
        %1223 = vmatpush.msra.mxu0 0.0
        %1224 = vmatpush.msra.mxu0 0.0
        %1225 = vmatpush.msra.mxu0 0.0
        %1226 = vmatpush.msra.mxu0 0.0
        %1227 = vmatpush.msra.mxu0 0.0
        %1228 = vmatpush.msra.mxu0 0.0
        %1229 = vmatpush.msra.mxu0 0.0
        %1230 = vmatpush.msra.mxu0 0.0
        %1231 = vmatpush.msra.mxu0 0.0
        %1232 = vmatpush.msra.mxu0 0.0
        %1233 = vmatpush.msra.mxu0 %v1213
        %1234 = vmatmul.f32.gmra.mxu0 %v1216
        %v1235 = vpop.f32.mrf.mxu0
        %v1236 = vadd.f32 0.0, %v1235
        %1237 = vdwg.mxu0
        %v1239 = vsel %vm1077, %v1236, 0
        %1241 = vmatpush.msra.mxu0 0.0
        %1242 = vmatpush.msra.mxu0 0.0
        %1243 = vmatpush.msra.mxu0 0.0
        %1244 = vmatpush.msra.mxu0 0.0
        %1245 = vmatpush.msra.mxu0 0.0
        %1246 = vmatpush.msra.mxu0 0.0
        %1247 = vmatpush.msra.mxu0 0.0
        %1248 = vmatpush.msra.mxu0 0.0
        %1249 = vmatpush.msra.mxu0 0.0
        %1250 = vmatpush.msra.mxu0 0.0
        %1251 = vmatpush.msra.mxu0 0.0
        %1252 = vmatpush.msra.mxu0 0.0
        %1253 = vmatpush.msra.mxu0 0.0
        %1254 = vmatpush.msra.mxu0 0.0
        %1255 = vmatpush.msra.mxu0 %v1072
        %1256 = vmatpush.msra.mxu0 %v1071
        %1257 = vmatmul.f32.gmra.mxu0 %v1239
        %v1258 = vpop.f32.mrf.mxu0
        %v1259 = vadd.f32 0.0, %v1258
        %1260 = vdwg.mxu0
        %v1262 = vsel %vm1077, %v1155, 0
        %1264 = vmatpush.msra.mxu0 0.0
        %1265 = vmatpush.msra.mxu0 0.0
        %1266 = vmatpush.msra.mxu0 0.0
        %1267 = vmatpush.msra.mxu0 0.0
        %1268 = vmatpush.msra.mxu0 0.0
        %1269 = vmatpush.msra.mxu0 0.0
        %1270 = vmatpush.msra.mxu0 0.0
        %1271 = vmatpush.msra.mxu0 0.0
        %1272 = vmatpush.msra.mxu0 0.0
        %1273 = vmatpush.msra.mxu0 0.0
        %1274 = vmatpush.msra.mxu0 0.0
        %1275 = vmatpush.msra.mxu0 0.0
        %1276 = vmatpush.msra.mxu0 0.0
        %1277 = vmatpush.msra.mxu0 0.0
        %1278 = vmatpush.msra.mxu0 %v1070
        %1279 = vmatpush.msra.mxu0 %v1069
        %1280 = vmatmul.f32.gmra.mxu0 %v1262
        %v1281 = vpop.f32.mrf.mxu0
        %v1282 = vadd.f32 %v1259, %v1281
        %1283 = vdwg.mxu0
        %1284 = vrot.lane.b32.xlu0 %v1003, 96
        %v1285 = vpop.permute.xlu0 %1284
        %1286 = vrot.lane.b32.xlu0 %v1035, 96
        %v1287 = vpop.permute.xlu0 %1286
        %v1288 = vsel %vm1077, %v1285, 0
        %v1290 = vsel %vm1077, %v1287, 0
        %1292 = vmatpush.xpose.msra.mxu0 0.0
        %1293 = vmatpush.xpose.msra.mxu0 0.0
        %1294 = vmatpush.xpose.msra.mxu0 0.0
        %1295 = vmatpush.xpose.msra.mxu0 0.0
        %1296 = vmatpush.xpose.msra.mxu0 0.0
        %1297 = vmatpush.xpose.msra.mxu0 0.0
        %1298 = vmatpush.xpose.msra.mxu0 0.0
        %1299 = vmatpush.xpose.msra.mxu0 0.0
        %1300 = vmatpush.xpose.msra.mxu0 0.0
        %1301 = vmatpush.xpose.msra.mxu0 0.0
        %1302 = vmatpush.xpose.msra.mxu0 0.0
        %1303 = vmatpush.xpose.msra.mxu0 0.0
        %1304 = vmatpush.xpose.msra.mxu0 0.0
        %1305 = vmatpush.xpose.msra.mxu0 0.0
        %1306 = vmatpush.xpose.msra.mxu0 0.0
        %1307 = vmatpush.xpose.msra.mxu0 %v1290
        %1308 = vmatmul.f32.gmra.mxu0 %v1288
        %v1309 = vpop.f32.mrf.mxu0
        %v1310 = vadd.f32 0.0, %v1309
        %1311 = vdwg.mxu0
        %v1312 = vmul.f32 %v1310, 0.25
        %v1313 = vadd.f32 %v1312, %v1106
        %v1314 = vsel %vm1109, %v1313, -inf
        %1315 = vmax.xlane.f32.xlu0 %v1314
        %v1316 = vpop.xlane.xlu0 %1315
        %v1317 = vsub.f32 %v1313, %v1316
        %v1318 = vmul.f32 %v1317, 1.442695
        %v1319 = vpow.pop %v1318
        %v1320 = vsel %vm1109, %v1319, 0.0
        %1321 = vadd.xlane.f32.xlu0 %v1320
        %v1322 = vpop.xlane.xlu0 %1321
        %v1323 = vrcp.pop %v1322
        %v1324 = vmul.f32 %v1322, %v1323
        %v1325 = vsub.f32 1.0, %v1324
        %v1326 = vmul.f32 %v1323, %v1325
        %v1327 = vadd.f32 %v1323, %v1326
        %vm1328 = vweird.f32 %v1322
        %vm1329 = vweird.f32 %v1323
        %vm1330 = vmor %vm1328, %vm1329
        %v1331 = vsel %vm1330, %v1323, %v1327
        %v1332 = vand.u32 2147483647, %v1322
        %vm1333 = vcmp.eq.f32.partialorder %v1332, 8.507059e+37
        %v1334 = vand.u32 %v1322, 2147483648
        %v1335 = vor.u32 1.1754944e-38, %v1334
        %v1336 = vsel %vm1333, %v1335, %v1331
        %v1337 = vmul.f32 %v1319, %v1336
        %1338 = vrot.lane.b32.xlu0 %v1067, 96
        %v1339 = vpop.permute.xlu0 %1338
        %v1342 = vsel %vm1109, %v1337, 0
        %1344 = vmatpush.msra.mxu0 0.0
        %1345 = vmatpush.msra.mxu0 0.0
        %1346 = vmatpush.msra.mxu0 0.0
        %1347 = vmatpush.msra.mxu0 0.0
        %1348 = vmatpush.msra.mxu0 0.0
        %1349 = vmatpush.msra.mxu0 0.0
        %1350 = vmatpush.msra.mxu0 0.0
        %1351 = vmatpush.msra.mxu0 0.0
        %1352 = vmatpush.msra.mxu0 0.0
        %1353 = vmatpush.msra.mxu0 0.0
        %1354 = vmatpush.msra.mxu0 0.0
        %1355 = vmatpush.msra.mxu0 0.0
        %1356 = vmatpush.msra.mxu0 0.0
        %1357 = vmatpush.msra.mxu0 0.0
        %1358 = vmatpush.msra.mxu0 0.0
        %1359 = vmatpush.msra.mxu0 %v1339
        %1360 = vmatmul.f32.gmra.mxu0 %v1342
        %v1361 = vpop.f32.mrf.mxu0
        %v1362 = vadd.f32 0.0, %v1361
        %1363 = vdwg.mxu0
        %v1365 = vsel %vm1077, %v1362, 0
        %1367 = vmatpush.msra.mxu0 0.0
        %1368 = vmatpush.msra.mxu0 0.0
        %1369 = vmatpush.msra.mxu0 0.0
        %1370 = vmatpush.msra.mxu0 0.0
        %1371 = vmatpush.msra.mxu0 0.0
        %1372 = vmatpush.msra.mxu0 0.0
        %1373 = vmatpush.msra.mxu0 0.0
        %1374 = vmatpush.msra.mxu0 0.0
        %1375 = vmatpush.msra.mxu0 0.0
        %1376 = vmatpush.msra.mxu0 0.0
        %1377 = vmatpush.msra.mxu0 0.0
        %1378 = vmatpush.msra.mxu0 0.0
        %1379 = vmatpush.msra.mxu0 0.0
        %1380 = vmatpush.msra.mxu0 0.0
        %1381 = vmatpush.msra.mxu0 %v1074
        %1382 = vmatpush.msra.mxu0 %v1073
        %1383 = vmatmul.f32.gmra.mxu0 %v1365
        %v1384 = vpop.f32.mrf.mxu0
        %v1385 = vadd.f32 0.0, %v1384
        %1386 = vdwg.mxu0
        %v1387 = vadd.f32 %v1282, %v1385
        %1388 = vrot.lane.b32.xlu0 %v1003, 80
        %v1389 = vpop.permute.xlu0 %1388
        %1390 = vrot.lane.b32.xlu0 %v1035, 80
        %v1391 = vpop.permute.xlu0 %1390
        %v1392 = vsel %vm1077, %v1389, 0
        %v1394 = vsel %vm1077, %v1391, 0
        %1396 = vmatpush.xpose.msra.mxu0 0.0
        %1397 = vmatpush.xpose.msra.mxu0 0.0
        %1398 = vmatpush.xpose.msra.mxu0 0.0
        %1399 = vmatpush.xpose.msra.mxu0 0.0
        %1400 = vmatpush.xpose.msra.mxu0 0.0
        %1401 = vmatpush.xpose.msra.mxu0 0.0
        %1402 = vmatpush.xpose.msra.mxu0 0.0
        %1403 = vmatpush.xpose.msra.mxu0 0.0
        %1404 = vmatpush.xpose.msra.mxu0 0.0
        %1405 = vmatpush.xpose.msra.mxu0 0.0
        %1406 = vmatpush.xpose.msra.mxu0 0.0
        %1407 = vmatpush.xpose.msra.mxu0 0.0
        %1408 = vmatpush.xpose.msra.mxu0 0.0
        %1409 = vmatpush.xpose.msra.mxu0 0.0
        %1410 = vmatpush.xpose.msra.mxu0 0.0
        %1411 = vmatpush.xpose.msra.mxu0 %v1394
        %1412 = vmatmul.f32.gmra.mxu0 %v1392
        %v1413 = vpop.f32.mrf.mxu0
        %v1414 = vadd.f32 0.0, %v1413
        %1415 = vdwg.mxu0
        %v1416 = vmul.f32 %v1414, 0.25
        %v1417 = vadd.f32 %v1416, %v1106
        %v1418 = vsel %vm1109, %v1417, -inf
        %1419 = vmax.xlane.f32.xlu0 %v1418
        %v1420 = vpop.xlane.xlu0 %1419
        %v1421 = vsub.f32 %v1417, %v1420
        %v1422 = vmul.f32 %v1421, 1.442695
        %v1423 = vpow.pop %v1422
        %v1424 = vsel %vm1109, %v1423, 0.0
        %1425 = vadd.xlane.f32.xlu0 %v1424
        %v1426 = vpop.xlane.xlu0 %1425
        %v1427 = vrcp.pop %v1426
        %v1428 = vmul.f32 %v1426, %v1427
        %v1429 = vsub.f32 1.0, %v1428
        %v1430 = vmul.f32 %v1427, %v1429
        %v1431 = vadd.f32 %v1427, %v1430
        %vm1432 = vweird.f32 %v1426
        %vm1433 = vweird.f32 %v1427
        %vm1434 = vmor %vm1432, %vm1433
        %v1435 = vsel %vm1434, %v1427, %v1431
        %v1436 = vand.u32 2147483647, %v1426
        %vm1437 = vcmp.eq.f32.partialorder %v1436, 8.507059e+37
        %v1438 = vand.u32 %v1426, 2147483648
        %v1439 = vor.u32 1.1754944e-38, %v1438
        %v1440 = vsel %vm1437, %v1439, %v1435
        %v1441 = vmul.f32 %v1423, %v1440
        %1442 = vrot.lane.b32.xlu0 %v1067, 80
        %v1443 = vpop.permute.xlu0 %1442
        %v1446 = vsel %vm1109, %v1441, 0
        %1448 = vmatpush.msra.mxu0 0.0
        %1449 = vmatpush.msra.mxu0 0.0
        %1450 = vmatpush.msra.mxu0 0.0
        %1451 = vmatpush.msra.mxu0 0.0
        %1452 = vmatpush.msra.mxu0 0.0
        %1453 = vmatpush.msra.mxu0 0.0
        %1454 = vmatpush.msra.mxu0 0.0
        %1455 = vmatpush.msra.mxu0 0.0
        %1456 = vmatpush.msra.mxu0 0.0
        %1457 = vmatpush.msra.mxu0 0.0
        %1458 = vmatpush.msra.mxu0 0.0
        %1459 = vmatpush.msra.mxu0 0.0
        %1460 = vmatpush.msra.mxu0 0.0
        %1461 = vmatpush.msra.mxu0 0.0
        %1462 = vmatpush.msra.mxu0 0.0
        %1463 = vmatpush.msra.mxu0 %v1443
        %1464 = vmatmul.f32.gmra.mxu0 %v1446
        %v1465 = vpop.f32.mrf.mxu0
        %v1466 = vadd.f32 0.0, %v1465
        %1467 = vdwg.mxu0
        %v1469 = vsel %vm1077, %v1466, 0
        %1471 = vmatpush.msra.mxu0 0.0
        %1472 = vmatpush.msra.mxu0 0.0
        %1473 = vmatpush.msra.mxu0 0.0
        %1474 = vmatpush.msra.mxu0 0.0
        %1475 = vmatpush.msra.mxu0 0.0
        %1476 = vmatpush.msra.mxu0 0.0
        %1477 = vmatpush.msra.mxu0 0.0
        %1478 = vmatpush.msra.mxu0 0.0
        %1479 = vmatpush.msra.mxu0 0.0
        %1480 = vmatpush.msra.mxu0 0.0
        %1481 = vmatpush.msra.mxu0 0.0
        %1482 = vmatpush.msra.mxu0 0.0
        %1483 = vmatpush.msra.mxu0 0.0
        %1484 = vmatpush.msra.mxu0 0.0
        %1485 = vmatpush.msra.mxu0 %v1076
        %1486 = vmatpush.msra.mxu0 %v1075
        %1487 = vmatmul.f32.gmra.mxu0 %v1469
        %v1488 = vpop.f32.mrf.mxu0
        %v1489 = vadd.f32 0.0, %v1488
        %1490 = vdwg.mxu0
        %v1491 = vadd.f32 %v1387, %v1489
        %v1492 = vld [vmem:[%s21] sm:$0x1]
        %v1494 = vperm.slane %v1492, 0
        %v1496 = vadd.f32 %v1491, %v1494
        %v1497 = vadd.f32 %v962, %v1496
        %v1498 = vld [vmem:[%s23] sm:$0x1]
        %v1499 = vld [vmem:[%s25] sm:$0x1]
        %v1500 = vsel %vm981, %v1497, 0.0
        %1501 = vadd.xlane.f32.xlu0 %v1500
        %v1502 = vpop.xlane.xlu0 %1501
        %v1503 = vrcp.pop 64.0
        %v1504 = vmul.f32 64.0, %v1503
        %v1505 = vsub.f32 1.0, %v1504
        %v1506 = vmul.f32 %v1503, %v1505
        %v1507 = vadd.f32 %v1503, %v1506
        %vm1508 = vweird.f32 %v1503
        %v1509 = vsel %vm1508, %v1503, %v1507
        %v1510 = vmul.f32 %v1502, %v1509
        %v1511 = vsub.f32 %v1497, %v1510
        %v1512 = vmul.f32 %v1511, %v1511
        %v1513 = vsel %vm981, %v1512, 0.0
        %1514 = vadd.xlane.f32.xlu0 %v1513
        %v1515 = vpop.xlane.xlu0 %1514
        %v1516 = vmul.f32 %v1515, %v1509
        %v1517 = vadd.f32 %v1516, 1e-12
        %v1518 = vrsqrt.pop %v1517
        %v1519 = vmul.f32 %v1518, %v1517
        %v1520 = vmul.f32 %v1519, %v1518
        %v1521 = vmul.f32 0.5, %v1520
        %v1522 = vsub.f32 1.5, %v1521
        %v1523 = vmul.f32 %v1518, %v1522
        %vm1524 = vweird.f32 %v1517
        %vm1525 = vweird.f32 %v1518
        %vm1526 = vmor %vm1524, %vm1525
        %v1527 = vsel %vm1526, %v1518, %v1523
        %v1528 = vmul.f32 %v1511, %v1527
        %v1530 = vperm.slane %v1498, 0
        %v1532 = vmul.f32 %v1528, %v1530
        %v1534 = vperm.slane %v1499, 0
        %v1536 = vadd.f32 %v1532, %v1534
        %v1537 = vld [vmem:[%s27] sm:$0xff]
        %v1538 = vld [vmem:[%s27 + $0x8] sm:$0xff]
        %v1539 = vld [vmem:[%s27 + $0x10] sm:$0xff]
        %v1540 = vld [vmem:[%s27 + $0x18] sm:$0xff]
        %v1541 = vld [vmem:[%s27 + $0x20] sm:$0xff]
        %v1542 = vld [vmem:[%s27 + $0x28] sm:$0xff]
        %v1543 = vld [vmem:[%s27 + $0x30] sm:$0xff]
        %v1544 = vld [vmem:[%s27 + $0x38] sm:$0xff]
        %v1545 = vld [vmem:[%s29] sm:$0x1]
        %v1547 = vperm.slane %v1545, 0
        %v1550 = vsel %vm981, %v1536, 0
        %1552 = vmatpush.msra.mxu0 0.0
        %1553 = vmatpush.msra.mxu0 0.0
        %1554 = vmatpush.msra.mxu0 0.0
        %1555 = vmatpush.msra.mxu0 0.0
        %1556 = vmatpush.msra.mxu0 0.0
        %1557 = vmatpush.msra.mxu0 0.0
        %1558 = vmatpush.msra.mxu0 0.0
        %1559 = vmatpush.msra.mxu0 0.0
        %1560 = vmatpush.msra.mxu0 %v1544
        %1561 = vmatpush.msra.mxu0 %v1543
        %1562 = vmatpush.msra.mxu0 %v1542
        %1563 = vmatpush.msra.mxu0 %v1541
        %1564 = vmatpush.msra.mxu0 %v1540
        %1565 = vmatpush.msra.mxu0 %v1539
        %1566 = vmatpush.msra.mxu0 %v1538
        %1567 = vmatpush.msra.mxu0 %v1537
        %1568 = vmatmul.f32.gmra.mxu0 %v1550
        %v1569 = vpop.f32.mrf.mxu0
        %v1570 = vadd.f32 %v1547, %v1569
        %1571 = vdwg.mxu0
        %v1572 = vld [vmem:[%s31] sm:$0xff]
        %v1573 = vld [vmem:[%s31 + $0x8] sm:$0xff]
        %v1574 = vld [vmem:[%s31 + $0x10] sm:$0xff]
        %v1575 = vld [vmem:[%s31 + $0x18] sm:$0xff]
        %v1576 = vld [vmem:[%s31 + $0x20] sm:$0xff]
        %v1577 = vld [vmem:[%s31 + $0x28] sm:$0xff]
        %v1578 = vld [vmem:[%s31 + $0x30] sm:$0xff]
        %v1579 = vld [vmem:[%s31 + $0x38] sm:$0xff]
        %v1580 = vld [vmem:[%s33] sm:$0x1]
        %v1582 = vperm.slane %v1580, 0
        %v1585 = vsel %vm981, %v963, 0
        %v1588 = vsel %vm981, %v964, 0
        %v1591 = vsel %vm981, %v965, 0
        %1593 = vmatpush.msra.mxu0 0.0
        %1594 = vmatpush.msra.mxu0 0.0
        %1595 = vmatpush.msra.mxu0 0.0
        %1596 = vmatpush.msra.mxu0 0.0
        %1597 = vmatpush.msra.mxu0 0.0
        %1598 = vmatpush.msra.mxu0 0.0
        %1599 = vmatpush.msra.mxu0 0.0
        %1600 = vmatpush.msra.mxu0 0.0
        %1601 = vmatpush.msra.mxu0 %v1579
        %1602 = vmatpush.msra.mxu0 %v1578
        %1603 = vmatpush.msra.mxu0 %v1577
        %1604 = vmatpush.msra.mxu0 %v1576
        %1605 = vmatpush.msra.mxu0 %v1575
        %1606 = vmatpush.msra.mxu0 %v1574
        %1607 = vmatpush.msra.mxu0 %v1573
        %1608 = vmatpush.msra.mxu0 %v1572
        %1609 = vmatmul.f32.gmra.mxu0 %v1585
        %v1610 = vpop.f32.mrf.mxu0
        %v1611 = vadd.f32 %v1582, %v1610
        %1612 = vmatmul.f32.gmra.mxu0 %v1588
        %v1613 = vpop.f32.mrf.mxu0
        %v1614 = vadd.f32 %v1582, %v1613
        %1615 = vmatmul.f32.gmra.mxu0 %v1591
        %v1616 = vpop.f32.mrf.mxu0
        %v1617 = vadd.f32 %v1582, %v1616
        %1618 = vdwg.mxu0
        %v1619 = vld [vmem:[%s35] sm:$0xff]
        %v1620 = vld [vmem:[%s35 + $0x8] sm:$0xff]
        %v1621 = vld [vmem:[%s35 + $0x10] sm:$0xff]
        %v1622 = vld [vmem:[%s35 + $0x18] sm:$0xff]
        %v1623 = vld [vmem:[%s35 + $0x20] sm:$0xff]
        %v1624 = vld [vmem:[%s35 + $0x28] sm:$0xff]
        %v1625 = vld [vmem:[%s35 + $0x30] sm:$0xff]
        %v1626 = vld [vmem:[%s35 + $0x38] sm:$0xff]
        %v1627 = vld [vmem:[%s37] sm:$0x1]
        %v1629 = vperm.slane %v1627, 0
        %1631 = vmatpush.msra.mxu0 0.0
        %1632 = vmatpush.msra.mxu0 0.0
        %1633 = vmatpush.msra.mxu0 0.0
        %1634 = vmatpush.msra.mxu0 0.0
        %1635 = vmatpush.msra.mxu0 0.0
        %1636 = vmatpush.msra.mxu0 0.0
        %1637 = vmatpush.msra.mxu0 0.0
        %1638 = vmatpush.msra.mxu0 0.0
        %1639 = vmatpush.msra.mxu0 %v1626
        %1640 = vmatpush.msra.mxu0 %v1625
        %1641 = vmatpush.msra.mxu0 %v1624
        %1642 = vmatpush.msra.mxu0 %v1623
        %1643 = vmatpush.msra.mxu0 %v1622
        %1644 = vmatpush.msra.mxu0 %v1621
        %1645 = vmatpush.msra.mxu0 %v1620
        %1646 = vmatpush.msra.mxu0 %v1619
        %1647 = vmatmul.f32.gmra.mxu0 %v1585
        %v1648 = vpop.f32.mrf.mxu0
        %v1649 = vadd.f32 %v1629, %v1648
        %1650 = vmatmul.f32.gmra.mxu0 %v1588
        %v1651 = vpop.f32.mrf.mxu0
        %v1652 = vadd.f32 %v1629, %v1651
        %1653 = vmatmul.f32.gmra.mxu0 %v1591
        %v1654 = vpop.f32.mrf.mxu0
        %v1655 = vadd.f32 %v1629, %v1654
        %1656 = vdwg.mxu0
        %v1657 = vld [vmem:[%s39] sm:$0xff]
        %v1658 = vld [vmem:[%s39 + $0x8] sm:$0xff]
        %v1659 = vld [vmem:[%s39 + $0x10] sm:$0xff]
        %v1660 = vld [vmem:[%s39 + $0x18] sm:$0xff]
        %v1661 = vld [vmem:[%s39 + $0x20] sm:$0xff]
        %v1662 = vld [vmem:[%s39 + $0x28] sm:$0xff]
        %v1663 = vld [vmem:[%s39 + $0x30] sm:$0xff]
        %v1664 = vld [vmem:[%s39 + $0x38] sm:$0xff]
        %v1666 = vsel %vm1077, %v1570, 0
        %v1669 = vsel %vm1077, %v1611, 0
        %v1672 = vsel %vm1077, %v1614, 0
        %v1675 = vsel %vm1077, %v1617, 0
        %1677 = vmatpush.xpose.msra.mxu0 0.0
        %1678 = vmatpush.xpose.msra.mxu0 0.0
        %1679 = vmatpush.xpose.msra.mxu0 0.0
        %1680 = vmatpush.xpose.msra.mxu0 0.0
        %1681 = vmatpush.xpose.msra.mxu0 0.0
        %1682 = vmatpush.xpose.msra.mxu0 0.0
        %1683 = vmatpush.xpose.msra.mxu0 0.0
        %1684 = vmatpush.xpose.msra.mxu0 0.0
        %1685 = vmatpush.xpose.msra.mxu0 0.0
        %1686 = vmatpush.xpose.msra.mxu0 0.0
        %1687 = vmatpush.xpose.msra.mxu0 0.0
        %1688 = vmatpush.xpose.msra.mxu0 0.0
        %1689 = vmatpush.xpose.msra.mxu0 0.0
        %1690 = vmatpush.xpose.msra.mxu0 %v1675
        %1691 = vmatpush.xpose.msra.mxu0 %v1672
        %1692 = vmatpush.xpose.msra.mxu0 %v1669
        %1693 = vmatmul.f32.gmra.mxu0 %v1666
        %v1694 = vpop.f32.mrf.mxu0
        %v1695 = vadd.f32 0.0, %v1694
        %1696 = vdwg.mxu0
        %v1697 = vmul.f32 %v1695, 0.25
        %vm1698 = vcmask 138240
        %v1699 = vsel %vm1698, %v1697, -inf
        %1700 = vmax.xlane.f32.xlu0 %v1699
        %v1701 = vpop.xlane.xlu0 %1700
        %v1702 = vsub.f32 %v1697, %v1701
        %v1703 = vmul.f32 %v1702, 1.442695
        %v1704 = vpow.pop %v1703
        %v1705 = vsel %vm1698, %v1704, 0.0
        %1706 = vadd.xlane.f32.xlu0 %v1705
        %v1707 = vpop.xlane.xlu0 %1706
        %v1708 = vrcp.pop %v1707
        %v1709 = vmul.f32 %v1707, %v1708
        %v1710 = vsub.f32 1.0, %v1709
        %v1711 = vmul.f32 %v1708, %v1710
        %v1712 = vadd.f32 %v1708, %v1711
        %vm1713 = vweird.f32 %v1707
        %vm1714 = vweird.f32 %v1708
        %vm1715 = vmor %vm1713, %vm1714
        %v1716 = vsel %vm1715, %v1708, %v1712
        %v1717 = vand.u32 2147483647, %v1707
        %vm1718 = vcmp.eq.f32.partialorder %v1717, 8.507059e+37
        %v1719 = vand.u32 %v1707, 2147483648
        %v1720 = vor.u32 1.1754944e-38, %v1719
        %v1721 = vsel %vm1718, %v1720, %v1716
        %v1722 = vmul.f32 %v1704, %v1721
        %v1724 = vsel %vm1698, %v1722, 0
        %vm1726 = vcmask 1040384
        %v1728 = vsel %vm1726, %v1655, 0
        %1730 = vmatpush.msra.mxu0 0.0
        %1731 = vmatpush.msra.mxu0 0.0
        %1732 = vmatpush.msra.mxu0 0.0
        %1733 = vmatpush.msra.mxu0 0.0
        %1734 = vmatpush.msra.mxu0 0.0
        %1735 = vmatpush.msra.mxu0 0.0
        %1736 = vmatpush.msra.mxu0 0.0
        %1737 = vmatpush.msra.mxu0 0.0
        %1738 = vmatpush.msra.mxu0 0.0
        %1739 = vmatpush.msra.mxu0 0.0
        %1740 = vmatpush.msra.mxu0 0.0
        %1741 = vmatpush.msra.mxu0 0.0
        %1742 = vmatpush.msra.mxu0 0.0
        %1743 = vmatpush.msra.mxu0 %v1728
        %1744 = vmatpush.msra.mxu0 %v1652
        %1745 = vmatpush.msra.mxu0 %v1649
        %1746 = vmatmul.f32.gmra.mxu0 %v1724
        %v1747 = vpop.f32.mrf.mxu0
        %v1748 = vadd.f32 0.0, %v1747
        %1749 = vdwg.mxu0
        %1750 = vrot.lane.b32.xlu0 %v1570, 112
        %v1751 = vpop.permute.xlu0 %1750
        %1752 = vrot.lane.b32.xlu0 %v1611, 112
        %v1753 = vpop.permute.xlu0 %1752
        %1754 = vrot.lane.b32.xlu0 %v1614, 112
        %v1755 = vpop.permute.xlu0 %1754
        %1756 = vrot.lane.b32.xlu0 %v1617, 112
        %v1757 = vpop.permute.xlu0 %1756
        %v1758 = vsel %vm1077, %v1751, 0
        %v1760 = vsel %vm1077, %v1753, 0
        %v1762 = vsel %vm1077, %v1755, 0
        %v1764 = vsel %vm1077, %v1757, 0
        %1766 = vmatpush.xpose.msra.mxu0 0.0
        %1767 = vmatpush.xpose.msra.mxu0 0.0
        %1768 = vmatpush.xpose.msra.mxu0 0.0
        %1769 = vmatpush.xpose.msra.mxu0 0.0
        %1770 = vmatpush.xpose.msra.mxu0 0.0
        %1771 = vmatpush.xpose.msra.mxu0 0.0
        %1772 = vmatpush.xpose.msra.mxu0 0.0
        %1773 = vmatpush.xpose.msra.mxu0 0.0
        %1774 = vmatpush.xpose.msra.mxu0 0.0
        %1775 = vmatpush.xpose.msra.mxu0 0.0
        %1776 = vmatpush.xpose.msra.mxu0 0.0
        %1777 = vmatpush.xpose.msra.mxu0 0.0
        %1778 = vmatpush.xpose.msra.mxu0 0.0
        %1779 = vmatpush.xpose.msra.mxu0 %v1764
        %1780 = vmatpush.xpose.msra.mxu0 %v1762
        %1781 = vmatpush.xpose.msra.mxu0 %v1760
        %1782 = vmatmul.f32.gmra.mxu0 %v1758
        %v1783 = vpop.f32.mrf.mxu0
        %v1784 = vadd.f32 0.0, %v1783
        %1785 = vdwg.mxu0
        %v1786 = vmul.f32 %v1784, 0.25
        %v1787 = vsel %vm1698, %v1786, -inf
        %1788 = vmax.xlane.f32.xlu0 %v1787
        %v1789 = vpop.xlane.xlu0 %1788
        %v1790 = vsub.f32 %v1786, %v1789
        %v1791 = vmul.f32 %v1790, 1.442695
        %v1792 = vpow.pop %v1791
        %v1793 = vsel %vm1698, %v1792, 0.0
        %1794 = vadd.xlane.f32.xlu0 %v1793
        %v1795 = vpop.xlane.xlu0 %1794
        %v1796 = vrcp.pop %v1795
        %v1797 = vmul.f32 %v1795, %v1796
        %v1798 = vsub.f32 1.0, %v1797
        %v1799 = vmul.f32 %v1796, %v1798
        %v1800 = vadd.f32 %v1796, %v1799
        %vm1801 = vweird.f32 %v1795
        %vm1802 = vweird.f32 %v1796
        %vm1803 = vmor %vm1801, %vm1802
        %v1804 = vsel %vm1803, %v1796, %v1800
        %v1805 = vand.u32 2147483647, %v1795
        %vm1806 = vcmp.eq.f32.partialorder %v1805, 8.507059e+37
        %v1807 = vand.u32 %v1795, 2147483648
        %v1808 = vor.u32 1.1754944e-38, %v1807
        %v1809 = vsel %vm1806, %v1808, %v1804
        %v1810 = vmul.f32 %v1792, %v1809
        %1813 = vrot.lane.b32.xlu0 %v1649, 112
        %v1814 = vpop.permute.xlu0 %1813
        %1815 = vrot.lane.b32.xlu0 %v1652, 112
        %v1816 = vpop.permute.xlu0 %1815
        %1817 = vrot.lane.b32.xlu0 %v1655, 112
        %v1818 = vpop.permute.xlu0 %1817
        %v1822 = vsel %vm1698, %v1810, 0
        %v1824 = vsel %vm1726, %v1818, 0
        %1826 = vmatpush.msra.mxu0 0.0
        %1827 = vmatpush.msra.mxu0 0.0
        %1828 = vmatpush.msra.mxu0 0.0
        %1829 = vmatpush.msra.mxu0 0.0
        %1830 = vmatpush.msra.mxu0 0.0
        %1831 = vmatpush.msra.mxu0 0.0
        %1832 = vmatpush.msra.mxu0 0.0
        %1833 = vmatpush.msra.mxu0 0.0
        %1834 = vmatpush.msra.mxu0 0.0
        %1835 = vmatpush.msra.mxu0 0.0
        %1836 = vmatpush.msra.mxu0 0.0
        %1837 = vmatpush.msra.mxu0 0.0
        %1838 = vmatpush.msra.mxu0 0.0
        %1839 = vmatpush.msra.mxu0 %v1824
        %1840 = vmatpush.msra.mxu0 %v1816
        %1841 = vmatpush.msra.mxu0 %v1814
        %1842 = vmatmul.f32.gmra.mxu0 %v1822
        %v1843 = vpop.f32.mrf.mxu0
        %v1844 = vadd.f32 0.0, %v1843
        %1845 = vdwg.mxu0
        %v1847 = vsel %vm1077, %v1844, 0
        %1849 = vmatpush.msra.mxu0 0.0
        %1850 = vmatpush.msra.mxu0 0.0
        %1851 = vmatpush.msra.mxu0 0.0
        %1852 = vmatpush.msra.mxu0 0.0
        %1853 = vmatpush.msra.mxu0 0.0
        %1854 = vmatpush.msra.mxu0 0.0
        %1855 = vmatpush.msra.mxu0 0.0
        %1856 = vmatpush.msra.mxu0 0.0
        %1857 = vmatpush.msra.mxu0 0.0
        %1858 = vmatpush.msra.mxu0 0.0
        %1859 = vmatpush.msra.mxu0 0.0
        %1860 = vmatpush.msra.mxu0 0.0
        %1861 = vmatpush.msra.mxu0 0.0
        %1862 = vmatpush.msra.mxu0 0.0
        %1863 = vmatpush.msra.mxu0 %v1660
        %1864 = vmatpush.msra.mxu0 %v1659
        %1865 = vmatmul.f32.gmra.mxu0 %v1847
        %v1866 = vpop.f32.mrf.mxu0
        %v1867 = vadd.f32 0.0, %v1866
        %1868 = vdwg.mxu0
        %v1870 = vsel %vm1077, %v1748, 0
        %1872 = vmatpush.msra.mxu0 0.0
        %1873 = vmatpush.msra.mxu0 0.0
        %1874 = vmatpush.msra.mxu0 0.0
        %1875 = vmatpush.msra.mxu0 0.0
        %1876 = vmatpush.msra.mxu0 0.0
        %1877 = vmatpush.msra.mxu0 0.0
        %1878 = vmatpush.msra.mxu0 0.0
        %1879 = vmatpush.msra.mxu0 0.0
        %1880 = vmatpush.msra.mxu0 0.0
        %1881 = vmatpush.msra.mxu0 0.0
        %1882 = vmatpush.msra.mxu0 0.0
        %1883 = vmatpush.msra.mxu0 0.0
        %1884 = vmatpush.msra.mxu0 0.0
        %1885 = vmatpush.msra.mxu0 0.0
        %1886 = vmatpush.msra.mxu0 %v1658
        %1887 = vmatpush.msra.mxu0 %v1657
        %1888 = vmatmul.f32.gmra.mxu0 %v1870
        %v1889 = vpop.f32.mrf.mxu0
        %v1890 = vadd.f32 %v1867, %v1889
        %1891 = vdwg.mxu0
        %1892 = vrot.lane.b32.xlu0 %v1570, 96
        %v1893 = vpop.permute.xlu0 %1892
        %1894 = vrot.lane.b32.xlu0 %v1611, 96
        %v1895 = vpop.permute.xlu0 %1894
        %1896 = vrot.lane.b32.xlu0 %v1614, 96
        %v1897 = vpop.permute.xlu0 %1896
        %1898 = vrot.lane.b32.xlu0 %v1617, 96
        %v1899 = vpop.permute.xlu0 %1898
        %v1900 = vsel %vm1077, %v1893, 0
        %v1902 = vsel %vm1077, %v1895, 0
        %v1904 = vsel %vm1077, %v1897, 0
        %v1906 = vsel %vm1077, %v1899, 0
        %1908 = vmatpush.xpose.msra.mxu0 0.0
        %1909 = vmatpush.xpose.msra.mxu0 0.0
        %1910 = vmatpush.xpose.msra.mxu0 0.0
        %1911 = vmatpush.xpose.msra.mxu0 0.0
        %1912 = vmatpush.xpose.msra.mxu0 0.0
        %1913 = vmatpush.xpose.msra.mxu0 0.0
        %1914 = vmatpush.xpose.msra.mxu0 0.0
        %1915 = vmatpush.xpose.msra.mxu0 0.0
        %1916 = vmatpush.xpose.msra.mxu0 0.0
        %1917 = vmatpush.xpose.msra.mxu0 0.0
        %1918 = vmatpush.xpose.msra.mxu0 0.0
        %1919 = vmatpush.xpose.msra.mxu0 0.0
        %1920 = vmatpush.xpose.msra.mxu0 0.0
        %1921 = vmatpush.xpose.msra.mxu0 %v1906
        %1922 = vmatpush.xpose.msra.mxu0 %v1904
        %1923 = vmatpush.xpose.msra.mxu0 %v1902
        %1924 = vmatmul.f32.gmra.mxu0 %v1900
        %v1925 = vpop.f32.mrf.mxu0
        %v1926 = vadd.f32 0.0, %v1925
        %1927 = vdwg.mxu0
        %v1928 = vmul.f32 %v1926, 0.25
        %v1929 = vsel %vm1698, %v1928, -inf
        %1930 = vmax.xlane.f32.xlu0 %v1929
        %v1931 = vpop.xlane.xlu0 %1930
        %v1932 = vsub.f32 %v1928, %v1931
        %v1933 = vmul.f32 %v1932, 1.442695
        %v1934 = vpow.pop %v1933
        %v1935 = vsel %vm1698, %v1934, 0.0
        %1936 = vadd.xlane.f32.xlu0 %v1935
        %v1937 = vpop.xlane.xlu0 %1936
        %v1938 = vrcp.pop %v1937
        %v1939 = vmul.f32 %v1937, %v1938
        %v1940 = vsub.f32 1.0, %v1939
        %v1941 = vmul.f32 %v1938, %v1940
        %v1942 = vadd.f32 %v1938, %v1941
        %vm1943 = vweird.f32 %v1937
        %vm1944 = vweird.f32 %v1938
        %vm1945 = vmor %vm1943, %vm1944
        %v1946 = vsel %vm1945, %v1938, %v1942
        %v1947 = vand.u32 2147483647, %v1937
        %vm1948 = vcmp.eq.f32.partialorder %v1947, 8.507059e+37
        %v1949 = vand.u32 %v1937, 2147483648
        %v1950 = vor.u32 1.1754944e-38, %v1949
        %v1951 = vsel %vm1948, %v1950, %v1946
        %v1952 = vmul.f32 %v1934, %v1951
        %1953 = vrot.lane.b32.xlu0 %v1649, 96
        %v1954 = vpop.permute.xlu0 %1953
        %1955 = vrot.lane.b32.xlu0 %v1652, 96
        %v1956 = vpop.permute.xlu0 %1955
        %1957 = vrot.lane.b32.xlu0 %v1655, 96
        %v1958 = vpop.permute.xlu0 %1957
        %v1962 = vsel %vm1698, %v1952, 0
        %v1964 = vsel %vm1726, %v1958, 0
        %1966 = vmatpush.msra.mxu0 0.0
        %1967 = vmatpush.msra.mxu0 0.0
        %1968 = vmatpush.msra.mxu0 0.0
        %1969 = vmatpush.msra.mxu0 0.0
        %1970 = vmatpush.msra.mxu0 0.0
        %1971 = vmatpush.msra.mxu0 0.0
        %1972 = vmatpush.msra.mxu0 0.0
        %1973 = vmatpush.msra.mxu0 0.0
        %1974 = vmatpush.msra.mxu0 0.0
        %1975 = vmatpush.msra.mxu0 0.0
        %1976 = vmatpush.msra.mxu0 0.0
        %1977 = vmatpush.msra.mxu0 0.0
        %1978 = vmatpush.msra.mxu0 0.0
        %1979 = vmatpush.msra.mxu0 %v1964
        %1980 = vmatpush.msra.mxu0 %v1956
        %1981 = vmatpush.msra.mxu0 %v1954
        %1982 = vmatmul.f32.gmra.mxu0 %v1962
        %v1983 = vpop.f32.mrf.mxu0
        %v1984 = vadd.f32 0.0, %v1983
        %1985 = vdwg.mxu0
        %v1987 = vsel %vm1077, %v1984, 0
        %1989 = vmatpush.msra.mxu0 0.0
        %1990 = vmatpush.msra.mxu0 0.0
        %1991 = vmatpush.msra.mxu0 0.0
        %1992 = vmatpush.msra.mxu0 0.0
        %1993 = vmatpush.msra.mxu0 0.0
        %1994 = vmatpush.msra.mxu0 0.0
        %1995 = vmatpush.msra.mxu0 0.0
        %1996 = vmatpush.msra.mxu0 0.0
        %1997 = vmatpush.msra.mxu0 0.0
        %1998 = vmatpush.msra.mxu0 0.0
        %1999 = vmatpush.msra.mxu0 0.0
        %2000 = vmatpush.msra.mxu0 0.0
        %2001 = vmatpush.msra.mxu0 0.0
        %2002 = vmatpush.msra.mxu0 0.0
        %2003 = vmatpush.msra.mxu0 %v1662
        %2004 = vmatpush.msra.mxu0 %v1661
        %2005 = vmatmul.f32.gmra.mxu0 %v1987
        %v2006 = vpop.f32.mrf.mxu0
        %v2007 = vadd.f32 0.0, %v2006
        %2008 = vdwg.mxu0
        %v2009 = vadd.f32 %v1890, %v2007
        %2010 = vrot.lane.b32.xlu0 %v1570, 80
        %v2011 = vpop.permute.xlu0 %2010
        %2012 = vrot.lane.b32.xlu0 %v1611, 80
        %v2013 = vpop.permute.xlu0 %2012
        %2014 = vrot.lane.b32.xlu0 %v1614, 80
        %v2015 = vpop.permute.xlu0 %2014
        %2016 = vrot.lane.b32.xlu0 %v1617, 80
        %v2017 = vpop.permute.xlu0 %2016
        %v2018 = vsel %vm1077, %v2011, 0
        %v2020 = vsel %vm1077, %v2013, 0
        %v2022 = vsel %vm1077, %v2015, 0
        %v2024 = vsel %vm1077, %v2017, 0
        %2026 = vmatpush.xpose.msra.mxu0 0.0
        %2027 = vmatpush.xpose.msra.mxu0 0.0
        %2028 = vmatpush.xpose.msra.mxu0 0.0
        %2029 = vmatpush.xpose.msra.mxu0 0.0
        %2030 = vmatpush.xpose.msra.mxu0 0.0
        %2031 = vmatpush.xpose.msra.mxu0 0.0
        %2032 = vmatpush.xpose.msra.mxu0 0.0
        %2033 = vmatpush.xpose.msra.mxu0 0.0
        %2034 = vmatpush.xpose.msra.mxu0 0.0
        %2035 = vmatpush.xpose.msra.mxu0 0.0
        %2036 = vmatpush.xpose.msra.mxu0 0.0
        %2037 = vmatpush.xpose.msra.mxu0 0.0
        %2038 = vmatpush.xpose.msra.mxu0 0.0
        %2039 = vmatpush.xpose.msra.mxu0 %v2024
        %2040 = vmatpush.xpose.msra.mxu0 %v2022
        %2041 = vmatpush.xpose.msra.mxu0 %v2020
        %2042 = vmatmul.f32.gmra.mxu0 %v2018
        %v2043 = vpop.f32.mrf.mxu0
        %v2044 = vadd.f32 0.0, %v2043
        %2045 = vdwg.mxu0
        %v2046 = vmul.f32 %v2044, 0.25
        %v2047 = vsel %vm1698, %v2046, -inf
        %2048 = vmax.xlane.f32.xlu0 %v2047
        %v2049 = vpop.xlane.xlu0 %2048
        %v2050 = vsub.f32 %v2046, %v2049
        %v2051 = vmul.f32 %v2050, 1.442695
        %v2052 = vpow.pop %v2051
        %v2053 = vsel %vm1698, %v2052, 0.0
        %2054 = vadd.xlane.f32.xlu0 %v2053
        %v2055 = vpop.xlane.xlu0 %2054
        %v2056 = vrcp.pop %v2055
        %v2057 = vmul.f32 %v2055, %v2056
        %v2058 = vsub.f32 1.0, %v2057
        %v2059 = vmul.f32 %v2056, %v2058
        %v2060 = vadd.f32 %v2056, %v2059
        %vm2061 = vweird.f32 %v2055
        %vm2062 = vweird.f32 %v2056
        %vm2063 = vmor %vm2061, %vm2062
        %v2064 = vsel %vm2063, %v2056, %v2060
        %v2065 = vand.u32 2147483647, %v2055
        %vm2066 = vcmp.eq.f32.partialorder %v2065, 8.507059e+37
        %v2067 = vand.u32 %v2055, 2147483648
        %v2068 = vor.u32 1.1754944e-38, %v2067
        %v2069 = vsel %vm2066, %v2068, %v2064
        %v2070 = vmul.f32 %v2052, %v2069
        %2071 = vrot.lane.b32.xlu0 %v1649, 80
        %v2072 = vpop.permute.xlu0 %2071
        %2073 = vrot.lane.b32.xlu0 %v1652, 80
        %v2074 = vpop.permute.xlu0 %2073
        %2075 = vrot.lane.b32.xlu0 %v1655, 80
        %v2076 = vpop.permute.xlu0 %2075
        %v2080 = vsel %vm1698, %v2070, 0
        %v2082 = vsel %vm1726, %v2076, 0
        %2084 = vmatpush.msra.mxu0 0.0
        %2085 = vmatpush.msra.mxu0 0.0
        %2086 = vmatpush.msra.mxu0 0.0
        %2087 = vmatpush.msra.mxu0 0.0
        %2088 = vmatpush.msra.mxu0 0.0
        %2089 = vmatpush.msra.mxu0 0.0
        %2090 = vmatpush.msra.mxu0 0.0
        %2091 = vmatpush.msra.mxu0 0.0
        %2092 = vmatpush.msra.mxu0 0.0
        %2093 = vmatpush.msra.mxu0 0.0
        %2094 = vmatpush.msra.mxu0 0.0
        %2095 = vmatpush.msra.mxu0 0.0
        %2096 = vmatpush.msra.mxu0 0.0
        %2097 = vmatpush.msra.mxu0 %v2082
        %2098 = vmatpush.msra.mxu0 %v2074
        %2099 = vmatpush.msra.mxu0 %v2072
        %2100 = vmatmul.f32.gmra.mxu0 %v2080
        %v2101 = vpop.f32.mrf.mxu0
        %v2102 = vadd.f32 0.0, %v2101
        %2103 = vdwg.mxu0
        %v2105 = vsel %vm1077, %v2102, 0
        %2107 = vmatpush.msra.mxu0 0.0
        %2108 = vmatpush.msra.mxu0 0.0
        %2109 = vmatpush.msra.mxu0 0.0
        %2110 = vmatpush.msra.mxu0 0.0
        %2111 = vmatpush.msra.mxu0 0.0
        %2112 = vmatpush.msra.mxu0 0.0
        %2113 = vmatpush.msra.mxu0 0.0
        %2114 = vmatpush.msra.mxu0 0.0
        %2115 = vmatpush.msra.mxu0 0.0
        %2116 = vmatpush.msra.mxu0 0.0
        %2117 = vmatpush.msra.mxu0 0.0
        %2118 = vmatpush.msra.mxu0 0.0
        %2119 = vmatpush.msra.mxu0 0.0
        %2120 = vmatpush.msra.mxu0 0.0
        %2121 = vmatpush.msra.mxu0 %v1664
        %2122 = vmatpush.msra.mxu0 %v1663
        %2123 = vmatmul.f32.gmra.mxu0 %v2105
        %v2124 = vpop.f32.mrf.mxu0
        %v2125 = vadd.f32 0.0, %v2124
        %2126 = vdwg.mxu0
        %v2127 = vadd.f32 %v2009, %v2125
        %v2128 = vld [vmem:[%s41] sm:$0x1]
        %v2130 = vperm.slane %v2128, 0
        %v2132 = vadd.f32 %v2127, %v2130
        %v2133 = vadd.f32 %v1536, %v2132
        %v2134 = vld [vmem:[%s43] sm:$0x1]
        %v2135 = vld [vmem:[%s45] sm:$0x1]
        %v2136 = vsel %vm981, %v2133, 0.0
        %2137 = vadd.xlane.f32.xlu0 %v2136
        %v2138 = vpop.xlane.xlu0 %2137
        %v2139 = vmul.f32 %v2138, %v1509
        %v2140 = vsub.f32 %v2133, %v2139
        %v2141 = vmul.f32 %v2140, %v2140
        %v2142 = vsel %vm981, %v2141, 0.0
        %2143 = vadd.xlane.f32.xlu0 %v2142
        %v2144 = vpop.xlane.xlu0 %2143
        %v2145 = vmul.f32 %v2144, %v1509
        %v2146 = vadd.f32 %v2145, 1e-12
        %v2147 = vrsqrt.pop %v2146
        %v2148 = vmul.f32 %v2147, %v2146
        %v2149 = vmul.f32 %v2148, %v2147
        %v2150 = vmul.f32 0.5, %v2149
        %v2151 = vsub.f32 1.5, %v2150
        %v2152 = vmul.f32 %v2147, %v2151
        %vm2153 = vweird.f32 %v2146
        %vm2154 = vweird.f32 %v2147
        %vm2155 = vmor %vm2153, %vm2154
        %v2156 = vsel %vm2155, %v2147, %v2152
        %v2157 = vmul.f32 %v2140, %v2156
        %v2159 = vperm.slane %v2134, 0
        %v2161 = vmul.f32 %v2157, %v2159
        %v2163 = vperm.slane %v2135, 0
        %v2165 = vadd.f32 %v2161, %v2163
        %v2166 = vld [vmem:[%s47] sm:$0xff]
        %v2167 = vld [vmem:[%s47 + $0x8] sm:$0xff]
        %v2168 = vld [vmem:[%s47 + $0x10] sm:$0xff]
        %v2169 = vld [vmem:[%s47 + $0x18] sm:$0xff]
        %v2170 = vld [vmem:[%s47 + $0x20] sm:$0xff]
        %v2171 = vld [vmem:[%s47 + $0x28] sm:$0xff]
        %v2172 = vld [vmem:[%s47 + $0x30] sm:$0xff]
        %v2173 = vld [vmem:[%s47 + $0x38] sm:$0xff]
        %v2174 = vld [vmem:[%s47 + $0x40] sm:$0xff]
        %v2175 = vld [vmem:[%s47 + $0x48] sm:$0xff]
        %v2176 = vld [vmem:[%s47 + $0x50] sm:$0xff]
        %v2177 = vld [vmem:[%s47 + $0x58] sm:$0xff]
        %v2178 = vld [vmem:[%s47 + $0x60] sm:$0xff]
        %v2179 = vld [vmem:[%s47 + $0x68] sm:$0xff]
        %v2180 = vld [vmem:[%s47 + $0x70] sm:$0xff]
        %v2181 = vld [vmem:[%s47 + $0x78] sm:$0xff]
        %v2182 = vld [vmem:[%s49] sm:$0x3]
        %v2184 = vperm.slane %v2182, 0
        %v2185 = vperm.slane %v2182, 1
        %v2189 = vsel %vm981, %v2165, 0
        %2191 = vmatpush.msra.mxu0 0.0
        %2192 = vmatpush.msra.mxu0 0.0
        %2193 = vmatpush.msra.mxu0 0.0
        %2194 = vmatpush.msra.mxu0 0.0
        %2195 = vmatpush.msra.mxu0 0.0
        %2196 = vmatpush.msra.mxu0 0.0
        %2197 = vmatpush.msra.mxu0 0.0
        %2198 = vmatpush.msra.mxu0 0.0
        %2199 = vmatpush.msra.mxu0 %v2180
        %2200 = vmatpush.msra.mxu0 %v2178
        %2201 = vmatpush.msra.mxu0 %v2176
        %2202 = vmatpush.msra.mxu0 %v2174
        %2203 = vmatpush.msra.mxu0 %v2172
        %2204 = vmatpush.msra.mxu0 %v2170
        %2205 = vmatpush.msra.mxu0 %v2168
        %2206 = vmatpush.msra.mxu0 %v2166
        %2207 = vmatmul.f32.gmra.mxu0 %v2189
        %v2208 = vpop.f32.mrf.mxu0
        %v2209 = vadd.f32 %v2184, %v2208
        %2210 = vdwg.mxu0
        %2211 = vmatpush.msra.mxu0 0.0
        %2212 = vmatpush.msra.mxu0 0.0
        %2213 = vmatpush.msra.mxu0 0.0
        %2214 = vmatpush.msra.mxu0 0.0
        %2215 = vmatpush.msra.mxu0 0.0
        %2216 = vmatpush.msra.mxu0 0.0
        %2217 = vmatpush.msra.mxu0 0.0
        %2218 = vmatpush.msra.mxu0 0.0
        %2219 = vmatpush.msra.mxu0 %v2181
        %2220 = vmatpush.msra.mxu0 %v2179
        %2221 = vmatpush.msra.mxu0 %v2177
        %2222 = vmatpush.msra.mxu0 %v2175
        %2223 = vmatpush.msra.mxu0 %v2173
        %2224 = vmatpush.msra.mxu0 %v2171
        %2225 = vmatpush.msra.mxu0 %v2169
        %2226 = vmatpush.msra.mxu0 %v2167
        %2227 = vmatmul.f32.gmra.mxu0 %v2189
        %v2228 = vpop.f32.mrf.mxu0
        %v2229 = vadd.f32 %v2185, %v2228
        %2230 = vdwg.mxu0
        %v2231 = vmul.f32 %v2209, 0.5
        %v2232 = vmul.f32 %v2229, 0.5
        %v2233 = vmul.f32 %v2209, 0.70710677
        %v2234 = vmul.f32 %v2229, 0.70710677
        %v2235 = vmul.f32 %v2233, %v2233
        %v2236 = vmin.f32 16.0, %v2235
        %v2237 = vmul.f32 %v2236, 2.1237322e-06
        %v2238 = vadd.f32 %v2237, 0.00028619796
        %v2239 = vmul.f32 %v2236, %v2238
        %v2240 = vadd.f32 %v2239, 0.0036580483
        %v2241 = vmul.f32 %v2236, %v2240
        %v2242 = vadd.f32 %v2241, 0.05243302
        %v2243 = vmul.f32 %v2236, %v2242
        %v2244 = vadd.f32 %v2243, 0.18741608
        %v2245 = vmul.f32 %v2236, %v2244
        %v2246 = vadd.f32 %v2245, 1.1283791
        %v2247 = vmul.f32 %v2233, %v2246
        %v2248 = vmul.f32 %v2236, 3.8918573e-05
        %v2249 = vadd.f32 %v2248, 0.001143296
        %v2250 = vmul.f32 %v2236, %v2249
        %v2251 = vadd.f32 %v2250, 0.014752088
        %v2252 = vmul.f32 %v2236, %v2251
        %v2253 = vadd.f32 %v2252, 0.112945676
        %v2254 = vmul.f32 %v2236, %v2253
        %v2255 = vadd.f32 %v2254, 0.4994258
        %v2256 = vmul.f32 %v2236, %v2255
        %v2257 = vadd.f32 %v2256, 1.0
        %v2258 = vrcp.pop %v2257
        %v2259 = vmul.f32 %v2257, %v2258
        %v2260 = vsub.f32 1.0, %v2259
        %v2261 = vmul.f32 %v2258, %v2260
        %v2262 = vadd.f32 %v2258, %v2261
        %vm2263 = vweird.f32 %v2257
        %vm2264 = vweird.f32 %v2258
        %vm2265 = vmor %vm2263, %vm2264
        %v2266 = vsel %vm2265, %v2258, %v2262
        %v2267 = vand.u32 2147483647, %v2257
        %vm2268 = vcmp.eq.f32.partialorder %v2267, 8.507059e+37
        %v2269 = vand.u32 %v2257, 2147483648
        %v2270 = vor.u32 1.1754944e-38, %v2269
        %v2271 = vsel %vm2268, %v2270, %v2266
        %v2272 = vmul.f32 %v2247, %v2271
        %v2273 = vmin.f32 %v2272, 1.0
        %v2274 = vmax.f32 %v2273, -1.0
        %v2275 = vmul.f32 %v2234, %v2234
        %v2276 = vmin.f32 16.0, %v2275
        %v2277 = vmul.f32 %v2276, 2.1237322e-06
        %v2278 = vadd.f32 %v2277, 0.00028619796
        %v2279 = vmul.f32 %v2276, %v2278
        %v2280 = vadd.f32 %v2279, 0.0036580483
        %v2281 = vmul.f32 %v2276, %v2280
        %v2282 = vadd.f32 %v2281, 0.05243302
        %v2283 = vmul.f32 %v2276, %v2282
        %v2284 = vadd.f32 %v2283, 0.18741608
        %v2285 = vmul.f32 %v2276, %v2284
        %v2286 = vadd.f32 %v2285, 1.1283791
        %v2287 = vmul.f32 %v2234, %v2286
        %v2288 = vmul.f32 %v2276, 3.8918573e-05
        %v2289 = vadd.f32 %v2288, 0.001143296
        %v2290 = vmul.f32 %v2276, %v2289
        %v2291 = vadd.f32 %v2290, 0.014752088
        %v2292 = vmul.f32 %v2276, %v2291
        %v2293 = vadd.f32 %v2292, 0.112945676
        %v2294 = vmul.f32 %v2276, %v2293
        %v2295 = vadd.f32 %v2294, 0.4994258
        %v2296 = vmul.f32 %v2276, %v2295
        %v2297 = vadd.f32 %v2296, 1.0
        %v2298 = vrcp.pop %v2297
        %v2299 = vmul.f32 %v2297, %v2298
        %v2300 = vsub.f32 1.0, %v2299
        %v2301 = vmul.f32 %v2298, %v2300
        %v2302 = vadd.f32 %v2298, %v2301
        %vm2303 = vweird.f32 %v2297
        %vm2304 = vweird.f32 %v2298
        %vm2305 = vmor %vm2303, %vm2304
        %v2306 = vsel %vm2305, %v2298, %v2302
        %v2307 = vand.u32 2147483647, %v2297
        %vm2308 = vcmp.eq.f32.partialorder %v2307, 8.507059e+37
        %v2309 = vand.u32 %v2297, 2147483648
        %v2310 = vor.u32 1.1754944e-38, %v2309
        %v2311 = vsel %vm2308, %v2310, %v2306
        %v2312 = vmul.f32 %v2287, %v2311
        %v2313 = vmin.f32 %v2312, 1.0
        %v2314 = vmax.f32 %v2313, -1.0
        %v2315 = vadd.f32 %v2274, 1.0
        %v2316 = vadd.f32 %v2314, 1.0
        %v2317 = vmul.f32 %v2231, %v2315
        %v2318 = vmul.f32 %v2232, %v2316
        %v2319 = vld [vmem:[%s51] sm:$0xff]
        %v2320 = vld [vmem:[%s51 + $0x8] sm:$0xff]
        %v2321 = vld [vmem:[%s51 + $0x10] sm:$0xff]
        %v2322 = vld [vmem:[%s51 + $0x18] sm:$0xff]
        %v2323 = vld [vmem:[%s51 + $0x20] sm:$0xff]
        %v2324 = vld [vmem:[%s51 + $0x28] sm:$0xff]
        %v2325 = vld [vmem:[%s51 + $0x30] sm:$0xff]
        %v2326 = vld [vmem:[%s51 + $0x38] sm:$0xff]
        %v2327 = vld [vmem:[%s51 + $0x40] sm:$0xff]
        %v2328 = vld [vmem:[%s51 + $0x48] sm:$0xff]
        %v2329 = vld [vmem:[%s51 + $0x50] sm:$0xff]
        %v2330 = vld [vmem:[%s51 + $0x58] sm:$0xff]
        %v2331 = vld [vmem:[%s51 + $0x60] sm:$0xff]
        %v2332 = vld [vmem:[%s51 + $0x68] sm:$0xff]
        %v2333 = vld [vmem:[%s51 + $0x70] sm:$0xff]
        %v2334 = vld [vmem:[%s51 + $0x78] sm:$0xff]
        %v2335 = vld [vmem:[%s51 + $0x80] sm:$0xff]
        %v2336 = vld [vmem:[%s51 + $0x88] sm:$0xff]
        %v2337 = vld [vmem:[%s51 + $0x90] sm:$0xff]
        %v2338 = vld [vmem:[%s51 + $0x98] sm:$0xff]
        %v2339 = vld [vmem:[%s51 + $0xa0] sm:$0xff]
        %v2340 = vld [vmem:[%s51 + $0xa8] sm:$0xff]
        %v2341 = vld [vmem:[%s51 + $0xb0] sm:$0xff]
        %v2342 = vld [vmem:[%s51 + $0xb8] sm:$0xff]
        %v2343 = vld [vmem:[%s51 + $0xc0] sm:$0xff]
        %v2344 = vld [vmem:[%s51 + $0xc8] sm:$0xff]
        %v2345 = vld [vmem:[%s51 + $0xd0] sm:$0xff]
        %v2346 = vld [vmem:[%s51 + $0xd8] sm:$0xff]
        %v2347 = vld [vmem:[%s51 + $0xe0] sm:$0xff]
        %v2348 = vld [vmem:[%s51 + $0xe8] sm:$0xff]
        %v2349 = vld [vmem:[%s51 + $0xf0] sm:$0xff]
        %v2350 = vld [vmem:[%s51 + $0xf8] sm:$0xff]
        %v2351 = vld [vmem:[%s53] sm:$0x1]
        %v2353 = vperm.slane %v2351, 0
        %2355 = vmatpush.msra.mxu0 %v2334
        %2356 = vmatpush.msra.mxu0 %v2333
        %2357 = vmatpush.msra.mxu0 %v2332
        %2358 = vmatpush.msra.mxu0 %v2331
        %2359 = vmatpush.msra.mxu0 %v2330
        %2360 = vmatpush.msra.mxu0 %v2329
        %2361 = vmatpush.msra.mxu0 %v2328
        %2362 = vmatpush.msra.mxu0 %v2327
        %2363 = vmatpush.msra.mxu0 %v2326
        %2364 = vmatpush.msra.mxu0 %v2325
        %2365 = vmatpush.msra.mxu0 %v2324
        %2366 = vmatpush.msra.mxu0 %v2323
        %2367 = vmatpush.msra.mxu0 %v2322
        %2368 = vmatpush.msra.mxu0 %v2321
        %2369 = vmatpush.msra.mxu0 %v2320
        %2370 = vmatpush.msra.mxu0 %v2319
        %2371 = vmatmul.f32.gmra.mxu0 %v2317
        %v2372 = vpop.f32.mrf.mxu0
        %v2373 = vadd.f32 %v2353, %v2372
        %2374 = vdwg.mxu0
        %2375 = vmatpush.msra.mxu0 %v2350
        %2376 = vmatpush.msra.mxu0 %v2349
        %2377 = vmatpush.msra.mxu0 %v2348
        %2378 = vmatpush.msra.mxu0 %v2347
        %2379 = vmatpush.msra.mxu0 %v2346
        %2380 = vmatpush.msra.mxu0 %v2345
        %2381 = vmatpush.msra.mxu0 %v2344
        %2382 = vmatpush.msra.mxu0 %v2343
        %2383 = vmatpush.msra.mxu0 %v2342
        %2384 = vmatpush.msra.mxu0 %v2341
        %2385 = vmatpush.msra.mxu0 %v2340
        %2386 = vmatpush.msra.mxu0 %v2339
        %2387 = vmatpush.msra.mxu0 %v2338
        %2388 = vmatpush.msra.mxu0 %v2337
        %2389 = vmatpush.msra.mxu0 %v2336
        %2390 = vmatpush.msra.mxu0 %v2335
        %2391 = vmatmul.f32.gmra.mxu0 %v2318
        %v2392 = vpop.f32.mrf.mxu0
        %v2393 = vadd.f32 %v2373, %v2392
        %2394 = vdwg.mxu0
        %v2395 = vadd.f32 %v2165, %v2393
        %v2396 = vld [vmem:[#allocation2] sm:$0x1]
        %v2397 = vld [vmem:[#allocation4] sm:$0x1]
        %v2398 = vsel %vm981, %v2395, 0.0
        %2399 = vadd.xlane.f32.xlu0 %v2398
        %v2400 = vpop.xlane.xlu0 %2399
        %v2401 = vmul.f32 %v2400, %v1509
        %v2402 = vsub.f32 %v2395, %v2401
        %v2403 = vmul.f32 %v2402, %v2402
        %v2404 = vsel %vm981, %v2403, 0.0
        %2405 = vadd.xlane.f32.xlu0 %v2404
        %v2406 = vpop.xlane.xlu0 %2405
        %v2407 = vmul.f32 %v2406, %v1509
        %v2408 = vadd.f32 %v2407, 1e-12
        %v2409 = vrsqrt.pop %v2408
        %v2410 = vmul.f32 %v2409, %v2408
        %v2411 = vmul.f32 %v2410, %v2409
        %v2412 = vmul.f32 0.5, %v2411
        %v2413 = vsub.f32 1.5, %v2412
        %v2414 = vmul.f32 %v2409, %v2413
        %vm2415 = vweird.f32 %v2408
        %vm2416 = vweird.f32 %v2409
        %vm2417 = vmor %vm2415, %vm2416
        %v2418 = vsel %vm2417, %v2409, %v2414
        %v2419 = vmul.f32 %v2402, %v2418
        %v2421 = vperm.slane %v2396, 0
        %v2423 = vmul.f32 %v2419, %v2421
        %v2425 = vperm.slane %v2397, 0
        %v2427 = vadd.f32 %v2423, %v2425
        %2428 = vst.msk [vmem:[%s961] sm:$0xff] %vm981, %v2427
        %p2429 = scmp.lt.s32.totalorder %s72, 1
        %s2430 = scalar_select %p2429, %s72, 1
        %s2431 = smul.addr %s2430, 8
        %s2432 = scalar_lea.vmem %s59, %s2431
        // Predicated region
        $region145: #{vl_transformer_itm.14} parent=135 // pred_check
          %p2433 = pneg %p714
        $region146: #{vl_transformer_itm.14} parent=135 // pred_check_branch
          %2435 = sbr.rel (%p2433) target = $region148
        $region147: #{vl_transformer_itm.14} parent=135 // pred_region
          _
        $region148: #{vl_transformer_itm.14} parent=135 // pred_fallthru
          _
      $region136: #{vl_transformer_itm.14} parent=5 // pred_fallthru
        _
      %p2436 = scmp.le.s32.totalorder 2, %s67
      // Predicated region
      $region149: #{vl_transformer_itm.14} parent=5 // pred_check
        %p2437 = pneg %p2436
      $region150: #{vl_transformer_itm.14} parent=5 // pred_check_branch
        %2439 = sbr.rel (%p2437) target = $region152
      $region151: #{vl_transformer_itm.14} parent=5 // pred_region
        %s2440 = ssub.s32 %s67, 2
        // Predicated region
        $region153: #{vl_transformer_itm.14} parent=151 // pred_check
          %p2441 = pneg %p720
        $region154: #{vl_transformer_itm.14} parent=151 // pred_check_branch
          %2443 = sbr.rel (%p2441) target = $region156
        $region155: #{vl_transformer_itm.14} parent=151 // pred_region
          %p2444 = scmp.lt.s32.totalorder %s73, 1
          %s2445 = scalar_select %p2444, %s73, 1
          %s2446 = smul.addr %s2445, 8
          %s2447 = scalar_lea.vmem %s59, %s2446
        $region156: #{vl_transformer_itm.14} parent=151 // pred_fallthru
          _
      $region152: #{vl_transformer_itm.14} parent=5 // pred_fallthru
        _
    $region6: #{vl_transformer_itm.14} parent=1 // loop_footer
      %s71 = sadd.s32 1, %s67
    $region7: #{vl_transformer_itm.14} parent=1 // loop_footer_branch
      %66 = sbr.rel target = $region3
    $region8: #{vl_transformer_itm.14} parent=1 // loop_exit
      _
    %2448 = vsyncpa [#allocation3], 1
    %s2449 = scalar_lea.sflag [#allocation3], 1
    %2450 = vsyncpa %s2449, 1
    %2451 = vsyncpa [#allocation5], 1

</llo_original>
